<compile_context>
chip_gen: v6e
topology: v6e:2x2x1
jax: 0.10.0
libtpu: 0.0.40
codegen_flags: <defaults>
</compile_context>

<pallas_src>
import math
import functools

import jax
import jax.numpy as jnp
from jax.experimental import pallas as pl
from jax.experimental.pallas import tpu as pltpu


# --------------------------- fused decoder kernel ---------------------------

def _decoder_stack_kernel(
    emb_ref, sin_ref,
    sa_wqkv_ref, sa_bqkv_ref, sa_wo_ref, sa_bo_ref,
    ca_wqkv_ref, ca_bqkv_ref, ca_wo_ref, ca_bo_ref,
    ff_w1_ref, ff_b1_ref, ff_w2_ref, ff_b2_ref,
    ln_ref, head_w_ref, head_b_ref,
    out_ref,
    x_scr, mem_scr,
    *, num_heads, eps, ff_chunks):
  layer = pl.program_id(0)
  last_layer = pl.num_programs(0) - 1
  M, D = x_scr.shape
  B, S, _ = emb_ref.shape
  H = num_heads
  hd = D // H
  scale = 1.0 / math.sqrt(hd)

  def mm(a, w):
    # a: (M, K) f32 activation, w: (K, N) bf16 streamed weight.
    # Cast the (small) activation to bf16 at the MXU input; accumulate f32.
    return jax.lax.dot_general(a.astype(w.dtype), w,
                               (((1,), (0,)), ((), ())),
                               preferred_element_type=jnp.float32)

  def mm_f32(a, w):
    return jax.lax.dot_general(a, w, (((1,), (0,)), ((), ())),
                               preferred_element_type=jnp.float32)

  def layer_norm(y, g, b):
    mu = jnp.mean(y, axis=-1, keepdims=True)
    var = jnp.mean((y - mu) ** 2, axis=-1, keepdims=True)
    return (y - mu) * jax.lax.rsqrt(var + eps) * g + b

  # memory = rope(embeddings): computed once (layer 0) into resident scratch.
  @pl.when(layer == 0)
  def _():
    mem = (emb_ref[...].astype(jnp.float32)
           * sin_ref[...][None, :, :]).reshape(M, D)
    mem_scr[...] = mem
    x_scr[...] = mem

  def mha(xq2d, xkv3, wqkv_ref, bqkv_ref, wo_ref, bo_ref, causal):
    # xq2d: (M, D) f32; xkv3: (B, S, D) f32
    # wqkv_ref: (1, 3, D, D) bf16 (K,N per proj); bqkv_ref: (1, 3, D) f32
    # wo_ref:   (1, D, D)   bf16 (K,N);           bo_ref:   (1, 1, D) f32
    bqkv = bqkv_ref[0]                                    # (3, D) f32
    xkv2d = xkv3.reshape(M, D)
    q = (mm(xq2d, wqkv_ref[0, 0]) + bqkv[0:1]) * scale
    k = mm(xkv2d, wqkv_ref[0, 1]) + bqkv[1:2]
    v = mm(xkv2d, wqkv_ref[0, 2]) + bqkv[2:3]
    q = q.reshape(B, S, D)
    k = k.reshape(B, S, D)
    v = v.reshape(B, S, D)
    if causal:
      row = jax.lax.broadcasted_iota(jnp.int32, (S, S), 0)
      col = jax.lax.broadcasted_iota(jnp.int32, (S, S), 1)
      bias = jnp.where(col > row, jnp.float32(-1e30), jnp.float32(0.0))
    # TODO(synk): heads as a static loop of rank-3 (batch=B) einsums; a single
    # (B,H)-batched dot_general is not a supported single Mosaic matmul.
    heads = []
    for h in range(H):
      sl = slice(h * hd, (h + 1) * hd)
      s = jnp.einsum('bqe,bke->bqk', q[:, :, sl], k[:, :, sl],
                     preferred_element_type=jnp.float32)
      if causal:
        s = s + bias[None, :, :]
      s = s - jnp.max(s, axis=-1, keepdims=True)
      p = jnp.exp(s)
      p = p / jnp.sum(p, axis=-1, keepdims=True)          # exact divide
      heads.append(jnp.einsum('bqk,bke->bqe', p, v[:, :, sl],
                              preferred_element_type=jnp.float32))
    o = jnp.concatenate(heads, axis=-1).reshape(M, D)
    return mm(o, wo_ref[0]) + bo_ref[0]

  x = x_scr[...]                        # (M, D), resident across layers
  mem3 = mem_scr[...].reshape(B, S, D)  # cross-attention K/V source
  ln = ln_ref[0]                        # (6, D): [g1, b1, g2, b2, g3, b3]

  # --- self-attention block (post-norm, PyTorch norm_first=False) ---
  sa = mha(x, x.reshape(B, S, D),
           sa_wqkv_ref, sa_bqkv_ref, sa_wo_ref, sa_bo_ref, causal=True)
  x1 = layer_norm(x + sa, ln[0:1], ln[1:2])

  # --- cross-attention block (memory = rope(embeddings), no mask) ---
  ca = mha(x1, mem3,
           ca_wqkv_ref, ca_bqkv_ref, ca_wo_ref, ca_bo_ref, causal=False)
  x2 = layer_norm(x1 + ca, ln[2:3], ln[3:4])

  # --- feed-forward block (ReLU), dff chunked to bound live f32 vregs ---
  dff = ff_w1_ref.shape[-1]
  ch = dff // ff_chunks
  acc = jnp.zeros((M, D), jnp.float32)
  for c in range(ff_chunks):            # static, short; per-chunk weight load
    c0, c1 = c * ch, (c + 1) * ch
    h1c = jnp.maximum(mm(x2, ff_w1_ref[0, :, c0:c1]) + ff_b1_ref[0, :, c0:c1],
                      0.0)                                # (M, ch) f32
    acc = acc + mm(h1c, ff_w2_ref[0, c0:c1, :])           # (M, D) f32
  x3 = layer_norm(x2 + acc + ff_b2_ref[0], ln[4:5], ln[5:6])

  x_scr[...] = x3

  # Regression head: only on the final layer (output block index constant, so
  # the (S, P) lane-dense output buffer stays resident until final writeback).
  @pl.when(layer == last_layer)
  def _():
    # literal transformer_output[:, -1, :] == last *batch* element -> (S, D)
    seq_rep = x3[(B - 1) * S:, :]
    out = mm_f32(seq_rep, head_w_ref[...]) + head_b_ref[...]
    out_ref[...] = out.astype(out_ref.dtype)


# --------------------------- wrapper -----------------------------------------

def protein_function_predictor(embeddings, params, *, label_dim, num_heads=8):
  S, B, D = embeddings.shape
  L = params["sa_wqkv"].shape[0]
  dff = params["ff_w1"].shape[-1]
  P = params["head_w"].shape[-1]         # lane-padded head width (mult of 128)

  # batch-first (B, S, D) inside the kernel keeps D lane-dense; this single
  # transpose is the only wrapper-side data op.
  emb_bf = jnp.transpose(embeddings, (1, 0, 2))

  # rope sinusoid table (intended semantics: (seq_len, embedding_dim) table).
  pos = jnp.arange(S, dtype=jnp.float32)[:, None]
  div = jnp.exp(jnp.arange(0, D, 2, dtype=jnp.float32) * (-math.log(10000.0) / D))
  ang = pos * div
  sinusoids = (jnp.zeros((S, D), jnp.float32)
               .at[:, 0::2].set(jnp.sin(ang))
               .at[:, 1::2].set(jnp.cos(ang)))

  def per_layer(shape):                  # per-layer streamed weight block
    nd = len(shape)
    return pl.BlockSpec((1,) + tuple(shape),
                        lambda l, _nd=nd: (l,) + (0,) * _nd)

  def resident(shape):                   # constant block index -> stays in VMEM
    nd = len(shape)
    return pl.BlockSpec(tuple(shape), lambda l, _nd=nd: (0,) * _nd)

  grid_spec = pltpu.PrefetchScalarGridSpec(
      num_scalar_prefetch=0,
      grid=(L,),
      in_specs=[
          resident((B, S, D)),                          # embeddings (batch-first)
          resident((S, D)),                             # sinusoid table
          per_layer((3, D, D)), per_layer((3, D)),      # self-attn qkv (K,N)
          per_layer((D, D)), per_layer((1, D)),         # self-attn out proj
          per_layer((3, D, D)), per_layer((3, D)),      # cross-attn qkv (K,N)
          per_layer((D, D)), per_layer((1, D)),         # cross-attn out proj
          per_layer((D, dff)), per_layer((1, dff)),     # ffn linear1 (K,N)
          per_layer((dff, D)), per_layer((1, D)),       # ffn linear2 (K,N)
          per_layer((6, D)),                            # layer norms g/b x3
          resident((D, P)), resident((1, P)),           # regression head (K,N)
      ],
      out_specs=pl.BlockSpec((S, P), lambda l: (0, 0)),
      scratch_shapes=[pltpu.VMEM((B * S, D), jnp.float32),   # activations
                      pltpu.VMEM((B * S, D), jnp.float32)],  # rope(memory)
  )

  out = pl.pallas_call(
      functools.partial(_decoder_stack_kernel,
                        num_heads=num_heads, eps=1e-5, ff_chunks=2),
      out_shape=jax.ShapeDtypeStruct((S, P), jnp.float32),
      grid_spec=grid_spec,
      compiler_params=pltpu.CompilerParams(
          dimension_semantics=("arbitrary",)),          # layers are sequential
  )(emb_bf, sinusoids,
    params["sa_wqkv"], params["sa_bqkv"], params["sa_wo"], params["sa_bo"],
    params["ca_wqkv"], params["ca_bqkv"], params["ca_wo"], params["ca_bo"],
    params["ff_w1"], params["ff_b1"], params["ff_w2"], params["ff_b2"],
    params["ln"], params["head_w"], params["head_b"])

  predicted_label_embedding = out[:, :label_dim]
  predicted_start = out[:, label_dim]
  predicted_end = out[:, label_dim + 1]
  return predicted_label_embedding, predicted_start, predicted_end


# --------------------------- deterministic params ---------------------------

def init_params(key, D, label_dim, num_labels, num_layers=6, dff=2048):
  keys = iter(jax.random.split(key, num_layers * 6 + 2))

  def dense(shape, scale=0.02):
    return scale * jax.random.normal(next(keys), shape, jnp.float32)

  def stack_bf16(mats):
    # Weights streamed per layer in bf16 (cast here, never in-kernel).
    return jnp.stack(mats).astype(jnp.bfloat16)

  sa_wqkv, sa_wo, ca_wqkv, ca_wo, ff_w1, ff_w2 = [], [], [], [], [], []
  for _ in range(num_layers):
    # All matmul weights are stored in MXU-native (K=in, N=out) layout
    # (i.e. W_torch.T); qkv is split per projection on a leading dim of 3.
    sa_wqkv.append(dense((3, D, D)))
    sa_wo.append(dense((D, D)))
    ca_wqkv.append(dense((3, D, D)))
    ca_wo.append(dense((D, D)))
    ff_w1.append(dense((D, dff)))
    ff_w2.append(dense((dff, D)))

  L = num_layers
  # layer-norm params rows: [g1, b1, g2, b2, g3, b3]
  ln = jnp.tile(
      jnp.array([1.0, 0.0, 1.0, 0.0, 1.0, 0.0], jnp.float32)[None, :, None],
      (L, 1, D))

  n_out = label_dim + 2
  P = ((max(n_out, 128) + 127) // 128) * 128            # lane-dense padded width
  head_w = jnp.zeros((D, P), jnp.float32).at[:, :n_out].set(dense((D, n_out)))
  head_b = jnp.zeros((1, P), jnp.float32)

  return dict(
      sa_wqkv=stack_bf16(sa_wqkv), sa_bqkv=jnp.zeros((L, 3, D), jnp.float32),
      sa_wo=stack_bf16(sa_wo), sa_bo=jnp.zeros((L, 1, D), jnp.float32),
      ca_wqkv=stack_bf16(ca_wqkv), ca_bqkv=jnp.zeros((L, 3, D), jnp.float32),
      ca_wo=stack_bf16(ca_wo), ca_bo=jnp.zeros((L, 1, D), jnp.float32),
      ff_w1=stack_bf16(ff_w1), ff_b1=jnp.zeros((L, 1, dff), jnp.float32),
      ff_w2=stack_bf16(ff_w2), ff_b2=jnp.zeros((L, 1, D), jnp.float32),
      ln=ln,
      head_w=head_w, head_b=head_b,
      label_embeddings=dense((num_labels, label_dim)),   # unused in forward()
  )


# --------------------------- main --------------------------------------------

if __name__ == "__main__":
  S, B, D = 8, 2, 64          # seq_len, batch, embedding_dim (D % nhead == 0)
  NUM_HEADS = 8
  LABEL_DIM = 16
  NUM_LABELS = 10
  NUM_LAYERS = 6
  DFF = 2048                  # PyTorch TransformerDecoderLayer default

  pkey, xkey = jax.random.split(jax.random.PRNGKey(0))
  params = init_params(pkey, D, LABEL_DIM, NUM_LABELS,
                       num_layers=NUM_LAYERS, dff=DFF)
  embeddings = jax.random.normal(xkey, (S, B, D), jnp.float32)

  fwd = jax.jit(functools.partial(protein_function_predictor,
                                  label_dim=LABEL_DIM, num_heads=NUM_HEADS))
  pred_label_emb, pred_start, pred_end = jax.block_until_ready(
      fwd(embeddings, params))

  assert pred_label_emb.shape == (S, LABEL_DIM)
  assert pred_start.shape == (S,)
  assert pred_end.shape == (S,)
  assert bool(jnp.all(jnp.isfinite(pred_label_emb)))
  assert bool(jnp.all(jnp.isfinite(pred_start)))
  assert bool(jnp.all(jnp.isfinite(pred_end)))
  print("KERNEL_OK")
</pallas_src>

<mosaic_0001>
module attributes {stable_mosaic.version = 11 : i64} {
  func.func @_decoder_stack_kernel(%arg0: i32, %arg1: memref<2x8x64xf32, #tpu.memory_space<vmem>>, %arg2: memref<8x64xf32, #tpu.memory_space<vmem>>, %arg3: memref<1x3x64x64xbf16, #tpu.memory_space<vmem>>, %arg4: memref<1x3x64xf32, #tpu.memory_space<vmem>>, %arg5: memref<1x64x64xbf16, #tpu.memory_space<vmem>>, %arg6: memref<1x1x64xf32, #tpu.memory_space<vmem>>, %arg7: memref<1x3x64x64xbf16, #tpu.memory_space<vmem>>, %arg8: memref<1x3x64xf32, #tpu.memory_space<vmem>>, %arg9: memref<1x64x64xbf16, #tpu.memory_space<vmem>>, %arg10: memref<1x1x64xf32, #tpu.memory_space<vmem>>, %arg11: memref<1x64x2048xbf16, #tpu.memory_space<vmem>>, %arg12: memref<1x1x2048xf32, #tpu.memory_space<vmem>>, %arg13: memref<1x2048x64xbf16, #tpu.memory_space<vmem>>, %arg14: memref<1x1x64xf32, #tpu.memory_space<vmem>>, %arg15: memref<1x6x64xf32, #tpu.memory_space<vmem>>, %arg16: memref<64x128xf32, #tpu.memory_space<vmem>>, %arg17: memref<1x128xf32, #tpu.memory_space<vmem>>, %arg18: memref<8x128xf32, #tpu.memory_space<vmem>>, %arg19: memref<16x64xf32, #tpu.memory_space<vmem>>, %arg20: memref<16x64xf32, #tpu.memory_space<vmem>>) attributes {dimension_semantics = [#tpu.dimension_semantics<arbitrary>], iteration_bounds = array<i64: 6>, scalar_prefetch = 0 : i64, scratch_operands = 2 : i64, tpu.core_type = #tpu.core_type<tc>, window_params = [{pipeline_mode = #tpu.pipeline_mode<synchronous>, transform_indices = @transform_0, window_bounds = array<i64: 2, 8, 64>}, {pipeline_mode = #tpu.pipeline_mode<synchronous>, transform_indices = @transform_1, window_bounds = array<i64: 8, 64>}, {transform_indices = @transform_2, window_bounds = array<i64: 1, 3, 64, 64>}, {transform_indices = @transform_3, window_bounds = array<i64: 1, 3, 64>}, {transform_indices = @transform_4, window_bounds = array<i64: 1, 64, 64>}, {transform_indices = @transform_5, window_bounds = array<i64: 1, 1, 64>}, {transform_indices = @transform_6, window_bounds = array<i64: 1, 3, 64, 64>}, {transform_indices = @transform_7, window_bounds = array<i64: 1, 3, 64>}, {transform_indices = @transform_8, window_bounds = array<i64: 1, 64, 64>}, {transform_indices = @transform_9, window_bounds = array<i64: 1, 1, 64>}, {transform_indices = @transform_10, window_bounds = array<i64: 1, 64, 2048>}, {transform_indices = @transform_11, window_bounds = array<i64: 1, 1, 2048>}, {transform_indices = @transform_12, window_bounds = array<i64: 1, 2048, 64>}, {transform_indices = @transform_13, window_bounds = array<i64: 1, 1, 64>}, {transform_indices = @transform_14, window_bounds = array<i64: 1, 6, 64>}, {pipeline_mode = #tpu.pipeline_mode<synchronous>, transform_indices = @transform_15, window_bounds = array<i64: 64, 128>}, {pipeline_mode = #tpu.pipeline_mode<synchronous>, transform_indices = @transform_16, window_bounds = array<i64: 1, 128>}, {pipeline_mode = #tpu.pipeline_mode<synchronous>, transform_indices = @transform_17, window_bounds = array<i64: 8, 128>}]} {
    %c0_i32 = arith.constant 0 : i32
    %0 = arith.cmpi eq, %arg0, %c0_i32 : i32
    %1 = arith.extui %0 : i1 to i32
    %c0_i32_0 = arith.constant 0 : i32
    %2 = arith.cmpi ne, %1, %c0_i32_0 : i32
    scf.if %2 {
      %c0_167 = arith.constant 0 : index
      %c0_168 = arith.constant 0 : index
      %c0_169 = arith.constant 0 : index
      %455 = vector.load %arg1[%c0_167, %c0_168, %c0_169] : memref<2x8x64xf32, #tpu.memory_space<vmem>>, vector<2x8x64xf32>
      %c0_170 = arith.constant 0 : index
      %c0_171 = arith.constant 0 : index
      %456 = vector.load %arg2[%c0_170, %c0_171] : memref<8x64xf32, #tpu.memory_space<vmem>>, vector<8x64xf32>
      %457 = vector.shape_cast %456 : vector<8x64xf32> to vector<1x8x64xf32>
      %458 = vector.broadcast %457 : vector<1x8x64xf32> to vector<2x8x64xf32>
      %459 = arith.mulf %455, %458 : vector<2x8x64xf32>
      %460 = vector.shape_cast %459 : vector<2x8x64xf32> to vector<16x64xf32>
      %c0_172 = arith.constant 0 : index
      %c0_173 = arith.constant 0 : index
      %461 = vector.load %arg20[%c0_172, %c0_173] : memref<16x64xf32, #tpu.memory_space<vmem>>, vector<16x64xf32>
      tpu.vector_store %arg20[%c0_172, %c0_173], %460 {strides = array<i32>} : memref<16x64xf32, #tpu.memory_space<vmem>>, vector<16x64xf32>,
      %c0_174 = arith.constant 0 : index
      %c0_175 = arith.constant 0 : index
      %462 = vector.load %arg19[%c0_174, %c0_175] : memref<16x64xf32, #tpu.memory_space<vmem>>, vector<16x64xf32>
      tpu.vector_store %arg19[%c0_174, %c0_175], %460 {strides = array<i32>} : memref<16x64xf32, #tpu.memory_space<vmem>>, vector<16x64xf32>,
    } else {
    }
    %c0 = arith.constant 0 : index
    %c0_1 = arith.constant 0 : index
    %3 = vector.load %arg19[%c0, %c0_1] : memref<16x64xf32, #tpu.memory_space<vmem>>, vector<16x64xf32>
    %c0_2 = arith.constant 0 : index
    %c0_3 = arith.constant 0 : index
    %4 = vector.load %arg20[%c0_2, %c0_3] : memref<16x64xf32, #tpu.memory_space<vmem>>, vector<16x64xf32>
    %5 = vector.shape_cast %4 : vector<16x64xf32> to vector<2x8x64xf32>
    %c0_4 = arith.constant 0 : index
    %c0_5 = arith.constant 0 : index
    %c0_6 = arith.constant 0 : index
    %6 = vector.load %arg15[%c0_4, %c0_5, %c0_6] : memref<1x6x64xf32, #tpu.memory_space<vmem>>, vector<1x6x64xf32>
    %7 = vector.shape_cast %6 : vector<1x6x64xf32> to vector<6x64xf32>
    %8 = vector.shape_cast %3 : vector<16x64xf32> to vector<2x8x64xf32>
    %c0_7 = arith.constant 0 : index
    %c0_8 = arith.constant 0 : index
    %c0_9 = arith.constant 0 : index
    %9 = vector.load %arg4[%c0_7, %c0_8, %c0_9] : memref<1x3x64xf32, #tpu.memory_space<vmem>>, vector<1x3x64xf32>
    %10 = vector.shape_cast %9 : vector<1x3x64xf32> to vector<3x64xf32>
    %11 = vector.shape_cast %8 : vector<2x8x64xf32> to vector<16x64xf32>
    %c0_10 = arith.constant 0 : index
    %c0_11 = arith.constant 0 : index
    %c0_12 = arith.constant 0 : index
    %c0_13 = arith.constant 0 : index
    %12 = vector.load %arg3[%c0_10, %c0_11, %c0_12, %c0_13] : memref<1x3x64x64xbf16, #tpu.memory_space<vmem>>, vector<1x1x64x64xbf16>
    %13 = vector.shape_cast %12 : vector<1x1x64x64xbf16> to vector<64x64xbf16>
    %14 = arith.truncf %3 : vector<16x64xf32> to vector<16x64xbf16>
    %cst = arith.constant dense<0.000000e+00> : vector<16x64xf32>
    %15 = tpu.matmul %14, %13, %cst {dimension_numbers = #tpu.dot_dimension_numbers<[1], [0], [0], [1], [0, 0, 1, 1], [], []>} : vector<16x64xbf16>, vector<64x64xbf16>, vector<16x64xf32> -> vector<16x64xf32>
    %16 = vector.extract_strided_slice %10 {offsets = [0, 0], sizes = [1, 64], strides = [1, 1]} : vector<3x64xf32> to vector<1x64xf32>
    %17 = vector.broadcast %16 : vector<1x64xf32> to vector<16x64xf32>
    %18 = arith.addf %15, %17 : vector<16x64xf32>
    %cst_14 = arith.constant 0.353553385 : f32
    %19 = vector.broadcast %cst_14 : f32 to vector<16x64xf32>
    %20 = arith.mulf %18, %19 : vector<16x64xf32>
    %c0_15 = arith.constant 0 : index
    %c1 = arith.constant 1 : index
    %c0_16 = arith.constant 0 : index
    %c0_17 = arith.constant 0 : index
    %21 = vector.load %arg3[%c0_15, %c1, %c0_16, %c0_17] : memref<1x3x64x64xbf16, #tpu.memory_space<vmem>>, vector<1x1x64x64xbf16>
    %22 = vector.shape_cast %21 : vector<1x1x64x64xbf16> to vector<64x64xbf16>
    %23 = arith.truncf %11 : vector<16x64xf32> to vector<16x64xbf16>
    %cst_18 = arith.constant dense<0.000000e+00> : vector<16x64xf32>
    %24 = tpu.matmul %23, %22, %cst_18 {dimension_numbers = #tpu.dot_dimension_numbers<[1], [0], [0], [1], [0, 0, 1, 1], [], []>} : vector<16x64xbf16>, vector<64x64xbf16>, vector<16x64xf32> -> vector<16x64xf32>
    %25 = vector.extract_strided_slice %10 {offsets = [1, 0], sizes = [1, 64], strides = [1, 1]} : vector<3x64xf32> to vector<1x64xf32>
    %26 = vector.broadcast %25 : vector<1x64xf32> to vector<16x64xf32>
    %27 = arith.addf %24, %26 : vector<16x64xf32>
    %c0_19 = arith.constant 0 : index
    %c2 = arith.constant 2 : index
    %c0_20 = arith.constant 0 : index
    %c0_21 = arith.constant 0 : index
    %28 = vector.load %arg3[%c0_19, %c2, %c0_20, %c0_21] : memref<1x3x64x64xbf16, #tpu.memory_space<vmem>>, vector<1x1x64x64xbf16>
    %29 = vector.shape_cast %28 : vector<1x1x64x64xbf16> to vector<64x64xbf16>
    %30 = arith.truncf %11 : vector<16x64xf32> to vector<16x64xbf16>
    %cst_22 = arith.constant dense<0.000000e+00> : vector<16x64xf32>
    %31 = tpu.matmul %30, %29, %cst_22 {dimension_numbers = #tpu.dot_dimension_numbers<[1], [0], [0], [1], [0, 0, 1, 1], [], []>} : vector<16x64xbf16>, vector<64x64xbf16>, vector<16x64xf32> -> vector<16x64xf32>
    %32 = vector.extract_strided_slice %10 {offsets = [2, 0], sizes = [1, 64], strides = [1, 1]} : vector<3x64xf32> to vector<1x64xf32>
    %33 = vector.broadcast %32 : vector<1x64xf32> to vector<16x64xf32>
    %34 = arith.addf %31, %33 : vector<16x64xf32>
    %35 = vector.shape_cast %20 : vector<16x64xf32> to vector<2x8x64xf32>
    %36 = vector.shape_cast %27 : vector<16x64xf32> to vector<2x8x64xf32>
    %37 = vector.shape_cast %34 : vector<16x64xf32> to vector<2x8x64xf32>
    %38 = tpu.iota {dimensions = array<i32: 0>} : vector<8x8xi32>
    %39 = tpu.iota {dimensions = array<i32: 1>} : vector<8x8xi32>
    %40 = arith.cmpi sgt, %39, %38 : vector<8x8xi32>
    %cst_23 = arith.constant -1.000000e+30 : f32
    %cst_24 = arith.constant 0.000000e+00 : f32
    %41 = vector.broadcast %cst_23 : f32 to vector<8x8xf32>
    %42 = vector.broadcast %cst_24 : f32 to vector<8x8xf32>
    %43 = arith.select %40, %41, %42 : vector<8x8xi1>, vector<8x8xf32>
    %44 = vector.extract_strided_slice %35 {offsets = [0, 0, 0], sizes = [2, 8, 8], strides = [1, 1, 1]} : vector<2x8x64xf32> to vector<2x8x8xf32>
    %45 = vector.extract_strided_slice %36 {offsets = [0, 0, 0], sizes = [2, 8, 8], strides = [1, 1, 1]} : vector<2x8x64xf32> to vector<2x8x8xf32>
    "tpu.trace_start"() <{level = 10 : i32, message = "bqe,bke->bqk"}> : () -> ()
    %cst_25 = arith.constant dense<0.000000e+00> : vector<2x8x8xf32>
    %46 = tpu.matmul %44, %45, %cst_25 {dimension_numbers = #tpu.dot_dimension_numbers<[2], [2], [1], [1], [0, 0, 0, 1, 1, 1], [0], [0]>} : vector<2x8x8xf32>, vector<2x8x8xf32>, vector<2x8x8xf32> -> vector<2x8x8xf32>
    "tpu.trace_stop"() : () -> ()
    %47 = vector.shape_cast %43 : vector<8x8xf32> to vector<1x8x8xf32>
    %48 = vector.broadcast %47 : vector<1x8x8xf32> to vector<2x8x8xf32>
    %49 = arith.addf %46, %48 : vector<2x8x8xf32>
    %cst_26 = arith.constant dense<0xFF800000> : vector<2x8xf32>
    %50 = vector.multi_reduction <maximumf>, %49, %cst_26 [2] : vector<2x8x8xf32> to vector<2x8xf32>
    %51 = vector.shape_cast %50 : vector<2x8xf32> to vector<2x8x1xf32>
    %52 = vector.broadcast %51 : vector<2x8x1xf32> to vector<2x8x8xf32>
    %53 = arith.subf %49, %52 : vector<2x8x8xf32>
    %54 = math.exp %53 : vector<2x8x8xf32>
    %cst_27 = arith.constant dense<0.000000e+00> : vector<2x8xf32>
    %55 = vector.multi_reduction <add>, %54, %cst_27 [2] : vector<2x8x8xf32> to vector<2x8xf32>
    %56 = vector.shape_cast %55 : vector<2x8xf32> to vector<2x8x1xf32>
    %57 = vector.broadcast %56 : vector<2x8x1xf32> to vector<2x8x8xf32>
    %58 = arith.divf %54, %57 : vector<2x8x8xf32>
    %59 = vector.extract_strided_slice %37 {offsets = [0, 0, 0], sizes = [2, 8, 8], strides = [1, 1, 1]} : vector<2x8x64xf32> to vector<2x8x8xf32>
    "tpu.trace_start"() <{level = 10 : i32, message = "bqk,bke->bqe"}> : () -> ()
    %cst_28 = arith.constant dense<0.000000e+00> : vector<2x8x8xf32>
    %60 = tpu.matmul %58, %59, %cst_28 {dimension_numbers = #tpu.dot_dimension_numbers<[2], [1], [1], [2], [0, 0, 0, 1, 1, 2], [0], [0]>} : vector<2x8x8xf32>, vector<2x8x8xf32>, vector<2x8x8xf32> -> vector<2x8x8xf32>
    "tpu.trace_stop"() : () -> ()
    %61 = vector.extract_strided_slice %35 {offsets = [0, 0, 8], sizes = [2, 8, 8], strides = [1, 1, 1]} : vector<2x8x64xf32> to vector<2x8x8xf32>
    %62 = vector.extract_strided_slice %36 {offsets = [0, 0, 8], sizes = [2, 8, 8], strides = [1, 1, 1]} : vector<2x8x64xf32> to vector<2x8x8xf32>
    "tpu.trace_start"() <{level = 10 : i32, message = "bqe,bke->bqk"}> : () -> ()
    %cst_29 = arith.constant dense<0.000000e+00> : vector<2x8x8xf32>
    %63 = tpu.matmul %61, %62, %cst_29 {dimension_numbers = #tpu.dot_dimension_numbers<[2], [2], [1], [1], [0, 0, 0, 1, 1, 1], [0], [0]>} : vector<2x8x8xf32>, vector<2x8x8xf32>, vector<2x8x8xf32> -> vector<2x8x8xf32>
    "tpu.trace_stop"() : () -> ()
    %64 = vector.shape_cast %43 : vector<8x8xf32> to vector<1x8x8xf32>
    %65 = vector.broadcast %64 : vector<1x8x8xf32> to vector<2x8x8xf32>
    %66 = arith.addf %63, %65 : vector<2x8x8xf32>
    %cst_30 = arith.constant dense<0xFF800000> : vector<2x8xf32>
    %67 = vector.multi_reduction <maximumf>, %66, %cst_30 [2] : vector<2x8x8xf32> to vector<2x8xf32>
    %68 = vector.shape_cast %67 : vector<2x8xf32> to vector<2x8x1xf32>
    %69 = vector.broadcast %68 : vector<2x8x1xf32> to vector<2x8x8xf32>
    %70 = arith.subf %66, %69 : vector<2x8x8xf32>
    %71 = math.exp %70 : vector<2x8x8xf32>
    %cst_31 = arith.constant dense<0.000000e+00> : vector<2x8xf32>
    %72 = vector.multi_reduction <add>, %71, %cst_31 [2] : vector<2x8x8xf32> to vector<2x8xf32>
    %73 = vector.shape_cast %72 : vector<2x8xf32> to vector<2x8x1xf32>
    %74 = vector.broadcast %73 : vector<2x8x1xf32> to vector<2x8x8xf32>
    %75 = arith.divf %71, %74 : vector<2x8x8xf32>
    %76 = vector.extract_strided_slice %37 {offsets = [0, 0, 8], sizes = [2, 8, 8], strides = [1, 1, 1]} : vector<2x8x64xf32> to vector<2x8x8xf32>
    "tpu.trace_start"() <{level = 10 : i32, message = "bqk,bke->bqe"}> : () -> ()
    %cst_32 = arith.constant dense<0.000000e+00> : vector<2x8x8xf32>
    %77 = tpu.matmul %75, %76, %cst_32 {dimension_numbers = #tpu.dot_dimension_numbers<[2], [1], [1], [2], [0, 0, 0, 1, 1, 2], [0], [0]>} : vector<2x8x8xf32>, vector<2x8x8xf32>, vector<2x8x8xf32> -> vector<2x8x8xf32>
    "tpu.trace_stop"() : () -> ()
    %78 = vector.extract_strided_slice %35 {offsets = [0, 0, 16], sizes = [2, 8, 8], strides = [1, 1, 1]} : vector<2x8x64xf32> to vector<2x8x8xf32>
    %79 = vector.extract_strided_slice %36 {offsets = [0, 0, 16], sizes = [2, 8, 8], strides = [1, 1, 1]} : vector<2x8x64xf32> to vector<2x8x8xf32>
    "tpu.trace_start"() <{level = 10 : i32, message = "bqe,bke->bqk"}> : () -> ()
    %cst_33 = arith.constant dense<0.000000e+00> : vector<2x8x8xf32>
    %80 = tpu.matmul %78, %79, %cst_33 {dimension_numbers = #tpu.dot_dimension_numbers<[2], [2], [1], [1], [0, 0, 0, 1, 1, 1], [0], [0]>} : vector<2x8x8xf32>, vector<2x8x8xf32>, vector<2x8x8xf32> -> vector<2x8x8xf32>
    "tpu.trace_stop"() : () -> ()
    %81 = vector.shape_cast %43 : vector<8x8xf32> to vector<1x8x8xf32>
    %82 = vector.broadcast %81 : vector<1x8x8xf32> to vector<2x8x8xf32>
    %83 = arith.addf %80, %82 : vector<2x8x8xf32>
    %cst_34 = arith.constant dense<0xFF800000> : vector<2x8xf32>
    %84 = vector.multi_reduction <maximumf>, %83, %cst_34 [2] : vector<2x8x8xf32> to vector<2x8xf32>
    %85 = vector.shape_cast %84 : vector<2x8xf32> to vector<2x8x1xf32>
    %86 = vector.broadcast %85 : vector<2x8x1xf32> to vector<2x8x8xf32>
    %87 = arith.subf %83, %86 : vector<2x8x8xf32>
    %88 = math.exp %87 : vector<2x8x8xf32>
    %cst_35 = arith.constant dense<0.000000e+00> : vector<2x8xf32>
    %89 = vector.multi_reduction <add>, %88, %cst_35 [2] : vector<2x8x8xf32> to vector<2x8xf32>
    %90 = vector.shape_cast %89 : vector<2x8xf32> to vector<2x8x1xf32>
    %91 = vector.broadcast %90 : vector<2x8x1xf32> to vector<2x8x8xf32>
    %92 = arith.divf %88, %91 : vector<2x8x8xf32>
    %93 = vector.extract_strided_slice %37 {offsets = [0, 0, 16], sizes = [2, 8, 8], strides = [1, 1, 1]} : vector<2x8x64xf32> to vector<2x8x8xf32>
    "tpu.trace_start"() <{level = 10 : i32, message = "bqk,bke->bqe"}> : () -> ()
    %cst_36 = arith.constant dense<0.000000e+00> : vector<2x8x8xf32>
    %94 = tpu.matmul %92, %93, %cst_36 {dimension_numbers = #tpu.dot_dimension_numbers<[2], [1], [1], [2], [0, 0, 0, 1, 1, 2], [0], [0]>} : vector<2x8x8xf32>, vector<2x8x8xf32>, vector<2x8x8xf32> -> vector<2x8x8xf32>
    "tpu.trace_stop"() : () -> ()
    %95 = vector.extract_strided_slice %35 {offsets = [0, 0, 24], sizes = [2, 8, 8], strides = [1, 1, 1]} : vector<2x8x64xf32> to vector<2x8x8xf32>
    %96 = vector.extract_strided_slice %36 {offsets = [0, 0, 24], sizes = [2, 8, 8], strides = [1, 1, 1]} : vector<2x8x64xf32> to vector<2x8x8xf32>
    "tpu.trace_start"() <{level = 10 : i32, message = "bqe,bke->bqk"}> : () -> ()
    %cst_37 = arith.constant dense<0.000000e+00> : vector<2x8x8xf32>
    %97 = tpu.matmul %95, %96, %cst_37 {dimension_numbers = #tpu.dot_dimension_numbers<[2], [2], [1], [1], [0, 0, 0, 1, 1, 1], [0], [0]>} : vector<2x8x8xf32>, vector<2x8x8xf32>, vector<2x8x8xf32> -> vector<2x8x8xf32>
    "tpu.trace_stop"() : () -> ()
    %98 = vector.shape_cast %43 : vector<8x8xf32> to vector<1x8x8xf32>
    %99 = vector.broadcast %98 : vector<1x8x8xf32> to vector<2x8x8xf32>
    %100 = arith.addf %97, %99 : vector<2x8x8xf32>
    %cst_38 = arith.constant dense<0xFF800000> : vector<2x8xf32>
    %101 = vector.multi_reduction <maximumf>, %100, %cst_38 [2] : vector<2x8x8xf32> to vector<2x8xf32>
    %102 = vector.shape_cast %101 : vector<2x8xf32> to vector<2x8x1xf32>
    %103 = vector.broadcast %102 : vector<2x8x1xf32> to vector<2x8x8xf32>
    %104 = arith.subf %100, %103 : vector<2x8x8xf32>
    %105 = math.exp %104 : vector<2x8x8xf32>
    %cst_39 = arith.constant dense<0.000000e+00> : vector<2x8xf32>
    %106 = vector.multi_reduction <add>, %105, %cst_39 [2] : vector<2x8x8xf32> to vector<2x8xf32>
    %107 = vector.shape_cast %106 : vector<2x8xf32> to vector<2x8x1xf32>
    %108 = vector.broadcast %107 : vector<2x8x1xf32> to vector<2x8x8xf32>
    %109 = arith.divf %105, %108 : vector<2x8x8xf32>
    %110 = vector.extract_strided_slice %37 {offsets = [0, 0, 24], sizes = [2, 8, 8], strides = [1, 1, 1]} : vector<2x8x64xf32> to vector<2x8x8xf32>
    "tpu.trace_start"() <{level = 10 : i32, message = "bqk,bke->bqe"}> : () -> ()
    %cst_40 = arith.constant dense<0.000000e+00> : vector<2x8x8xf32>
    %111 = tpu.matmul %109, %110, %cst_40 {dimension_numbers = #tpu.dot_dimension_numbers<[2], [1], [1], [2], [0, 0, 0, 1, 1, 2], [0], [0]>} : vector<2x8x8xf32>, vector<2x8x8xf32>, vector<2x8x8xf32> -> vector<2x8x8xf32>
    "tpu.trace_stop"() : () -> ()
    %112 = vector.extract_strided_slice %35 {offsets = [0, 0, 32], sizes = [2, 8, 8], strides = [1, 1, 1]} : vector<2x8x64xf32> to vector<2x8x8xf32>
    %113 = vector.extract_strided_slice %36 {offsets = [0, 0, 32], sizes = [2, 8, 8], strides = [1, 1, 1]} : vector<2x8x64xf32> to vector<2x8x8xf32>
    "tpu.trace_start"() <{level = 10 : i32, message = "bqe,bke->bqk"}> : () -> ()
    %cst_41 = arith.constant dense<0.000000e+00> : vector<2x8x8xf32>
    %114 = tpu.matmul %112, %113, %cst_41 {dimension_numbers = #tpu.dot_dimension_numbers<[2], [2], [1], [1], [0, 0, 0, 1, 1, 1], [0], [0]>} : vector<2x8x8xf32>, vector<2x8x8xf32>, vector<2x8x8xf32> -> vector<2x8x8xf32>
    "tpu.trace_stop"() : () -> ()
    %115 = vector.shape_cast %43 : vector<8x8xf32> to vector<1x8x8xf32>
    %116 = vector.broadcast %115 : vector<1x8x8xf32> to vector<2x8x8xf32>
    %117 = arith.addf %114, %116 : vector<2x8x8xf32>
    %cst_42 = arith.constant dense<0xFF800000> : vector<2x8xf32>
    %118 = vector.multi_reduction <maximumf>, %117, %cst_42 [2] : vector<2x8x8xf32> to vector<2x8xf32>
    %119 = vector.shape_cast %118 : vector<2x8xf32> to vector<2x8x1xf32>
    %120 = vector.broadcast %119 : vector<2x8x1xf32> to vector<2x8x8xf32>
    %121 = arith.subf %117, %120 : vector<2x8x8xf32>
    %122 = math.exp %121 : vector<2x8x8xf32>
    %cst_43 = arith.constant dense<0.000000e+00> : vector<2x8xf32>
    %123 = vector.multi_reduction <add>, %122, %cst_43 [2] : vector<2x8x8xf32> to vector<2x8xf32>
    %124 = vector.shape_cast %123 : vector<2x8xf32> to vector<2x8x1xf32>
    %125 = vector.broadcast %124 : vector<2x8x1xf32> to vector<2x8x8xf32>
    %126 = arith.divf %122, %125 : vector<2x8x8xf32>
    %127 = vector.extract_strided_slice %37 {offsets = [0, 0, 32], sizes = [2, 8, 8], strides = [1, 1, 1]} : vector<2x8x64xf32> to vector<2x8x8xf32>
    "tpu.trace_start"() <{level = 10 : i32, message = "bqk,bke->bqe"}> : () -> ()
    %cst_44 = arith.constant dense<0.000000e+00> : vector<2x8x8xf32>
    %128 = tpu.matmul %126, %127, %cst_44 {dimension_numbers = #tpu.dot_dimension_numbers<[2], [1], [1], [2], [0, 0, 0, 1, 1, 2], [0], [0]>} : vector<2x8x8xf32>, vector<2x8x8xf32>, vector<2x8x8xf32> -> vector<2x8x8xf32>
    "tpu.trace_stop"() : () -> ()
    %129 = vector.extract_strided_slice %35 {offsets = [0, 0, 40], sizes = [2, 8, 8], strides = [1, 1, 1]} : vector<2x8x64xf32> to vector<2x8x8xf32>
    %130 = vector.extract_strided_slice %36 {offsets = [0, 0, 40], sizes = [2, 8, 8], strides = [1, 1, 1]} : vector<2x8x64xf32> to vector<2x8x8xf32>
    "tpu.trace_start"() <{level = 10 : i32, message = "bqe,bke->bqk"}> : () -> ()
    %cst_45 = arith.constant dense<0.000000e+00> : vector<2x8x8xf32>
    %131 = tpu.matmul %129, %130, %cst_45 {dimension_numbers = #tpu.dot_dimension_numbers<[2], [2], [1], [1], [0, 0, 0, 1, 1, 1], [0], [0]>} : vector<2x8x8xf32>, vector<2x8x8xf32>, vector<2x8x8xf32> -> vector<2x8x8xf32>
    "tpu.trace_stop"() : () -> ()
    %132 = vector.shape_cast %43 : vector<8x8xf32> to vector<1x8x8xf32>
    %133 = vector.broadcast %132 : vector<1x8x8xf32> to vector<2x8x8xf32>
    %134 = arith.addf %131, %133 : vector<2x8x8xf32>
    %cst_46 = arith.constant dense<0xFF800000> : vector<2x8xf32>
    %135 = vector.multi_reduction <maximumf>, %134, %cst_46 [2] : vector<2x8x8xf32> to vector<2x8xf32>
    %136 = vector.shape_cast %135 : vector<2x8xf32> to vector<2x8x1xf32>
    %137 = vector.broadcast %136 : vector<2x8x1xf32> to vector<2x8x8xf32>
    %138 = arith.subf %134, %137 : vector<2x8x8xf32>
    %139 = math.exp %138 : vector<2x8x8xf32>
    %cst_47 = arith.constant dense<0.000000e+00> : vector<2x8xf32>
    %140 = vector.multi_reduction <add>, %139, %cst_47 [2] : vector<2x8x8xf32> to vector<2x8xf32>
    %141 = vector.shape_cast %140 : vector<2x8xf32> to vector<2x8x1xf32>
    %142 = vector.broadcast %141 : vector<2x8x1xf32> to vector<2x8x8xf32>
    %143 = arith.divf %139, %142 : vector<2x8x8xf32>
    %144 = vector.extract_strided_slice %37 {offsets = [0, 0, 40], sizes = [2, 8, 8], strides = [1, 1, 1]} : vector<2x8x64xf32> to vector<2x8x8xf32>
    "tpu.trace_start"() <{level = 10 : i32, message = "bqk,bke->bqe"}> : () -> ()
    %cst_48 = arith.constant dense<0.000000e+00> : vector<2x8x8xf32>
    %145 = tpu.matmul %143, %144, %cst_48 {dimension_numbers = #tpu.dot_dimension_numbers<[2], [1], [1], [2], [0, 0, 0, 1, 1, 2], [0], [0]>} : vector<2x8x8xf32>, vector<2x8x8xf32>, vector<2x8x8xf32> -> vector<2x8x8xf32>
    "tpu.trace_stop"() : () -> ()
    %146 = vector.extract_strided_slice %35 {offsets = [0, 0, 48], sizes = [2, 8, 8], strides = [1, 1, 1]} : vector<2x8x64xf32> to vector<2x8x8xf32>
    %147 = vector.extract_strided_slice %36 {offsets = [0, 0, 48], sizes = [2, 8, 8], strides = [1, 1, 1]} : vector<2x8x64xf32> to vector<2x8x8xf32>
    "tpu.trace_start"() <{level = 10 : i32, message = "bqe,bke->bqk"}> : () -> ()
    %cst_49 = arith.constant dense<0.000000e+00> : vector<2x8x8xf32>
    %148 = tpu.matmul %146, %147, %cst_49 {dimension_numbers = #tpu.dot_dimension_numbers<[2], [2], [1], [1], [0, 0, 0, 1, 1, 1], [0], [0]>} : vector<2x8x8xf32>, vector<2x8x8xf32>, vector<2x8x8xf32> -> vector<2x8x8xf32>
    "tpu.trace_stop"() : () -> ()
    %149 = vector.shape_cast %43 : vector<8x8xf32> to vector<1x8x8xf32>
    %150 = vector.broadcast %149 : vector<1x8x8xf32> to vector<2x8x8xf32>
    %151 = arith.addf %148, %150 : vector<2x8x8xf32>
    %cst_50 = arith.constant dense<0xFF800000> : vector<2x8xf32>
    %152 = vector.multi_reduction <maximumf>, %151, %cst_50 [2] : vector<2x8x8xf32> to vector<2x8xf32>
    %153 = vector.shape_cast %152 : vector<2x8xf32> to vector<2x8x1xf32>
    %154 = vector.broadcast %153 : vector<2x8x1xf32> to vector<2x8x8xf32>
    %155 = arith.subf %151, %154 : vector<2x8x8xf32>
    %156 = math.exp %155 : vector<2x8x8xf32>
    %cst_51 = arith.constant dense<0.000000e+00> : vector<2x8xf32>
    %157 = vector.multi_reduction <add>, %156, %cst_51 [2] : vector<2x8x8xf32> to vector<2x8xf32>
    %158 = vector.shape_cast %157 : vector<2x8xf32> to vector<2x8x1xf32>
    %159 = vector.broadcast %158 : vector<2x8x1xf32> to vector<2x8x8xf32>
    %160 = arith.divf %156, %159 : vector<2x8x8xf32>
    %161 = vector.extract_strided_slice %37 {offsets = [0, 0, 48], sizes = [2, 8, 8], strides = [1, 1, 1]} : vector<2x8x64xf32> to vector<2x8x8xf32>
    "tpu.trace_start"() <{level = 10 : i32, message = "bqk,bke->bqe"}> : () -> ()
    %cst_52 = arith.constant dense<0.000000e+00> : vector<2x8x8xf32>
    %162 = tpu.matmul %160, %161, %cst_52 {dimension_numbers = #tpu.dot_dimension_numbers<[2], [1], [1], [2], [0, 0, 0, 1, 1, 2], [0], [0]>} : vector<2x8x8xf32>, vector<2x8x8xf32>, vector<2x8x8xf32> -> vector<2x8x8xf32>
    "tpu.trace_stop"() : () -> ()
    %163 = vector.extract_strided_slice %35 {offsets = [0, 0, 56], sizes = [2, 8, 8], strides = [1, 1, 1]} : vector<2x8x64xf32> to vector<2x8x8xf32>
    %164 = vector.extract_strided_slice %36 {offsets = [0, 0, 56], sizes = [2, 8, 8], strides = [1, 1, 1]} : vector<2x8x64xf32> to vector<2x8x8xf32>
    "tpu.trace_start"() <{level = 10 : i32, message = "bqe,bke->bqk"}> : () -> ()
    %cst_53 = arith.constant dense<0.000000e+00> : vector<2x8x8xf32>
    %165 = tpu.matmul %163, %164, %cst_53 {dimension_numbers = #tpu.dot_dimension_numbers<[2], [2], [1], [1], [0, 0, 0, 1, 1, 1], [0], [0]>} : vector<2x8x8xf32>, vector<2x8x8xf32>, vector<2x8x8xf32> -> vector<2x8x8xf32>
    "tpu.trace_stop"() : () -> ()
    %166 = vector.shape_cast %43 : vector<8x8xf32> to vector<1x8x8xf32>
    %167 = vector.broadcast %166 : vector<1x8x8xf32> to vector<2x8x8xf32>
    %168 = arith.addf %165, %167 : vector<2x8x8xf32>
    %cst_54 = arith.constant dense<0xFF800000> : vector<2x8xf32>
    %169 = vector.multi_reduction <maximumf>, %168, %cst_54 [2] : vector<2x8x8xf32> to vector<2x8xf32>
    %170 = vector.shape_cast %169 : vector<2x8xf32> to vector<2x8x1xf32>
    %171 = vector.broadcast %170 : vector<2x8x1xf32> to vector<2x8x8xf32>
    %172 = arith.subf %168, %171 : vector<2x8x8xf32>
    %173 = math.exp %172 : vector<2x8x8xf32>
    %cst_55 = arith.constant dense<0.000000e+00> : vector<2x8xf32>
    %174 = vector.multi_reduction <add>, %173, %cst_55 [2] : vector<2x8x8xf32> to vector<2x8xf32>
    %175 = vector.shape_cast %174 : vector<2x8xf32> to vector<2x8x1xf32>
    %176 = vector.broadcast %175 : vector<2x8x1xf32> to vector<2x8x8xf32>
    %177 = arith.divf %173, %176 : vector<2x8x8xf32>
    %178 = vector.extract_strided_slice %37 {offsets = [0, 0, 56], sizes = [2, 8, 8], strides = [1, 1, 1]} : vector<2x8x64xf32> to vector<2x8x8xf32>
    "tpu.trace_start"() <{level = 10 : i32, message = "bqk,bke->bqe"}> : () -> ()
    %cst_56 = arith.constant dense<0.000000e+00> : vector<2x8x8xf32>
    %179 = tpu.matmul %177, %178, %cst_56 {dimension_numbers = #tpu.dot_dimension_numbers<[2], [1], [1], [2], [0, 0, 0, 1, 1, 2], [0], [0]>} : vector<2x8x8xf32>, vector<2x8x8xf32>, vector<2x8x8xf32> -> vector<2x8x8xf32>
    "tpu.trace_stop"() : () -> ()
    %180 = tpu.concatenate %60, %77, %94, %111, %128, %145, %162, %179 in 2 : vector<2x8x8xf32>, vector<2x8x8xf32>, vector<2x8x8xf32>, vector<2x8x8xf32>, vector<2x8x8xf32>, vector<2x8x8xf32>, vector<2x8x8xf32>, vector<2x8x8xf32> -> vector<2x8x64xf32>
    %181 = vector.shape_cast %180 : vector<2x8x64xf32> to vector<16x64xf32>
    %c0_57 = arith.constant 0 : index
    %c0_58 = arith.constant 0 : index
    %c0_59 = arith.constant 0 : index
    %182 = vector.load %arg5[%c0_57, %c0_58, %c0_59] : memref<1x64x64xbf16, #tpu.memory_space<vmem>>, vector<1x64x64xbf16>
    %183 = vector.shape_cast %182 : vector<1x64x64xbf16> to vector<64x64xbf16>
    %184 = arith.truncf %181 : vector<16x64xf32> to vector<16x64xbf16>
    %cst_60 = arith.constant dense<0.000000e+00> : vector<16x64xf32>
    %185 = tpu.matmul %184, %183, %cst_60 {dimension_numbers = #tpu.dot_dimension_numbers<[1], [0], [0], [1], [0, 0, 1, 1], [], []>} : vector<16x64xbf16>, vector<64x64xbf16>, vector<16x64xf32> -> vector<16x64xf32>
    %c0_61 = arith.constant 0 : index
    %c0_62 = arith.constant 0 : index
    %c0_63 = arith.constant 0 : index
    %186 = vector.load %arg6[%c0_61, %c0_62, %c0_63] : memref<1x1x64xf32, #tpu.memory_space<vmem>>, vector<1x1x64xf32>
    %187 = vector.shape_cast %186 : vector<1x1x64xf32> to vector<1x64xf32>
    %188 = vector.broadcast %187 : vector<1x64xf32> to vector<16x64xf32>
    %189 = arith.addf %185, %188 : vector<16x64xf32>
    %190 = arith.addf %3, %189 : vector<16x64xf32>
    %191 = vector.extract_strided_slice %7 {offsets = [0, 0], sizes = [1, 64], strides = [1, 1]} : vector<6x64xf32> to vector<1x64xf32>
    %192 = vector.extract_strided_slice %7 {offsets = [1, 0], sizes = [1, 64], strides = [1, 1]} : vector<6x64xf32> to vector<1x64xf32>
    %cst_64 = arith.constant dense<0.000000e+00> : vector<16xf32>
    %193 = vector.multi_reduction <add>, %190, %cst_64 [1] : vector<16x64xf32> to vector<16xf32>
    %194 = vector.shape_cast %193 : vector<16xf32> to vector<16x1xf32>
    %cst_65 = arith.constant 6.400000e+01 : f32
    %195 = vector.broadcast %cst_65 : f32 to vector<16x1xf32>
    %196 = arith.divf %194, %195 : vector<16x1xf32>
    %197 = vector.broadcast %196 : vector<16x1xf32> to vector<16x64xf32>
    %198 = arith.subf %190, %197 : vector<16x64xf32>
    %199 = arith.mulf %198, %198 : vector<16x64xf32>
    %cst_66 = arith.constant dense<0.000000e+00> : vector<16xf32>
    %200 = vector.multi_reduction <add>, %199, %cst_66 [1] : vector<16x64xf32> to vector<16xf32>
    %201 = vector.shape_cast %200 : vector<16xf32> to vector<16x1xf32>
    %cst_67 = arith.constant 6.400000e+01 : f32
    %202 = vector.broadcast %cst_67 : f32 to vector<16x1xf32>
    %203 = arith.divf %201, %202 : vector<16x1xf32>
    %204 = vector.broadcast %196 : vector<16x1xf32> to vector<16x64xf32>
    %205 = arith.subf %190, %204 : vector<16x64xf32>
    %cst_68 = arith.constant 9.99999974E-6 : f32
    %206 = vector.broadcast %cst_68 : f32 to vector<16x1xf32>
    %207 = arith.addf %203, %206 : vector<16x1xf32>
    %208 = math.rsqrt %207 : vector<16x1xf32>
    %209 = vector.broadcast %208 : vector<16x1xf32> to vector<16x64xf32>
    %210 = arith.mulf %205, %209 : vector<16x64xf32>
    %211 = vector.broadcast %191 : vector<1x64xf32> to vector<16x64xf32>
    %212 = arith.mulf %210, %211 : vector<16x64xf32>
    %213 = vector.broadcast %192 : vector<1x64xf32> to vector<16x64xf32>
    %214 = arith.addf %212, %213 : vector<16x64xf32>
    %c0_69 = arith.constant 0 : index
    %c0_70 = arith.constant 0 : index
    %c0_71 = arith.constant 0 : index
    %215 = vector.load %arg8[%c0_69, %c0_70, %c0_71] : memref<1x3x64xf32, #tpu.memory_space<vmem>>, vector<1x3x64xf32>
    %216 = vector.shape_cast %215 : vector<1x3x64xf32> to vector<3x64xf32>
    %217 = vector.shape_cast %5 : vector<2x8x64xf32> to vector<16x64xf32>
    %c0_72 = arith.constant 0 : index
    %c0_73 = arith.constant 0 : index
    %c0_74 = arith.constant 0 : index
    %c0_75 = arith.constant 0 : index
    %218 = vector.load %arg7[%c0_72, %c0_73, %c0_74, %c0_75] : memref<1x3x64x64xbf16, #tpu.memory_space<vmem>>, vector<1x1x64x64xbf16>
    %219 = vector.shape_cast %218 : vector<1x1x64x64xbf16> to vector<64x64xbf16>
    %220 = arith.truncf %214 : vector<16x64xf32> to vector<16x64xbf16>
    %cst_76 = arith.constant dense<0.000000e+00> : vector<16x64xf32>
    %221 = tpu.matmul %220, %219, %cst_76 {dimension_numbers = #tpu.dot_dimension_numbers<[1], [0], [0], [1], [0, 0, 1, 1], [], []>} : vector<16x64xbf16>, vector<64x64xbf16>, vector<16x64xf32> -> vector<16x64xf32>
    %222 = vector.extract_strided_slice %216 {offsets = [0, 0], sizes = [1, 64], strides = [1, 1]} : vector<3x64xf32> to vector<1x64xf32>
    %223 = vector.broadcast %222 : vector<1x64xf32> to vector<16x64xf32>
    %224 = arith.addf %221, %223 : vector<16x64xf32>
    %cst_77 = arith.constant 0.353553385 : f32
    %225 = vector.broadcast %cst_77 : f32 to vector<16x64xf32>
    %226 = arith.mulf %224, %225 : vector<16x64xf32>
    %c0_78 = arith.constant 0 : index
    %c1_79 = arith.constant 1 : index
    %c0_80 = arith.constant 0 : index
    %c0_81 = arith.constant 0 : index
    %227 = vector.load %arg7[%c0_78, %c1_79, %c0_80, %c0_81] : memref<1x3x64x64xbf16, #tpu.memory_space<vmem>>, vector<1x1x64x64xbf16>
    %228 = vector.shape_cast %227 : vector<1x1x64x64xbf16> to vector<64x64xbf16>
    %229 = arith.truncf %217 : vector<16x64xf32> to vector<16x64xbf16>
    %cst_82 = arith.constant dense<0.000000e+00> : vector<16x64xf32>
    %230 = tpu.matmul %229, %228, %cst_82 {dimension_numbers = #tpu.dot_dimension_numbers<[1], [0], [0], [1], [0, 0, 1, 1], [], []>} : vector<16x64xbf16>, vector<64x64xbf16>, vector<16x64xf32> -> vector<16x64xf32>
    %231 = vector.extract_strided_slice %216 {offsets = [1, 0], sizes = [1, 64], strides = [1, 1]} : vector<3x64xf32> to vector<1x64xf32>
    %232 = vector.broadcast %231 : vector<1x64xf32> to vector<16x64xf32>
    %233 = arith.addf %230, %232 : vector<16x64xf32>
    %c0_83 = arith.constant 0 : index
    %c2_84 = arith.constant 2 : index
    %c0_85 = arith.constant 0 : index
    %c0_86 = arith.constant 0 : index
    %234 = vector.load %arg7[%c0_83, %c2_84, %c0_85, %c0_86] : memref<1x3x64x64xbf16, #tpu.memory_space<vmem>>, vector<1x1x64x64xbf16>
    %235 = vector.shape_cast %234 : vector<1x1x64x64xbf16> to vector<64x64xbf16>
    %236 = arith.truncf %217 : vector<16x64xf32> to vector<16x64xbf16>
    %cst_87 = arith.constant dense<0.000000e+00> : vector<16x64xf32>
    %237 = tpu.matmul %236, %235, %cst_87 {dimension_numbers = #tpu.dot_dimension_numbers<[1], [0], [0], [1], [0, 0, 1, 1], [], []>} : vector<16x64xbf16>, vector<64x64xbf16>, vector<16x64xf32> -> vector<16x64xf32>
    %238 = vector.extract_strided_slice %216 {offsets = [2, 0], sizes = [1, 64], strides = [1, 1]} : vector<3x64xf32> to vector<1x64xf32>
    %239 = vector.broadcast %238 : vector<1x64xf32> to vector<16x64xf32>
    %240 = arith.addf %237, %239 : vector<16x64xf32>
    %241 = vector.shape_cast %226 : vector<16x64xf32> to vector<2x8x64xf32>
    %242 = vector.shape_cast %233 : vector<16x64xf32> to vector<2x8x64xf32>
    %243 = vector.shape_cast %240 : vector<16x64xf32> to vector<2x8x64xf32>
    %244 = vector.extract_strided_slice %241 {offsets = [0, 0, 0], sizes = [2, 8, 8], strides = [1, 1, 1]} : vector<2x8x64xf32> to vector<2x8x8xf32>
    %245 = vector.extract_strided_slice %242 {offsets = [0, 0, 0], sizes = [2, 8, 8], strides = [1, 1, 1]} : vector<2x8x64xf32> to vector<2x8x8xf32>
    "tpu.trace_start"() <{level = 10 : i32, message = "bqe,bke->bqk"}> : () -> ()
    %cst_88 = arith.constant dense<0.000000e+00> : vector<2x8x8xf32>
    %246 = tpu.matmul %244, %245, %cst_88 {dimension_numbers = #tpu.dot_dimension_numbers<[2], [2], [1], [1], [0, 0, 0, 1, 1, 1], [0], [0]>} : vector<2x8x8xf32>, vector<2x8x8xf32>, vector<2x8x8xf32> -> vector<2x8x8xf32>
    "tpu.trace_stop"() : () -> ()
    %cst_89 = arith.constant dense<0xFF800000> : vector<2x8xf32>
    %247 = vector.multi_reduction <maximumf>, %246, %cst_89 [2] : vector<2x8x8xf32> to vector<2x8xf32>
    %248 = vector.shape_cast %247 : vector<2x8xf32> to vector<2x8x1xf32>
    %249 = vector.broadcast %248 : vector<2x8x1xf32> to vector<2x8x8xf32>
    %250 = arith.subf %246, %249 : vector<2x8x8xf32>
    %251 = math.exp %250 : vector<2x8x8xf32>
    %cst_90 = arith.constant dense<0.000000e+00> : vector<2x8xf32>
    %252 = vector.multi_reduction <add>, %251, %cst_90 [2] : vector<2x8x8xf32> to vector<2x8xf32>
    %253 = vector.shape_cast %252 : vector<2x8xf32> to vector<2x8x1xf32>
    %254 = vector.broadcast %253 : vector<2x8x1xf32> to vector<2x8x8xf32>
    %255 = arith.divf %251, %254 : vector<2x8x8xf32>
    %256 = vector.extract_strided_slice %243 {offsets = [0, 0, 0], sizes = [2, 8, 8], strides = [1, 1, 1]} : vector<2x8x64xf32> to vector<2x8x8xf32>
    "tpu.trace_start"() <{level = 10 : i32, message = "bqk,bke->bqe"}> : () -> ()
    %cst_91 = arith.constant dense<0.000000e+00> : vector<2x8x8xf32>
    %257 = tpu.matmul %255, %256, %cst_91 {dimension_numbers = #tpu.dot_dimension_numbers<[2], [1], [1], [2], [0, 0, 0, 1, 1, 2], [0], [0]>} : vector<2x8x8xf32>, vector<2x8x8xf32>, vector<2x8x8xf32> -> vector<2x8x8xf32>
    "tpu.trace_stop"() : () -> ()
    %258 = vector.extract_strided_slice %241 {offsets = [0, 0, 8], sizes = [2, 8, 8], strides = [1, 1, 1]} : vector<2x8x64xf32> to vector<2x8x8xf32>
    %259 = vector.extract_strided_slice %242 {offsets = [0, 0, 8], sizes = [2, 8, 8], strides = [1, 1, 1]} : vector<2x8x64xf32> to vector<2x8x8xf32>
    "tpu.trace_start"() <{level = 10 : i32, message = "bqe,bke->bqk"}> : () -> ()
    %cst_92 = arith.constant dense<0.000000e+00> : vector<2x8x8xf32>
    %260 = tpu.matmul %258, %259, %cst_92 {dimension_numbers = #tpu.dot_dimension_numbers<[2], [2], [1], [1], [0, 0, 0, 1, 1, 1], [0], [0]>} : vector<2x8x8xf32>, vector<2x8x8xf32>, vector<2x8x8xf32> -> vector<2x8x8xf32>
    "tpu.trace_stop"() : () -> ()
    %cst_93 = arith.constant dense<0xFF800000> : vector<2x8xf32>
    %261 = vector.multi_reduction <maximumf>, %260, %cst_93 [2] : vector<2x8x8xf32> to vector<2x8xf32>
    %262 = vector.shape_cast %261 : vector<2x8xf32> to vector<2x8x1xf32>
    %263 = vector.broadcast %262 : vector<2x8x1xf32> to vector<2x8x8xf32>
    %264 = arith.subf %260, %263 : vector<2x8x8xf32>
    %265 = math.exp %264 : vector<2x8x8xf32>
    %cst_94 = arith.constant dense<0.000000e+00> : vector<2x8xf32>
    %266 = vector.multi_reduction <add>, %265, %cst_94 [2] : vector<2x8x8xf32> to vector<2x8xf32>
    %267 = vector.shape_cast %266 : vector<2x8xf32> to vector<2x8x1xf32>
    %268 = vector.broadcast %267 : vector<2x8x1xf32> to vector<2x8x8xf32>
    %269 = arith.divf %265, %268 : vector<2x8x8xf32>
    %270 = vector.extract_strided_slice %243 {offsets = [0, 0, 8], sizes = [2, 8, 8], strides = [1, 1, 1]} : vector<2x8x64xf32> to vector<2x8x8xf32>
    "tpu.trace_start"() <{level = 10 : i32, message = "bqk,bke->bqe"}> : () -> ()
    %cst_95 = arith.constant dense<0.000000e+00> : vector<2x8x8xf32>
    %271 = tpu.matmul %269, %270, %cst_95 {dimension_numbers = #tpu.dot_dimension_numbers<[2], [1], [1], [2], [0, 0, 0, 1, 1, 2], [0], [0]>} : vector<2x8x8xf32>, vector<2x8x8xf32>, vector<2x8x8xf32> -> vector<2x8x8xf32>
    "tpu.trace_stop"() : () -> ()
    %272 = vector.extract_strided_slice %241 {offsets = [0, 0, 16], sizes = [2, 8, 8], strides = [1, 1, 1]} : vector<2x8x64xf32> to vector<2x8x8xf32>
    %273 = vector.extract_strided_slice %242 {offsets = [0, 0, 16], sizes = [2, 8, 8], strides = [1, 1, 1]} : vector<2x8x64xf32> to vector<2x8x8xf32>
    "tpu.trace_start"() <{level = 10 : i32, message = "bqe,bke->bqk"}> : () -> ()
    %cst_96 = arith.constant dense<0.000000e+00> : vector<2x8x8xf32>
    %274 = tpu.matmul %272, %273, %cst_96 {dimension_numbers = #tpu.dot_dimension_numbers<[2], [2], [1], [1], [0, 0, 0, 1, 1, 1], [0], [0]>} : vector<2x8x8xf32>, vector<2x8x8xf32>, vector<2x8x8xf32> -> vector<2x8x8xf32>
    "tpu.trace_stop"() : () -> ()
    %cst_97 = arith.constant dense<0xFF800000> : vector<2x8xf32>
    %275 = vector.multi_reduction <maximumf>, %274, %cst_97 [2] : vector<2x8x8xf32> to vector<2x8xf32>
    %276 = vector.shape_cast %275 : vector<2x8xf32> to vector<2x8x1xf32>
    %277 = vector.broadcast %276 : vector<2x8x1xf32> to vector<2x8x8xf32>
    %278 = arith.subf %274, %277 : vector<2x8x8xf32>
    %279 = math.exp %278 : vector<2x8x8xf32>
    %cst_98 = arith.constant dense<0.000000e+00> : vector<2x8xf32>
    %280 = vector.multi_reduction <add>, %279, %cst_98 [2] : vector<2x8x8xf32> to vector<2x8xf32>
    %281 = vector.shape_cast %280 : vector<2x8xf32> to vector<2x8x1xf32>
    %282 = vector.broadcast %281 : vector<2x8x1xf32> to vector<2x8x8xf32>
    %283 = arith.divf %279, %282 : vector<2x8x8xf32>
    %284 = vector.extract_strided_slice %243 {offsets = [0, 0, 16], sizes = [2, 8, 8], strides = [1, 1, 1]} : vector<2x8x64xf32> to vector<2x8x8xf32>
    "tpu.trace_start"() <{level = 10 : i32, message = "bqk,bke->bqe"}> : () -> ()
    %cst_99 = arith.constant dense<0.000000e+00> : vector<2x8x8xf32>
    %285 = tpu.matmul %283, %284, %cst_99 {dimension_numbers = #tpu.dot_dimension_numbers<[2], [1], [1], [2], [0, 0, 0, 1, 1, 2], [0], [0]>} : vector<2x8x8xf32>, vector<2x8x8xf32>, vector<2x8x8xf32> -> vector<2x8x8xf32>
    "tpu.trace_stop"() : () -> ()
    %286 = vector.extract_strided_slice %241 {offsets = [0, 0, 24], sizes = [2, 8, 8], strides = [1, 1, 1]} : vector<2x8x64xf32> to vector<2x8x8xf32>
    %287 = vector.extract_strided_slice %242 {offsets = [0, 0, 24], sizes = [2, 8, 8], strides = [1, 1, 1]} : vector<2x8x64xf32> to vector<2x8x8xf32>
    "tpu.trace_start"() <{level = 10 : i32, message = "bqe,bke->bqk"}> : () -> ()
    %cst_100 = arith.constant dense<0.000000e+00> : vector<2x8x8xf32>
    %288 = tpu.matmul %286, %287, %cst_100 {dimension_numbers = #tpu.dot_dimension_numbers<[2], [2], [1], [1], [0, 0, 0, 1, 1, 1], [0], [0]>} : vector<2x8x8xf32>, vector<2x8x8xf32>, vector<2x8x8xf32> -> vector<2x8x8xf32>
    "tpu.trace_stop"() : () -> ()
    %cst_101 = arith.constant dense<0xFF800000> : vector<2x8xf32>
    %289 = vector.multi_reduction <maximumf>, %288, %cst_101 [2] : vector<2x8x8xf32> to vector<2x8xf32>
    %290 = vector.shape_cast %289 : vector<2x8xf32> to vector<2x8x1xf32>
    %291 = vector.broadcast %290 : vector<2x8x1xf32> to vector<2x8x8xf32>
    %292 = arith.subf %288, %291 : vector<2x8x8xf32>
    %293 = math.exp %292 : vector<2x8x8xf32>
    %cst_102 = arith.constant dense<0.000000e+00> : vector<2x8xf32>
    %294 = vector.multi_reduction <add>, %293, %cst_102 [2] : vector<2x8x8xf32> to vector<2x8xf32>
    %295 = vector.shape_cast %294 : vector<2x8xf32> to vector<2x8x1xf32>
    %296 = vector.broadcast %295 : vector<2x8x1xf32> to vector<2x8x8xf32>
    %297 = arith.divf %293, %296 : vector<2x8x8xf32>
    %298 = vector.extract_strided_slice %243 {offsets = [0, 0, 24], sizes = [2, 8, 8], strides = [1, 1, 1]} : vector<2x8x64xf32> to vector<2x8x8xf32>
    "tpu.trace_start"() <{level = 10 : i32, message = "bqk,bke->bqe"}> : () -> ()
    %cst_103 = arith.constant dense<0.000000e+00> : vector<2x8x8xf32>
    %299 = tpu.matmul %297, %298, %cst_103 {dimension_numbers = #tpu.dot_dimension_numbers<[2], [1], [1], [2], [0, 0, 0, 1, 1, 2], [0], [0]>} : vector<2x8x8xf32>, vector<2x8x8xf32>, vector<2x8x8xf32> -> vector<2x8x8xf32>
    "tpu.trace_stop"() : () -> ()
    %300 = vector.extract_strided_slice %241 {offsets = [0, 0, 32], sizes = [2, 8, 8], strides = [1, 1, 1]} : vector<2x8x64xf32> to vector<2x8x8xf32>
    %301 = vector.extract_strided_slice %242 {offsets = [0, 0, 32], sizes = [2, 8, 8], strides = [1, 1, 1]} : vector<2x8x64xf32> to vector<2x8x8xf32>
    "tpu.trace_start"() <{level = 10 : i32, message = "bqe,bke->bqk"}> : () -> ()
    %cst_104 = arith.constant dense<0.000000e+00> : vector<2x8x8xf32>
    %302 = tpu.matmul %300, %301, %cst_104 {dimension_numbers = #tpu.dot_dimension_numbers<[2], [2], [1], [1], [0, 0, 0, 1, 1, 1], [0], [0]>} : vector<2x8x8xf32>, vector<2x8x8xf32>, vector<2x8x8xf32> -> vector<2x8x8xf32>
    "tpu.trace_stop"() : () -> ()
    %cst_105 = arith.constant dense<0xFF800000> : vector<2x8xf32>
    %303 = vector.multi_reduction <maximumf>, %302, %cst_105 [2] : vector<2x8x8xf32> to vector<2x8xf32>
    %304 = vector.shape_cast %303 : vector<2x8xf32> to vector<2x8x1xf32>
    %305 = vector.broadcast %304 : vector<2x8x1xf32> to vector<2x8x8xf32>
    %306 = arith.subf %302, %305 : vector<2x8x8xf32>
    %307 = math.exp %306 : vector<2x8x8xf32>
    %cst_106 = arith.constant dense<0.000000e+00> : vector<2x8xf32>
    %308 = vector.multi_reduction <add>, %307, %cst_106 [2] : vector<2x8x8xf32> to vector<2x8xf32>
    %309 = vector.shape_cast %308 : vector<2x8xf32> to vector<2x8x1xf32>
    %310 = vector.broadcast %309 : vector<2x8x1xf32> to vector<2x8x8xf32>
    %311 = arith.divf %307, %310 : vector<2x8x8xf32>
    %312 = vector.extract_strided_slice %243 {offsets = [0, 0, 32], sizes = [2, 8, 8], strides = [1, 1, 1]} : vector<2x8x64xf32> to vector<2x8x8xf32>
    "tpu.trace_start"() <{level = 10 : i32, message = "bqk,bke->bqe"}> : () -> ()
    %cst_107 = arith.constant dense<0.000000e+00> : vector<2x8x8xf32>
    %313 = tpu.matmul %311, %312, %cst_107 {dimension_numbers = #tpu.dot_dimension_numbers<[2], [1], [1], [2], [0, 0, 0, 1, 1, 2], [0], [0]>} : vector<2x8x8xf32>, vector<2x8x8xf32>, vector<2x8x8xf32> -> vector<2x8x8xf32>
    "tpu.trace_stop"() : () -> ()
    %314 = vector.extract_strided_slice %241 {offsets = [0, 0, 40], sizes = [2, 8, 8], strides = [1, 1, 1]} : vector<2x8x64xf32> to vector<2x8x8xf32>
    %315 = vector.extract_strided_slice %242 {offsets = [0, 0, 40], sizes = [2, 8, 8], strides = [1, 1, 1]} : vector<2x8x64xf32> to vector<2x8x8xf32>
    "tpu.trace_start"() <{level = 10 : i32, message = "bqe,bke->bqk"}> : () -> ()
    %cst_108 = arith.constant dense<0.000000e+00> : vector<2x8x8xf32>
    %316 = tpu.matmul %314, %315, %cst_108 {dimension_numbers = #tpu.dot_dimension_numbers<[2], [2], [1], [1], [0, 0, 0, 1, 1, 1], [0], [0]>} : vector<2x8x8xf32>, vector<2x8x8xf32>, vector<2x8x8xf32> -> vector<2x8x8xf32>
    "tpu.trace_stop"() : () -> ()
    %cst_109 = arith.constant dense<0xFF800000> : vector<2x8xf32>
    %317 = vector.multi_reduction <maximumf>, %316, %cst_109 [2] : vector<2x8x8xf32> to vector<2x8xf32>
    %318 = vector.shape_cast %317 : vector<2x8xf32> to vector<2x8x1xf32>
    %319 = vector.broadcast %318 : vector<2x8x1xf32> to vector<2x8x8xf32>
    %320 = arith.subf %316, %319 : vector<2x8x8xf32>
    %321 = math.exp %320 : vector<2x8x8xf32>
    %cst_110 = arith.constant dense<0.000000e+00> : vector<2x8xf32>
    %322 = vector.multi_reduction <add>, %321, %cst_110 [2] : vector<2x8x8xf32> to vector<2x8xf32>
    %323 = vector.shape_cast %322 : vector<2x8xf32> to vector<2x8x1xf32>
    %324 = vector.broadcast %323 : vector<2x8x1xf32> to vector<2x8x8xf32>
    %325 = arith.divf %321, %324 : vector<2x8x8xf32>
    %326 = vector.extract_strided_slice %243 {offsets = [0, 0, 40], sizes = [2, 8, 8], strides = [1, 1, 1]} : vector<2x8x64xf32> to vector<2x8x8xf32>
    "tpu.trace_start"() <{level = 10 : i32, message = "bqk,bke->bqe"}> : () -> ()
    %cst_111 = arith.constant dense<0.000000e+00> : vector<2x8x8xf32>
    %327 = tpu.matmul %325, %326, %cst_111 {dimension_numbers = #tpu.dot_dimension_numbers<[2], [1], [1], [2], [0, 0, 0, 1, 1, 2], [0], [0]>} : vector<2x8x8xf32>, vector<2x8x8xf32>, vector<2x8x8xf32> -> vector<2x8x8xf32>
    "tpu.trace_stop"() : () -> ()
    %328 = vector.extract_strided_slice %241 {offsets = [0, 0, 48], sizes = [2, 8, 8], strides = [1, 1, 1]} : vector<2x8x64xf32> to vector<2x8x8xf32>
    %329 = vector.extract_strided_slice %242 {offsets = [0, 0, 48], sizes = [2, 8, 8], strides = [1, 1, 1]} : vector<2x8x64xf32> to vector<2x8x8xf32>
    "tpu.trace_start"() <{level = 10 : i32, message = "bqe,bke->bqk"}> : () -> ()
    %cst_112 = arith.constant dense<0.000000e+00> : vector<2x8x8xf32>
    %330 = tpu.matmul %328, %329, %cst_112 {dimension_numbers = #tpu.dot_dimension_numbers<[2], [2], [1], [1], [0, 0, 0, 1, 1, 1], [0], [0]>} : vector<2x8x8xf32>, vector<2x8x8xf32>, vector<2x8x8xf32> -> vector<2x8x8xf32>
    "tpu.trace_stop"() : () -> ()
    %cst_113 = arith.constant dense<0xFF800000> : vector<2x8xf32>
    %331 = vector.multi_reduction <maximumf>, %330, %cst_113 [2] : vector<2x8x8xf32> to vector<2x8xf32>
    %332 = vector.shape_cast %331 : vector<2x8xf32> to vector<2x8x1xf32>
    %333 = vector.broadcast %332 : vector<2x8x1xf32> to vector<2x8x8xf32>
    %334 = arith.subf %330, %333 : vector<2x8x8xf32>
    %335 = math.exp %334 : vector<2x8x8xf32>
    %cst_114 = arith.constant dense<0.000000e+00> : vector<2x8xf32>
    %336 = vector.multi_reduction <add>, %335, %cst_114 [2] : vector<2x8x8xf32> to vector<2x8xf32>
    %337 = vector.shape_cast %336 : vector<2x8xf32> to vector<2x8x1xf32>
    %338 = vector.broadcast %337 : vector<2x8x1xf32> to vector<2x8x8xf32>
    %339 = arith.divf %335, %338 : vector<2x8x8xf32>
    %340 = vector.extract_strided_slice %243 {offsets = [0, 0, 48], sizes = [2, 8, 8], strides = [1, 1, 1]} : vector<2x8x64xf32> to vector<2x8x8xf32>
    "tpu.trace_start"() <{level = 10 : i32, message = "bqk,bke->bqe"}> : () -> ()
    %cst_115 = arith.constant dense<0.000000e+00> : vector<2x8x8xf32>
    %341 = tpu.matmul %339, %340, %cst_115 {dimension_numbers = #tpu.dot_dimension_numbers<[2], [1], [1], [2], [0, 0, 0, 1, 1, 2], [0], [0]>} : vector<2x8x8xf32>, vector<2x8x8xf32>, vector<2x8x8xf32> -> vector<2x8x8xf32>
    "tpu.trace_stop"() : () -> ()
    %342 = vector.extract_strided_slice %241 {offsets = [0, 0, 56], sizes = [2, 8, 8], strides = [1, 1, 1]} : vector<2x8x64xf32> to vector<2x8x8xf32>
    %343 = vector.extract_strided_slice %242 {offsets = [0, 0, 56], sizes = [2, 8, 8], strides = [1, 1, 1]} : vector<2x8x64xf32> to vector<2x8x8xf32>
    "tpu.trace_start"() <{level = 10 : i32, message = "bqe,bke->bqk"}> : () -> ()
    %cst_116 = arith.constant dense<0.000000e+00> : vector<2x8x8xf32>
    %344 = tpu.matmul %342, %343, %cst_116 {dimension_numbers = #tpu.dot_dimension_numbers<[2], [2], [1], [1], [0, 0, 0, 1, 1, 1], [0], [0]>} : vector<2x8x8xf32>, vector<2x8x8xf32>, vector<2x8x8xf32> -> vector<2x8x8xf32>
    "tpu.trace_stop"() : () -> ()
    %cst_117 = arith.constant dense<0xFF800000> : vector<2x8xf32>
    %345 = vector.multi_reduction <maximumf>, %344, %cst_117 [2] : vector<2x8x8xf32> to vector<2x8xf32>
    %346 = vector.shape_cast %345 : vector<2x8xf32> to vector<2x8x1xf32>
    %347 = vector.broadcast %346 : vector<2x8x1xf32> to vector<2x8x8xf32>
    %348 = arith.subf %344, %347 : vector<2x8x8xf32>
    %349 = math.exp %348 : vector<2x8x8xf32>
    %cst_118 = arith.constant dense<0.000000e+00> : vector<2x8xf32>
    %350 = vector.multi_reduction <add>, %349, %cst_118 [2] : vector<2x8x8xf32> to vector<2x8xf32>
    %351 = vector.shape_cast %350 : vector<2x8xf32> to vector<2x8x1xf32>
    %352 = vector.broadcast %351 : vector<2x8x1xf32> to vector<2x8x8xf32>
    %353 = arith.divf %349, %352 : vector<2x8x8xf32>
    %354 = vector.extract_strided_slice %243 {offsets = [0, 0, 56], sizes = [2, 8, 8], strides = [1, 1, 1]} : vector<2x8x64xf32> to vector<2x8x8xf32>
    "tpu.trace_start"() <{level = 10 : i32, message = "bqk,bke->bqe"}> : () -> ()
    %cst_119 = arith.constant dense<0.000000e+00> : vector<2x8x8xf32>
    %355 = tpu.matmul %353, %354, %cst_119 {dimension_numbers = #tpu.dot_dimension_numbers<[2], [1], [1], [2], [0, 0, 0, 1, 1, 2], [0], [0]>} : vector<2x8x8xf32>, vector<2x8x8xf32>, vector<2x8x8xf32> -> vector<2x8x8xf32>
    "tpu.trace_stop"() : () -> ()
    %356 = tpu.concatenate %257, %271, %285, %299, %313, %327, %341, %355 in 2 : vector<2x8x8xf32>, vector<2x8x8xf32>, vector<2x8x8xf32>, vector<2x8x8xf32>, vector<2x8x8xf32>, vector<2x8x8xf32>, vector<2x8x8xf32>, vector<2x8x8xf32> -> vector<2x8x64xf32>
    %357 = vector.shape_cast %356 : vector<2x8x64xf32> to vector<16x64xf32>
    %c0_120 = arith.constant 0 : index
    %c0_121 = arith.constant 0 : index
    %c0_122 = arith.constant 0 : index
    %358 = vector.load %arg9[%c0_120, %c0_121, %c0_122] : memref<1x64x64xbf16, #tpu.memory_space<vmem>>, vector<1x64x64xbf16>
    %359 = vector.shape_cast %358 : vector<1x64x64xbf16> to vector<64x64xbf16>
    %360 = arith.truncf %357 : vector<16x64xf32> to vector<16x64xbf16>
    %cst_123 = arith.constant dense<0.000000e+00> : vector<16x64xf32>
    %361 = tpu.matmul %360, %359, %cst_123 {dimension_numbers = #tpu.dot_dimension_numbers<[1], [0], [0], [1], [0, 0, 1, 1], [], []>} : vector<16x64xbf16>, vector<64x64xbf16>, vector<16x64xf32> -> vector<16x64xf32>
    %c0_124 = arith.constant 0 : index
    %c0_125 = arith.constant 0 : index
    %c0_126 = arith.constant 0 : index
    %362 = vector.load %arg10[%c0_124, %c0_125, %c0_126] : memref<1x1x64xf32, #tpu.memory_space<vmem>>, vector<1x1x64xf32>
    %363 = vector.shape_cast %362 : vector<1x1x64xf32> to vector<1x64xf32>
    %364 = vector.broadcast %363 : vector<1x64xf32> to vector<16x64xf32>
    %365 = arith.addf %361, %364 : vector<16x64xf32>
    %366 = arith.addf %214, %365 : vector<16x64xf32>
    %367 = vector.extract_strided_slice %7 {offsets = [2, 0], sizes = [1, 64], strides = [1, 1]} : vector<6x64xf32> to vector<1x64xf32>
    %368 = vector.extract_strided_slice %7 {offsets = [3, 0], sizes = [1, 64], strides = [1, 1]} : vector<6x64xf32> to vector<1x64xf32>
    %cst_127 = arith.constant dense<0.000000e+00> : vector<16xf32>
    %369 = vector.multi_reduction <add>, %366, %cst_127 [1] : vector<16x64xf32> to vector<16xf32>
    %370 = vector.shape_cast %369 : vector<16xf32> to vector<16x1xf32>
    %cst_128 = arith.constant 6.400000e+01 : f32
    %371 = vector.broadcast %cst_128 : f32 to vector<16x1xf32>
    %372 = arith.divf %370, %371 : vector<16x1xf32>
    %373 = vector.broadcast %372 : vector<16x1xf32> to vector<16x64xf32>
    %374 = arith.subf %366, %373 : vector<16x64xf32>
    %375 = arith.mulf %374, %374 : vector<16x64xf32>
    %cst_129 = arith.constant dense<0.000000e+00> : vector<16xf32>
    %376 = vector.multi_reduction <add>, %375, %cst_129 [1] : vector<16x64xf32> to vector<16xf32>
    %377 = vector.shape_cast %376 : vector<16xf32> to vector<16x1xf32>
    %cst_130 = arith.constant 6.400000e+01 : f32
    %378 = vector.broadcast %cst_130 : f32 to vector<16x1xf32>
    %379 = arith.divf %377, %378 : vector<16x1xf32>
    %380 = vector.broadcast %372 : vector<16x1xf32> to vector<16x64xf32>
    %381 = arith.subf %366, %380 : vector<16x64xf32>
    %cst_131 = arith.constant 9.99999974E-6 : f32
    %382 = vector.broadcast %cst_131 : f32 to vector<16x1xf32>
    %383 = arith.addf %379, %382 : vector<16x1xf32>
    %384 = math.rsqrt %383 : vector<16x1xf32>
    %385 = vector.broadcast %384 : vector<16x1xf32> to vector<16x64xf32>
    %386 = arith.mulf %381, %385 : vector<16x64xf32>
    %387 = vector.broadcast %367 : vector<1x64xf32> to vector<16x64xf32>
    %388 = arith.mulf %386, %387 : vector<16x64xf32>
    %389 = vector.broadcast %368 : vector<1x64xf32> to vector<16x64xf32>
    %390 = arith.addf %388, %389 : vector<16x64xf32>
    %cst_132 = arith.constant 0.000000e+00 : f32
    %391 = vector.broadcast %cst_132 : f32 to vector<16x64xf32>
    %c0_133 = arith.constant 0 : index
    %c0_134 = arith.constant 0 : index
    %c0_135 = arith.constant 0 : index
    %392 = vector.load %arg11[%c0_133, %c0_134, %c0_135] : memref<1x64x2048xbf16, #tpu.memory_space<vmem>>, vector<1x64x1024xbf16>
    %393 = vector.shape_cast %392 : vector<1x64x1024xbf16> to vector<64x1024xbf16>
    %394 = arith.truncf %390 : vector<16x64xf32> to vector<16x64xbf16>
    %cst_136 = arith.constant dense<0.000000e+00> : vector<16x1024xf32>
    %395 = tpu.matmul %394, %393, %cst_136 {dimension_numbers = #tpu.dot_dimension_numbers<[1], [0], [0], [1], [0, 0, 1, 1], [], []>} : vector<16x64xbf16>, vector<64x1024xbf16>, vector<16x1024xf32> -> vector<16x1024xf32>
    %c0_137 = arith.constant 0 : index
    %c0_138 = arith.constant 0 : index
    %c0_139 = arith.constant 0 : index
    %396 = vector.load %arg12[%c0_137, %c0_138, %c0_139] : memref<1x1x2048xf32, #tpu.memory_space<vmem>>, vector<1x1x1024xf32>
    %397 = vector.shape_cast %396 : vector<1x1x1024xf32> to vector<1x1024xf32>
    %398 = vector.broadcast %397 : vector<1x1024xf32> to vector<16x1024xf32>
    %399 = arith.addf %395, %398 : vector<16x1024xf32>
    %cst_140 = arith.constant 0.000000e+00 : f32
    %400 = vector.broadcast %cst_140 : f32 to vector<16x1024xf32>
    %401 = arith.maximumf %399, %400 : vector<16x1024xf32>
    %c0_141 = arith.constant 0 : index
    %c0_142 = arith.constant 0 : index
    %c0_143 = arith.constant 0 : index
    %402 = vector.load %arg13[%c0_141, %c0_142, %c0_143] : memref<1x2048x64xbf16, #tpu.memory_space<vmem>>, vector<1x1024x64xbf16>
    %403 = vector.shape_cast %402 : vector<1x1024x64xbf16> to vector<1024x64xbf16>
    %404 = arith.truncf %401 : vector<16x1024xf32> to vector<16x1024xbf16>
    %cst_144 = arith.constant dense<0.000000e+00> : vector<16x64xf32>
    %405 = tpu.matmul %404, %403, %cst_144 {dimension_numbers = #tpu.dot_dimension_numbers<[1], [0], [0], [1], [0, 0, 1, 1], [], []>} : vector<16x1024xbf16>, vector<1024x64xbf16>, vector<16x64xf32> -> vector<16x64xf32>
    %406 = arith.addf %391, %405 : vector<16x64xf32>
    %c0_145 = arith.constant 0 : index
    %c0_146 = arith.constant 0 : index
    %c1024 = arith.constant 1024 : index
    %407 = vector.load %arg11[%c0_145, %c0_146, %c1024] : memref<1x64x2048xbf16, #tpu.memory_space<vmem>>, vector<1x64x1024xbf16>
    %408 = vector.shape_cast %407 : vector<1x64x1024xbf16> to vector<64x1024xbf16>
    %409 = arith.truncf %390 : vector<16x64xf32> to vector<16x64xbf16>
    %cst_147 = arith.constant dense<0.000000e+00> : vector<16x1024xf32>
    %410 = tpu.matmul %409, %408, %cst_147 {dimension_numbers = #tpu.dot_dimension_numbers<[1], [0], [0], [1], [0, 0, 1, 1], [], []>} : vector<16x64xbf16>, vector<64x1024xbf16>, vector<16x1024xf32> -> vector<16x1024xf32>
    %c0_148 = arith.constant 0 : index
    %c0_149 = arith.constant 0 : index
    %c1024_150 = arith.constant 1024 : index
    %411 = vector.load %arg12[%c0_148, %c0_149, %c1024_150] : memref<1x1x2048xf32, #tpu.memory_space<vmem>>, vector<1x1x1024xf32>
    %412 = vector.shape_cast %411 : vector<1x1x1024xf32> to vector<1x1024xf32>
    %413 = vector.broadcast %412 : vector<1x1024xf32> to vector<16x1024xf32>
    %414 = arith.addf %410, %413 : vector<16x1024xf32>
    %cst_151 = arith.constant 0.000000e+00 : f32
    %415 = vector.broadcast %cst_151 : f32 to vector<16x1024xf32>
    %416 = arith.maximumf %414, %415 : vector<16x1024xf32>
    %c0_152 = arith.constant 0 : index
    %c1024_153 = arith.constant 1024 : index
    %c0_154 = arith.constant 0 : index
    %417 = vector.load %arg13[%c0_152, %c1024_153, %c0_154] : memref<1x2048x64xbf16, #tpu.memory_space<vmem>>, vector<1x1024x64xbf16>
    %418 = vector.shape_cast %417 : vector<1x1024x64xbf16> to vector<1024x64xbf16>
    %419 = arith.truncf %416 : vector<16x1024xf32> to vector<16x1024xbf16>
    %cst_155 = arith.constant dense<0.000000e+00> : vector<16x64xf32>
    %420 = tpu.matmul %419, %418, %cst_155 {dimension_numbers = #tpu.dot_dimension_numbers<[1], [0], [0], [1], [0, 0, 1, 1], [], []>} : vector<16x1024xbf16>, vector<1024x64xbf16>, vector<16x64xf32> -> vector<16x64xf32>
    %421 = arith.addf %406, %420 : vector<16x64xf32>
    %422 = arith.addf %390, %421 : vector<16x64xf32>
    %c0_156 = arith.constant 0 : index
    %c0_157 = arith.constant 0 : index
    %c0_158 = arith.constant 0 : index
    %423 = vector.load %arg14[%c0_156, %c0_157, %c0_158] : memref<1x1x64xf32, #tpu.memory_space<vmem>>, vector<1x1x64xf32>
    %424 = vector.shape_cast %423 : vector<1x1x64xf32> to vector<1x64xf32>
    %425 = vector.broadcast %424 : vector<1x64xf32> to vector<16x64xf32>
    %426 = arith.addf %422, %425 : vector<16x64xf32>
    %427 = vector.extract_strided_slice %7 {offsets = [4, 0], sizes = [1, 64], strides = [1, 1]} : vector<6x64xf32> to vector<1x64xf32>
    %428 = vector.extract_strided_slice %7 {offsets = [5, 0], sizes = [1, 64], strides = [1, 1]} : vector<6x64xf32> to vector<1x64xf32>
    %cst_159 = arith.constant dense<0.000000e+00> : vector<16xf32>
    %429 = vector.multi_reduction <add>, %426, %cst_159 [1] : vector<16x64xf32> to vector<16xf32>
    %430 = vector.shape_cast %429 : vector<16xf32> to vector<16x1xf32>
    %cst_160 = arith.constant 6.400000e+01 : f32
    %431 = vector.broadcast %cst_160 : f32 to vector<16x1xf32>
    %432 = arith.divf %430, %431 : vector<16x1xf32>
    %433 = vector.broadcast %432 : vector<16x1xf32> to vector<16x64xf32>
    %434 = arith.subf %426, %433 : vector<16x64xf32>
    %435 = arith.mulf %434, %434 : vector<16x64xf32>
    %cst_161 = arith.constant dense<0.000000e+00> : vector<16xf32>
    %436 = vector.multi_reduction <add>, %435, %cst_161 [1] : vector<16x64xf32> to vector<16xf32>
    %437 = vector.shape_cast %436 : vector<16xf32> to vector<16x1xf32>
    %cst_162 = arith.constant 6.400000e+01 : f32
    %438 = vector.broadcast %cst_162 : f32 to vector<16x1xf32>
    %439 = arith.divf %437, %438 : vector<16x1xf32>
    %440 = vector.broadcast %432 : vector<16x1xf32> to vector<16x64xf32>
    %441 = arith.subf %426, %440 : vector<16x64xf32>
    %cst_163 = arith.constant 9.99999974E-6 : f32
    %442 = vector.broadcast %cst_163 : f32 to vector<16x1xf32>
    %443 = arith.addf %439, %442 : vector<16x1xf32>
    %444 = math.rsqrt %443 : vector<16x1xf32>
    %445 = vector.broadcast %444 : vector<16x1xf32> to vector<16x64xf32>
    %446 = arith.mulf %441, %445 : vector<16x64xf32>
    %447 = vector.broadcast %427 : vector<1x64xf32> to vector<16x64xf32>
    %448 = arith.mulf %446, %447 : vector<16x64xf32>
    %449 = vector.broadcast %428 : vector<1x64xf32> to vector<16x64xf32>
    %450 = arith.addf %448, %449 : vector<16x64xf32>
    %c0_164 = arith.constant 0 : index
    %c0_165 = arith.constant 0 : index
    %451 = vector.load %arg19[%c0_164, %c0_165] : memref<16x64xf32, #tpu.memory_space<vmem>>, vector<16x64xf32>
    tpu.vector_store %arg19[%c0_164, %c0_165], %450 {strides = array<i32>} : memref<16x64xf32, #tpu.memory_space<vmem>>, vector<16x64xf32>,
    %c5_i32 = arith.constant 5 : i32
    %452 = arith.cmpi eq, %arg0, %c5_i32 : i32
    %453 = arith.extui %452 : i1 to i32
    %c0_i32_166 = arith.constant 0 : i32
    %454 = arith.cmpi ne, %453, %c0_i32_166 : i32
    scf.if %454 {
      %455 = vector.extract_strided_slice %450 {offsets = [8, 0], sizes = [8, 64], strides = [1, 1]} : vector<16x64xf32> to vector<8x64xf32>
      %c0_167 = arith.constant 0 : index
      %c0_168 = arith.constant 0 : index
      %456 = vector.load %arg16[%c0_167, %c0_168] : memref<64x128xf32, #tpu.memory_space<vmem>>, vector<64x128xf32>
      %cst_169 = arith.constant dense<0.000000e+00> : vector<8x128xf32>
      %457 = tpu.matmul %455, %456, %cst_169 {dimension_numbers = #tpu.dot_dimension_numbers<[1], [0], [0], [1], [0, 0, 1, 1], [], []>} : vector<8x64xf32>, vector<64x128xf32>, vector<8x128xf32> -> vector<8x128xf32>
      %c0_170 = arith.constant 0 : index
      %c0_171 = arith.constant 0 : index
      %458 = vector.load %arg17[%c0_170, %c0_171] : memref<1x128xf32, #tpu.memory_space<vmem>>, vector<1x128xf32>
      %459 = vector.broadcast %458 : vector<1x128xf32> to vector<8x128xf32>
      %460 = arith.addf %457, %459 : vector<8x128xf32>
      %c0_172 = arith.constant 0 : index
      %c0_173 = arith.constant 0 : index
      %461 = vector.load %arg18[%c0_172, %c0_173] : memref<8x128xf32, #tpu.memory_space<vmem>>, vector<8x128xf32>
      tpu.vector_store %arg18[%c0_172, %c0_173], %460 {strides = array<i32>} : memref<8x128xf32, #tpu.memory_space<vmem>>, vector<8x128xf32>,
    } else {
    }
    return
  }
  func.func @transform_0(%arg0: i32) -> (i32, i32, i32) {
    %c0_i32 = arith.constant 0 : i32
    %c0_i32_0 = arith.constant 0 : i32
    %c0_i32_1 = arith.constant 0 : i32
    %c0_i32_2 = arith.constant 0 : i32
    return %c0_i32, %c0_i32_0, %c0_i32_1 : i32, i32, i32
  }
  func.func @transform_1(%arg0: i32) -> (i32, i32) {
    %c0_i32 = arith.constant 0 : i32
    %c0_i32_0 = arith.constant 0 : i32
    %c0_i32_1 = arith.constant 0 : i32
    return %c0_i32, %c0_i32_0 : i32, i32
  }
  func.func @transform_2(%arg0: i32) -> (i32, i32, i32, i32) {
    %c0_i32 = arith.constant 0 : i32
    %c0_i32_0 = arith.constant 0 : i32
    %c0_i32_1 = arith.constant 0 : i32
    %c0_i32_2 = arith.constant 0 : i32
    return %arg0, %c0_i32, %c0_i32_0, %c0_i32_1 : i32, i32, i32, i32
  }
  func.func @transform_3(%arg0: i32) -> (i32, i32, i32) {
    %c0_i32 = arith.constant 0 : i32
    %c0_i32_0 = arith.constant 0 : i32
    %c0_i32_1 = arith.constant 0 : i32
    return %arg0, %c0_i32, %c0_i32_0 : i32, i32, i32
  }
  func.func @transform_4(%arg0: i32) -> (i32, i32, i32) {
    %c0_i32 = arith.constant 0 : i32
    %c0_i32_0 = arith.constant 0 : i32
    %c0_i32_1 = arith.constant 0 : i32
    return %arg0, %c0_i32, %c0_i32_0 : i32, i32, i32
  }
  func.func @transform_5(%arg0: i32) -> (i32, i32, i32) {
    %c0_i32 = arith.constant 0 : i32
    %c0_i32_0 = arith.constant 0 : i32
    %c0_i32_1 = arith.constant 0 : i32
    return %arg0, %c0_i32, %c0_i32_0 : i32, i32, i32
  }
  func.func @transform_6(%arg0: i32) -> (i32, i32, i32, i32) {
    %c0_i32 = arith.constant 0 : i32
    %c0_i32_0 = arith.constant 0 : i32
    %c0_i32_1 = arith.constant 0 : i32
    %c0_i32_2 = arith.constant 0 : i32
    return %arg0, %c0_i32, %c0_i32_0, %c0_i32_1 : i32, i32, i32, i32
  }
  func.func @transform_7(%arg0: i32) -> (i32, i32, i32) {
    %c0_i32 = arith.constant 0 : i32
    %c0_i32_0 = arith.constant 0 : i32
    %c0_i32_1 = arith.constant 0 : i32
    return %arg0, %c0_i32, %c0_i32_0 : i32, i32, i32
  }
  func.func @transform_8(%arg0: i32) -> (i32, i32, i32) {
    %c0_i32 = arith.constant 0 : i32
    %c0_i32_0 = arith.constant 0 : i32
    %c0_i32_1 = arith.constant 0 : i32
    return %arg0, %c0_i32, %c0_i32_0 : i32, i32, i32
  }
  func.func @transform_9(%arg0: i32) -> (i32, i32, i32) {
    %c0_i32 = arith.constant 0 : i32
    %c0_i32_0 = arith.constant 0 : i32
    %c0_i32_1 = arith.constant 0 : i32
    return %arg0, %c0_i32, %c0_i32_0 : i32, i32, i32
  }
  func.func @transform_10(%arg0: i32) -> (i32, i32, i32) {
    %c0_i32 = arith.constant 0 : i32
    %c0_i32_0 = arith.constant 0 : i32
    %c0_i32_1 = arith.constant 0 : i32
    return %arg0, %c0_i32, %c0_i32_0 : i32, i32, i32
  }
  func.func @transform_11(%arg0: i32) -> (i32, i32, i32) {
    %c0_i32 = arith.constant 0 : i32
    %c0_i32_0 = arith.constant 0 : i32
    %c0_i32_1 = arith.constant 0 : i32
    return %arg0, %c0_i32, %c0_i32_0 : i32, i32, i32
  }
  func.func @transform_12(%arg0: i32) -> (i32, i32, i32) {
    %c0_i32 = arith.constant 0 : i32
    %c0_i32_0 = arith.constant 0 : i32
    %c0_i32_1 = arith.constant 0 : i32
    return %arg0, %c0_i32, %c0_i32_0 : i32, i32, i32
  }
  func.func @transform_13(%arg0: i32) -> (i32, i32, i32) {
    %c0_i32 = arith.constant 0 : i32
    %c0_i32_0 = arith.constant 0 : i32
    %c0_i32_1 = arith.constant 0 : i32
    return %arg0, %c0_i32, %c0_i32_0 : i32, i32, i32
  }
  func.func @transform_14(%arg0: i32) -> (i32, i32, i32) {
    %c0_i32 = arith.constant 0 : i32
    %c0_i32_0 = arith.constant 0 : i32
    %c0_i32_1 = arith.constant 0 : i32
    return %arg0, %c0_i32, %c0_i32_0 : i32, i32, i32
  }
  func.func @transform_15(%arg0: i32) -> (i32, i32) {
    %c0_i32 = arith.constant 0 : i32
    %c0_i32_0 = arith.constant 0 : i32
    %c0_i32_1 = arith.constant 0 : i32
    return %c0_i32, %c0_i32_0 : i32, i32
  }
  func.func @transform_16(%arg0: i32) -> (i32, i32) {
    %c0_i32 = arith.constant 0 : i32
    %c0_i32_0 = arith.constant 0 : i32
    %c0_i32_1 = arith.constant 0 : i32
    return %c0_i32, %c0_i32_0 : i32, i32
  }
  func.func @transform_17(%arg0: i32) -> (i32, i32) {
    %c0_i32 = arith.constant 0 : i32
    %c0_i32_0 = arith.constant 0 : i32
    %c0_i32_1 = arith.constant 0 : i32
    return %c0_i32, %c0_i32_0 : i32, i32
  }
}

</mosaic_0001>

<llo_original>
// kernel: protein_function_predictor.1
$region0: #{protein_function_predictor.1}
  #allocation0 [shape = 'u32[]', space=smem, size = 0x4, offset = 0x4, fixed_abs, tag = 'smem constant byte address 0x4 - core index']
  #allocation1 [shape = 'u32[144,128]{1,0:T(1,128)}', space=vmem, size = 0x12000, scoped, tag = 'internal scratch']
  #allocation2 [shape = 'f32[16,64]{1,0:T(8,128)}', space=vmem, size = 0x2000, scoped, tag = 'scratch operand']
  #allocation3 [shape = 'f32[16,64]{1,0:T(8,128)}', space=vmem, size = 0x2000, scoped, tag = 'scratch operand']
  %s0 = inlined_call_operand.vmem [shape: f32[2,8,64], index: 0, kind: input, shape index: {}]
  %s1 = inlined_call_operand.vmem [shape: f32[8,64], index: 1, kind: input, shape index: {}]
  %s2 = inlined_call_operand.vmem [shape: bf16[6,3,64,64], index: 2, kind: input, shape index: {}]
  %s3 = inlined_call_operand.vmem [shape: f32[6,3,64], index: 3, kind: input, shape index: {}]
  %s4 = inlined_call_operand.vmem [shape: bf16[6,64,64], index: 4, kind: input, shape index: {}]
  %s5 = inlined_call_operand.vmem [shape: f32[6,1,64], index: 5, kind: input, shape index: {}]
  %s6 = inlined_call_operand.vmem [shape: bf16[6,3,64,64], index: 6, kind: input, shape index: {}]
  %s7 = inlined_call_operand.vmem [shape: f32[6,3,64], index: 7, kind: input, shape index: {}]
  %s8 = inlined_call_operand.vmem [shape: bf16[6,64,64], index: 8, kind: input, shape index: {}]
  %s9 = inlined_call_operand.vmem [shape: f32[6,1,64], index: 9, kind: input, shape index: {}]
  %s10 = inlined_call_operand.vmem [shape: bf16[6,64,2048], index: 10, kind: input, shape index: {}]
  %s11 = inlined_call_operand.vmem [shape: f32[6,1,2048], index: 11, kind: input, shape index: {}]
  %s12 = inlined_call_operand.vmem [shape: bf16[6,2048,64], index: 12, kind: input, shape index: {}]
  %s13 = inlined_call_operand.vmem [shape: f32[6,1,64], index: 13, kind: input, shape index: {}]
  %s14 = inlined_call_operand.vmem [shape: f32[6,6,64], index: 14, kind: input, shape index: {}]
  %s15 = inlined_call_operand.vmem [shape: f32[64,128], index: 15, kind: input, shape index: {}]
  %s16 = inlined_call_operand.vmem [shape: f32[1,128], index: 16, kind: input, shape index: {}]
  %s17 = inlined_call_operand.vmem [shape: f32[8,128], index: 17, kind: output, shape index: {}]
  %s18 = sld [smem:[#allocation0]]
  $region109: #{protein_function_predictor.1} parent=0
    _
  %s20 = ssub.s32 1, %s18
  %s21 = scalar_select 0, %s20, %s18
  loop: start=0, step=1, limit=8
  $region2: #{protein_function_predictor.1} parent=0 // loop_pre_header
    _
  $region3: #{protein_function_predictor.1} parent=0 // loop_header
    %s23 = sphi 0, %s27
    %p24 = scmp.ge.s32.totalorder %s23, 8
    %s31 = sphi 0, %s31
    %s33 = sphi 0, %s31
    %s34 = sphi 0, %s33
    %s48 = sphi 0, %s34
    %s52 = sphi 0, %s52
    %s54 = sphi 0, %s52
    %s55 = sphi 0, %s54
    %s69 = sphi 0, %s55
    %s75 = sphi 0, %s77
    %s78 = sphi 0, %s75
    %s79 = sphi 0, %s78
    %s95 = sphi 0, %s79
    %s101 = sphi 0, %s103
    %s104 = sphi 0, %s101
    %s105 = sphi 0, %s104
    %s121 = sphi 0, %s105
    %s127 = sphi 0, %s129
    %s130 = sphi 0, %s127
    %s131 = sphi 0, %s130
    %s147 = sphi 0, %s131
    %s153 = sphi 0, %s155
    %s156 = sphi 0, %s153
    %s157 = sphi 0, %s156
    %s173 = sphi 0, %s157
    %s179 = sphi 0, %s181
    %s182 = sphi 0, %s179
    %s183 = sphi 0, %s182
    %s199 = sphi 0, %s183
    %s205 = sphi 0, %s207
    %s208 = sphi 0, %s205
    %s209 = sphi 0, %s208
    %s225 = sphi 0, %s209
    %s231 = sphi 0, %s233
    %s234 = sphi 0, %s231
    %s235 = sphi 0, %s234
    %s251 = sphi 0, %s235
    %s257 = sphi 0, %s259
    %s260 = sphi 0, %s257
    %s261 = sphi 0, %s260
    %s277 = sphi 0, %s261
    %s283 = sphi 0, %s285
    %s286 = sphi 0, %s283
    %s287 = sphi 0, %s286
    %s303 = sphi 0, %s287
    %s309 = sphi 0, %s311
    %s312 = sphi 0, %s309
    %s313 = sphi 0, %s312
    %s329 = sphi 0, %s313
    %s335 = sphi 0, %s337
    %s338 = sphi 0, %s335
    %s339 = sphi 0, %s338
    %s355 = sphi 0, %s339
    %s361 = sphi 0, %s363
    %s364 = sphi 0, %s361
    %s365 = sphi 0, %s364
    %s381 = sphi 0, %s365
    %s387 = sphi 0, %s389
    %s390 = sphi 0, %s387
    %s391 = sphi 0, %s390
    %s407 = sphi 0, %s391
    %s411 = sphi 0, %s411
    %s413 = sphi 0, %s411
    %s414 = sphi 0, %s413
    %s428 = sphi 0, %s414
    %s432 = sphi 0, %s432
    %s434 = sphi 0, %s432
    %s435 = sphi 0, %s434
    %s449 = sphi 0, %s435
    %s453 = sphi 0, %s453
    %s455 = sphi 0, %s453
    %s456 = sphi 0, %s455
    %s470 = sphi 0, %s456
  $region4: #{protein_function_predictor.1} parent=0 // loop_header_branch
    %26 = sbr.rel (%p24) target = $region8
  $region5: #{protein_function_predictor.1} parent=0 // loop_body
    %s28 = ssub.s32 %s23, 1
    %s29 = ssub.s32 %s23, 2
    %s30 = sadd.s32 %s23, 1
    %s32 = sadd.s32 %s31, 1
    %p35 = scmp.eq.s32.totalorder %s23, 5
    %p36 = scmp.ne.s32.totalorder %s31, %s33
    %p37 = scmp.eq.s32.totalorder %s23, 0
    %p38 = por %p36, %p37
    %p39 = scmp.ne.s32.totalorder %s31, %s33
    %p40 = scmp.eq.s32.totalorder %s28, 5
    %p41 = por %p39, %p40
    %p42 = scmp.ne.s32.totalorder %s33, %s34
    %p43 = scmp.eq.s32.totalorder %s28, 0
    %p44 = por %p42, %p43
    %p45 = scmp.ne.s32.totalorder %s33, %s34
    %p46 = scmp.eq.s32.totalorder %s29, 5
    %p47 = por %p45, %p46
    %p49 = scmp.ne.s32.totalorder %s34, %s48
    %p50 = scmp.eq.s32.totalorder %s29, 0
    %p51 = por %p49, %p50
    %s53 = sadd.s32 %s52, 1
    %p56 = scmp.eq.s32.totalorder %s23, 5
    %p57 = scmp.ne.s32.totalorder %s52, %s54
    %p58 = scmp.eq.s32.totalorder %s23, 0
    %p59 = por %p57, %p58
    %p60 = scmp.ne.s32.totalorder %s52, %s54
    %p61 = scmp.eq.s32.totalorder %s28, 5
    %p62 = por %p60, %p61
    %p63 = scmp.ne.s32.totalorder %s54, %s55
    %p64 = scmp.eq.s32.totalorder %s28, 0
    %p65 = por %p63, %p64
    %p66 = scmp.ne.s32.totalorder %s54, %s55
    %p67 = scmp.eq.s32.totalorder %s29, 5
    %p68 = por %p66, %p67
    %p70 = scmp.ne.s32.totalorder %s55, %s69
    %p71 = scmp.eq.s32.totalorder %s29, 0
    %p72 = por %p70, %p71
    %s73 = ssub.s32 %s23, %s30
    %p74 = scmp.eq.s32.totalorder %s73, 0
    %s76 = sadd.s32 %s75, 1
    %s77 = scalar_select %p74, %s75, %s76
    %p80 = pneg %p74
    %p81 = scmp.eq.s32.totalorder %s23, 5
    %p82 = por %p80, %p81
    %p83 = scmp.ne.s32.totalorder %s75, %s78
    %p84 = scmp.eq.s32.totalorder %s23, 0
    %p85 = por %p83, %p84
    %p86 = scmp.ne.s32.totalorder %s75, %s78
    %p87 = scmp.eq.s32.totalorder %s28, 5
    %p88 = por %p86, %p87
    %p89 = scmp.ne.s32.totalorder %s78, %s79
    %p90 = scmp.eq.s32.totalorder %s28, 0
    %p91 = por %p89, %p90
    %p92 = scmp.ne.s32.totalorder %s78, %s79
    %p93 = scmp.eq.s32.totalorder %s29, 5
    %p94 = por %p92, %p93
    %p96 = scmp.ne.s32.totalorder %s79, %s95
    %p97 = scmp.eq.s32.totalorder %s29, 0
    %p98 = por %p96, %p97
    %s99 = ssub.s32 %s23, %s30
    %p100 = scmp.eq.s32.totalorder %s99, 0
    %s102 = sadd.s32 %s101, 1
    %s103 = scalar_select %p100, %s101, %s102
    %p106 = pneg %p100
    %p107 = scmp.eq.s32.totalorder %s23, 5
    %p108 = por %p106, %p107
    %p109 = scmp.ne.s32.totalorder %s101, %s104
    %p110 = scmp.eq.s32.totalorder %s23, 0
    %p111 = por %p109, %p110
    %p112 = scmp.ne.s32.totalorder %s101, %s104
    %p113 = scmp.eq.s32.totalorder %s28, 5
    %p114 = por %p112, %p113
    %p115 = scmp.ne.s32.totalorder %s104, %s105
    %p116 = scmp.eq.s32.totalorder %s28, 0
    %p117 = por %p115, %p116
    %p118 = scmp.ne.s32.totalorder %s104, %s105
    %p119 = scmp.eq.s32.totalorder %s29, 5
    %p120 = por %p118, %p119
    %p122 = scmp.ne.s32.totalorder %s105, %s121
    %p123 = scmp.eq.s32.totalorder %s29, 0
    %p124 = por %p122, %p123
    %s125 = ssub.s32 %s23, %s30
    %p126 = scmp.eq.s32.totalorder %s125, 0
    %s128 = sadd.s32 %s127, 1
    %s129 = scalar_select %p126, %s127, %s128
    %p132 = pneg %p126
    %p133 = scmp.eq.s32.totalorder %s23, 5
    %p134 = por %p132, %p133
    %p135 = scmp.ne.s32.totalorder %s127, %s130
    %p136 = scmp.eq.s32.totalorder %s23, 0
    %p137 = por %p135, %p136
    %p138 = scmp.ne.s32.totalorder %s127, %s130
    %p139 = scmp.eq.s32.totalorder %s28, 5
    %p140 = por %p138, %p139
    %p141 = scmp.ne.s32.totalorder %s130, %s131
    %p142 = scmp.eq.s32.totalorder %s28, 0
    %p143 = por %p141, %p142
    %p144 = scmp.ne.s32.totalorder %s130, %s131
    %p145 = scmp.eq.s32.totalorder %s29, 5
    %p146 = por %p144, %p145
    %p148 = scmp.ne.s32.totalorder %s131, %s147
    %p149 = scmp.eq.s32.totalorder %s29, 0
    %p150 = por %p148, %p149
    %s151 = ssub.s32 %s23, %s30
    %p152 = scmp.eq.s32.totalorder %s151, 0
    %s154 = sadd.s32 %s153, 1
    %s155 = scalar_select %p152, %s153, %s154
    %p158 = pneg %p152
    %p159 = scmp.eq.s32.totalorder %s23, 5
    %p160 = por %p158, %p159
    %p161 = scmp.ne.s32.totalorder %s153, %s156
    %p162 = scmp.eq.s32.totalorder %s23, 0
    %p163 = por %p161, %p162
    %p164 = scmp.ne.s32.totalorder %s153, %s156
    %p165 = scmp.eq.s32.totalorder %s28, 5
    %p166 = por %p164, %p165
    %p167 = scmp.ne.s32.totalorder %s156, %s157
    %p168 = scmp.eq.s32.totalorder %s28, 0
    %p169 = por %p167, %p168
    %p170 = scmp.ne.s32.totalorder %s156, %s157
    %p171 = scmp.eq.s32.totalorder %s29, 5
    %p172 = por %p170, %p171
    %p174 = scmp.ne.s32.totalorder %s157, %s173
    %p175 = scmp.eq.s32.totalorder %s29, 0
    %p176 = por %p174, %p175
    %s177 = ssub.s32 %s23, %s30
    %p178 = scmp.eq.s32.totalorder %s177, 0
    %s180 = sadd.s32 %s179, 1
    %s181 = scalar_select %p178, %s179, %s180
    %p184 = pneg %p178
    %p185 = scmp.eq.s32.totalorder %s23, 5
    %p186 = por %p184, %p185
    %p187 = scmp.ne.s32.totalorder %s179, %s182
    %p188 = scmp.eq.s32.totalorder %s23, 0
    %p189 = por %p187, %p188
    %p190 = scmp.ne.s32.totalorder %s179, %s182
    %p191 = scmp.eq.s32.totalorder %s28, 5
    %p192 = por %p190, %p191
    %p193 = scmp.ne.s32.totalorder %s182, %s183
    %p194 = scmp.eq.s32.totalorder %s28, 0
    %p195 = por %p193, %p194
    %p196 = scmp.ne.s32.totalorder %s182, %s183
    %p197 = scmp.eq.s32.totalorder %s29, 5
    %p198 = por %p196, %p197
    %p200 = scmp.ne.s32.totalorder %s183, %s199
    %p201 = scmp.eq.s32.totalorder %s29, 0
    %p202 = por %p200, %p201
    %s203 = ssub.s32 %s23, %s30
    %p204 = scmp.eq.s32.totalorder %s203, 0
    %s206 = sadd.s32 %s205, 1
    %s207 = scalar_select %p204, %s205, %s206
    %p210 = pneg %p204
    %p211 = scmp.eq.s32.totalorder %s23, 5
    %p212 = por %p210, %p211
    %p213 = scmp.ne.s32.totalorder %s205, %s208
    %p214 = scmp.eq.s32.totalorder %s23, 0
    %p215 = por %p213, %p214
    %p216 = scmp.ne.s32.totalorder %s205, %s208
    %p217 = scmp.eq.s32.totalorder %s28, 5
    %p218 = por %p216, %p217
    %p219 = scmp.ne.s32.totalorder %s208, %s209
    %p220 = scmp.eq.s32.totalorder %s28, 0
    %p221 = por %p219, %p220
    %p222 = scmp.ne.s32.totalorder %s208, %s209
    %p223 = scmp.eq.s32.totalorder %s29, 5
    %p224 = por %p222, %p223
    %p226 = scmp.ne.s32.totalorder %s209, %s225
    %p227 = scmp.eq.s32.totalorder %s29, 0
    %p228 = por %p226, %p227
    %s229 = ssub.s32 %s23, %s30
    %p230 = scmp.eq.s32.totalorder %s229, 0
    %s232 = sadd.s32 %s231, 1
    %s233 = scalar_select %p230, %s231, %s232
    %p236 = pneg %p230
    %p237 = scmp.eq.s32.totalorder %s23, 5
    %p238 = por %p236, %p237
    %p239 = scmp.ne.s32.totalorder %s231, %s234
    %p240 = scmp.eq.s32.totalorder %s23, 0
    %p241 = por %p239, %p240
    %p242 = scmp.ne.s32.totalorder %s231, %s234
    %p243 = scmp.eq.s32.totalorder %s28, 5
    %p244 = por %p242, %p243
    %p245 = scmp.ne.s32.totalorder %s234, %s235
    %p246 = scmp.eq.s32.totalorder %s28, 0
    %p247 = por %p245, %p246
    %p248 = scmp.ne.s32.totalorder %s234, %s235
    %p249 = scmp.eq.s32.totalorder %s29, 5
    %p250 = por %p248, %p249
    %p252 = scmp.ne.s32.totalorder %s235, %s251
    %p253 = scmp.eq.s32.totalorder %s29, 0
    %p254 = por %p252, %p253
    %s255 = ssub.s32 %s23, %s30
    %p256 = scmp.eq.s32.totalorder %s255, 0
    %s258 = sadd.s32 %s257, 1
    %s259 = scalar_select %p256, %s257, %s258
    %p262 = pneg %p256
    %p263 = scmp.eq.s32.totalorder %s23, 5
    %p264 = por %p262, %p263
    %p265 = scmp.ne.s32.totalorder %s257, %s260
    %p266 = scmp.eq.s32.totalorder %s23, 0
    %p267 = por %p265, %p266
    %p268 = scmp.ne.s32.totalorder %s257, %s260
    %p269 = scmp.eq.s32.totalorder %s28, 5
    %p270 = por %p268, %p269
    %p271 = scmp.ne.s32.totalorder %s260, %s261
    %p272 = scmp.eq.s32.totalorder %s28, 0
    %p273 = por %p271, %p272
    %p274 = scmp.ne.s32.totalorder %s260, %s261
    %p275 = scmp.eq.s32.totalorder %s29, 5
    %p276 = por %p274, %p275
    %p278 = scmp.ne.s32.totalorder %s261, %s277
    %p279 = scmp.eq.s32.totalorder %s29, 0
    %p280 = por %p278, %p279
    %s281 = ssub.s32 %s23, %s30
    %p282 = scmp.eq.s32.totalorder %s281, 0
    %s284 = sadd.s32 %s283, 1
    %s285 = scalar_select %p282, %s283, %s284
    %p288 = pneg %p282
    %p289 = scmp.eq.s32.totalorder %s23, 5
    %p290 = por %p288, %p289
    %p291 = scmp.ne.s32.totalorder %s283, %s286
    %p292 = scmp.eq.s32.totalorder %s23, 0
    %p293 = por %p291, %p292
    %p294 = scmp.ne.s32.totalorder %s283, %s286
    %p295 = scmp.eq.s32.totalorder %s28, 5
    %p296 = por %p294, %p295
    %p297 = scmp.ne.s32.totalorder %s286, %s287
    %p298 = scmp.eq.s32.totalorder %s28, 0
    %p299 = por %p297, %p298
    %p300 = scmp.ne.s32.totalorder %s286, %s287
    %p301 = scmp.eq.s32.totalorder %s29, 5
    %p302 = por %p300, %p301
    %p304 = scmp.ne.s32.totalorder %s287, %s303
    %p305 = scmp.eq.s32.totalorder %s29, 0
    %p306 = por %p304, %p305
    %s307 = ssub.s32 %s23, %s30
    %p308 = scmp.eq.s32.totalorder %s307, 0
    %s310 = sadd.s32 %s309, 1
    %s311 = scalar_select %p308, %s309, %s310
    %p314 = pneg %p308
    %p315 = scmp.eq.s32.totalorder %s23, 5
    %p316 = por %p314, %p315
    %p317 = scmp.ne.s32.totalorder %s309, %s312
    %p318 = scmp.eq.s32.totalorder %s23, 0
    %p319 = por %p317, %p318
    %p320 = scmp.ne.s32.totalorder %s309, %s312
    %p321 = scmp.eq.s32.totalorder %s28, 5
    %p322 = por %p320, %p321
    %p323 = scmp.ne.s32.totalorder %s312, %s313
    %p324 = scmp.eq.s32.totalorder %s28, 0
    %p325 = por %p323, %p324
    %p326 = scmp.ne.s32.totalorder %s312, %s313
    %p327 = scmp.eq.s32.totalorder %s29, 5
    %p328 = por %p326, %p327
    %p330 = scmp.ne.s32.totalorder %s313, %s329
    %p331 = scmp.eq.s32.totalorder %s29, 0
    %p332 = por %p330, %p331
    %s333 = ssub.s32 %s23, %s30
    %p334 = scmp.eq.s32.totalorder %s333, 0
    %s336 = sadd.s32 %s335, 1
    %s337 = scalar_select %p334, %s335, %s336
    %p340 = pneg %p334
    %p341 = scmp.eq.s32.totalorder %s23, 5
    %p342 = por %p340, %p341
    %p343 = scmp.ne.s32.totalorder %s335, %s338
    %p344 = scmp.eq.s32.totalorder %s23, 0
    %p345 = por %p343, %p344
    %p346 = scmp.ne.s32.totalorder %s335, %s338
    %p347 = scmp.eq.s32.totalorder %s28, 5
    %p348 = por %p346, %p347
    %p349 = scmp.ne.s32.totalorder %s338, %s339
    %p350 = scmp.eq.s32.totalorder %s28, 0
    %p351 = por %p349, %p350
    %p352 = scmp.ne.s32.totalorder %s338, %s339
    %p353 = scmp.eq.s32.totalorder %s29, 5
    %p354 = por %p352, %p353
    %p356 = scmp.ne.s32.totalorder %s339, %s355
    %p357 = scmp.eq.s32.totalorder %s29, 0
    %p358 = por %p356, %p357
    %s359 = ssub.s32 %s23, %s30
    %p360 = scmp.eq.s32.totalorder %s359, 0
    %s362 = sadd.s32 %s361, 1
    %s363 = scalar_select %p360, %s361, %s362
    %p366 = pneg %p360
    %p367 = scmp.eq.s32.totalorder %s23, 5
    %p368 = por %p366, %p367
    %p369 = scmp.ne.s32.totalorder %s361, %s364
    %p370 = scmp.eq.s32.totalorder %s23, 0
    %p371 = por %p369, %p370
    %p372 = scmp.ne.s32.totalorder %s361, %s364
    %p373 = scmp.eq.s32.totalorder %s28, 5
    %p374 = por %p372, %p373
    %p375 = scmp.ne.s32.totalorder %s364, %s365
    %p376 = scmp.eq.s32.totalorder %s28, 0
    %p377 = por %p375, %p376
    %p378 = scmp.ne.s32.totalorder %s364, %s365
    %p379 = scmp.eq.s32.totalorder %s29, 5
    %p380 = por %p378, %p379
    %p382 = scmp.ne.s32.totalorder %s365, %s381
    %p383 = scmp.eq.s32.totalorder %s29, 0
    %p384 = por %p382, %p383
    %s385 = ssub.s32 %s23, %s30
    %p386 = scmp.eq.s32.totalorder %s385, 0
    %s388 = sadd.s32 %s387, 1
    %s389 = scalar_select %p386, %s387, %s388
    %p392 = pneg %p386
    %p393 = scmp.eq.s32.totalorder %s23, 5
    %p394 = por %p392, %p393
    %p395 = scmp.ne.s32.totalorder %s387, %s390
    %p396 = scmp.eq.s32.totalorder %s23, 0
    %p397 = por %p395, %p396
    %p398 = scmp.ne.s32.totalorder %s387, %s390
    %p399 = scmp.eq.s32.totalorder %s28, 5
    %p400 = por %p398, %p399
    %p401 = scmp.ne.s32.totalorder %s390, %s391
    %p402 = scmp.eq.s32.totalorder %s28, 0
    %p403 = por %p401, %p402
    %p404 = scmp.ne.s32.totalorder %s390, %s391
    %p405 = scmp.eq.s32.totalorder %s29, 5
    %p406 = por %p404, %p405
    %p408 = scmp.ne.s32.totalorder %s391, %s407
    %p409 = scmp.eq.s32.totalorder %s29, 0
    %p410 = por %p408, %p409
    %s412 = sadd.s32 %s411, 1
    %p415 = scmp.eq.s32.totalorder %s23, 5
    %p416 = scmp.ne.s32.totalorder %s411, %s413
    %p417 = scmp.eq.s32.totalorder %s23, 0
    %p418 = por %p416, %p417
    %p419 = scmp.ne.s32.totalorder %s411, %s413
    %p420 = scmp.eq.s32.totalorder %s28, 5
    %p421 = por %p419, %p420
    %p422 = scmp.ne.s32.totalorder %s413, %s414
    %p423 = scmp.eq.s32.totalorder %s28, 0
    %p424 = por %p422, %p423
    %p425 = scmp.ne.s32.totalorder %s413, %s414
    %p426 = scmp.eq.s32.totalorder %s29, 5
    %p427 = por %p425, %p426
    %p429 = scmp.ne.s32.totalorder %s414, %s428
    %p430 = scmp.eq.s32.totalorder %s29, 0
    %p431 = por %p429, %p430
    %s433 = sadd.s32 %s432, 1
    %p436 = scmp.eq.s32.totalorder %s23, 5
    %p437 = scmp.ne.s32.totalorder %s432, %s434
    %p438 = scmp.eq.s32.totalorder %s23, 0
    %p439 = por %p437, %p438
    %p440 = scmp.ne.s32.totalorder %s432, %s434
    %p441 = scmp.eq.s32.totalorder %s28, 5
    %p442 = por %p440, %p441
    %p443 = scmp.ne.s32.totalorder %s434, %s435
    %p444 = scmp.eq.s32.totalorder %s28, 0
    %p445 = por %p443, %p444
    %p446 = scmp.ne.s32.totalorder %s434, %s435
    %p447 = scmp.eq.s32.totalorder %s29, 5
    %p448 = por %p446, %p447
    %p450 = scmp.ne.s32.totalorder %s435, %s449
    %p451 = scmp.eq.s32.totalorder %s29, 0
    %p452 = por %p450, %p451
    %s454 = sadd.s32 %s453, 1
    %p457 = scmp.eq.s32.totalorder %s23, 5
    %p458 = scmp.ne.s32.totalorder %s453, %s455
    %p459 = scmp.eq.s32.totalorder %s23, 0
    %p460 = por %p458, %p459
    %p461 = scmp.ne.s32.totalorder %s453, %s455
    %p462 = scmp.eq.s32.totalorder %s28, 5
    %p463 = por %p461, %p462
    %p464 = scmp.ne.s32.totalorder %s455, %s456
    %p465 = scmp.eq.s32.totalorder %s28, 0
    %p466 = por %p464, %p465
    %p467 = scmp.ne.s32.totalorder %s455, %s456
    %p468 = scmp.eq.s32.totalorder %s29, 5
    %p469 = por %p467, %p468
    %p471 = scmp.ne.s32.totalorder %s456, %s470
    %p472 = scmp.eq.s32.totalorder %s29, 0
    %p473 = por %p471, %p472
    %p474 = scmp.le.s32.totalorder 1, %s23
    %p475 = scmp.lt.s32.totalorder %s23, 7
    %p476 = pnand %p474, %p475
    %p477 = pneg %p476
    // Predicated region
    $region9: #{protein_function_predictor.1} parent=5 // pred_check
      _
    $region10: #{protein_function_predictor.1} parent=5 // pred_check_branch
      %479 = sbr.rel (%p476) target = $region12
    $region11: #{protein_function_predictor.1} parent=5 // pred_region
      %s480 = ssub.s32 %s23, 1
      // Predicated region
      $region13: #{protein_function_predictor.1} parent=11 // pred_check
        %p481 = pneg %p44
      $region14: #{protein_function_predictor.1} parent=11 // pred_check_branch
        %483 = sbr.rel (%p481) target = $region16
      $region15: #{protein_function_predictor.1} parent=11 // pred_region
        _
      $region16: #{protein_function_predictor.1} parent=11 // pred_fallthru
        _
      // Predicated region
      $region17: #{protein_function_predictor.1} parent=11 // pred_check
        %p484 = pneg %p65
      $region18: #{protein_function_predictor.1} parent=11 // pred_check_branch
        %486 = sbr.rel (%p484) target = $region20
      $region19: #{protein_function_predictor.1} parent=11 // pred_region
        _
      $region20: #{protein_function_predictor.1} parent=11 // pred_fallthru
        _
      // Predicated region
      $region21: #{protein_function_predictor.1} parent=11 // pred_check
        %p487 = pneg %p424
      $region22: #{protein_function_predictor.1} parent=11 // pred_check_branch
        %489 = sbr.rel (%p487) target = $region24
      $region23: #{protein_function_predictor.1} parent=11 // pred_region
        _
      $region24: #{protein_function_predictor.1} parent=11 // pred_fallthru
        _
      // Predicated region
      $region25: #{protein_function_predictor.1} parent=11 // pred_check
        %p490 = pneg %p445
      $region26: #{protein_function_predictor.1} parent=11 // pred_check_branch
        %492 = sbr.rel (%p490) target = $region28
      $region27: #{protein_function_predictor.1} parent=11 // pred_region
        _
      $region28: #{protein_function_predictor.1} parent=11 // pred_fallthru
        _
    $region12: #{protein_function_predictor.1} parent=5 // pred_fallthru
      _
    %p493 = scmp.lt.s32.totalorder %s23, 6
    // Predicated region
    $region29: #{protein_function_predictor.1} parent=5 // pred_check
      %p494 = pneg %p493
    $region30: #{protein_function_predictor.1} parent=5 // pred_check_branch
      %496 = sbr.rel (%p494) target = $region32
    $region31: #{protein_function_predictor.1} parent=5 // pred_region
      // Predicated region
      $region33: #{protein_function_predictor.1} parent=31 // pred_check
        %p497 = pneg %p85
      $region34: #{protein_function_predictor.1} parent=31 // pred_check_branch
        %499 = sbr.rel (%p497) target = $region36
      $region35: #{protein_function_predictor.1} parent=31 // pred_region
        %p500 = scmp.lt.s32.totalorder %s23, 5
        %s501 = scalar_select %p500, %s23, 5
        %s502 = smul.addr %s501, 24
        %s503 = smul.addr %s502, 4
        %s504 = scalar_lea.vmem %s2, %s503
      $region36: #{protein_function_predictor.1} parent=31 // pred_fallthru
        _
      // Predicated region
      $region37: #{protein_function_predictor.1} parent=31 // pred_check
        %p505 = pneg %p111
      $region38: #{protein_function_predictor.1} parent=31 // pred_check_branch
        %507 = sbr.rel (%p505) target = $region40
      $region39: #{protein_function_predictor.1} parent=31 // pred_region
        %p508 = scmp.lt.s32.totalorder %s23, 5
        %s509 = scalar_select %p508, %s23, 5
        %s510 = smul.addr %s509, 4
        %s511 = scalar_lea.vmem %s3, %s510
      $region40: #{protein_function_predictor.1} parent=31 // pred_fallthru
        _
      // Predicated region
      $region41: #{protein_function_predictor.1} parent=31 // pred_check
        %p512 = pneg %p137
      $region42: #{protein_function_predictor.1} parent=31 // pred_check_branch
        %514 = sbr.rel (%p512) target = $region44
      $region43: #{protein_function_predictor.1} parent=31 // pred_region
        %p515 = scmp.lt.s32.totalorder %s23, 5
        %s516 = scalar_select %p515, %s23, 5
        %s517 = smul.addr %s516, 8
        %s518 = smul.addr %s517, 4
        %s519 = scalar_lea.vmem %s4, %s518
      $region44: #{protein_function_predictor.1} parent=31 // pred_fallthru
        _
      // Predicated region
      $region45: #{protein_function_predictor.1} parent=31 // pred_check
        %p520 = pneg %p163
      $region46: #{protein_function_predictor.1} parent=31 // pred_check_branch
        %522 = sbr.rel (%p520) target = $region48
      $region47: #{protein_function_predictor.1} parent=31 // pred_region
        %p523 = scmp.lt.s32.totalorder %s23, 5
        %s524 = scalar_select %p523, %s23, 5
        %s525 = scalar_lea.vmem %s5, %s524
      $region48: #{protein_function_predictor.1} parent=31 // pred_fallthru
        _
      // Predicated region
      $region49: #{protein_function_predictor.1} parent=31 // pred_check
        %p526 = pneg %p189
      $region50: #{protein_function_predictor.1} parent=31 // pred_check_branch
        %528 = sbr.rel (%p526) target = $region52
      $region51: #{protein_function_predictor.1} parent=31 // pred_region
        %p529 = scmp.lt.s32.totalorder %s23, 5
        %s530 = scalar_select %p529, %s23, 5
        %s531 = smul.addr %s530, 24
        %s532 = smul.addr %s531, 4
        %s533 = scalar_lea.vmem %s6, %s532
      $region52: #{protein_function_predictor.1} parent=31 // pred_fallthru
        _
      // Predicated region
      $region53: #{protein_function_predictor.1} parent=31 // pred_check
        %p534 = pneg %p215
      $region54: #{protein_function_predictor.1} parent=31 // pred_check_branch
        %536 = sbr.rel (%p534) target = $region56
      $region55: #{protein_function_predictor.1} parent=31 // pred_region
        %p537 = scmp.lt.s32.totalorder %s23, 5
        %s538 = scalar_select %p537, %s23, 5
        %s539 = smul.addr %s538, 4
        %s540 = scalar_lea.vmem %s7, %s539
      $region56: #{protein_function_predictor.1} parent=31 // pred_fallthru
        _
      // Predicated region
      $region57: #{protein_function_predictor.1} parent=31 // pred_check
        %p541 = pneg %p241
      $region58: #{protein_function_predictor.1} parent=31 // pred_check_branch
        %543 = sbr.rel (%p541) target = $region60
      $region59: #{protein_function_predictor.1} parent=31 // pred_region
        %p544 = scmp.lt.s32.totalorder %s23, 5
        %s545 = scalar_select %p544, %s23, 5
        %s546 = smul.addr %s545, 8
        %s547 = smul.addr %s546, 4
        %s548 = scalar_lea.vmem %s8, %s547
      $region60: #{protein_function_predictor.1} parent=31 // pred_fallthru
        _
      // Predicated region
      $region61: #{protein_function_predictor.1} parent=31 // pred_check
        %p549 = pneg %p267
      $region62: #{protein_function_predictor.1} parent=31 // pred_check_branch
        %551 = sbr.rel (%p549) target = $region64
      $region63: #{protein_function_predictor.1} parent=31 // pred_region
        %p552 = scmp.lt.s32.totalorder %s23, 5
        %s553 = scalar_select %p552, %s23, 5
        %s554 = scalar_lea.vmem %s9, %s553
      $region64: #{protein_function_predictor.1} parent=31 // pred_fallthru
        _
      // Predicated region
      $region65: #{protein_function_predictor.1} parent=31 // pred_check
        %p555 = pneg %p293
      $region66: #{protein_function_predictor.1} parent=31 // pred_check_branch
        %557 = sbr.rel (%p555) target = $region68
      $region67: #{protein_function_predictor.1} parent=31 // pred_region
        %p558 = scmp.lt.s32.totalorder %s23, 5
        %s559 = scalar_select %p558, %s23, 5
        %s560 = smul.addr %s559, 128
        %s561 = smul.addr %s560, 4
        %s562 = scalar_lea.vmem %s10, %s561
      $region68: #{protein_function_predictor.1} parent=31 // pred_fallthru
        _
      // Predicated region
      $region69: #{protein_function_predictor.1} parent=31 // pred_check
        %p563 = pneg %p319
      $region70: #{protein_function_predictor.1} parent=31 // pred_check_branch
        %565 = sbr.rel (%p563) target = $region72
      $region71: #{protein_function_predictor.1} parent=31 // pred_region
        %p566 = scmp.lt.s32.totalorder %s23, 5
        %s567 = scalar_select %p566, %s23, 5
        %s568 = smul.addr %s567, 16
        %s569 = scalar_lea.vmem %s11, %s568
      $region72: #{protein_function_predictor.1} parent=31 // pred_fallthru
        _
      // Predicated region
      $region73: #{protein_function_predictor.1} parent=31 // pred_check
        %p570 = pneg %p345
      $region74: #{protein_function_predictor.1} parent=31 // pred_check_branch
        %572 = sbr.rel (%p570) target = $region76
      $region75: #{protein_function_predictor.1} parent=31 // pred_region
        %p573 = scmp.lt.s32.totalorder %s23, 5
        %s574 = scalar_select %p573, %s23, 5
        %s575 = smul.addr %s574, 256
        %s576 = smul.addr %s575, 4
        %s577 = scalar_lea.vmem %s12, %s576
      $region76: #{protein_function_predictor.1} parent=31 // pred_fallthru
        _
      // Predicated region
      $region77: #{protein_function_predictor.1} parent=31 // pred_check
        %p578 = pneg %p371
      $region78: #{protein_function_predictor.1} parent=31 // pred_check_branch
        %580 = sbr.rel (%p578) target = $region80
      $region79: #{protein_function_predictor.1} parent=31 // pred_region
        %p581 = scmp.lt.s32.totalorder %s23, 5
        %s582 = scalar_select %p581, %s23, 5
        %s583 = scalar_lea.vmem %s13, %s582
      $region80: #{protein_function_predictor.1} parent=31 // pred_fallthru
        _
      // Predicated region
      $region81: #{protein_function_predictor.1} parent=31 // pred_check
        %p584 = pneg %p397
      $region82: #{protein_function_predictor.1} parent=31 // pred_check_branch
        %586 = sbr.rel (%p584) target = $region84
      $region83: #{protein_function_predictor.1} parent=31 // pred_region
        %p587 = scmp.lt.s32.totalorder %s23, 5
        %s588 = scalar_select %p587, %s23, 5
        %s589 = smul.addr %s588, 8
        %s590 = scalar_lea.vmem %s14, %s589
      $region84: #{protein_function_predictor.1} parent=31 // pred_fallthru
        _
    $region32: #{protein_function_predictor.1} parent=5 // pred_fallthru
      _
    %p591 = scmp.le.s32.totalorder 1, %s23
    %p592 = scmp.lt.s32.totalorder %s23, 7
    %p593 = pnand %p591, %p592
    %p594 = pneg %p593
    // Predicated region
    $region85: #{protein_function_predictor.1} parent=5 // pred_check
      _
    $region86: #{protein_function_predictor.1} parent=5 // pred_check_branch
      %596 = sbr.rel (%p593) target = $region88
    $region87: #{protein_function_predictor.1} parent=5 // pred_region
      %s597 = ssub.s32 %s23, 1
      %p598 = pneg %p44
      %p599 = pneg %p41
      %p600 = pneg %p65
      %p601 = pneg %p62
      %p602 = scmp.lt.s32.totalorder %s28, 5
      %s603 = scalar_select %p602, %s28, 5
      %s604 = smul.addr %s603, 24
      %s605 = smul.addr %s604, 4
      %s606 = scalar_lea.vmem %s2, %s605
      %p607 = pneg %p91
      %p608 = pneg %p88
      %p609 = scmp.lt.s32.totalorder %s28, 5
      %s610 = scalar_select %p609, %s28, 5
      %s611 = smul.addr %s610, 4
      %s612 = scalar_lea.vmem %s3, %s611
      %p613 = pneg %p117
      %p614 = pneg %p114
      %p615 = scmp.lt.s32.totalorder %s28, 5
      %s616 = scalar_select %p615, %s28, 5
      %s617 = smul.addr %s616, 8
      %s618 = smul.addr %s617, 4
      %s619 = scalar_lea.vmem %s4, %s618
      %p620 = pneg %p143
      %p621 = pneg %p140
      %p622 = scmp.lt.s32.totalorder %s28, 5
      %s623 = scalar_select %p622, %s28, 5
      %s624 = scalar_lea.vmem %s5, %s623
      %p625 = pneg %p169
      %p626 = pneg %p166
      %p627 = scmp.lt.s32.totalorder %s28, 5
      %s628 = scalar_select %p627, %s28, 5
      %s629 = smul.addr %s628, 24
      %s630 = smul.addr %s629, 4
      %s631 = scalar_lea.vmem %s6, %s630
      %p632 = pneg %p195
      %p633 = pneg %p192
      %p634 = scmp.lt.s32.totalorder %s28, 5
      %s635 = scalar_select %p634, %s28, 5
      %s636 = smul.addr %s635, 4
      %s637 = scalar_lea.vmem %s7, %s636
      %p638 = pneg %p221
      %p639 = pneg %p218
      %p640 = scmp.lt.s32.totalorder %s28, 5
      %s641 = scalar_select %p640, %s28, 5
      %s642 = smul.addr %s641, 8
      %s643 = smul.addr %s642, 4
      %s644 = scalar_lea.vmem %s8, %s643
      %p645 = pneg %p247
      %p646 = pneg %p244
      %p647 = scmp.lt.s32.totalorder %s28, 5
      %s648 = scalar_select %p647, %s28, 5
      %s649 = scalar_lea.vmem %s9, %s648
      %p650 = pneg %p273
      %p651 = pneg %p270
      %p652 = scmp.lt.s32.totalorder %s28, 5
      %s653 = scalar_select %p652, %s28, 5
      %s654 = smul.addr %s653, 128
      %s655 = smul.addr %s654, 4
      %s656 = scalar_lea.vmem %s10, %s655
      %p657 = pneg %p299
      %p658 = pneg %p296
      %p659 = scmp.lt.s32.totalorder %s28, 5
      %s660 = scalar_select %p659, %s28, 5
      %s661 = smul.addr %s660, 16
      %s662 = scalar_lea.vmem %s11, %s661
      %p663 = pneg %p325
      %p664 = pneg %p322
      %p665 = scmp.lt.s32.totalorder %s28, 5
      %s666 = scalar_select %p665, %s28, 5
      %s667 = smul.addr %s666, 256
      %s668 = smul.addr %s667, 4
      %s669 = scalar_lea.vmem %s12, %s668
      %p670 = pneg %p351
      %p671 = pneg %p348
      %p672 = scmp.lt.s32.totalorder %s28, 5
      %s673 = scalar_select %p672, %s28, 5
      %s674 = scalar_lea.vmem %s13, %s673
      %p675 = pneg %p377
      %p676 = pneg %p374
      %p677 = scmp.lt.s32.totalorder %s28, 5
      %s678 = scalar_select %p677, %s28, 5
      %s679 = smul.addr %s678, 8
      %s680 = scalar_lea.vmem %s14, %s679
      %p681 = pneg %p403
      %p682 = pneg %p400
      %p683 = pneg %p424
      %p684 = pneg %p421
      %p685 = pneg %p445
      %p686 = pneg %p442
      %p687 = pneg %p466
      %p688 = pneg %p463
      %p689 = scmp.lt.s32.totalorder %s28, 5
      %s690 = scalar_select %p689, %s28, 5
      %s691 = smul.addr %s690, 24
      %s692 = smul.addr %s691, 4
      %s693 = scalar_lea.vmem %s2, %s692
      %p694 = scmp.lt.s32.totalorder %s28, 5
      %s695 = scalar_select %p694, %s28, 5
      %s696 = smul.addr %s695, 4
      %s697 = scalar_lea.vmem %s3, %s696
      %p698 = scmp.lt.s32.totalorder %s28, 5
      %s699 = scalar_select %p698, %s28, 5
      %s700 = smul.addr %s699, 8
      %s701 = smul.addr %s700, 4
      %s702 = scalar_lea.vmem %s4, %s701
      %p703 = scmp.lt.s32.totalorder %s28, 5
      %s704 = scalar_select %p703, %s28, 5
      %s705 = scalar_lea.vmem %s5, %s704
      %p706 = scmp.lt.s32.totalorder %s28, 5
      %s707 = scalar_select %p706, %s28, 5
      %s708 = smul.addr %s707, 24
      %s709 = smul.addr %s708, 4
      %s710 = scalar_lea.vmem %s6, %s709
      %p711 = scmp.lt.s32.totalorder %s28, 5
      %s712 = scalar_select %p711, %s28, 5
      %s713 = smul.addr %s712, 4
      %s714 = scalar_lea.vmem %s7, %s713
      %p715 = scmp.lt.s32.totalorder %s28, 5
      %s716 = scalar_select %p715, %s28, 5
      %s717 = smul.addr %s716, 8
      %s718 = smul.addr %s717, 4
      %s719 = scalar_lea.vmem %s8, %s718
      %p720 = scmp.lt.s32.totalorder %s28, 5
      %s721 = scalar_select %p720, %s28, 5
      %s722 = scalar_lea.vmem %s9, %s721
      %p723 = scmp.lt.s32.totalorder %s28, 5
      %s724 = scalar_select %p723, %s28, 5
      %s725 = smul.addr %s724, 128
      %s726 = smul.addr %s725, 4
      %s727 = scalar_lea.vmem %s10, %s726
      %p728 = scmp.lt.s32.totalorder %s28, 5
      %s729 = scalar_select %p728, %s28, 5
      %s730 = smul.addr %s729, 16
      %s731 = scalar_lea.vmem %s11, %s730
      %p732 = scmp.lt.s32.totalorder %s28, 5
      %s733 = scalar_select %p732, %s28, 5
      %s734 = smul.addr %s733, 256
      %s735 = smul.addr %s734, 4
      %s736 = scalar_lea.vmem %s12, %s735
      %p737 = scmp.lt.s32.totalorder %s28, 5
      %s738 = scalar_select %p737, %s28, 5
      %s739 = scalar_lea.vmem %s13, %s738
      %p740 = scmp.lt.s32.totalorder %s28, 5
      %s741 = scalar_select %p740, %s28, 5
      %s742 = smul.addr %s741, 8
      %s743 = scalar_lea.vmem %s14, %s742
      %p745 = scmp.eq.s32.totalorder %s28, 0
      // Predicated region
      $region89: #{protein_function_predictor.1} parent=87 // pred_check
        %p746 = pneg %p745
      $region90: #{protein_function_predictor.1} parent=87 // pred_check_branch
        %748 = sbr.rel (%p746) target = $region92
      $region91: #{protein_function_predictor.1} parent=87 // pred_region
        %v749 = vld [vmem:[%s0] sm:$0xff]
        %v750 = vld [vmem:[%s0 + $0x8] sm:$0xff]
        %v751 = vld [vmem:[%s1] sm:$0xff]
        %v752 = vmul.f32 %v749, %v751
        %v753 = vmul.f32 %v750, %v751
        %vm754 = vcmask 523264
        %755 = vst.msk [vmem:[#allocation3] sm:$0xff] %vm754, %v752
        %756 = vst.msk [vmem:[#allocation3 + $0x8] sm:$0xff] %vm754, %v753
        %757 = vst.msk [vmem:[#allocation2] sm:$0xff] %vm754, %v752
        %758 = vst.msk [vmem:[#allocation2 + $0x8] sm:$0xff] %vm754, %v753
      $region92: #{protein_function_predictor.1} parent=87 // pred_fallthru
        _
      %v759 = vld [vmem:[#allocation2] sm:$0xff]
      %v760 = vld [vmem:[#allocation2 + $0x8] sm:$0xff]
      %v761 = vld [vmem:[#allocation3] sm:$0xff]
      %v762 = vld [vmem:[#allocation3 + $0x8] sm:$0xff]
      %v763 = vld [vmem:[%s743] sm:$0x3f]
      %v764 = vld [vmem:[%s697] sm:$0x7]
      %v765 = vld [vmem:[%s693] sm:$0xf]
      %v766 = vld [vmem:[%s693 + $0x4] sm:$0xf]
      %v767 = vld [vmem:[%s693 + $0x8] sm:$0xf]
      %v768 = vld [vmem:[%s693 + $0xc] sm:$0xf]
      %v769 = vld [vmem:[%s693 + $0x10] sm:$0xf]
      %v770 = vld [vmem:[%s693 + $0x14] sm:$0xf]
      %v771 = vld [vmem:[%s693 + $0x18] sm:$0xf]
      %v772 = vld [vmem:[%s693 + $0x1c] sm:$0xf]
      %v773 = vpack.c.bf16 %v760, %v759
      %v774 = vlaneseq
      %v775 = vshrl.u32 %v774, 7
      %v776 = vsub.s32 0, %v775
      %v777 = vrot.slane %v764, %v776
      %v786 = vunpack.c.l.b16 %v765
      %v787 = vunpack.c.l.b16 %v766
      %v788 = vunpack.c.l.b16 %v767
      %v789 = vunpack.c.l.b16 %v768
      %v790 = vunpack.c.l.b16 %v769
      %v791 = vunpack.c.l.b16 %v770
      %v792 = vunpack.c.l.b16 %v771
      %v793 = vunpack.c.l.b16 %v772
      %v794 = vpack.c.b16 %v787, %v786
      %v795 = vpack.c.b16 %v789, %v788
      %v796 = vpack.c.b16 %v791, %v790
      %v797 = vpack.c.b16 %v793, %v792
      %vm802 = vcmask 523264
      %v804 = vsel %vm802, %v773, 0
      %806 = vmatprep.subr.bf16.mxu0 0
      %807 = vmatpush1.bf16.msra.mxu0 0
      %808 = vmatprep.subr.bf16.mxu0 0
      %809 = vmatpush1.bf16.msra.mxu0 0
      %810 = vmatprep.subr.bf16.mxu0 0
      %811 = vmatpush1.bf16.msra.mxu0 0
      %812 = vmatprep.subr.bf16.mxu0 0
      %813 = vmatpush1.bf16.msra.mxu0 0
      %814 = vmatprep.subr.bf16.mxu0 0
      %815 = vmatpush1.bf16.msra.mxu0 %v797
      %816 = vmatprep.subr.bf16.mxu0 0
      %817 = vmatpush1.bf16.msra.mxu0 %v796
      %818 = vmatprep.subr.bf16.mxu0 0
      %819 = vmatpush1.bf16.msra.mxu0 %v795
      %820 = vmatprep.subr.bf16.mxu0 0
      %821 = vmatpush1.bf16.msra.mxu0 %v794
      %822 = vmatprep.subr.bf16.mxu0 0
      %823 = vmatpush2.bf16.msra.mxu0 0
      %824 = vmatprep.subr.bf16.mxu0 0
      %825 = vmatpush2.bf16.msra.mxu0 0
      %826 = vmatprep.subr.bf16.mxu0 0
      %827 = vmatpush2.bf16.msra.mxu0 0
      %828 = vmatprep.subr.bf16.mxu0 0
      %829 = vmatpush2.bf16.msra.mxu0 0
      %830 = vmatprep.subr.bf16.mxu0 0
      %831 = vmatpush2.bf16.msra.mxu0 0
      %832 = vmatprep.subr.bf16.mxu0 0
      %833 = vmatpush2.bf16.msra.mxu0 0
      %834 = vmatprep.subr.bf16.mxu0 0
      %835 = vmatpush2.bf16.msra.mxu0 0
      %836 = vmatprep.subr.bf16.mxu0 0
      %837 = vmatpush2.bf16.msra.mxu0 0
      %838 = vmatprep.mubr.bf16.mxu0 0
      %839 = vmatmul.mubr.bf16.gmra.mxu0 %v804
      %v840 = vpop.f32.mrf.mxu0
      %v841 = vadd.f32 %v777, %v840
      %v842 = vpop.f32.mrf.mxu0
      %v843 = vpop.f32.mrf.mxu0
      %v844 = vadd.f32 %v777, %v843
      %v845 = vpop.f32.mrf.mxu0
      %846 = vdwg.mxu0
      %v847 = vmul.f32 %v841, 0.35355338
      %v848 = vmul.f32 %v844, 0.35355338
      %s849 = scalar_lea.vmem %s693, 32
      %v850 = vld [vmem:[%s849] sm:$0xf]
      %v851 = vld [vmem:[%s849 + $0x4] sm:$0xf]
      %v852 = vld [vmem:[%s849 + $0x8] sm:$0xf]
      %v853 = vld [vmem:[%s849 + $0xc] sm:$0xf]
      %v854 = vld [vmem:[%s849 + $0x10] sm:$0xf]
      %v855 = vld [vmem:[%s849 + $0x14] sm:$0xf]
      %v856 = vld [vmem:[%s849 + $0x18] sm:$0xf]
      %v857 = vld [vmem:[%s849 + $0x1c] sm:$0xf]
      %v858 = vlaneseq
      %v859 = vshrl.u32 %v858, 7
      %v860 = vsub.s32 1, %v859
      %v861 = vrot.slane %v764, %v860
      %v870 = vunpack.c.l.b16 %v850
      %v871 = vunpack.c.l.b16 %v851
      %v872 = vunpack.c.l.b16 %v852
      %v873 = vunpack.c.l.b16 %v853
      %v874 = vunpack.c.l.b16 %v854
      %v875 = vunpack.c.l.b16 %v855
      %v876 = vunpack.c.l.b16 %v856
      %v877 = vunpack.c.l.b16 %v857
      %v878 = vpack.c.b16 %v871, %v870
      %v879 = vpack.c.b16 %v873, %v872
      %v880 = vpack.c.b16 %v875, %v874
      %v881 = vpack.c.b16 %v877, %v876
      %886 = vmatprep.subr.bf16.mxu0 0
      %887 = vmatpush1.bf16.msra.mxu0 0
      %888 = vmatprep.subr.bf16.mxu0 0
      %889 = vmatpush1.bf16.msra.mxu0 0
      %890 = vmatprep.subr.bf16.mxu0 0
      %891 = vmatpush1.bf16.msra.mxu0 0
      %892 = vmatprep.subr.bf16.mxu0 0
      %893 = vmatpush1.bf16.msra.mxu0 0
      %894 = vmatprep.subr.bf16.mxu0 0
      %895 = vmatpush1.bf16.msra.mxu0 %v881
      %896 = vmatprep.subr.bf16.mxu0 0
      %897 = vmatpush1.bf16.msra.mxu0 %v880
      %898 = vmatprep.subr.bf16.mxu0 0
      %899 = vmatpush1.bf16.msra.mxu0 %v879
      %900 = vmatprep.subr.bf16.mxu0 0
      %901 = vmatpush1.bf16.msra.mxu0 %v878
      %902 = vmatprep.subr.bf16.mxu0 0
      %903 = vmatpush2.bf16.msra.mxu0 0
      %904 = vmatprep.subr.bf16.mxu0 0
      %905 = vmatpush2.bf16.msra.mxu0 0
      %906 = vmatprep.subr.bf16.mxu0 0
      %907 = vmatpush2.bf16.msra.mxu0 0
      %908 = vmatprep.subr.bf16.mxu0 0
      %909 = vmatpush2.bf16.msra.mxu0 0
      %910 = vmatprep.subr.bf16.mxu0 0
      %911 = vmatpush2.bf16.msra.mxu0 0
      %912 = vmatprep.subr.bf16.mxu0 0
      %913 = vmatpush2.bf16.msra.mxu0 0
      %914 = vmatprep.subr.bf16.mxu0 0
      %915 = vmatpush2.bf16.msra.mxu0 0
      %916 = vmatprep.subr.bf16.mxu0 0
      %917 = vmatpush2.bf16.msra.mxu0 0
      %918 = vmatprep.mubr.bf16.mxu0 0
      %919 = vmatmul.mubr.bf16.gmra.mxu0 %v804
      %v920 = vpop.f32.mrf.mxu0
      %v921 = vadd.f32 %v861, %v920
      %v922 = vpop.f32.mrf.mxu0
      %v923 = vpop.f32.mrf.mxu0
      %v924 = vadd.f32 %v861, %v923
      %v925 = vpop.f32.mrf.mxu0
      %926 = vdwg.mxu0
      %s927 = scalar_lea.vmem %s693, 64
      %v928 = vld [vmem:[%s927] sm:$0xf]
      %v929 = vld [vmem:[%s927 + $0x4] sm:$0xf]
      %v930 = vld [vmem:[%s927 + $0x8] sm:$0xf]
      %v931 = vld [vmem:[%s927 + $0xc] sm:$0xf]
      %v932 = vld [vmem:[%s927 + $0x10] sm:$0xf]
      %v933 = vld [vmem:[%s927 + $0x14] sm:$0xf]
      %v934 = vld [vmem:[%s927 + $0x18] sm:$0xf]
      %v935 = vld [vmem:[%s927 + $0x1c] sm:$0xf]
      %v936 = vlaneseq
      %v937 = vshrl.u32 %v936, 7
      %v938 = vsub.s32 2, %v937
      %v939 = vrot.slane %v764, %v938
      %v948 = vunpack.c.l.b16 %v928
      %v949 = vunpack.c.l.b16 %v929
      %v950 = vunpack.c.l.b16 %v930
      %v951 = vunpack.c.l.b16 %v931
      %v952 = vunpack.c.l.b16 %v932
      %v953 = vunpack.c.l.b16 %v933
      %v954 = vunpack.c.l.b16 %v934
      %v955 = vunpack.c.l.b16 %v935
      %v956 = vpack.c.b16 %v949, %v948
      %v957 = vpack.c.b16 %v951, %v950
      %v958 = vpack.c.b16 %v953, %v952
      %v959 = vpack.c.b16 %v955, %v954
      %964 = vmatprep.subr.bf16.mxu0 0
      %965 = vmatpush1.bf16.msra.mxu0 0
      %966 = vmatprep.subr.bf16.mxu0 0
      %967 = vmatpush1.bf16.msra.mxu0 0
      %968 = vmatprep.subr.bf16.mxu0 0
      %969 = vmatpush1.bf16.msra.mxu0 0
      %970 = vmatprep.subr.bf16.mxu0 0
      %971 = vmatpush1.bf16.msra.mxu0 0
      %972 = vmatprep.subr.bf16.mxu0 0
      %973 = vmatpush1.bf16.msra.mxu0 %v959
      %974 = vmatprep.subr.bf16.mxu0 0
      %975 = vmatpush1.bf16.msra.mxu0 %v958
      %976 = vmatprep.subr.bf16.mxu0 0
      %977 = vmatpush1.bf16.msra.mxu0 %v957
      %978 = vmatprep.subr.bf16.mxu0 0
      %979 = vmatpush1.bf16.msra.mxu0 %v956
      %980 = vmatprep.subr.bf16.mxu0 0
      %981 = vmatpush2.bf16.msra.mxu0 0
      %982 = vmatprep.subr.bf16.mxu0 0
      %983 = vmatpush2.bf16.msra.mxu0 0
      %984 = vmatprep.subr.bf16.mxu0 0
      %985 = vmatpush2.bf16.msra.mxu0 0
      %986 = vmatprep.subr.bf16.mxu0 0
      %987 = vmatpush2.bf16.msra.mxu0 0
      %988 = vmatprep.subr.bf16.mxu0 0
      %989 = vmatpush2.bf16.msra.mxu0 0
      %990 = vmatprep.subr.bf16.mxu0 0
      %991 = vmatpush2.bf16.msra.mxu0 0
      %992 = vmatprep.subr.bf16.mxu0 0
      %993 = vmatpush2.bf16.msra.mxu0 0
      %994 = vmatprep.subr.bf16.mxu0 0
      %995 = vmatpush2.bf16.msra.mxu0 0
      %996 = vmatprep.mubr.bf16.mxu0 0
      %997 = vmatmul.mubr.bf16.gmra.mxu0 %v804
      %v998 = vpop.f32.mrf.mxu0
      %v999 = vadd.f32 %v939, %v998
      %v1000 = vpop.f32.mrf.mxu0
      %v1001 = vpop.f32.mrf.mxu0
      %v1002 = vadd.f32 %v939, %v1001
      %v1003 = vpop.f32.mrf.mxu0
      %1004 = vdwg.mxu0
      %v1005 = vlaneseq
      %v1006 = vshrl.u32 %v1005, 7
      %v1007 = vlaneseq
      %v1008 = vand.u32 %v1007, 127
      %vm1009 = vcmp.gt.s32.totalorder %v1008, %v1006
      %v1010 = vsel %vm1009, -1e+30, 0.0
      %vm1011 = vcmask 64512
      %v1013 = vsel %vm1011, %v847, 0
      %v1016 = vsel %vm1011, %v921, 0
      %1018 = vmatprep.subr.mxu0 0.0
      %1019 = vmatpush1.xpose.msra.mxu0 0.0
      %1020 = vmatprep.subr.mxu0 0.0
      %1021 = vmatpush1.xpose.msra.mxu0 0.0
      %1022 = vmatprep.subr.mxu0 0.0
      %1023 = vmatpush1.xpose.msra.mxu0 0.0
      %1024 = vmatprep.subr.mxu0 0.0
      %1025 = vmatpush1.xpose.msra.mxu0 0.0
      %1026 = vmatprep.subr.mxu0 0.0
      %1027 = vmatpush1.xpose.msra.mxu0 0.0
      %1028 = vmatprep.subr.mxu0 0.0
      %1029 = vmatpush1.xpose.msra.mxu0 0.0
      %1030 = vmatprep.subr.mxu0 0.0
      %1031 = vmatpush1.xpose.msra.mxu0 0.0
      %1032 = vmatprep.subr.mxu0 0.0
      %1033 = vmatpush1.xpose.msra.mxu0 0.0
      %1034 = vmatprep.subr.mxu0 0.0
      %1035 = vmatpush1.xpose.msra.mxu0 0.0
      %1036 = vmatprep.subr.mxu0 0.0
      %1037 = vmatpush1.xpose.msra.mxu0 0.0
      %1038 = vmatprep.subr.mxu0 0.0
      %1039 = vmatpush1.xpose.msra.mxu0 0.0
      %1040 = vmatprep.subr.mxu0 0.0
      %1041 = vmatpush1.xpose.msra.mxu0 0.0
      %1042 = vmatprep.subr.mxu0 0.0
      %1043 = vmatpush1.xpose.msra.mxu0 0.0
      %1044 = vmatprep.subr.mxu0 0.0
      %1045 = vmatpush1.xpose.msra.mxu0 0.0
      %1046 = vmatprep.subr.mxu0 0.0
      %1047 = vmatpush1.xpose.msra.mxu0 0.0
      %1048 = vmatprep.subr.mxu0 0.0
      %1049 = vmatpush1.xpose.msra.mxu0 %v1016
      %1050 = vmatprep.subr.mxu0 0.0
      %1051 = vmatpush2.xpose.msra.mxu0 0.0
      %1052 = vmatprep.subr.mxu0 0.0
      %1053 = vmatpush2.xpose.msra.mxu0 0.0
      %1054 = vmatprep.subr.mxu0 0.0
      %1055 = vmatpush2.xpose.msra.mxu0 0.0
      %1056 = vmatprep.subr.mxu0 0.0
      %1057 = vmatpush2.xpose.msra.mxu0 0.0
      %1058 = vmatprep.subr.mxu0 0.0
      %1059 = vmatpush2.xpose.msra.mxu0 0.0
      %1060 = vmatprep.subr.mxu0 0.0
      %1061 = vmatpush2.xpose.msra.mxu0 0.0
      %1062 = vmatprep.subr.mxu0 0.0
      %1063 = vmatpush2.xpose.msra.mxu0 0.0
      %1064 = vmatprep.subr.mxu0 0.0
      %1065 = vmatpush2.xpose.msra.mxu0 0.0
      %1066 = vmatprep.subr.mxu0 0.0
      %1067 = vmatpush2.xpose.msra.mxu0 0.0
      %1068 = vmatprep.subr.mxu0 0.0
      %1069 = vmatpush2.xpose.msra.mxu0 0.0
      %1070 = vmatprep.subr.mxu0 0.0
      %1071 = vmatpush2.xpose.msra.mxu0 0.0
      %1072 = vmatprep.subr.mxu0 0.0
      %1073 = vmatpush2.xpose.msra.mxu0 0.0
      %1074 = vmatprep.subr.mxu0 0.0
      %1075 = vmatpush2.xpose.msra.mxu0 0.0
      %1076 = vmatprep.subr.mxu0 0.0
      %1077 = vmatpush2.xpose.msra.mxu0 0.0
      %1078 = vmatprep.subr.mxu0 0.0
      %1079 = vmatpush2.xpose.msra.mxu0 0.0
      %1080 = vmatprep.subr.mxu0 0.0
      %1081 = vmatpush2.xpose.msra.mxu0 0.0
      %1082 = vmatprep.mubr.f32.mxu0 0.0
      %1083 = vmatmul.mubr.f32.gmra.mxu0 %v1013
      %v1084 = vpop.f32.mrf.mxu0
      %v1085 = vadd.f32 %v1010, %v1084
      %v1086 = vpop.f32.mrf.mxu0
      %1087 = vdwg.mxu0
      %v1089 = vsel %vm1011, %v848, 0
      %v1092 = vsel %vm1011, %v924, 0
      %1094 = vmatprep.subr.mxu0 0.0
      %1095 = vmatpush1.xpose.msra.mxu0 0.0
      %1096 = vmatprep.subr.mxu0 0.0
      %1097 = vmatpush1.xpose.msra.mxu0 0.0
      %1098 = vmatprep.subr.mxu0 0.0
      %1099 = vmatpush1.xpose.msra.mxu0 0.0
      %1100 = vmatprep.subr.mxu0 0.0
      %1101 = vmatpush1.xpose.msra.mxu0 0.0
      %1102 = vmatprep.subr.mxu0 0.0
      %1103 = vmatpush1.xpose.msra.mxu0 0.0
      %1104 = vmatprep.subr.mxu0 0.0
      %1105 = vmatpush1.xpose.msra.mxu0 0.0
      %1106 = vmatprep.subr.mxu0 0.0
      %1107 = vmatpush1.xpose.msra.mxu0 0.0
      %1108 = vmatprep.subr.mxu0 0.0
      %1109 = vmatpush1.xpose.msra.mxu0 0.0
      %1110 = vmatprep.subr.mxu0 0.0
      %1111 = vmatpush1.xpose.msra.mxu0 0.0
      %1112 = vmatprep.subr.mxu0 0.0
      %1113 = vmatpush1.xpose.msra.mxu0 0.0
      %1114 = vmatprep.subr.mxu0 0.0
      %1115 = vmatpush1.xpose.msra.mxu0 0.0
      %1116 = vmatprep.subr.mxu0 0.0
      %1117 = vmatpush1.xpose.msra.mxu0 0.0
      %1118 = vmatprep.subr.mxu0 0.0
      %1119 = vmatpush1.xpose.msra.mxu0 0.0
      %1120 = vmatprep.subr.mxu0 0.0
      %1121 = vmatpush1.xpose.msra.mxu0 0.0
      %1122 = vmatprep.subr.mxu0 0.0
      %1123 = vmatpush1.xpose.msra.mxu0 0.0
      %1124 = vmatprep.subr.mxu0 0.0
      %1125 = vmatpush1.xpose.msra.mxu0 %v1092
      %1126 = vmatprep.subr.mxu0 0.0
      %1127 = vmatpush2.xpose.msra.mxu0 0.0
      %1128 = vmatprep.subr.mxu0 0.0
      %1129 = vmatpush2.xpose.msra.mxu0 0.0
      %1130 = vmatprep.subr.mxu0 0.0
      %1131 = vmatpush2.xpose.msra.mxu0 0.0
      %1132 = vmatprep.subr.mxu0 0.0
      %1133 = vmatpush2.xpose.msra.mxu0 0.0
      %1134 = vmatprep.subr.mxu0 0.0
      %1135 = vmatpush2.xpose.msra.mxu0 0.0
      %1136 = vmatprep.subr.mxu0 0.0
      %1137 = vmatpush2.xpose.msra.mxu0 0.0
      %1138 = vmatprep.subr.mxu0 0.0
      %1139 = vmatpush2.xpose.msra.mxu0 0.0
      %1140 = vmatprep.subr.mxu0 0.0
      %1141 = vmatpush2.xpose.msra.mxu0 0.0
      %1142 = vmatprep.subr.mxu0 0.0
      %1143 = vmatpush2.xpose.msra.mxu0 0.0
      %1144 = vmatprep.subr.mxu0 0.0
      %1145 = vmatpush2.xpose.msra.mxu0 0.0
      %1146 = vmatprep.subr.mxu0 0.0
      %1147 = vmatpush2.xpose.msra.mxu0 0.0
      %1148 = vmatprep.subr.mxu0 0.0
      %1149 = vmatpush2.xpose.msra.mxu0 0.0
      %1150 = vmatprep.subr.mxu0 0.0
      %1151 = vmatpush2.xpose.msra.mxu0 0.0
      %1152 = vmatprep.subr.mxu0 0.0
      %1153 = vmatpush2.xpose.msra.mxu0 0.0
      %1154 = vmatprep.subr.mxu0 0.0
      %1155 = vmatpush2.xpose.msra.mxu0 0.0
      %1156 = vmatprep.subr.mxu0 0.0
      %1157 = vmatpush2.xpose.msra.mxu0 0.0
      %1158 = vmatprep.mubr.f32.mxu0 0.0
      %1159 = vmatmul.mubr.f32.gmra.mxu0 %v1089
      %v1160 = vpop.f32.mrf.mxu0
      %v1161 = vadd.f32 %v1010, %v1160
      %v1162 = vpop.f32.mrf.mxu0
      %1163 = vdwg.mxu0
      %v1164 = vsel %vm1011, %v1085, -inf
      %1165 = vmax.xlane.f32.xlu0 %v1164
      %v1166 = vpop.xlane.xlu0 %1165
      %v1167 = vsel %vm1011, %v1161, -inf
      %1168 = vmax.xlane.f32.xlu0 %v1167
      %v1169 = vpop.xlane.xlu0 %1168
      %v1170 = vsub.f32 %v1085, %v1166
      %v1171 = vsub.f32 %v1161, %v1169
      %v1172 = vmul.f32 %v1170, 1.442695
      %v1173 = vpow.pop %v1172
      %v1174 = vmul.f32 %v1171, 1.442695
      %v1175 = vpow.pop %v1174
      %v1176 = vsel %vm1011, %v1173, 0.0
      %1177 = vadd.xlane.f32.xlu0 %v1176
      %v1178 = vpop.xlane.xlu0 %1177
      %v1179 = vsel %vm1011, %v1175, 0.0
      %1180 = vadd.xlane.f32.xlu0 %v1179
      %v1181 = vpop.xlane.xlu0 %1180
      %v1182 = vrcp.pop %v1178
      %v1183 = vmul.f32 %v1173, %v1182
      %v1184 = vrcp.pop %v1181
      %v1185 = vmul.f32 %v1175, %v1184
      %v1187 = vsel %vm1011, %v1183, 0
      %1189 = vmatprep.subr.mxu0 0.0
      %1190 = vmatpush1.msra.mxu0 0.0
      %1191 = vmatprep.subr.mxu0 0.0
      %1192 = vmatpush1.msra.mxu0 0.0
      %1193 = vmatprep.subr.mxu0 0.0
      %1194 = vmatpush1.msra.mxu0 0.0
      %1195 = vmatprep.subr.mxu0 0.0
      %1196 = vmatpush1.msra.mxu0 0.0
      %1197 = vmatprep.subr.mxu0 0.0
      %1198 = vmatpush1.msra.mxu0 0.0
      %1199 = vmatprep.subr.mxu0 0.0
      %1200 = vmatpush1.msra.mxu0 0.0
      %1201 = vmatprep.subr.mxu0 0.0
      %1202 = vmatpush1.msra.mxu0 0.0
      %1203 = vmatprep.subr.mxu0 0.0
      %1204 = vmatpush1.msra.mxu0 0.0
      %1205 = vmatprep.subr.mxu0 0.0
      %1206 = vmatpush1.msra.mxu0 0.0
      %1207 = vmatprep.subr.mxu0 0.0
      %1208 = vmatpush1.msra.mxu0 0.0
      %1209 = vmatprep.subr.mxu0 0.0
      %1210 = vmatpush1.msra.mxu0 0.0
      %1211 = vmatprep.subr.mxu0 0.0
      %1212 = vmatpush1.msra.mxu0 0.0
      %1213 = vmatprep.subr.mxu0 0.0
      %1214 = vmatpush1.msra.mxu0 0.0
      %1215 = vmatprep.subr.mxu0 0.0
      %1216 = vmatpush1.msra.mxu0 0.0
      %1217 = vmatprep.subr.mxu0 0.0
      %1218 = vmatpush1.msra.mxu0 0.0
      %1219 = vmatprep.subr.mxu0 0.0
      %1220 = vmatpush1.msra.mxu0 %v999
      %1221 = vmatprep.subr.mxu0 0.0
      %1222 = vmatpush2.msra.mxu0 0.0
      %1223 = vmatprep.subr.mxu0 0.0
      %1224 = vmatpush2.msra.mxu0 0.0
      %1225 = vmatprep.subr.mxu0 0.0
      %1226 = vmatpush2.msra.mxu0 0.0
      %1227 = vmatprep.subr.mxu0 0.0
      %1228 = vmatpush2.msra.mxu0 0.0
      %1229 = vmatprep.subr.mxu0 0.0
      %1230 = vmatpush2.msra.mxu0 0.0
      %1231 = vmatprep.subr.mxu0 0.0
      %1232 = vmatpush2.msra.mxu0 0.0
      %1233 = vmatprep.subr.mxu0 0.0
      %1234 = vmatpush2.msra.mxu0 0.0
      %1235 = vmatprep.subr.mxu0 0.0
      %1236 = vmatpush2.msra.mxu0 0.0
      %1237 = vmatprep.subr.mxu0 0.0
      %1238 = vmatpush2.msra.mxu0 0.0
      %1239 = vmatprep.subr.mxu0 0.0
      %1240 = vmatpush2.msra.mxu0 0.0
      %1241 = vmatprep.subr.mxu0 0.0
      %1242 = vmatpush2.msra.mxu0 0.0
      %1243 = vmatprep.subr.mxu0 0.0
      %1244 = vmatpush2.msra.mxu0 0.0
      %1245 = vmatprep.subr.mxu0 0.0
      %1246 = vmatpush2.msra.mxu0 0.0
      %1247 = vmatprep.subr.mxu0 0.0
      %1248 = vmatpush2.msra.mxu0 0.0
      %1249 = vmatprep.subr.mxu0 0.0
      %1250 = vmatpush2.msra.mxu0 0.0
      %1251 = vmatprep.subr.mxu0 0.0
      %1252 = vmatpush2.msra.mxu0 0.0
      %1253 = vmatprep.mubr.f32.mxu0 0.0
      %1254 = vmatmul.mubr.f32.gmra.mxu0 %v1187
      %v1255 = vpop.f32.mrf.mxu0
      %v1256 = vadd.f32 0.0, %v1255
      %v1257 = vpop.f32.mrf.mxu0
      %1258 = vdwg.mxu0
      %v1260 = vsel %vm1011, %v1185, 0
      %1262 = vmatprep.subr.mxu0 0.0
      %1263 = vmatpush1.msra.mxu0 0.0
      %1264 = vmatprep.subr.mxu0 0.0
      %1265 = vmatpush1.msra.mxu0 0.0
      %1266 = vmatprep.subr.mxu0 0.0
      %1267 = vmatpush1.msra.mxu0 0.0
      %1268 = vmatprep.subr.mxu0 0.0
      %1269 = vmatpush1.msra.mxu0 0.0
      %1270 = vmatprep.subr.mxu0 0.0
      %1271 = vmatpush1.msra.mxu0 0.0
      %1272 = vmatprep.subr.mxu0 0.0
      %1273 = vmatpush1.msra.mxu0 0.0
      %1274 = vmatprep.subr.mxu0 0.0
      %1275 = vmatpush1.msra.mxu0 0.0
      %1276 = vmatprep.subr.mxu0 0.0
      %1277 = vmatpush1.msra.mxu0 0.0
      %1278 = vmatprep.subr.mxu0 0.0
      %1279 = vmatpush1.msra.mxu0 0.0
      %1280 = vmatprep.subr.mxu0 0.0
      %1281 = vmatpush1.msra.mxu0 0.0
      %1282 = vmatprep.subr.mxu0 0.0
      %1283 = vmatpush1.msra.mxu0 0.0
      %1284 = vmatprep.subr.mxu0 0.0
      %1285 = vmatpush1.msra.mxu0 0.0
      %1286 = vmatprep.subr.mxu0 0.0
      %1287 = vmatpush1.msra.mxu0 0.0
      %1288 = vmatprep.subr.mxu0 0.0
      %1289 = vmatpush1.msra.mxu0 0.0
      %1290 = vmatprep.subr.mxu0 0.0
      %1291 = vmatpush1.msra.mxu0 0.0
      %1292 = vmatprep.subr.mxu0 0.0
      %1293 = vmatpush1.msra.mxu0 %v1002
      %1294 = vmatprep.subr.mxu0 0.0
      %1295 = vmatpush2.msra.mxu0 0.0
      %1296 = vmatprep.subr.mxu0 0.0
      %1297 = vmatpush2.msra.mxu0 0.0
      %1298 = vmatprep.subr.mxu0 0.0
      %1299 = vmatpush2.msra.mxu0 0.0
      %1300 = vmatprep.subr.mxu0 0.0
      %1301 = vmatpush2.msra.mxu0 0.0
      %1302 = vmatprep.subr.mxu0 0.0
      %1303 = vmatpush2.msra.mxu0 0.0
      %1304 = vmatprep.subr.mxu0 0.0
      %1305 = vmatpush2.msra.mxu0 0.0
      %1306 = vmatprep.subr.mxu0 0.0
      %1307 = vmatpush2.msra.mxu0 0.0
      %1308 = vmatprep.subr.mxu0 0.0
      %1309 = vmatpush2.msra.mxu0 0.0
      %1310 = vmatprep.subr.mxu0 0.0
      %1311 = vmatpush2.msra.mxu0 0.0
      %1312 = vmatprep.subr.mxu0 0.0
      %1313 = vmatpush2.msra.mxu0 0.0
      %1314 = vmatprep.subr.mxu0 0.0
      %1315 = vmatpush2.msra.mxu0 0.0
      %1316 = vmatprep.subr.mxu0 0.0
      %1317 = vmatpush2.msra.mxu0 0.0
      %1318 = vmatprep.subr.mxu0 0.0
      %1319 = vmatpush2.msra.mxu0 0.0
      %1320 = vmatprep.subr.mxu0 0.0
      %1321 = vmatpush2.msra.mxu0 0.0
      %1322 = vmatprep.subr.mxu0 0.0
      %1323 = vmatpush2.msra.mxu0 0.0
      %1324 = vmatprep.subr.mxu0 0.0
      %1325 = vmatpush2.msra.mxu0 0.0
      %1326 = vmatprep.mubr.f32.mxu0 0.0
      %1327 = vmatmul.mubr.f32.gmra.mxu0 %v1260
      %v1328 = vpop.f32.mrf.mxu0
      %v1329 = vadd.f32 0.0, %v1328
      %v1330 = vpop.f32.mrf.mxu0
      %1331 = vdwg.mxu0
      %1332 = vrot.lane.b32.xlu0 %v847, 120
      %v1333 = vpop.permute.xlu0 %1332
      %1334 = vrot.lane.b32.xlu0 %v921, 120
      %v1335 = vpop.permute.xlu0 %1334
      %v1336 = vsel %vm1011, %v1333, 0
      %v1338 = vsel %vm1011, %v1335, 0
      %1340 = vmatprep.subr.mxu0 0.0
      %1341 = vmatpush1.xpose.msra.mxu0 0.0
      %1342 = vmatprep.subr.mxu0 0.0
      %1343 = vmatpush1.xpose.msra.mxu0 0.0
      %1344 = vmatprep.subr.mxu0 0.0
      %1345 = vmatpush1.xpose.msra.mxu0 0.0
      %1346 = vmatprep.subr.mxu0 0.0
      %1347 = vmatpush1.xpose.msra.mxu0 0.0
      %1348 = vmatprep.subr.mxu0 0.0
      %1349 = vmatpush1.xpose.msra.mxu0 0.0
      %1350 = vmatprep.subr.mxu0 0.0
      %1351 = vmatpush1.xpose.msra.mxu0 0.0
      %1352 = vmatprep.subr.mxu0 0.0
      %1353 = vmatpush1.xpose.msra.mxu0 0.0
      %1354 = vmatprep.subr.mxu0 0.0
      %1355 = vmatpush1.xpose.msra.mxu0 0.0
      %1356 = vmatprep.subr.mxu0 0.0
      %1357 = vmatpush1.xpose.msra.mxu0 0.0
      %1358 = vmatprep.subr.mxu0 0.0
      %1359 = vmatpush1.xpose.msra.mxu0 0.0
      %1360 = vmatprep.subr.mxu0 0.0
      %1361 = vmatpush1.xpose.msra.mxu0 0.0
      %1362 = vmatprep.subr.mxu0 0.0
      %1363 = vmatpush1.xpose.msra.mxu0 0.0
      %1364 = vmatprep.subr.mxu0 0.0
      %1365 = vmatpush1.xpose.msra.mxu0 0.0
      %1366 = vmatprep.subr.mxu0 0.0
      %1367 = vmatpush1.xpose.msra.mxu0 0.0
      %1368 = vmatprep.subr.mxu0 0.0
      %1369 = vmatpush1.xpose.msra.mxu0 0.0
      %1370 = vmatprep.subr.mxu0 0.0
      %1371 = vmatpush1.xpose.msra.mxu0 %v1338
      %1372 = vmatprep.subr.mxu0 0.0
      %1373 = vmatpush2.xpose.msra.mxu0 0.0
      %1374 = vmatprep.subr.mxu0 0.0
      %1375 = vmatpush2.xpose.msra.mxu0 0.0
      %1376 = vmatprep.subr.mxu0 0.0
      %1377 = vmatpush2.xpose.msra.mxu0 0.0
      %1378 = vmatprep.subr.mxu0 0.0
      %1379 = vmatpush2.xpose.msra.mxu0 0.0
      %1380 = vmatprep.subr.mxu0 0.0
      %1381 = vmatpush2.xpose.msra.mxu0 0.0
      %1382 = vmatprep.subr.mxu0 0.0
      %1383 = vmatpush2.xpose.msra.mxu0 0.0
      %1384 = vmatprep.subr.mxu0 0.0
      %1385 = vmatpush2.xpose.msra.mxu0 0.0
      %1386 = vmatprep.subr.mxu0 0.0
      %1387 = vmatpush2.xpose.msra.mxu0 0.0
      %1388 = vmatprep.subr.mxu0 0.0
      %1389 = vmatpush2.xpose.msra.mxu0 0.0
      %1390 = vmatprep.subr.mxu0 0.0
      %1391 = vmatpush2.xpose.msra.mxu0 0.0
      %1392 = vmatprep.subr.mxu0 0.0
      %1393 = vmatpush2.xpose.msra.mxu0 0.0
      %1394 = vmatprep.subr.mxu0 0.0
      %1395 = vmatpush2.xpose.msra.mxu0 0.0
      %1396 = vmatprep.subr.mxu0 0.0
      %1397 = vmatpush2.xpose.msra.mxu0 0.0
      %1398 = vmatprep.subr.mxu0 0.0
      %1399 = vmatpush2.xpose.msra.mxu0 0.0
      %1400 = vmatprep.subr.mxu0 0.0
      %1401 = vmatpush2.xpose.msra.mxu0 0.0
      %1402 = vmatprep.subr.mxu0 0.0
      %1403 = vmatpush2.xpose.msra.mxu0 0.0
      %1404 = vmatprep.mubr.f32.mxu0 0.0
      %1405 = vmatmul.mubr.f32.gmra.mxu0 %v1336
      %v1406 = vpop.f32.mrf.mxu0
      %v1407 = vadd.f32 %v1010, %v1406
      %v1408 = vpop.f32.mrf.mxu0
      %1409 = vdwg.mxu0
      %1410 = vrot.lane.b32.xlu0 %v848, 120
      %v1411 = vpop.permute.xlu0 %1410
      %1412 = vrot.lane.b32.xlu0 %v924, 120
      %v1413 = vpop.permute.xlu0 %1412
      %v1414 = vsel %vm1011, %v1411, 0
      %v1416 = vsel %vm1011, %v1413, 0
      %1418 = vmatprep.subr.mxu0 0.0
      %1419 = vmatpush1.xpose.msra.mxu0 0.0
      %1420 = vmatprep.subr.mxu0 0.0
      %1421 = vmatpush1.xpose.msra.mxu0 0.0
      %1422 = vmatprep.subr.mxu0 0.0
      %1423 = vmatpush1.xpose.msra.mxu0 0.0
      %1424 = vmatprep.subr.mxu0 0.0
      %1425 = vmatpush1.xpose.msra.mxu0 0.0
      %1426 = vmatprep.subr.mxu0 0.0
      %1427 = vmatpush1.xpose.msra.mxu0 0.0
      %1428 = vmatprep.subr.mxu0 0.0
      %1429 = vmatpush1.xpose.msra.mxu0 0.0
      %1430 = vmatprep.subr.mxu0 0.0
      %1431 = vmatpush1.xpose.msra.mxu0 0.0
      %1432 = vmatprep.subr.mxu0 0.0
      %1433 = vmatpush1.xpose.msra.mxu0 0.0
      %1434 = vmatprep.subr.mxu0 0.0
      %1435 = vmatpush1.xpose.msra.mxu0 0.0
      %1436 = vmatprep.subr.mxu0 0.0
      %1437 = vmatpush1.xpose.msra.mxu0 0.0
      %1438 = vmatprep.subr.mxu0 0.0
      %1439 = vmatpush1.xpose.msra.mxu0 0.0
      %1440 = vmatprep.subr.mxu0 0.0
      %1441 = vmatpush1.xpose.msra.mxu0 0.0
      %1442 = vmatprep.subr.mxu0 0.0
      %1443 = vmatpush1.xpose.msra.mxu0 0.0
      %1444 = vmatprep.subr.mxu0 0.0
      %1445 = vmatpush1.xpose.msra.mxu0 0.0
      %1446 = vmatprep.subr.mxu0 0.0
      %1447 = vmatpush1.xpose.msra.mxu0 0.0
      %1448 = vmatprep.subr.mxu0 0.0
      %1449 = vmatpush1.xpose.msra.mxu0 %v1416
      %1450 = vmatprep.subr.mxu0 0.0
      %1451 = vmatpush2.xpose.msra.mxu0 0.0
      %1452 = vmatprep.subr.mxu0 0.0
      %1453 = vmatpush2.xpose.msra.mxu0 0.0
      %1454 = vmatprep.subr.mxu0 0.0
      %1455 = vmatpush2.xpose.msra.mxu0 0.0
      %1456 = vmatprep.subr.mxu0 0.0
      %1457 = vmatpush2.xpose.msra.mxu0 0.0
      %1458 = vmatprep.subr.mxu0 0.0
      %1459 = vmatpush2.xpose.msra.mxu0 0.0
      %1460 = vmatprep.subr.mxu0 0.0
      %1461 = vmatpush2.xpose.msra.mxu0 0.0
      %1462 = vmatprep.subr.mxu0 0.0
      %1463 = vmatpush2.xpose.msra.mxu0 0.0
      %1464 = vmatprep.subr.mxu0 0.0
      %1465 = vmatpush2.xpose.msra.mxu0 0.0
      %1466 = vmatprep.subr.mxu0 0.0
      %1467 = vmatpush2.xpose.msra.mxu0 0.0
      %1468 = vmatprep.subr.mxu0 0.0
      %1469 = vmatpush2.xpose.msra.mxu0 0.0
      %1470 = vmatprep.subr.mxu0 0.0
      %1471 = vmatpush2.xpose.msra.mxu0 0.0
      %1472 = vmatprep.subr.mxu0 0.0
      %1473 = vmatpush2.xpose.msra.mxu0 0.0
      %1474 = vmatprep.subr.mxu0 0.0
      %1475 = vmatpush2.xpose.msra.mxu0 0.0
      %1476 = vmatprep.subr.mxu0 0.0
      %1477 = vmatpush2.xpose.msra.mxu0 0.0
      %1478 = vmatprep.subr.mxu0 0.0
      %1479 = vmatpush2.xpose.msra.mxu0 0.0
      %1480 = vmatprep.subr.mxu0 0.0
      %1481 = vmatpush2.xpose.msra.mxu0 0.0
      %1482 = vmatprep.mubr.f32.mxu0 0.0
      %1483 = vmatmul.mubr.f32.gmra.mxu0 %v1414
      %v1484 = vpop.f32.mrf.mxu0
      %v1485 = vadd.f32 %v1010, %v1484
      %v1486 = vpop.f32.mrf.mxu0
      %1487 = vdwg.mxu0
      %v1488 = vsel %vm1011, %v1407, -inf
      %1489 = vmax.xlane.f32.xlu0 %v1488
      %v1490 = vpop.xlane.xlu0 %1489
      %v1491 = vsel %vm1011, %v1485, -inf
      %1492 = vmax.xlane.f32.xlu0 %v1491
      %v1493 = vpop.xlane.xlu0 %1492
      %v1494 = vsub.f32 %v1407, %v1490
      %v1495 = vsub.f32 %v1485, %v1493
      %v1496 = vmul.f32 %v1494, 1.442695
      %v1497 = vpow.pop %v1496
      %v1498 = vmul.f32 %v1495, 1.442695
      %v1499 = vpow.pop %v1498
      %v1500 = vsel %vm1011, %v1497, 0.0
      %1501 = vadd.xlane.f32.xlu0 %v1500
      %v1502 = vpop.xlane.xlu0 %1501
      %v1503 = vsel %vm1011, %v1499, 0.0
      %1504 = vadd.xlane.f32.xlu0 %v1503
      %v1505 = vpop.xlane.xlu0 %1504
      %v1506 = vrcp.pop %v1502
      %v1507 = vmul.f32 %v1497, %v1506
      %v1508 = vrcp.pop %v1505
      %v1509 = vmul.f32 %v1499, %v1508
      %1511 = vrot.lane.b32.xlu0 %v999, 120
      %v1512 = vpop.permute.xlu0 %1511
      %v1515 = vsel %vm1011, %v1507, 0
      %1517 = vmatprep.subr.mxu0 0.0
      %1518 = vmatpush1.msra.mxu0 0.0
      %1519 = vmatprep.subr.mxu0 0.0
      %1520 = vmatpush1.msra.mxu0 0.0
      %1521 = vmatprep.subr.mxu0 0.0
      %1522 = vmatpush1.msra.mxu0 0.0
      %1523 = vmatprep.subr.mxu0 0.0
      %1524 = vmatpush1.msra.mxu0 0.0
      %1525 = vmatprep.subr.mxu0 0.0
      %1526 = vmatpush1.msra.mxu0 0.0
      %1527 = vmatprep.subr.mxu0 0.0
      %1528 = vmatpush1.msra.mxu0 0.0
      %1529 = vmatprep.subr.mxu0 0.0
      %1530 = vmatpush1.msra.mxu0 0.0
      %1531 = vmatprep.subr.mxu0 0.0
      %1532 = vmatpush1.msra.mxu0 0.0
      %1533 = vmatprep.subr.mxu0 0.0
      %1534 = vmatpush1.msra.mxu0 0.0
      %1535 = vmatprep.subr.mxu0 0.0
      %1536 = vmatpush1.msra.mxu0 0.0
      %1537 = vmatprep.subr.mxu0 0.0
      %1538 = vmatpush1.msra.mxu0 0.0
      %1539 = vmatprep.subr.mxu0 0.0
      %1540 = vmatpush1.msra.mxu0 0.0
      %1541 = vmatprep.subr.mxu0 0.0
      %1542 = vmatpush1.msra.mxu0 0.0
      %1543 = vmatprep.subr.mxu0 0.0
      %1544 = vmatpush1.msra.mxu0 0.0
      %1545 = vmatprep.subr.mxu0 0.0
      %1546 = vmatpush1.msra.mxu0 0.0
      %1547 = vmatprep.subr.mxu0 0.0
      %1548 = vmatpush1.msra.mxu0 %v1512
      %1549 = vmatprep.subr.mxu0 0.0
      %1550 = vmatpush2.msra.mxu0 0.0
      %1551 = vmatprep.subr.mxu0 0.0
      %1552 = vmatpush2.msra.mxu0 0.0
      %1553 = vmatprep.subr.mxu0 0.0
      %1554 = vmatpush2.msra.mxu0 0.0
      %1555 = vmatprep.subr.mxu0 0.0
      %1556 = vmatpush2.msra.mxu0 0.0
      %1557 = vmatprep.subr.mxu0 0.0
      %1558 = vmatpush2.msra.mxu0 0.0
      %1559 = vmatprep.subr.mxu0 0.0
      %1560 = vmatpush2.msra.mxu0 0.0
      %1561 = vmatprep.subr.mxu0 0.0
      %1562 = vmatpush2.msra.mxu0 0.0
      %1563 = vmatprep.subr.mxu0 0.0
      %1564 = vmatpush2.msra.mxu0 0.0
      %1565 = vmatprep.subr.mxu0 0.0
      %1566 = vmatpush2.msra.mxu0 0.0
      %1567 = vmatprep.subr.mxu0 0.0
      %1568 = vmatpush2.msra.mxu0 0.0
      %1569 = vmatprep.subr.mxu0 0.0
      %1570 = vmatpush2.msra.mxu0 0.0
      %1571 = vmatprep.subr.mxu0 0.0
      %1572 = vmatpush2.msra.mxu0 0.0
      %1573 = vmatprep.subr.mxu0 0.0
      %1574 = vmatpush2.msra.mxu0 0.0
      %1575 = vmatprep.subr.mxu0 0.0
      %1576 = vmatpush2.msra.mxu0 0.0
      %1577 = vmatprep.subr.mxu0 0.0
      %1578 = vmatpush2.msra.mxu0 0.0
      %1579 = vmatprep.subr.mxu0 0.0
      %1580 = vmatpush2.msra.mxu0 0.0
      %1581 = vmatprep.mubr.f32.mxu0 0.0
      %1582 = vmatmul.mubr.f32.gmra.mxu0 %v1515
      %v1583 = vpop.f32.mrf.mxu0
      %v1584 = vadd.f32 0.0, %v1583
      %v1585 = vpop.f32.mrf.mxu0
      %1586 = vdwg.mxu0
      %1588 = vrot.lane.b32.xlu0 %v1002, 120
      %v1589 = vpop.permute.xlu0 %1588
      %v1592 = vsel %vm1011, %v1509, 0
      %1594 = vmatprep.subr.mxu0 0.0
      %1595 = vmatpush1.msra.mxu0 0.0
      %1596 = vmatprep.subr.mxu0 0.0
      %1597 = vmatpush1.msra.mxu0 0.0
      %1598 = vmatprep.subr.mxu0 0.0
      %1599 = vmatpush1.msra.mxu0 0.0
      %1600 = vmatprep.subr.mxu0 0.0
      %1601 = vmatpush1.msra.mxu0 0.0
      %1602 = vmatprep.subr.mxu0 0.0
      %1603 = vmatpush1.msra.mxu0 0.0
      %1604 = vmatprep.subr.mxu0 0.0
      %1605 = vmatpush1.msra.mxu0 0.0
      %1606 = vmatprep.subr.mxu0 0.0
      %1607 = vmatpush1.msra.mxu0 0.0
      %1608 = vmatprep.subr.mxu0 0.0
      %1609 = vmatpush1.msra.mxu0 0.0
      %1610 = vmatprep.subr.mxu0 0.0
      %1611 = vmatpush1.msra.mxu0 0.0
      %1612 = vmatprep.subr.mxu0 0.0
      %1613 = vmatpush1.msra.mxu0 0.0
      %1614 = vmatprep.subr.mxu0 0.0
      %1615 = vmatpush1.msra.mxu0 0.0
      %1616 = vmatprep.subr.mxu0 0.0
      %1617 = vmatpush1.msra.mxu0 0.0
      %1618 = vmatprep.subr.mxu0 0.0
      %1619 = vmatpush1.msra.mxu0 0.0
      %1620 = vmatprep.subr.mxu0 0.0
      %1621 = vmatpush1.msra.mxu0 0.0
      %1622 = vmatprep.subr.mxu0 0.0
      %1623 = vmatpush1.msra.mxu0 0.0
      %1624 = vmatprep.subr.mxu0 0.0
      %1625 = vmatpush1.msra.mxu0 %v1589
      %1626 = vmatprep.subr.mxu0 0.0
      %1627 = vmatpush2.msra.mxu0 0.0
      %1628 = vmatprep.subr.mxu0 0.0
      %1629 = vmatpush2.msra.mxu0 0.0
      %1630 = vmatprep.subr.mxu0 0.0
      %1631 = vmatpush2.msra.mxu0 0.0
      %1632 = vmatprep.subr.mxu0 0.0
      %1633 = vmatpush2.msra.mxu0 0.0
      %1634 = vmatprep.subr.mxu0 0.0
      %1635 = vmatpush2.msra.mxu0 0.0
      %1636 = vmatprep.subr.mxu0 0.0
      %1637 = vmatpush2.msra.mxu0 0.0
      %1638 = vmatprep.subr.mxu0 0.0
      %1639 = vmatpush2.msra.mxu0 0.0
      %1640 = vmatprep.subr.mxu0 0.0
      %1641 = vmatpush2.msra.mxu0 0.0
      %1642 = vmatprep.subr.mxu0 0.0
      %1643 = vmatpush2.msra.mxu0 0.0
      %1644 = vmatprep.subr.mxu0 0.0
      %1645 = vmatpush2.msra.mxu0 0.0
      %1646 = vmatprep.subr.mxu0 0.0
      %1647 = vmatpush2.msra.mxu0 0.0
      %1648 = vmatprep.subr.mxu0 0.0
      %1649 = vmatpush2.msra.mxu0 0.0
      %1650 = vmatprep.subr.mxu0 0.0
      %1651 = vmatpush2.msra.mxu0 0.0
      %1652 = vmatprep.subr.mxu0 0.0
      %1653 = vmatpush2.msra.mxu0 0.0
      %1654 = vmatprep.subr.mxu0 0.0
      %1655 = vmatpush2.msra.mxu0 0.0
      %1656 = vmatprep.subr.mxu0 0.0
      %1657 = vmatpush2.msra.mxu0 0.0
      %1658 = vmatprep.mubr.f32.mxu0 0.0
      %1659 = vmatmul.mubr.f32.gmra.mxu0 %v1592
      %v1660 = vpop.f32.mrf.mxu0
      %v1661 = vadd.f32 0.0, %v1660
      %v1662 = vpop.f32.mrf.mxu0
      %1663 = vdwg.mxu0
      %1664 = vrot.lane.b32.xlu0 %v847, 112
      %v1665 = vpop.permute.xlu0 %1664
      %1666 = vrot.lane.b32.xlu0 %v921, 112
      %v1667 = vpop.permute.xlu0 %1666
      %v1668 = vsel %vm1011, %v1665, 0
      %v1670 = vsel %vm1011, %v1667, 0
      %1672 = vmatprep.subr.mxu0 0.0
      %1673 = vmatpush1.xpose.msra.mxu0 0.0
      %1674 = vmatprep.subr.mxu0 0.0
      %1675 = vmatpush1.xpose.msra.mxu0 0.0
      %1676 = vmatprep.subr.mxu0 0.0
      %1677 = vmatpush1.xpose.msra.mxu0 0.0
      %1678 = vmatprep.subr.mxu0 0.0
      %1679 = vmatpush1.xpose.msra.mxu0 0.0
      %1680 = vmatprep.subr.mxu0 0.0
      %1681 = vmatpush1.xpose.msra.mxu0 0.0
      %1682 = vmatprep.subr.mxu0 0.0
      %1683 = vmatpush1.xpose.msra.mxu0 0.0
      %1684 = vmatprep.subr.mxu0 0.0
      %1685 = vmatpush1.xpose.msra.mxu0 0.0
      %1686 = vmatprep.subr.mxu0 0.0
      %1687 = vmatpush1.xpose.msra.mxu0 0.0
      %1688 = vmatprep.subr.mxu0 0.0
      %1689 = vmatpush1.xpose.msra.mxu0 0.0
      %1690 = vmatprep.subr.mxu0 0.0
      %1691 = vmatpush1.xpose.msra.mxu0 0.0
      %1692 = vmatprep.subr.mxu0 0.0
      %1693 = vmatpush1.xpose.msra.mxu0 0.0
      %1694 = vmatprep.subr.mxu0 0.0
      %1695 = vmatpush1.xpose.msra.mxu0 0.0
      %1696 = vmatprep.subr.mxu0 0.0
      %1697 = vmatpush1.xpose.msra.mxu0 0.0
      %1698 = vmatprep.subr.mxu0 0.0
      %1699 = vmatpush1.xpose.msra.mxu0 0.0
      %1700 = vmatprep.subr.mxu0 0.0
      %1701 = vmatpush1.xpose.msra.mxu0 0.0
      %1702 = vmatprep.subr.mxu0 0.0
      %1703 = vmatpush1.xpose.msra.mxu0 %v1670
      %1704 = vmatprep.subr.mxu0 0.0
      %1705 = vmatpush2.xpose.msra.mxu0 0.0
      %1706 = vmatprep.subr.mxu0 0.0
      %1707 = vmatpush2.xpose.msra.mxu0 0.0
      %1708 = vmatprep.subr.mxu0 0.0
      %1709 = vmatpush2.xpose.msra.mxu0 0.0
      %1710 = vmatprep.subr.mxu0 0.0
      %1711 = vmatpush2.xpose.msra.mxu0 0.0
      %1712 = vmatprep.subr.mxu0 0.0
      %1713 = vmatpush2.xpose.msra.mxu0 0.0
      %1714 = vmatprep.subr.mxu0 0.0
      %1715 = vmatpush2.xpose.msra.mxu0 0.0
      %1716 = vmatprep.subr.mxu0 0.0
      %1717 = vmatpush2.xpose.msra.mxu0 0.0
      %1718 = vmatprep.subr.mxu0 0.0
      %1719 = vmatpush2.xpose.msra.mxu0 0.0
      %1720 = vmatprep.subr.mxu0 0.0
      %1721 = vmatpush2.xpose.msra.mxu0 0.0
      %1722 = vmatprep.subr.mxu0 0.0
      %1723 = vmatpush2.xpose.msra.mxu0 0.0
      %1724 = vmatprep.subr.mxu0 0.0
      %1725 = vmatpush2.xpose.msra.mxu0 0.0
      %1726 = vmatprep.subr.mxu0 0.0
      %1727 = vmatpush2.xpose.msra.mxu0 0.0
      %1728 = vmatprep.subr.mxu0 0.0
      %1729 = vmatpush2.xpose.msra.mxu0 0.0
      %1730 = vmatprep.subr.mxu0 0.0
      %1731 = vmatpush2.xpose.msra.mxu0 0.0
      %1732 = vmatprep.subr.mxu0 0.0
      %1733 = vmatpush2.xpose.msra.mxu0 0.0
      %1734 = vmatprep.subr.mxu0 0.0
      %1735 = vmatpush2.xpose.msra.mxu0 0.0
      %1736 = vmatprep.mubr.f32.mxu0 0.0
      %1737 = vmatmul.mubr.f32.gmra.mxu0 %v1668
      %v1738 = vpop.f32.mrf.mxu0
      %v1739 = vadd.f32 %v1010, %v1738
      %v1740 = vpop.f32.mrf.mxu0
      %1741 = vdwg.mxu0
      %1742 = vrot.lane.b32.xlu0 %v848, 112
      %v1743 = vpop.permute.xlu0 %1742
      %1744 = vrot.lane.b32.xlu0 %v924, 112
      %v1745 = vpop.permute.xlu0 %1744
      %v1746 = vsel %vm1011, %v1743, 0
      %v1748 = vsel %vm1011, %v1745, 0
      %1750 = vmatprep.subr.mxu0 0.0
      %1751 = vmatpush1.xpose.msra.mxu0 0.0
      %1752 = vmatprep.subr.mxu0 0.0
      %1753 = vmatpush1.xpose.msra.mxu0 0.0
      %1754 = vmatprep.subr.mxu0 0.0
      %1755 = vmatpush1.xpose.msra.mxu0 0.0
      %1756 = vmatprep.subr.mxu0 0.0
      %1757 = vmatpush1.xpose.msra.mxu0 0.0
      %1758 = vmatprep.subr.mxu0 0.0
      %1759 = vmatpush1.xpose.msra.mxu0 0.0
      %1760 = vmatprep.subr.mxu0 0.0
      %1761 = vmatpush1.xpose.msra.mxu0 0.0
      %1762 = vmatprep.subr.mxu0 0.0
      %1763 = vmatpush1.xpose.msra.mxu0 0.0
      %1764 = vmatprep.subr.mxu0 0.0
      %1765 = vmatpush1.xpose.msra.mxu0 0.0
      %1766 = vmatprep.subr.mxu0 0.0
      %1767 = vmatpush1.xpose.msra.mxu0 0.0
      %1768 = vmatprep.subr.mxu0 0.0
      %1769 = vmatpush1.xpose.msra.mxu0 0.0
      %1770 = vmatprep.subr.mxu0 0.0
      %1771 = vmatpush1.xpose.msra.mxu0 0.0
      %1772 = vmatprep.subr.mxu0 0.0
      %1773 = vmatpush1.xpose.msra.mxu0 0.0
      %1774 = vmatprep.subr.mxu0 0.0
      %1775 = vmatpush1.xpose.msra.mxu0 0.0
      %1776 = vmatprep.subr.mxu0 0.0
      %1777 = vmatpush1.xpose.msra.mxu0 0.0
      %1778 = vmatprep.subr.mxu0 0.0
      %1779 = vmatpush1.xpose.msra.mxu0 0.0
      %1780 = vmatprep.subr.mxu0 0.0
      %1781 = vmatpush1.xpose.msra.mxu0 %v1748
      %1782 = vmatprep.subr.mxu0 0.0
      %1783 = vmatpush2.xpose.msra.mxu0 0.0
      %1784 = vmatprep.subr.mxu0 0.0
      %1785 = vmatpush2.xpose.msra.mxu0 0.0
      %1786 = vmatprep.subr.mxu0 0.0
      %1787 = vmatpush2.xpose.msra.mxu0 0.0
      %1788 = vmatprep.subr.mxu0 0.0
      %1789 = vmatpush2.xpose.msra.mxu0 0.0
      %1790 = vmatprep.subr.mxu0 0.0
      %1791 = vmatpush2.xpose.msra.mxu0 0.0
      %1792 = vmatprep.subr.mxu0 0.0
      %1793 = vmatpush2.xpose.msra.mxu0 0.0
      %1794 = vmatprep.subr.mxu0 0.0
      %1795 = vmatpush2.xpose.msra.mxu0 0.0
      %1796 = vmatprep.subr.mxu0 0.0
      %1797 = vmatpush2.xpose.msra.mxu0 0.0
      %1798 = vmatprep.subr.mxu0 0.0
      %1799 = vmatpush2.xpose.msra.mxu0 0.0
      %1800 = vmatprep.subr.mxu0 0.0
      %1801 = vmatpush2.xpose.msra.mxu0 0.0
      %1802 = vmatprep.subr.mxu0 0.0
      %1803 = vmatpush2.xpose.msra.mxu0 0.0
      %1804 = vmatprep.subr.mxu0 0.0
      %1805 = vmatpush2.xpose.msra.mxu0 0.0
      %1806 = vmatprep.subr.mxu0 0.0
      %1807 = vmatpush2.xpose.msra.mxu0 0.0
      %1808 = vmatprep.subr.mxu0 0.0
      %1809 = vmatpush2.xpose.msra.mxu0 0.0
      %1810 = vmatprep.subr.mxu0 0.0
      %1811 = vmatpush2.xpose.msra.mxu0 0.0
      %1812 = vmatprep.subr.mxu0 0.0
      %1813 = vmatpush2.xpose.msra.mxu0 0.0
      %1814 = vmatprep.mubr.f32.mxu0 0.0
      %1815 = vmatmul.mubr.f32.gmra.mxu0 %v1746
      %v1816 = vpop.f32.mrf.mxu0
      %v1817 = vadd.f32 %v1010, %v1816
      %v1818 = vpop.f32.mrf.mxu0
      %1819 = vdwg.mxu0
      %v1820 = vsel %vm1011, %v1739, -inf
      %1821 = vmax.xlane.f32.xlu0 %v1820
      %v1822 = vpop.xlane.xlu0 %1821
      %v1823 = vsel %vm1011, %v1817, -inf
      %1824 = vmax.xlane.f32.xlu0 %v1823
      %v1825 = vpop.xlane.xlu0 %1824
      %v1826 = vsub.f32 %v1739, %v1822
      %v1827 = vsub.f32 %v1817, %v1825
      %v1828 = vmul.f32 %v1826, 1.442695
      %v1829 = vpow.pop %v1828
      %v1830 = vmul.f32 %v1827, 1.442695
      %v1831 = vpow.pop %v1830
      %v1832 = vsel %vm1011, %v1829, 0.0
      %1833 = vadd.xlane.f32.xlu0 %v1832
      %v1834 = vpop.xlane.xlu0 %1833
      %v1835 = vsel %vm1011, %v1831, 0.0
      %1836 = vadd.xlane.f32.xlu0 %v1835
      %v1837 = vpop.xlane.xlu0 %1836
      %v1838 = vrcp.pop %v1834
      %v1839 = vmul.f32 %v1829, %v1838
      %v1840 = vrcp.pop %v1837
      %v1841 = vmul.f32 %v1831, %v1840
      %1842 = vrot.lane.b32.xlu0 %v999, 112
      %v1843 = vpop.permute.xlu0 %1842
      %v1846 = vsel %vm1011, %v1839, 0
      %1848 = vmatprep.subr.mxu0 0.0
      %1849 = vmatpush1.msra.mxu0 0.0
      %1850 = vmatprep.subr.mxu0 0.0
      %1851 = vmatpush1.msra.mxu0 0.0
      %1852 = vmatprep.subr.mxu0 0.0
      %1853 = vmatpush1.msra.mxu0 0.0
      %1854 = vmatprep.subr.mxu0 0.0
      %1855 = vmatpush1.msra.mxu0 0.0
      %1856 = vmatprep.subr.mxu0 0.0
      %1857 = vmatpush1.msra.mxu0 0.0
      %1858 = vmatprep.subr.mxu0 0.0
      %1859 = vmatpush1.msra.mxu0 0.0
      %1860 = vmatprep.subr.mxu0 0.0
      %1861 = vmatpush1.msra.mxu0 0.0
      %1862 = vmatprep.subr.mxu0 0.0
      %1863 = vmatpush1.msra.mxu0 0.0
      %1864 = vmatprep.subr.mxu0 0.0
      %1865 = vmatpush1.msra.mxu0 0.0
      %1866 = vmatprep.subr.mxu0 0.0
      %1867 = vmatpush1.msra.mxu0 0.0
      %1868 = vmatprep.subr.mxu0 0.0
      %1869 = vmatpush1.msra.mxu0 0.0
      %1870 = vmatprep.subr.mxu0 0.0
      %1871 = vmatpush1.msra.mxu0 0.0
      %1872 = vmatprep.subr.mxu0 0.0
      %1873 = vmatpush1.msra.mxu0 0.0
      %1874 = vmatprep.subr.mxu0 0.0
      %1875 = vmatpush1.msra.mxu0 0.0
      %1876 = vmatprep.subr.mxu0 0.0
      %1877 = vmatpush1.msra.mxu0 0.0
      %1878 = vmatprep.subr.mxu0 0.0
      %1879 = vmatpush1.msra.mxu0 %v1843
      %1880 = vmatprep.subr.mxu0 0.0
      %1881 = vmatpush2.msra.mxu0 0.0
      %1882 = vmatprep.subr.mxu0 0.0
      %1883 = vmatpush2.msra.mxu0 0.0
      %1884 = vmatprep.subr.mxu0 0.0
      %1885 = vmatpush2.msra.mxu0 0.0
      %1886 = vmatprep.subr.mxu0 0.0
      %1887 = vmatpush2.msra.mxu0 0.0
      %1888 = vmatprep.subr.mxu0 0.0
      %1889 = vmatpush2.msra.mxu0 0.0
      %1890 = vmatprep.subr.mxu0 0.0
      %1891 = vmatpush2.msra.mxu0 0.0
      %1892 = vmatprep.subr.mxu0 0.0
      %1893 = vmatpush2.msra.mxu0 0.0
      %1894 = vmatprep.subr.mxu0 0.0
      %1895 = vmatpush2.msra.mxu0 0.0
      %1896 = vmatprep.subr.mxu0 0.0
      %1897 = vmatpush2.msra.mxu0 0.0
      %1898 = vmatprep.subr.mxu0 0.0
      %1899 = vmatpush2.msra.mxu0 0.0
      %1900 = vmatprep.subr.mxu0 0.0
      %1901 = vmatpush2.msra.mxu0 0.0
      %1902 = vmatprep.subr.mxu0 0.0
      %1903 = vmatpush2.msra.mxu0 0.0
      %1904 = vmatprep.subr.mxu0 0.0
      %1905 = vmatpush2.msra.mxu0 0.0
      %1906 = vmatprep.subr.mxu0 0.0
      %1907 = vmatpush2.msra.mxu0 0.0
      %1908 = vmatprep.subr.mxu0 0.0
      %1909 = vmatpush2.msra.mxu0 0.0
      %1910 = vmatprep.subr.mxu0 0.0
      %1911 = vmatpush2.msra.mxu0 0.0
      %1912 = vmatprep.mubr.f32.mxu0 0.0
      %1913 = vmatmul.mubr.f32.gmra.mxu0 %v1846
      %v1914 = vpop.f32.mrf.mxu0
      %v1915 = vadd.f32 0.0, %v1914
      %v1916 = vpop.f32.mrf.mxu0
      %1917 = vdwg.mxu0
      %1918 = vrot.lane.b32.xlu0 %v1002, 112
      %v1919 = vpop.permute.xlu0 %1918
      %v1922 = vsel %vm1011, %v1841, 0
      %1924 = vmatprep.subr.mxu0 0.0
      %1925 = vmatpush1.msra.mxu0 0.0
      %1926 = vmatprep.subr.mxu0 0.0
      %1927 = vmatpush1.msra.mxu0 0.0
      %1928 = vmatprep.subr.mxu0 0.0
      %1929 = vmatpush1.msra.mxu0 0.0
      %1930 = vmatprep.subr.mxu0 0.0
      %1931 = vmatpush1.msra.mxu0 0.0
      %1932 = vmatprep.subr.mxu0 0.0
      %1933 = vmatpush1.msra.mxu0 0.0
      %1934 = vmatprep.subr.mxu0 0.0
      %1935 = vmatpush1.msra.mxu0 0.0
      %1936 = vmatprep.subr.mxu0 0.0
      %1937 = vmatpush1.msra.mxu0 0.0
      %1938 = vmatprep.subr.mxu0 0.0
      %1939 = vmatpush1.msra.mxu0 0.0
      %1940 = vmatprep.subr.mxu0 0.0
      %1941 = vmatpush1.msra.mxu0 0.0
      %1942 = vmatprep.subr.mxu0 0.0
      %1943 = vmatpush1.msra.mxu0 0.0
      %1944 = vmatprep.subr.mxu0 0.0
      %1945 = vmatpush1.msra.mxu0 0.0
      %1946 = vmatprep.subr.mxu0 0.0
      %1947 = vmatpush1.msra.mxu0 0.0
      %1948 = vmatprep.subr.mxu0 0.0
      %1949 = vmatpush1.msra.mxu0 0.0
      %1950 = vmatprep.subr.mxu0 0.0
      %1951 = vmatpush1.msra.mxu0 0.0
      %1952 = vmatprep.subr.mxu0 0.0
      %1953 = vmatpush1.msra.mxu0 0.0
      %1954 = vmatprep.subr.mxu0 0.0
      %1955 = vmatpush1.msra.mxu0 %v1919
      %1956 = vmatprep.subr.mxu0 0.0
      %1957 = vmatpush2.msra.mxu0 0.0
      %1958 = vmatprep.subr.mxu0 0.0
      %1959 = vmatpush2.msra.mxu0 0.0
      %1960 = vmatprep.subr.mxu0 0.0
      %1961 = vmatpush2.msra.mxu0 0.0
      %1962 = vmatprep.subr.mxu0 0.0
      %1963 = vmatpush2.msra.mxu0 0.0
      %1964 = vmatprep.subr.mxu0 0.0
      %1965 = vmatpush2.msra.mxu0 0.0
      %1966 = vmatprep.subr.mxu0 0.0
      %1967 = vmatpush2.msra.mxu0 0.0
      %1968 = vmatprep.subr.mxu0 0.0
      %1969 = vmatpush2.msra.mxu0 0.0
      %1970 = vmatprep.subr.mxu0 0.0
      %1971 = vmatpush2.msra.mxu0 0.0
      %1972 = vmatprep.subr.mxu0 0.0
      %1973 = vmatpush2.msra.mxu0 0.0
      %1974 = vmatprep.subr.mxu0 0.0
      %1975 = vmatpush2.msra.mxu0 0.0
      %1976 = vmatprep.subr.mxu0 0.0
      %1977 = vmatpush2.msra.mxu0 0.0
      %1978 = vmatprep.subr.mxu0 0.0
      %1979 = vmatpush2.msra.mxu0 0.0
      %1980 = vmatprep.subr.mxu0 0.0
      %1981 = vmatpush2.msra.mxu0 0.0
      %1982 = vmatprep.subr.mxu0 0.0
      %1983 = vmatpush2.msra.mxu0 0.0
      %1984 = vmatprep.subr.mxu0 0.0
      %1985 = vmatpush2.msra.mxu0 0.0
      %1986 = vmatprep.subr.mxu0 0.0
      %1987 = vmatpush2.msra.mxu0 0.0
      %1988 = vmatprep.mubr.f32.mxu0 0.0
      %1989 = vmatmul.mubr.f32.gmra.mxu0 %v1922
      %v1990 = vpop.f32.mrf.mxu0
      %v1991 = vadd.f32 0.0, %v1990
      %v1992 = vpop.f32.mrf.mxu0
      %1993 = vdwg.mxu0
      %1994 = vrot.lane.b32.xlu0 %v847, 104
      %v1995 = vpop.permute.xlu0 %1994
      %1996 = vrot.lane.b32.xlu0 %v921, 104
      %v1997 = vpop.permute.xlu0 %1996
      %v1998 = vsel %vm1011, %v1995, 0
      %v2000 = vsel %vm1011, %v1997, 0
      %2002 = vmatprep.subr.mxu0 0.0
      %2003 = vmatpush1.xpose.msra.mxu0 0.0
      %2004 = vmatprep.subr.mxu0 0.0
      %2005 = vmatpush1.xpose.msra.mxu0 0.0
      %2006 = vmatprep.subr.mxu0 0.0
      %2007 = vmatpush1.xpose.msra.mxu0 0.0
      %2008 = vmatprep.subr.mxu0 0.0
      %2009 = vmatpush1.xpose.msra.mxu0 0.0
      %2010 = vmatprep.subr.mxu0 0.0
      %2011 = vmatpush1.xpose.msra.mxu0 0.0
      %2012 = vmatprep.subr.mxu0 0.0
      %2013 = vmatpush1.xpose.msra.mxu0 0.0
      %2014 = vmatprep.subr.mxu0 0.0
      %2015 = vmatpush1.xpose.msra.mxu0 0.0
      %2016 = vmatprep.subr.mxu0 0.0
      %2017 = vmatpush1.xpose.msra.mxu0 0.0
      %2018 = vmatprep.subr.mxu0 0.0
      %2019 = vmatpush1.xpose.msra.mxu0 0.0
      %2020 = vmatprep.subr.mxu0 0.0
      %2021 = vmatpush1.xpose.msra.mxu0 0.0
      %2022 = vmatprep.subr.mxu0 0.0
      %2023 = vmatpush1.xpose.msra.mxu0 0.0
      %2024 = vmatprep.subr.mxu0 0.0
      %2025 = vmatpush1.xpose.msra.mxu0 0.0
      %2026 = vmatprep.subr.mxu0 0.0
      %2027 = vmatpush1.xpose.msra.mxu0 0.0
      %2028 = vmatprep.subr.mxu0 0.0
      %2029 = vmatpush1.xpose.msra.mxu0 0.0
      %2030 = vmatprep.subr.mxu0 0.0
      %2031 = vmatpush1.xpose.msra.mxu0 0.0
      %2032 = vmatprep.subr.mxu0 0.0
      %2033 = vmatpush1.xpose.msra.mxu0 %v2000
      %2034 = vmatprep.subr.mxu0 0.0
      %2035 = vmatpush2.xpose.msra.mxu0 0.0
      %2036 = vmatprep.subr.mxu0 0.0
      %2037 = vmatpush2.xpose.msra.mxu0 0.0
      %2038 = vmatprep.subr.mxu0 0.0
      %2039 = vmatpush2.xpose.msra.mxu0 0.0
      %2040 = vmatprep.subr.mxu0 0.0
      %2041 = vmatpush2.xpose.msra.mxu0 0.0
      %2042 = vmatprep.subr.mxu0 0.0
      %2043 = vmatpush2.xpose.msra.mxu0 0.0
      %2044 = vmatprep.subr.mxu0 0.0
      %2045 = vmatpush2.xpose.msra.mxu0 0.0
      %2046 = vmatprep.subr.mxu0 0.0
      %2047 = vmatpush2.xpose.msra.mxu0 0.0
      %2048 = vmatprep.subr.mxu0 0.0
      %2049 = vmatpush2.xpose.msra.mxu0 0.0
      %2050 = vmatprep.subr.mxu0 0.0
      %2051 = vmatpush2.xpose.msra.mxu0 0.0
      %2052 = vmatprep.subr.mxu0 0.0
      %2053 = vmatpush2.xpose.msra.mxu0 0.0
      %2054 = vmatprep.subr.mxu0 0.0
      %2055 = vmatpush2.xpose.msra.mxu0 0.0
      %2056 = vmatprep.subr.mxu0 0.0
      %2057 = vmatpush2.xpose.msra.mxu0 0.0
      %2058 = vmatprep.subr.mxu0 0.0
      %2059 = vmatpush2.xpose.msra.mxu0 0.0
      %2060 = vmatprep.subr.mxu0 0.0
      %2061 = vmatpush2.xpose.msra.mxu0 0.0
      %2062 = vmatprep.subr.mxu0 0.0
      %2063 = vmatpush2.xpose.msra.mxu0 0.0
      %2064 = vmatprep.subr.mxu0 0.0
      %2065 = vmatpush2.xpose.msra.mxu0 0.0
      %2066 = vmatprep.mubr.f32.mxu0 0.0
      %2067 = vmatmul.mubr.f32.gmra.mxu0 %v1998
      %v2068 = vpop.f32.mrf.mxu0
      %v2069 = vadd.f32 %v1010, %v2068
      %v2070 = vpop.f32.mrf.mxu0
      %2071 = vdwg.mxu0
      %2072 = vrot.lane.b32.xlu0 %v848, 104
      %v2073 = vpop.permute.xlu0 %2072
      %2074 = vrot.lane.b32.xlu0 %v924, 104
      %v2075 = vpop.permute.xlu0 %2074
      %v2076 = vsel %vm1011, %v2073, 0
      %v2078 = vsel %vm1011, %v2075, 0
      %2080 = vmatprep.subr.mxu0 0.0
      %2081 = vmatpush1.xpose.msra.mxu0 0.0
      %2082 = vmatprep.subr.mxu0 0.0
      %2083 = vmatpush1.xpose.msra.mxu0 0.0
      %2084 = vmatprep.subr.mxu0 0.0
      %2085 = vmatpush1.xpose.msra.mxu0 0.0
      %2086 = vmatprep.subr.mxu0 0.0
      %2087 = vmatpush1.xpose.msra.mxu0 0.0
      %2088 = vmatprep.subr.mxu0 0.0
      %2089 = vmatpush1.xpose.msra.mxu0 0.0
      %2090 = vmatprep.subr.mxu0 0.0
      %2091 = vmatpush1.xpose.msra.mxu0 0.0
      %2092 = vmatprep.subr.mxu0 0.0
      %2093 = vmatpush1.xpose.msra.mxu0 0.0
      %2094 = vmatprep.subr.mxu0 0.0
      %2095 = vmatpush1.xpose.msra.mxu0 0.0
      %2096 = vmatprep.subr.mxu0 0.0
      %2097 = vmatpush1.xpose.msra.mxu0 0.0
      %2098 = vmatprep.subr.mxu0 0.0
      %2099 = vmatpush1.xpose.msra.mxu0 0.0
      %2100 = vmatprep.subr.mxu0 0.0
      %2101 = vmatpush1.xpose.msra.mxu0 0.0
      %2102 = vmatprep.subr.mxu0 0.0
      %2103 = vmatpush1.xpose.msra.mxu0 0.0
      %2104 = vmatprep.subr.mxu0 0.0
      %2105 = vmatpush1.xpose.msra.mxu0 0.0
      %2106 = vmatprep.subr.mxu0 0.0
      %2107 = vmatpush1.xpose.msra.mxu0 0.0
      %2108 = vmatprep.subr.mxu0 0.0
      %2109 = vmatpush1.xpose.msra.mxu0 0.0
      %2110 = vmatprep.subr.mxu0 0.0
      %2111 = vmatpush1.xpose.msra.mxu0 %v2078
      %2112 = vmatprep.subr.mxu0 0.0
      %2113 = vmatpush2.xpose.msra.mxu0 0.0
      %2114 = vmatprep.subr.mxu0 0.0
      %2115 = vmatpush2.xpose.msra.mxu0 0.0
      %2116 = vmatprep.subr.mxu0 0.0
      %2117 = vmatpush2.xpose.msra.mxu0 0.0
      %2118 = vmatprep.subr.mxu0 0.0
      %2119 = vmatpush2.xpose.msra.mxu0 0.0
      %2120 = vmatprep.subr.mxu0 0.0
      %2121 = vmatpush2.xpose.msra.mxu0 0.0
      %2122 = vmatprep.subr.mxu0 0.0
      %2123 = vmatpush2.xpose.msra.mxu0 0.0
      %2124 = vmatprep.subr.mxu0 0.0
      %2125 = vmatpush2.xpose.msra.mxu0 0.0
      %2126 = vmatprep.subr.mxu0 0.0
      %2127 = vmatpush2.xpose.msra.mxu0 0.0
      %2128 = vmatprep.subr.mxu0 0.0
      %2129 = vmatpush2.xpose.msra.mxu0 0.0
      %2130 = vmatprep.subr.mxu0 0.0
      %2131 = vmatpush2.xpose.msra.mxu0 0.0
      %2132 = vmatprep.subr.mxu0 0.0
      %2133 = vmatpush2.xpose.msra.mxu0 0.0
      %2134 = vmatprep.subr.mxu0 0.0
      %2135 = vmatpush2.xpose.msra.mxu0 0.0
      %2136 = vmatprep.subr.mxu0 0.0
      %2137 = vmatpush2.xpose.msra.mxu0 0.0
      %2138 = vmatprep.subr.mxu0 0.0
      %2139 = vmatpush2.xpose.msra.mxu0 0.0
      %2140 = vmatprep.subr.mxu0 0.0
      %2141 = vmatpush2.xpose.msra.mxu0 0.0
      %2142 = vmatprep.subr.mxu0 0.0
      %2143 = vmatpush2.xpose.msra.mxu0 0.0
      %2144 = vmatprep.mubr.f32.mxu0 0.0
      %2145 = vmatmul.mubr.f32.gmra.mxu0 %v2076
      %v2146 = vpop.f32.mrf.mxu0
      %v2147 = vadd.f32 %v1010, %v2146
      %v2148 = vpop.f32.mrf.mxu0
      %2149 = vdwg.mxu0
      %v2150 = vsel %vm1011, %v2069, -inf
      %2151 = vmax.xlane.f32.xlu0 %v2150
      %v2152 = vpop.xlane.xlu0 %2151
      %v2153 = vsel %vm1011, %v2147, -inf
      %2154 = vmax.xlane.f32.xlu0 %v2153
      %v2155 = vpop.xlane.xlu0 %2154
      %v2156 = vsub.f32 %v2069, %v2152
      %v2157 = vsub.f32 %v2147, %v2155
      %v2158 = vmul.f32 %v2156, 1.442695
      %v2159 = vpow.pop %v2158
      %v2160 = vmul.f32 %v2157, 1.442695
      %v2161 = vpow.pop %v2160
      %v2162 = vsel %vm1011, %v2159, 0.0
      %2163 = vadd.xlane.f32.xlu0 %v2162
      %v2164 = vpop.xlane.xlu0 %2163
      %v2165 = vsel %vm1011, %v2161, 0.0
      %2166 = vadd.xlane.f32.xlu0 %v2165
      %v2167 = vpop.xlane.xlu0 %2166
      %v2168 = vrcp.pop %v2164
      %v2169 = vmul.f32 %v2159, %v2168
      %v2170 = vrcp.pop %v2167
      %v2171 = vmul.f32 %v2161, %v2170
      %2172 = vrot.lane.b32.xlu0 %v999, 104
      %v2173 = vpop.permute.xlu0 %2172
      %v2176 = vsel %vm1011, %v2169, 0
      %2178 = vmatprep.subr.mxu0 0.0
      %2179 = vmatpush1.msra.mxu0 0.0
      %2180 = vmatprep.subr.mxu0 0.0
      %2181 = vmatpush1.msra.mxu0 0.0
      %2182 = vmatprep.subr.mxu0 0.0
      %2183 = vmatpush1.msra.mxu0 0.0
      %2184 = vmatprep.subr.mxu0 0.0
      %2185 = vmatpush1.msra.mxu0 0.0
      %2186 = vmatprep.subr.mxu0 0.0
      %2187 = vmatpush1.msra.mxu0 0.0
      %2188 = vmatprep.subr.mxu0 0.0
      %2189 = vmatpush1.msra.mxu0 0.0
      %2190 = vmatprep.subr.mxu0 0.0
      %2191 = vmatpush1.msra.mxu0 0.0
      %2192 = vmatprep.subr.mxu0 0.0
      %2193 = vmatpush1.msra.mxu0 0.0
      %2194 = vmatprep.subr.mxu0 0.0
      %2195 = vmatpush1.msra.mxu0 0.0
      %2196 = vmatprep.subr.mxu0 0.0
      %2197 = vmatpush1.msra.mxu0 0.0
      %2198 = vmatprep.subr.mxu0 0.0
      %2199 = vmatpush1.msra.mxu0 0.0
      %2200 = vmatprep.subr.mxu0 0.0
      %2201 = vmatpush1.msra.mxu0 0.0
      %2202 = vmatprep.subr.mxu0 0.0
      %2203 = vmatpush1.msra.mxu0 0.0
      %2204 = vmatprep.subr.mxu0 0.0
      %2205 = vmatpush1.msra.mxu0 0.0
      %2206 = vmatprep.subr.mxu0 0.0
      %2207 = vmatpush1.msra.mxu0 0.0
      %2208 = vmatprep.subr.mxu0 0.0
      %2209 = vmatpush1.msra.mxu0 %v2173
      %2210 = vmatprep.subr.mxu0 0.0
      %2211 = vmatpush2.msra.mxu0 0.0
      %2212 = vmatprep.subr.mxu0 0.0
      %2213 = vmatpush2.msra.mxu0 0.0
      %2214 = vmatprep.subr.mxu0 0.0
      %2215 = vmatpush2.msra.mxu0 0.0
      %2216 = vmatprep.subr.mxu0 0.0
      %2217 = vmatpush2.msra.mxu0 0.0
      %2218 = vmatprep.subr.mxu0 0.0
      %2219 = vmatpush2.msra.mxu0 0.0
      %2220 = vmatprep.subr.mxu0 0.0
      %2221 = vmatpush2.msra.mxu0 0.0
      %2222 = vmatprep.subr.mxu0 0.0
      %2223 = vmatpush2.msra.mxu0 0.0
      %2224 = vmatprep.subr.mxu0 0.0
      %2225 = vmatpush2.msra.mxu0 0.0
      %2226 = vmatprep.subr.mxu0 0.0
      %2227 = vmatpush2.msra.mxu0 0.0
      %2228 = vmatprep.subr.mxu0 0.0
      %2229 = vmatpush2.msra.mxu0 0.0
      %2230 = vmatprep.subr.mxu0 0.0
      %2231 = vmatpush2.msra.mxu0 0.0
      %2232 = vmatprep.subr.mxu0 0.0
      %2233 = vmatpush2.msra.mxu0 0.0
      %2234 = vmatprep.subr.mxu0 0.0
      %2235 = vmatpush2.msra.mxu0 0.0
      %2236 = vmatprep.subr.mxu0 0.0
      %2237 = vmatpush2.msra.mxu0 0.0
      %2238 = vmatprep.subr.mxu0 0.0
      %2239 = vmatpush2.msra.mxu0 0.0
      %2240 = vmatprep.subr.mxu0 0.0
      %2241 = vmatpush2.msra.mxu0 0.0
      %2242 = vmatprep.mubr.f32.mxu0 0.0
      %2243 = vmatmul.mubr.f32.gmra.mxu0 %v2176
      %v2244 = vpop.f32.mrf.mxu0
      %v2245 = vadd.f32 0.0, %v2244
      %v2246 = vpop.f32.mrf.mxu0
      %2247 = vdwg.mxu0
      %2248 = vrot.lane.b32.xlu0 %v1002, 104
      %v2249 = vpop.permute.xlu0 %2248
      %v2252 = vsel %vm1011, %v2171, 0
      %2254 = vmatprep.subr.mxu0 0.0
      %2255 = vmatpush1.msra.mxu0 0.0
      %2256 = vmatprep.subr.mxu0 0.0
      %2257 = vmatpush1.msra.mxu0 0.0
      %2258 = vmatprep.subr.mxu0 0.0
      %2259 = vmatpush1.msra.mxu0 0.0
      %2260 = vmatprep.subr.mxu0 0.0
      %2261 = vmatpush1.msra.mxu0 0.0
      %2262 = vmatprep.subr.mxu0 0.0
      %2263 = vmatpush1.msra.mxu0 0.0
      %2264 = vmatprep.subr.mxu0 0.0
      %2265 = vmatpush1.msra.mxu0 0.0
      %2266 = vmatprep.subr.mxu0 0.0
      %2267 = vmatpush1.msra.mxu0 0.0
      %2268 = vmatprep.subr.mxu0 0.0
      %2269 = vmatpush1.msra.mxu0 0.0
      %2270 = vmatprep.subr.mxu0 0.0
      %2271 = vmatpush1.msra.mxu0 0.0
      %2272 = vmatprep.subr.mxu0 0.0
      %2273 = vmatpush1.msra.mxu0 0.0
      %2274 = vmatprep.subr.mxu0 0.0
      %2275 = vmatpush1.msra.mxu0 0.0
      %2276 = vmatprep.subr.mxu0 0.0
      %2277 = vmatpush1.msra.mxu0 0.0
      %2278 = vmatprep.subr.mxu0 0.0
      %2279 = vmatpush1.msra.mxu0 0.0
      %2280 = vmatprep.subr.mxu0 0.0
      %2281 = vmatpush1.msra.mxu0 0.0
      %2282 = vmatprep.subr.mxu0 0.0
      %2283 = vmatpush1.msra.mxu0 0.0
      %2284 = vmatprep.subr.mxu0 0.0
      %2285 = vmatpush1.msra.mxu0 %v2249
      %2286 = vmatprep.subr.mxu0 0.0
      %2287 = vmatpush2.msra.mxu0 0.0
      %2288 = vmatprep.subr.mxu0 0.0
      %2289 = vmatpush2.msra.mxu0 0.0
      %2290 = vmatprep.subr.mxu0 0.0
      %2291 = vmatpush2.msra.mxu0 0.0
      %2292 = vmatprep.subr.mxu0 0.0
      %2293 = vmatpush2.msra.mxu0 0.0
      %2294 = vmatprep.subr.mxu0 0.0
      %2295 = vmatpush2.msra.mxu0 0.0
      %2296 = vmatprep.subr.mxu0 0.0
      %2297 = vmatpush2.msra.mxu0 0.0
      %2298 = vmatprep.subr.mxu0 0.0
      %2299 = vmatpush2.msra.mxu0 0.0
      %2300 = vmatprep.subr.mxu0 0.0
      %2301 = vmatpush2.msra.mxu0 0.0
      %2302 = vmatprep.subr.mxu0 0.0
      %2303 = vmatpush2.msra.mxu0 0.0
      %2304 = vmatprep.subr.mxu0 0.0
      %2305 = vmatpush2.msra.mxu0 0.0
      %2306 = vmatprep.subr.mxu0 0.0
      %2307 = vmatpush2.msra.mxu0 0.0
      %2308 = vmatprep.subr.mxu0 0.0
      %2309 = vmatpush2.msra.mxu0 0.0
      %2310 = vmatprep.subr.mxu0 0.0
      %2311 = vmatpush2.msra.mxu0 0.0
      %2312 = vmatprep.subr.mxu0 0.0
      %2313 = vmatpush2.msra.mxu0 0.0
      %2314 = vmatprep.subr.mxu0 0.0
      %2315 = vmatpush2.msra.mxu0 0.0
      %2316 = vmatprep.subr.mxu0 0.0
      %2317 = vmatpush2.msra.mxu0 0.0
      %2318 = vmatprep.mubr.f32.mxu0 0.0
      %2319 = vmatmul.mubr.f32.gmra.mxu0 %v2252
      %v2320 = vpop.f32.mrf.mxu0
      %v2321 = vadd.f32 0.0, %v2320
      %v2322 = vpop.f32.mrf.mxu0
      %2323 = vdwg.mxu0
      %2324 = vrot.lane.b32.xlu0 %v847, 96
      %v2325 = vpop.permute.xlu0 %2324
      %2326 = vrot.lane.b32.xlu0 %v921, 96
      %v2327 = vpop.permute.xlu0 %2326
      %v2328 = vsel %vm1011, %v2325, 0
      %v2330 = vsel %vm1011, %v2327, 0
      %2332 = vmatprep.subr.mxu0 0.0
      %2333 = vmatpush1.xpose.msra.mxu0 0.0
      %2334 = vmatprep.subr.mxu0 0.0
      %2335 = vmatpush1.xpose.msra.mxu0 0.0
      %2336 = vmatprep.subr.mxu0 0.0
      %2337 = vmatpush1.xpose.msra.mxu0 0.0
      %2338 = vmatprep.subr.mxu0 0.0
      %2339 = vmatpush1.xpose.msra.mxu0 0.0
      %2340 = vmatprep.subr.mxu0 0.0
      %2341 = vmatpush1.xpose.msra.mxu0 0.0
      %2342 = vmatprep.subr.mxu0 0.0
      %2343 = vmatpush1.xpose.msra.mxu0 0.0
      %2344 = vmatprep.subr.mxu0 0.0
      %2345 = vmatpush1.xpose.msra.mxu0 0.0
      %2346 = vmatprep.subr.mxu0 0.0
      %2347 = vmatpush1.xpose.msra.mxu0 0.0
      %2348 = vmatprep.subr.mxu0 0.0
      %2349 = vmatpush1.xpose.msra.mxu0 0.0
      %2350 = vmatprep.subr.mxu0 0.0
      %2351 = vmatpush1.xpose.msra.mxu0 0.0
      %2352 = vmatprep.subr.mxu0 0.0
      %2353 = vmatpush1.xpose.msra.mxu0 0.0
      %2354 = vmatprep.subr.mxu0 0.0
      %2355 = vmatpush1.xpose.msra.mxu0 0.0
      %2356 = vmatprep.subr.mxu0 0.0
      %2357 = vmatpush1.xpose.msra.mxu0 0.0
      %2358 = vmatprep.subr.mxu0 0.0
      %2359 = vmatpush1.xpose.msra.mxu0 0.0
      %2360 = vmatprep.subr.mxu0 0.0
      %2361 = vmatpush1.xpose.msra.mxu0 0.0
      %2362 = vmatprep.subr.mxu0 0.0
      %2363 = vmatpush1.xpose.msra.mxu0 %v2330
      %2364 = vmatprep.subr.mxu0 0.0
      %2365 = vmatpush2.xpose.msra.mxu0 0.0
      %2366 = vmatprep.subr.mxu0 0.0
      %2367 = vmatpush2.xpose.msra.mxu0 0.0
      %2368 = vmatprep.subr.mxu0 0.0
      %2369 = vmatpush2.xpose.msra.mxu0 0.0
      %2370 = vmatprep.subr.mxu0 0.0
      %2371 = vmatpush2.xpose.msra.mxu0 0.0
      %2372 = vmatprep.subr.mxu0 0.0
      %2373 = vmatpush2.xpose.msra.mxu0 0.0
      %2374 = vmatprep.subr.mxu0 0.0
      %2375 = vmatpush2.xpose.msra.mxu0 0.0
      %2376 = vmatprep.subr.mxu0 0.0
      %2377 = vmatpush2.xpose.msra.mxu0 0.0
      %2378 = vmatprep.subr.mxu0 0.0
      %2379 = vmatpush2.xpose.msra.mxu0 0.0
      %2380 = vmatprep.subr.mxu0 0.0
      %2381 = vmatpush2.xpose.msra.mxu0 0.0
      %2382 = vmatprep.subr.mxu0 0.0
      %2383 = vmatpush2.xpose.msra.mxu0 0.0
      %2384 = vmatprep.subr.mxu0 0.0
      %2385 = vmatpush2.xpose.msra.mxu0 0.0
      %2386 = vmatprep.subr.mxu0 0.0
      %2387 = vmatpush2.xpose.msra.mxu0 0.0
      %2388 = vmatprep.subr.mxu0 0.0
      %2389 = vmatpush2.xpose.msra.mxu0 0.0
      %2390 = vmatprep.subr.mxu0 0.0
      %2391 = vmatpush2.xpose.msra.mxu0 0.0
      %2392 = vmatprep.subr.mxu0 0.0
      %2393 = vmatpush2.xpose.msra.mxu0 0.0
      %2394 = vmatprep.subr.mxu0 0.0
      %2395 = vmatpush2.xpose.msra.mxu0 0.0
      %2396 = vmatprep.mubr.f32.mxu0 0.0
      %2397 = vmatmul.mubr.f32.gmra.mxu0 %v2328
      %v2398 = vpop.f32.mrf.mxu0
      %v2399 = vadd.f32 %v1010, %v2398
      %v2400 = vpop.f32.mrf.mxu0
      %2401 = vdwg.mxu0
      %2402 = vrot.lane.b32.xlu0 %v848, 96
      %v2403 = vpop.permute.xlu0 %2402
      %2404 = vrot.lane.b32.xlu0 %v924, 96
      %v2405 = vpop.permute.xlu0 %2404
      %v2406 = vsel %vm1011, %v2403, 0
      %v2408 = vsel %vm1011, %v2405, 0
      %2410 = vmatprep.subr.mxu0 0.0
      %2411 = vmatpush1.xpose.msra.mxu0 0.0
      %2412 = vmatprep.subr.mxu0 0.0
      %2413 = vmatpush1.xpose.msra.mxu0 0.0
      %2414 = vmatprep.subr.mxu0 0.0
      %2415 = vmatpush1.xpose.msra.mxu0 0.0
      %2416 = vmatprep.subr.mxu0 0.0
      %2417 = vmatpush1.xpose.msra.mxu0 0.0
      %2418 = vmatprep.subr.mxu0 0.0
      %2419 = vmatpush1.xpose.msra.mxu0 0.0
      %2420 = vmatprep.subr.mxu0 0.0
      %2421 = vmatpush1.xpose.msra.mxu0 0.0
      %2422 = vmatprep.subr.mxu0 0.0
      %2423 = vmatpush1.xpose.msra.mxu0 0.0
      %2424 = vmatprep.subr.mxu0 0.0
      %2425 = vmatpush1.xpose.msra.mxu0 0.0
      %2426 = vmatprep.subr.mxu0 0.0
      %2427 = vmatpush1.xpose.msra.mxu0 0.0
      %2428 = vmatprep.subr.mxu0 0.0
      %2429 = vmatpush1.xpose.msra.mxu0 0.0
      %2430 = vmatprep.subr.mxu0 0.0
      %2431 = vmatpush1.xpose.msra.mxu0 0.0
      %2432 = vmatprep.subr.mxu0 0.0
      %2433 = vmatpush1.xpose.msra.mxu0 0.0
      %2434 = vmatprep.subr.mxu0 0.0
      %2435 = vmatpush1.xpose.msra.mxu0 0.0
      %2436 = vmatprep.subr.mxu0 0.0
      %2437 = vmatpush1.xpose.msra.mxu0 0.0
      %2438 = vmatprep.subr.mxu0 0.0
      %2439 = vmatpush1.xpose.msra.mxu0 0.0
      %2440 = vmatprep.subr.mxu0 0.0
      %2441 = vmatpush1.xpose.msra.mxu0 %v2408
      %2442 = vmatprep.subr.mxu0 0.0
      %2443 = vmatpush2.xpose.msra.mxu0 0.0
      %2444 = vmatprep.subr.mxu0 0.0
      %2445 = vmatpush2.xpose.msra.mxu0 0.0
      %2446 = vmatprep.subr.mxu0 0.0
      %2447 = vmatpush2.xpose.msra.mxu0 0.0
      %2448 = vmatprep.subr.mxu0 0.0
      %2449 = vmatpush2.xpose.msra.mxu0 0.0
      %2450 = vmatprep.subr.mxu0 0.0
      %2451 = vmatpush2.xpose.msra.mxu0 0.0
      %2452 = vmatprep.subr.mxu0 0.0
      %2453 = vmatpush2.xpose.msra.mxu0 0.0
      %2454 = vmatprep.subr.mxu0 0.0
      %2455 = vmatpush2.xpose.msra.mxu0 0.0
      %2456 = vmatprep.subr.mxu0 0.0
      %2457 = vmatpush2.xpose.msra.mxu0 0.0
      %2458 = vmatprep.subr.mxu0 0.0
      %2459 = vmatpush2.xpose.msra.mxu0 0.0
      %2460 = vmatprep.subr.mxu0 0.0
      %2461 = vmatpush2.xpose.msra.mxu0 0.0
      %2462 = vmatprep.subr.mxu0 0.0
      %2463 = vmatpush2.xpose.msra.mxu0 0.0
      %2464 = vmatprep.subr.mxu0 0.0
      %2465 = vmatpush2.xpose.msra.mxu0 0.0
      %2466 = vmatprep.subr.mxu0 0.0
      %2467 = vmatpush2.xpose.msra.mxu0 0.0
      %2468 = vmatprep.subr.mxu0 0.0
      %2469 = vmatpush2.xpose.msra.mxu0 0.0
      %2470 = vmatprep.subr.mxu0 0.0
      %2471 = vmatpush2.xpose.msra.mxu0 0.0
      %2472 = vmatprep.subr.mxu0 0.0
      %2473 = vmatpush2.xpose.msra.mxu0 0.0
      %2474 = vmatprep.mubr.f32.mxu0 0.0
      %2475 = vmatmul.mubr.f32.gmra.mxu0 %v2406
      %v2476 = vpop.f32.mrf.mxu0
      %v2477 = vadd.f32 %v1010, %v2476
      %v2478 = vpop.f32.mrf.mxu0
      %2479 = vdwg.mxu0
      %v2480 = vsel %vm1011, %v2399, -inf
      %2481 = vmax.xlane.f32.xlu0 %v2480
      %v2482 = vpop.xlane.xlu0 %2481
      %v2483 = vsel %vm1011, %v2477, -inf
      %2484 = vmax.xlane.f32.xlu0 %v2483
      %v2485 = vpop.xlane.xlu0 %2484
      %v2486 = vsub.f32 %v2399, %v2482
      %v2487 = vsub.f32 %v2477, %v2485
      %v2488 = vmul.f32 %v2486, 1.442695
      %v2489 = vpow.pop %v2488
      %v2490 = vmul.f32 %v2487, 1.442695
      %v2491 = vpow.pop %v2490
      %v2492 = vsel %vm1011, %v2489, 0.0
      %2493 = vadd.xlane.f32.xlu0 %v2492
      %v2494 = vpop.xlane.xlu0 %2493
      %v2495 = vsel %vm1011, %v2491, 0.0
      %2496 = vadd.xlane.f32.xlu0 %v2495
      %v2497 = vpop.xlane.xlu0 %2496
      %v2498 = vrcp.pop %v2494
      %v2499 = vmul.f32 %v2489, %v2498
      %v2500 = vrcp.pop %v2497
      %v2501 = vmul.f32 %v2491, %v2500
      %2502 = vrot.lane.b32.xlu0 %v999, 96
      %v2503 = vpop.permute.xlu0 %2502
      %v2506 = vsel %vm1011, %v2499, 0
      %2508 = vmatprep.subr.mxu0 0.0
      %2509 = vmatpush1.msra.mxu0 0.0
      %2510 = vmatprep.subr.mxu0 0.0
      %2511 = vmatpush1.msra.mxu0 0.0
      %2512 = vmatprep.subr.mxu0 0.0
      %2513 = vmatpush1.msra.mxu0 0.0
      %2514 = vmatprep.subr.mxu0 0.0
      %2515 = vmatpush1.msra.mxu0 0.0
      %2516 = vmatprep.subr.mxu0 0.0
      %2517 = vmatpush1.msra.mxu0 0.0
      %2518 = vmatprep.subr.mxu0 0.0
      %2519 = vmatpush1.msra.mxu0 0.0
      %2520 = vmatprep.subr.mxu0 0.0
      %2521 = vmatpush1.msra.mxu0 0.0
      %2522 = vmatprep.subr.mxu0 0.0
      %2523 = vmatpush1.msra.mxu0 0.0
      %2524 = vmatprep.subr.mxu0 0.0
      %2525 = vmatpush1.msra.mxu0 0.0
      %2526 = vmatprep.subr.mxu0 0.0
      %2527 = vmatpush1.msra.mxu0 0.0
      %2528 = vmatprep.subr.mxu0 0.0
      %2529 = vmatpush1.msra.mxu0 0.0
      %2530 = vmatprep.subr.mxu0 0.0
      %2531 = vmatpush1.msra.mxu0 0.0
      %2532 = vmatprep.subr.mxu0 0.0
      %2533 = vmatpush1.msra.mxu0 0.0
      %2534 = vmatprep.subr.mxu0 0.0
      %2535 = vmatpush1.msra.mxu0 0.0
      %2536 = vmatprep.subr.mxu0 0.0
      %2537 = vmatpush1.msra.mxu0 0.0
      %2538 = vmatprep.subr.mxu0 0.0
      %2539 = vmatpush1.msra.mxu0 %v2503
      %2540 = vmatprep.subr.mxu0 0.0
      %2541 = vmatpush2.msra.mxu0 0.0
      %2542 = vmatprep.subr.mxu0 0.0
      %2543 = vmatpush2.msra.mxu0 0.0
      %2544 = vmatprep.subr.mxu0 0.0
      %2545 = vmatpush2.msra.mxu0 0.0
      %2546 = vmatprep.subr.mxu0 0.0
      %2547 = vmatpush2.msra.mxu0 0.0
      %2548 = vmatprep.subr.mxu0 0.0
      %2549 = vmatpush2.msra.mxu0 0.0
      %2550 = vmatprep.subr.mxu0 0.0
      %2551 = vmatpush2.msra.mxu0 0.0
      %2552 = vmatprep.subr.mxu0 0.0
      %2553 = vmatpush2.msra.mxu0 0.0
      %2554 = vmatprep.subr.mxu0 0.0
      %2555 = vmatpush2.msra.mxu0 0.0
      %2556 = vmatprep.subr.mxu0 0.0
      %2557 = vmatpush2.msra.mxu0 0.0
      %2558 = vmatprep.subr.mxu0 0.0
      %2559 = vmatpush2.msra.mxu0 0.0
      %2560 = vmatprep.subr.mxu0 0.0
      %2561 = vmatpush2.msra.mxu0 0.0
      %2562 = vmatprep.subr.mxu0 0.0
      %2563 = vmatpush2.msra.mxu0 0.0
      %2564 = vmatprep.subr.mxu0 0.0
      %2565 = vmatpush2.msra.mxu0 0.0
      %2566 = vmatprep.subr.mxu0 0.0
      %2567 = vmatpush2.msra.mxu0 0.0
      %2568 = vmatprep.subr.mxu0 0.0
      %2569 = vmatpush2.msra.mxu0 0.0
      %2570 = vmatprep.subr.mxu0 0.0
      %2571 = vmatpush2.msra.mxu0 0.0
      %2572 = vmatprep.mubr.f32.mxu0 0.0
      %2573 = vmatmul.mubr.f32.gmra.mxu0 %v2506
      %v2574 = vpop.f32.mrf.mxu0
      %v2575 = vadd.f32 0.0, %v2574
      %v2576 = vpop.f32.mrf.mxu0
      %2577 = vdwg.mxu0
      %2578 = vrot.lane.b32.xlu0 %v1002, 96
      %v2579 = vpop.permute.xlu0 %2578
      %v2582 = vsel %vm1011, %v2501, 0
      %2584 = vmatprep.subr.mxu0 0.0
      %2585 = vmatpush1.msra.mxu0 0.0
      %2586 = vmatprep.subr.mxu0 0.0
      %2587 = vmatpush1.msra.mxu0 0.0
      %2588 = vmatprep.subr.mxu0 0.0
      %2589 = vmatpush1.msra.mxu0 0.0
      %2590 = vmatprep.subr.mxu0 0.0
      %2591 = vmatpush1.msra.mxu0 0.0
      %2592 = vmatprep.subr.mxu0 0.0
      %2593 = vmatpush1.msra.mxu0 0.0
      %2594 = vmatprep.subr.mxu0 0.0
      %2595 = vmatpush1.msra.mxu0 0.0
      %2596 = vmatprep.subr.mxu0 0.0
      %2597 = vmatpush1.msra.mxu0 0.0
      %2598 = vmatprep.subr.mxu0 0.0
      %2599 = vmatpush1.msra.mxu0 0.0
      %2600 = vmatprep.subr.mxu0 0.0
      %2601 = vmatpush1.msra.mxu0 0.0
      %2602 = vmatprep.subr.mxu0 0.0
      %2603 = vmatpush1.msra.mxu0 0.0
      %2604 = vmatprep.subr.mxu0 0.0
      %2605 = vmatpush1.msra.mxu0 0.0
      %2606 = vmatprep.subr.mxu0 0.0
      %2607 = vmatpush1.msra.mxu0 0.0
      %2608 = vmatprep.subr.mxu0 0.0
      %2609 = vmatpush1.msra.mxu0 0.0
      %2610 = vmatprep.subr.mxu0 0.0
      %2611 = vmatpush1.msra.mxu0 0.0
      %2612 = vmatprep.subr.mxu0 0.0
      %2613 = vmatpush1.msra.mxu0 0.0
      %2614 = vmatprep.subr.mxu0 0.0
      %2615 = vmatpush1.msra.mxu0 %v2579
      %2616 = vmatprep.subr.mxu0 0.0
      %2617 = vmatpush2.msra.mxu0 0.0
      %2618 = vmatprep.subr.mxu0 0.0
      %2619 = vmatpush2.msra.mxu0 0.0
      %2620 = vmatprep.subr.mxu0 0.0
      %2621 = vmatpush2.msra.mxu0 0.0
      %2622 = vmatprep.subr.mxu0 0.0
      %2623 = vmatpush2.msra.mxu0 0.0
      %2624 = vmatprep.subr.mxu0 0.0
      %2625 = vmatpush2.msra.mxu0 0.0
      %2626 = vmatprep.subr.mxu0 0.0
      %2627 = vmatpush2.msra.mxu0 0.0
      %2628 = vmatprep.subr.mxu0 0.0
      %2629 = vmatpush2.msra.mxu0 0.0
      %2630 = vmatprep.subr.mxu0 0.0
      %2631 = vmatpush2.msra.mxu0 0.0
      %2632 = vmatprep.subr.mxu0 0.0
      %2633 = vmatpush2.msra.mxu0 0.0
      %2634 = vmatprep.subr.mxu0 0.0
      %2635 = vmatpush2.msra.mxu0 0.0
      %2636 = vmatprep.subr.mxu0 0.0
      %2637 = vmatpush2.msra.mxu0 0.0
      %2638 = vmatprep.subr.mxu0 0.0
      %2639 = vmatpush2.msra.mxu0 0.0
      %2640 = vmatprep.subr.mxu0 0.0
      %2641 = vmatpush2.msra.mxu0 0.0
      %2642 = vmatprep.subr.mxu0 0.0
      %2643 = vmatpush2.msra.mxu0 0.0
      %2644 = vmatprep.subr.mxu0 0.0
      %2645 = vmatpush2.msra.mxu0 0.0
      %2646 = vmatprep.subr.mxu0 0.0
      %2647 = vmatpush2.msra.mxu0 0.0
      %2648 = vmatprep.mubr.f32.mxu0 0.0
      %2649 = vmatmul.mubr.f32.gmra.mxu0 %v2582
      %v2650 = vpop.f32.mrf.mxu0
      %v2651 = vadd.f32 0.0, %v2650
      %v2652 = vpop.f32.mrf.mxu0
      %2653 = vdwg.mxu0
      %2654 = vrot.lane.b32.xlu0 %v847, 88
      %v2655 = vpop.permute.xlu0 %2654
      %2656 = vrot.lane.b32.xlu0 %v921, 88
      %v2657 = vpop.permute.xlu0 %2656
      %v2658 = vsel %vm1011, %v2655, 0
      %v2660 = vsel %vm1011, %v2657, 0
      %2662 = vmatprep.subr.mxu0 0.0
      %2663 = vmatpush1.xpose.msra.mxu0 0.0
      %2664 = vmatprep.subr.mxu0 0.0
      %2665 = vmatpush1.xpose.msra.mxu0 0.0
      %2666 = vmatprep.subr.mxu0 0.0
      %2667 = vmatpush1.xpose.msra.mxu0 0.0
      %2668 = vmatprep.subr.mxu0 0.0
      %2669 = vmatpush1.xpose.msra.mxu0 0.0
      %2670 = vmatprep.subr.mxu0 0.0
      %2671 = vmatpush1.xpose.msra.mxu0 0.0
      %2672 = vmatprep.subr.mxu0 0.0
      %2673 = vmatpush1.xpose.msra.mxu0 0.0
      %2674 = vmatprep.subr.mxu0 0.0
      %2675 = vmatpush1.xpose.msra.mxu0 0.0
      %2676 = vmatprep.subr.mxu0 0.0
      %2677 = vmatpush1.xpose.msra.mxu0 0.0
      %2678 = vmatprep.subr.mxu0 0.0
      %2679 = vmatpush1.xpose.msra.mxu0 0.0
      %2680 = vmatprep.subr.mxu0 0.0
      %2681 = vmatpush1.xpose.msra.mxu0 0.0
      %2682 = vmatprep.subr.mxu0 0.0
      %2683 = vmatpush1.xpose.msra.mxu0 0.0
      %2684 = vmatprep.subr.mxu0 0.0
      %2685 = vmatpush1.xpose.msra.mxu0 0.0
      %2686 = vmatprep.subr.mxu0 0.0
      %2687 = vmatpush1.xpose.msra.mxu0 0.0
      %2688 = vmatprep.subr.mxu0 0.0
      %2689 = vmatpush1.xpose.msra.mxu0 0.0
      %2690 = vmatprep.subr.mxu0 0.0
      %2691 = vmatpush1.xpose.msra.mxu0 0.0
      %2692 = vmatprep.subr.mxu0 0.0
      %2693 = vmatpush1.xpose.msra.mxu0 %v2660
      %2694 = vmatprep.subr.mxu0 0.0
      %2695 = vmatpush2.xpose.msra.mxu0 0.0
      %2696 = vmatprep.subr.mxu0 0.0
      %2697 = vmatpush2.xpose.msra.mxu0 0.0
      %2698 = vmatprep.subr.mxu0 0.0
      %2699 = vmatpush2.xpose.msra.mxu0 0.0
      %2700 = vmatprep.subr.mxu0 0.0
      %2701 = vmatpush2.xpose.msra.mxu0 0.0
      %2702 = vmatprep.subr.mxu0 0.0
      %2703 = vmatpush2.xpose.msra.mxu0 0.0
      %2704 = vmatprep.subr.mxu0 0.0
      %2705 = vmatpush2.xpose.msra.mxu0 0.0
      %2706 = vmatprep.subr.mxu0 0.0
      %2707 = vmatpush2.xpose.msra.mxu0 0.0
      %2708 = vmatprep.subr.mxu0 0.0
      %2709 = vmatpush2.xpose.msra.mxu0 0.0
      %2710 = vmatprep.subr.mxu0 0.0
      %2711 = vmatpush2.xpose.msra.mxu0 0.0
      %2712 = vmatprep.subr.mxu0 0.0
      %2713 = vmatpush2.xpose.msra.mxu0 0.0
      %2714 = vmatprep.subr.mxu0 0.0
      %2715 = vmatpush2.xpose.msra.mxu0 0.0
      %2716 = vmatprep.subr.mxu0 0.0
      %2717 = vmatpush2.xpose.msra.mxu0 0.0
      %2718 = vmatprep.subr.mxu0 0.0
      %2719 = vmatpush2.xpose.msra.mxu0 0.0
      %2720 = vmatprep.subr.mxu0 0.0
      %2721 = vmatpush2.xpose.msra.mxu0 0.0
      %2722 = vmatprep.subr.mxu0 0.0
      %2723 = vmatpush2.xpose.msra.mxu0 0.0
      %2724 = vmatprep.subr.mxu0 0.0
      %2725 = vmatpush2.xpose.msra.mxu0 0.0
      %2726 = vmatprep.mubr.f32.mxu0 0.0
      %2727 = vmatmul.mubr.f32.gmra.mxu0 %v2658
      %v2728 = vpop.f32.mrf.mxu0
      %v2729 = vadd.f32 %v1010, %v2728
      %v2730 = vpop.f32.mrf.mxu0
      %2731 = vdwg.mxu0
      %2732 = vrot.lane.b32.xlu0 %v848, 88
      %v2733 = vpop.permute.xlu0 %2732
      %2734 = vrot.lane.b32.xlu0 %v924, 88
      %v2735 = vpop.permute.xlu0 %2734
      %v2736 = vsel %vm1011, %v2733, 0
      %v2738 = vsel %vm1011, %v2735, 0
      %2740 = vmatprep.subr.mxu0 0.0
      %2741 = vmatpush1.xpose.msra.mxu0 0.0
      %2742 = vmatprep.subr.mxu0 0.0
      %2743 = vmatpush1.xpose.msra.mxu0 0.0
      %2744 = vmatprep.subr.mxu0 0.0
      %2745 = vmatpush1.xpose.msra.mxu0 0.0
      %2746 = vmatprep.subr.mxu0 0.0
      %2747 = vmatpush1.xpose.msra.mxu0 0.0
      %2748 = vmatprep.subr.mxu0 0.0
      %2749 = vmatpush1.xpose.msra.mxu0 0.0
      %2750 = vmatprep.subr.mxu0 0.0
      %2751 = vmatpush1.xpose.msra.mxu0 0.0
      %2752 = vmatprep.subr.mxu0 0.0
      %2753 = vmatpush1.xpose.msra.mxu0 0.0
      %2754 = vmatprep.subr.mxu0 0.0
      %2755 = vmatpush1.xpose.msra.mxu0 0.0
      %2756 = vmatprep.subr.mxu0 0.0
      %2757 = vmatpush1.xpose.msra.mxu0 0.0
      %2758 = vmatprep.subr.mxu0 0.0
      %2759 = vmatpush1.xpose.msra.mxu0 0.0
      %2760 = vmatprep.subr.mxu0 0.0
      %2761 = vmatpush1.xpose.msra.mxu0 0.0
      %2762 = vmatprep.subr.mxu0 0.0
      %2763 = vmatpush1.xpose.msra.mxu0 0.0
      %2764 = vmatprep.subr.mxu0 0.0
      %2765 = vmatpush1.xpose.msra.mxu0 0.0
      %2766 = vmatprep.subr.mxu0 0.0
      %2767 = vmatpush1.xpose.msra.mxu0 0.0
      %2768 = vmatprep.subr.mxu0 0.0
      %2769 = vmatpush1.xpose.msra.mxu0 0.0
      %2770 = vmatprep.subr.mxu0 0.0
      %2771 = vmatpush1.xpose.msra.mxu0 %v2738
      %2772 = vmatprep.subr.mxu0 0.0
      %2773 = vmatpush2.xpose.msra.mxu0 0.0
      %2774 = vmatprep.subr.mxu0 0.0
      %2775 = vmatpush2.xpose.msra.mxu0 0.0
      %2776 = vmatprep.subr.mxu0 0.0
      %2777 = vmatpush2.xpose.msra.mxu0 0.0
      %2778 = vmatprep.subr.mxu0 0.0
      %2779 = vmatpush2.xpose.msra.mxu0 0.0
      %2780 = vmatprep.subr.mxu0 0.0
      %2781 = vmatpush2.xpose.msra.mxu0 0.0
      %2782 = vmatprep.subr.mxu0 0.0
      %2783 = vmatpush2.xpose.msra.mxu0 0.0
      %2784 = vmatprep.subr.mxu0 0.0
      %2785 = vmatpush2.xpose.msra.mxu0 0.0
      %2786 = vmatprep.subr.mxu0 0.0
      %2787 = vmatpush2.xpose.msra.mxu0 0.0
      %2788 = vmatprep.subr.mxu0 0.0
      %2789 = vmatpush2.xpose.msra.mxu0 0.0
      %2790 = vmatprep.subr.mxu0 0.0
      %2791 = vmatpush2.xpose.msra.mxu0 0.0
      %2792 = vmatprep.subr.mxu0 0.0
      %2793 = vmatpush2.xpose.msra.mxu0 0.0
      %2794 = vmatprep.subr.mxu0 0.0
      %2795 = vmatpush2.xpose.msra.mxu0 0.0
      %2796 = vmatprep.subr.mxu0 0.0
      %2797 = vmatpush2.xpose.msra.mxu0 0.0
      %2798 = vmatprep.subr.mxu0 0.0
      %2799 = vmatpush2.xpose.msra.mxu0 0.0
      %2800 = vmatprep.subr.mxu0 0.0
      %2801 = vmatpush2.xpose.msra.mxu0 0.0
      %2802 = vmatprep.subr.mxu0 0.0
      %2803 = vmatpush2.xpose.msra.mxu0 0.0
      %2804 = vmatprep.mubr.f32.mxu0 0.0
      %2805 = vmatmul.mubr.f32.gmra.mxu0 %v2736
      %v2806 = vpop.f32.mrf.mxu0
      %v2807 = vadd.f32 %v1010, %v2806
      %v2808 = vpop.f32.mrf.mxu0
      %2809 = vdwg.mxu0
      %v2810 = vsel %vm1011, %v2729, -inf
      %2811 = vmax.xlane.f32.xlu0 %v2810
      %v2812 = vpop.xlane.xlu0 %2811
      %v2813 = vsel %vm1011, %v2807, -inf
      %2814 = vmax.xlane.f32.xlu0 %v2813
      %v2815 = vpop.xlane.xlu0 %2814
      %v2816 = vsub.f32 %v2729, %v2812
      %v2817 = vsub.f32 %v2807, %v2815
      %v2818 = vmul.f32 %v2816, 1.442695
      %v2819 = vpow.pop %v2818
      %v2820 = vmul.f32 %v2817, 1.442695
      %v2821 = vpow.pop %v2820
      %v2822 = vsel %vm1011, %v2819, 0.0
      %2823 = vadd.xlane.f32.xlu0 %v2822
      %v2824 = vpop.xlane.xlu0 %2823
      %v2825 = vsel %vm1011, %v2821, 0.0
      %2826 = vadd.xlane.f32.xlu0 %v2825
      %v2827 = vpop.xlane.xlu0 %2826
      %v2828 = vrcp.pop %v2824
      %v2829 = vmul.f32 %v2819, %v2828
      %v2830 = vrcp.pop %v2827
      %v2831 = vmul.f32 %v2821, %v2830
      %2832 = vrot.lane.b32.xlu0 %v999, 88
      %v2833 = vpop.permute.xlu0 %2832
      %v2836 = vsel %vm1011, %v2829, 0
      %2838 = vmatprep.subr.mxu0 0.0
      %2839 = vmatpush1.msra.mxu0 0.0
      %2840 = vmatprep.subr.mxu0 0.0
      %2841 = vmatpush1.msra.mxu0 0.0
      %2842 = vmatprep.subr.mxu0 0.0
      %2843 = vmatpush1.msra.mxu0 0.0
      %2844 = vmatprep.subr.mxu0 0.0
      %2845 = vmatpush1.msra.mxu0 0.0
      %2846 = vmatprep.subr.mxu0 0.0
      %2847 = vmatpush1.msra.mxu0 0.0
      %2848 = vmatprep.subr.mxu0 0.0
      %2849 = vmatpush1.msra.mxu0 0.0
      %2850 = vmatprep.subr.mxu0 0.0
      %2851 = vmatpush1.msra.mxu0 0.0
      %2852 = vmatprep.subr.mxu0 0.0
      %2853 = vmatpush1.msra.mxu0 0.0
      %2854 = vmatprep.subr.mxu0 0.0
      %2855 = vmatpush1.msra.mxu0 0.0
      %2856 = vmatprep.subr.mxu0 0.0
      %2857 = vmatpush1.msra.mxu0 0.0
      %2858 = vmatprep.subr.mxu0 0.0
      %2859 = vmatpush1.msra.mxu0 0.0
      %2860 = vmatprep.subr.mxu0 0.0
      %2861 = vmatpush1.msra.mxu0 0.0
      %2862 = vmatprep.subr.mxu0 0.0
      %2863 = vmatpush1.msra.mxu0 0.0
      %2864 = vmatprep.subr.mxu0 0.0
      %2865 = vmatpush1.msra.mxu0 0.0
      %2866 = vmatprep.subr.mxu0 0.0
      %2867 = vmatpush1.msra.mxu0 0.0
      %2868 = vmatprep.subr.mxu0 0.0
      %2869 = vmatpush1.msra.mxu0 %v2833
      %2870 = vmatprep.subr.mxu0 0.0
      %2871 = vmatpush2.msra.mxu0 0.0
      %2872 = vmatprep.subr.mxu0 0.0
      %2873 = vmatpush2.msra.mxu0 0.0
      %2874 = vmatprep.subr.mxu0 0.0
      %2875 = vmatpush2.msra.mxu0 0.0
      %2876 = vmatprep.subr.mxu0 0.0
      %2877 = vmatpush2.msra.mxu0 0.0
      %2878 = vmatprep.subr.mxu0 0.0
      %2879 = vmatpush2.msra.mxu0 0.0
      %2880 = vmatprep.subr.mxu0 0.0
      %2881 = vmatpush2.msra.mxu0 0.0
      %2882 = vmatprep.subr.mxu0 0.0
      %2883 = vmatpush2.msra.mxu0 0.0
      %2884 = vmatprep.subr.mxu0 0.0
      %2885 = vmatpush2.msra.mxu0 0.0
      %2886 = vmatprep.subr.mxu0 0.0
      %2887 = vmatpush2.msra.mxu0 0.0
      %2888 = vmatprep.subr.mxu0 0.0
      %2889 = vmatpush2.msra.mxu0 0.0
      %2890 = vmatprep.subr.mxu0 0.0
      %2891 = vmatpush2.msra.mxu0 0.0
      %2892 = vmatprep.subr.mxu0 0.0
      %2893 = vmatpush2.msra.mxu0 0.0
      %2894 = vmatprep.subr.mxu0 0.0
      %2895 = vmatpush2.msra.mxu0 0.0
      %2896 = vmatprep.subr.mxu0 0.0
      %2897 = vmatpush2.msra.mxu0 0.0
      %2898 = vmatprep.subr.mxu0 0.0
      %2899 = vmatpush2.msra.mxu0 0.0
      %2900 = vmatprep.subr.mxu0 0.0
      %2901 = vmatpush2.msra.mxu0 0.0
      %2902 = vmatprep.mubr.f32.mxu0 0.0
      %2903 = vmatmul.mubr.f32.gmra.mxu0 %v2836
      %v2904 = vpop.f32.mrf.mxu0
      %v2905 = vadd.f32 0.0, %v2904
      %v2906 = vpop.f32.mrf.mxu0
      %2907 = vdwg.mxu0
      %2908 = vrot.lane.b32.xlu0 %v1002, 88
      %v2909 = vpop.permute.xlu0 %2908
      %v2912 = vsel %vm1011, %v2831, 0
      %2914 = vmatprep.subr.mxu0 0.0
      %2915 = vmatpush1.msra.mxu0 0.0
      %2916 = vmatprep.subr.mxu0 0.0
      %2917 = vmatpush1.msra.mxu0 0.0
      %2918 = vmatprep.subr.mxu0 0.0
      %2919 = vmatpush1.msra.mxu0 0.0
      %2920 = vmatprep.subr.mxu0 0.0
      %2921 = vmatpush1.msra.mxu0 0.0
      %2922 = vmatprep.subr.mxu0 0.0
      %2923 = vmatpush1.msra.mxu0 0.0
      %2924 = vmatprep.subr.mxu0 0.0
      %2925 = vmatpush1.msra.mxu0 0.0
      %2926 = vmatprep.subr.mxu0 0.0
      %2927 = vmatpush1.msra.mxu0 0.0
      %2928 = vmatprep.subr.mxu0 0.0
      %2929 = vmatpush1.msra.mxu0 0.0
      %2930 = vmatprep.subr.mxu0 0.0
      %2931 = vmatpush1.msra.mxu0 0.0
      %2932 = vmatprep.subr.mxu0 0.0
      %2933 = vmatpush1.msra.mxu0 0.0
      %2934 = vmatprep.subr.mxu0 0.0
      %2935 = vmatpush1.msra.mxu0 0.0
      %2936 = vmatprep.subr.mxu0 0.0
      %2937 = vmatpush1.msra.mxu0 0.0
      %2938 = vmatprep.subr.mxu0 0.0
      %2939 = vmatpush1.msra.mxu0 0.0
      %2940 = vmatprep.subr.mxu0 0.0
      %2941 = vmatpush1.msra.mxu0 0.0
      %2942 = vmatprep.subr.mxu0 0.0
      %2943 = vmatpush1.msra.mxu0 0.0
      %2944 = vmatprep.subr.mxu0 0.0
      %2945 = vmatpush1.msra.mxu0 %v2909
      %2946 = vmatprep.subr.mxu0 0.0
      %2947 = vmatpush2.msra.mxu0 0.0
      %2948 = vmatprep.subr.mxu0 0.0
      %2949 = vmatpush2.msra.mxu0 0.0
      %2950 = vmatprep.subr.mxu0 0.0
      %2951 = vmatpush2.msra.mxu0 0.0
      %2952 = vmatprep.subr.mxu0 0.0
      %2953 = vmatpush2.msra.mxu0 0.0
      %2954 = vmatprep.subr.mxu0 0.0
      %2955 = vmatpush2.msra.mxu0 0.0
      %2956 = vmatprep.subr.mxu0 0.0
      %2957 = vmatpush2.msra.mxu0 0.0
      %2958 = vmatprep.subr.mxu0 0.0
      %2959 = vmatpush2.msra.mxu0 0.0
      %2960 = vmatprep.subr.mxu0 0.0
      %2961 = vmatpush2.msra.mxu0 0.0
      %2962 = vmatprep.subr.mxu0 0.0
      %2963 = vmatpush2.msra.mxu0 0.0
      %2964 = vmatprep.subr.mxu0 0.0
      %2965 = vmatpush2.msra.mxu0 0.0
      %2966 = vmatprep.subr.mxu0 0.0
      %2967 = vmatpush2.msra.mxu0 0.0
      %2968 = vmatprep.subr.mxu0 0.0
      %2969 = vmatpush2.msra.mxu0 0.0
      %2970 = vmatprep.subr.mxu0 0.0
      %2971 = vmatpush2.msra.mxu0 0.0
      %2972 = vmatprep.subr.mxu0 0.0
      %2973 = vmatpush2.msra.mxu0 0.0
      %2974 = vmatprep.subr.mxu0 0.0
      %2975 = vmatpush2.msra.mxu0 0.0
      %2976 = vmatprep.subr.mxu0 0.0
      %2977 = vmatpush2.msra.mxu0 0.0
      %2978 = vmatprep.mubr.f32.mxu0 0.0
      %2979 = vmatmul.mubr.f32.gmra.mxu0 %v2912
      %v2980 = vpop.f32.mrf.mxu0
      %v2981 = vadd.f32 0.0, %v2980
      %v2982 = vpop.f32.mrf.mxu0
      %2983 = vdwg.mxu0
      %2984 = vrot.lane.b32.xlu0 %v847, 80
      %v2985 = vpop.permute.xlu0 %2984
      %2986 = vrot.lane.b32.xlu0 %v921, 80
      %v2987 = vpop.permute.xlu0 %2986
      %v2988 = vsel %vm1011, %v2985, 0
      %v2990 = vsel %vm1011, %v2987, 0
      %2992 = vmatprep.subr.mxu0 0.0
      %2993 = vmatpush1.xpose.msra.mxu0 0.0
      %2994 = vmatprep.subr.mxu0 0.0
      %2995 = vmatpush1.xpose.msra.mxu0 0.0
      %2996 = vmatprep.subr.mxu0 0.0
      %2997 = vmatpush1.xpose.msra.mxu0 0.0
      %2998 = vmatprep.subr.mxu0 0.0
      %2999 = vmatpush1.xpose.msra.mxu0 0.0
      %3000 = vmatprep.subr.mxu0 0.0
      %3001 = vmatpush1.xpose.msra.mxu0 0.0
      %3002 = vmatprep.subr.mxu0 0.0
      %3003 = vmatpush1.xpose.msra.mxu0 0.0
      %3004 = vmatprep.subr.mxu0 0.0
      %3005 = vmatpush1.xpose.msra.mxu0 0.0
      %3006 = vmatprep.subr.mxu0 0.0
      %3007 = vmatpush1.xpose.msra.mxu0 0.0
      %3008 = vmatprep.subr.mxu0 0.0
      %3009 = vmatpush1.xpose.msra.mxu0 0.0
      %3010 = vmatprep.subr.mxu0 0.0
      %3011 = vmatpush1.xpose.msra.mxu0 0.0
      %3012 = vmatprep.subr.mxu0 0.0
      %3013 = vmatpush1.xpose.msra.mxu0 0.0
      %3014 = vmatprep.subr.mxu0 0.0
      %3015 = vmatpush1.xpose.msra.mxu0 0.0
      %3016 = vmatprep.subr.mxu0 0.0
      %3017 = vmatpush1.xpose.msra.mxu0 0.0
      %3018 = vmatprep.subr.mxu0 0.0
      %3019 = vmatpush1.xpose.msra.mxu0 0.0
      %3020 = vmatprep.subr.mxu0 0.0
      %3021 = vmatpush1.xpose.msra.mxu0 0.0
      %3022 = vmatprep.subr.mxu0 0.0
      %3023 = vmatpush1.xpose.msra.mxu0 %v2990
      %3024 = vmatprep.subr.mxu0 0.0
      %3025 = vmatpush2.xpose.msra.mxu0 0.0
      %3026 = vmatprep.subr.mxu0 0.0
      %3027 = vmatpush2.xpose.msra.mxu0 0.0
      %3028 = vmatprep.subr.mxu0 0.0
      %3029 = vmatpush2.xpose.msra.mxu0 0.0
      %3030 = vmatprep.subr.mxu0 0.0
      %3031 = vmatpush2.xpose.msra.mxu0 0.0
      %3032 = vmatprep.subr.mxu0 0.0
      %3033 = vmatpush2.xpose.msra.mxu0 0.0
      %3034 = vmatprep.subr.mxu0 0.0
      %3035 = vmatpush2.xpose.msra.mxu0 0.0
      %3036 = vmatprep.subr.mxu0 0.0
      %3037 = vmatpush2.xpose.msra.mxu0 0.0
      %3038 = vmatprep.subr.mxu0 0.0
      %3039 = vmatpush2.xpose.msra.mxu0 0.0
      %3040 = vmatprep.subr.mxu0 0.0
      %3041 = vmatpush2.xpose.msra.mxu0 0.0
      %3042 = vmatprep.subr.mxu0 0.0
      %3043 = vmatpush2.xpose.msra.mxu0 0.0
      %3044 = vmatprep.subr.mxu0 0.0
      %3045 = vmatpush2.xpose.msra.mxu0 0.0
      %3046 = vmatprep.subr.mxu0 0.0
      %3047 = vmatpush2.xpose.msra.mxu0 0.0
      %3048 = vmatprep.subr.mxu0 0.0
      %3049 = vmatpush2.xpose.msra.mxu0 0.0
      %3050 = vmatprep.subr.mxu0 0.0
      %3051 = vmatpush2.xpose.msra.mxu0 0.0
      %3052 = vmatprep.subr.mxu0 0.0
      %3053 = vmatpush2.xpose.msra.mxu0 0.0
      %3054 = vmatprep.subr.mxu0 0.0
      %3055 = vmatpush2.xpose.msra.mxu0 0.0
      %3056 = vmatprep.mubr.f32.mxu0 0.0
      %3057 = vmatmul.mubr.f32.gmra.mxu0 %v2988
      %v3058 = vpop.f32.mrf.mxu0
      %v3059 = vadd.f32 %v1010, %v3058
      %v3060 = vpop.f32.mrf.mxu0
      %3061 = vdwg.mxu0
      %3062 = vrot.lane.b32.xlu0 %v848, 80
      %v3063 = vpop.permute.xlu0 %3062
      %3064 = vrot.lane.b32.xlu0 %v924, 80
      %v3065 = vpop.permute.xlu0 %3064
      %v3066 = vsel %vm1011, %v3063, 0
      %v3068 = vsel %vm1011, %v3065, 0
      %3070 = vmatprep.subr.mxu0 0.0
      %3071 = vmatpush1.xpose.msra.mxu0 0.0
      %3072 = vmatprep.subr.mxu0 0.0
      %3073 = vmatpush1.xpose.msra.mxu0 0.0
      %3074 = vmatprep.subr.mxu0 0.0
      %3075 = vmatpush1.xpose.msra.mxu0 0.0
      %3076 = vmatprep.subr.mxu0 0.0
      %3077 = vmatpush1.xpose.msra.mxu0 0.0
      %3078 = vmatprep.subr.mxu0 0.0
      %3079 = vmatpush1.xpose.msra.mxu0 0.0
      %3080 = vmatprep.subr.mxu0 0.0
      %3081 = vmatpush1.xpose.msra.mxu0 0.0
      %3082 = vmatprep.subr.mxu0 0.0
      %3083 = vmatpush1.xpose.msra.mxu0 0.0
      %3084 = vmatprep.subr.mxu0 0.0
      %3085 = vmatpush1.xpose.msra.mxu0 0.0
      %3086 = vmatprep.subr.mxu0 0.0
      %3087 = vmatpush1.xpose.msra.mxu0 0.0
      %3088 = vmatprep.subr.mxu0 0.0
      %3089 = vmatpush1.xpose.msra.mxu0 0.0
      %3090 = vmatprep.subr.mxu0 0.0
      %3091 = vmatpush1.xpose.msra.mxu0 0.0
      %3092 = vmatprep.subr.mxu0 0.0
      %3093 = vmatpush1.xpose.msra.mxu0 0.0
      %3094 = vmatprep.subr.mxu0 0.0
      %3095 = vmatpush1.xpose.msra.mxu0 0.0
      %3096 = vmatprep.subr.mxu0 0.0
      %3097 = vmatpush1.xpose.msra.mxu0 0.0
      %3098 = vmatprep.subr.mxu0 0.0
      %3099 = vmatpush1.xpose.msra.mxu0 0.0
      %3100 = vmatprep.subr.mxu0 0.0
      %3101 = vmatpush1.xpose.msra.mxu0 %v3068
      %3102 = vmatprep.subr.mxu0 0.0
      %3103 = vmatpush2.xpose.msra.mxu0 0.0
      %3104 = vmatprep.subr.mxu0 0.0
      %3105 = vmatpush2.xpose.msra.mxu0 0.0
      %3106 = vmatprep.subr.mxu0 0.0
      %3107 = vmatpush2.xpose.msra.mxu0 0.0
      %3108 = vmatprep.subr.mxu0 0.0
      %3109 = vmatpush2.xpose.msra.mxu0 0.0
      %3110 = vmatprep.subr.mxu0 0.0
      %3111 = vmatpush2.xpose.msra.mxu0 0.0
      %3112 = vmatprep.subr.mxu0 0.0
      %3113 = vmatpush2.xpose.msra.mxu0 0.0
      %3114 = vmatprep.subr.mxu0 0.0
      %3115 = vmatpush2.xpose.msra.mxu0 0.0
      %3116 = vmatprep.subr.mxu0 0.0
      %3117 = vmatpush2.xpose.msra.mxu0 0.0
      %3118 = vmatprep.subr.mxu0 0.0
      %3119 = vmatpush2.xpose.msra.mxu0 0.0
      %3120 = vmatprep.subr.mxu0 0.0
      %3121 = vmatpush2.xpose.msra.mxu0 0.0
      %3122 = vmatprep.subr.mxu0 0.0
      %3123 = vmatpush2.xpose.msra.mxu0 0.0
      %3124 = vmatprep.subr.mxu0 0.0
      %3125 = vmatpush2.xpose.msra.mxu0 0.0
      %3126 = vmatprep.subr.mxu0 0.0
      %3127 = vmatpush2.xpose.msra.mxu0 0.0
      %3128 = vmatprep.subr.mxu0 0.0
      %3129 = vmatpush2.xpose.msra.mxu0 0.0
      %3130 = vmatprep.subr.mxu0 0.0
      %3131 = vmatpush2.xpose.msra.mxu0 0.0
      %3132 = vmatprep.subr.mxu0 0.0
      %3133 = vmatpush2.xpose.msra.mxu0 0.0
      %3134 = vmatprep.mubr.f32.mxu0 0.0
      %3135 = vmatmul.mubr.f32.gmra.mxu0 %v3066
      %v3136 = vpop.f32.mrf.mxu0
      %v3137 = vadd.f32 %v1010, %v3136
      %v3138 = vpop.f32.mrf.mxu0
      %3139 = vdwg.mxu0
      %v3140 = vsel %vm1011, %v3059, -inf
      %3141 = vmax.xlane.f32.xlu0 %v3140
      %v3142 = vpop.xlane.xlu0 %3141
      %v3143 = vsel %vm1011, %v3137, -inf
      %3144 = vmax.xlane.f32.xlu0 %v3143
      %v3145 = vpop.xlane.xlu0 %3144
      %v3146 = vsub.f32 %v3059, %v3142
      %v3147 = vsub.f32 %v3137, %v3145
      %v3148 = vmul.f32 %v3146, 1.442695
      %v3149 = vpow.pop %v3148
      %v3150 = vmul.f32 %v3147, 1.442695
      %v3151 = vpow.pop %v3150
      %v3152 = vsel %vm1011, %v3149, 0.0
      %3153 = vadd.xlane.f32.xlu0 %v3152
      %v3154 = vpop.xlane.xlu0 %3153
      %v3155 = vsel %vm1011, %v3151, 0.0
      %3156 = vadd.xlane.f32.xlu0 %v3155
      %v3157 = vpop.xlane.xlu0 %3156
      %v3158 = vrcp.pop %v3154
      %v3159 = vmul.f32 %v3149, %v3158
      %v3160 = vrcp.pop %v3157
      %v3161 = vmul.f32 %v3151, %v3160
      %3162 = vrot.lane.b32.xlu0 %v999, 80
      %v3163 = vpop.permute.xlu0 %3162
      %v3166 = vsel %vm1011, %v3159, 0
      %3168 = vmatprep.subr.mxu0 0.0
      %3169 = vmatpush1.msra.mxu0 0.0
      %3170 = vmatprep.subr.mxu0 0.0
      %3171 = vmatpush1.msra.mxu0 0.0
      %3172 = vmatprep.subr.mxu0 0.0
      %3173 = vmatpush1.msra.mxu0 0.0
      %3174 = vmatprep.subr.mxu0 0.0
      %3175 = vmatpush1.msra.mxu0 0.0
      %3176 = vmatprep.subr.mxu0 0.0
      %3177 = vmatpush1.msra.mxu0 0.0
      %3178 = vmatprep.subr.mxu0 0.0
      %3179 = vmatpush1.msra.mxu0 0.0
      %3180 = vmatprep.subr.mxu0 0.0
      %3181 = vmatpush1.msra.mxu0 0.0
      %3182 = vmatprep.subr.mxu0 0.0
      %3183 = vmatpush1.msra.mxu0 0.0
      %3184 = vmatprep.subr.mxu0 0.0
      %3185 = vmatpush1.msra.mxu0 0.0
      %3186 = vmatprep.subr.mxu0 0.0
      %3187 = vmatpush1.msra.mxu0 0.0
      %3188 = vmatprep.subr.mxu0 0.0
      %3189 = vmatpush1.msra.mxu0 0.0
      %3190 = vmatprep.subr.mxu0 0.0
      %3191 = vmatpush1.msra.mxu0 0.0
      %3192 = vmatprep.subr.mxu0 0.0
      %3193 = vmatpush1.msra.mxu0 0.0
      %3194 = vmatprep.subr.mxu0 0.0
      %3195 = vmatpush1.msra.mxu0 0.0
      %3196 = vmatprep.subr.mxu0 0.0
      %3197 = vmatpush1.msra.mxu0 0.0
      %3198 = vmatprep.subr.mxu0 0.0
      %3199 = vmatpush1.msra.mxu0 %v3163
      %3200 = vmatprep.subr.mxu0 0.0
      %3201 = vmatpush2.msra.mxu0 0.0
      %3202 = vmatprep.subr.mxu0 0.0
      %3203 = vmatpush2.msra.mxu0 0.0
      %3204 = vmatprep.subr.mxu0 0.0
      %3205 = vmatpush2.msra.mxu0 0.0
      %3206 = vmatprep.subr.mxu0 0.0
      %3207 = vmatpush2.msra.mxu0 0.0
      %3208 = vmatprep.subr.mxu0 0.0
      %3209 = vmatpush2.msra.mxu0 0.0
      %3210 = vmatprep.subr.mxu0 0.0
      %3211 = vmatpush2.msra.mxu0 0.0
      %3212 = vmatprep.subr.mxu0 0.0
      %3213 = vmatpush2.msra.mxu0 0.0
      %3214 = vmatprep.subr.mxu0 0.0
      %3215 = vmatpush2.msra.mxu0 0.0
      %3216 = vmatprep.subr.mxu0 0.0
      %3217 = vmatpush2.msra.mxu0 0.0
      %3218 = vmatprep.subr.mxu0 0.0
      %3219 = vmatpush2.msra.mxu0 0.0
      %3220 = vmatprep.subr.mxu0 0.0
      %3221 = vmatpush2.msra.mxu0 0.0
      %3222 = vmatprep.subr.mxu0 0.0
      %3223 = vmatpush2.msra.mxu0 0.0
      %3224 = vmatprep.subr.mxu0 0.0
      %3225 = vmatpush2.msra.mxu0 0.0
      %3226 = vmatprep.subr.mxu0 0.0
      %3227 = vmatpush2.msra.mxu0 0.0
      %3228 = vmatprep.subr.mxu0 0.0
      %3229 = vmatpush2.msra.mxu0 0.0
      %3230 = vmatprep.subr.mxu0 0.0
      %3231 = vmatpush2.msra.mxu0 0.0
      %3232 = vmatprep.mubr.f32.mxu0 0.0
      %3233 = vmatmul.mubr.f32.gmra.mxu0 %v3166
      %v3234 = vpop.f32.mrf.mxu0
      %v3235 = vadd.f32 0.0, %v3234
      %v3236 = vpop.f32.mrf.mxu0
      %3237 = vdwg.mxu0
      %3238 = vrot.lane.b32.xlu0 %v1002, 80
      %v3239 = vpop.permute.xlu0 %3238
      %v3242 = vsel %vm1011, %v3161, 0
      %3244 = vmatprep.subr.mxu0 0.0
      %3245 = vmatpush1.msra.mxu0 0.0
      %3246 = vmatprep.subr.mxu0 0.0
      %3247 = vmatpush1.msra.mxu0 0.0
      %3248 = vmatprep.subr.mxu0 0.0
      %3249 = vmatpush1.msra.mxu0 0.0
      %3250 = vmatprep.subr.mxu0 0.0
      %3251 = vmatpush1.msra.mxu0 0.0
      %3252 = vmatprep.subr.mxu0 0.0
      %3253 = vmatpush1.msra.mxu0 0.0
      %3254 = vmatprep.subr.mxu0 0.0
      %3255 = vmatpush1.msra.mxu0 0.0
      %3256 = vmatprep.subr.mxu0 0.0
      %3257 = vmatpush1.msra.mxu0 0.0
      %3258 = vmatprep.subr.mxu0 0.0
      %3259 = vmatpush1.msra.mxu0 0.0
      %3260 = vmatprep.subr.mxu0 0.0
      %3261 = vmatpush1.msra.mxu0 0.0
      %3262 = vmatprep.subr.mxu0 0.0
      %3263 = vmatpush1.msra.mxu0 0.0
      %3264 = vmatprep.subr.mxu0 0.0
      %3265 = vmatpush1.msra.mxu0 0.0
      %3266 = vmatprep.subr.mxu0 0.0
      %3267 = vmatpush1.msra.mxu0 0.0
      %3268 = vmatprep.subr.mxu0 0.0
      %3269 = vmatpush1.msra.mxu0 0.0
      %3270 = vmatprep.subr.mxu0 0.0
      %3271 = vmatpush1.msra.mxu0 0.0
      %3272 = vmatprep.subr.mxu0 0.0
      %3273 = vmatpush1.msra.mxu0 0.0
      %3274 = vmatprep.subr.mxu0 0.0
      %3275 = vmatpush1.msra.mxu0 %v3239
      %3276 = vmatprep.subr.mxu0 0.0
      %3277 = vmatpush2.msra.mxu0 0.0
      %3278 = vmatprep.subr.mxu0 0.0
      %3279 = vmatpush2.msra.mxu0 0.0
      %3280 = vmatprep.subr.mxu0 0.0
      %3281 = vmatpush2.msra.mxu0 0.0
      %3282 = vmatprep.subr.mxu0 0.0
      %3283 = vmatpush2.msra.mxu0 0.0
      %3284 = vmatprep.subr.mxu0 0.0
      %3285 = vmatpush2.msra.mxu0 0.0
      %3286 = vmatprep.subr.mxu0 0.0
      %3287 = vmatpush2.msra.mxu0 0.0
      %3288 = vmatprep.subr.mxu0 0.0
      %3289 = vmatpush2.msra.mxu0 0.0
      %3290 = vmatprep.subr.mxu0 0.0
      %3291 = vmatpush2.msra.mxu0 0.0
      %3292 = vmatprep.subr.mxu0 0.0
      %3293 = vmatpush2.msra.mxu0 0.0
      %3294 = vmatprep.subr.mxu0 0.0
      %3295 = vmatpush2.msra.mxu0 0.0
      %3296 = vmatprep.subr.mxu0 0.0
      %3297 = vmatpush2.msra.mxu0 0.0
      %3298 = vmatprep.subr.mxu0 0.0
      %3299 = vmatpush2.msra.mxu0 0.0
      %3300 = vmatprep.subr.mxu0 0.0
      %3301 = vmatpush2.msra.mxu0 0.0
      %3302 = vmatprep.subr.mxu0 0.0
      %3303 = vmatpush2.msra.mxu0 0.0
      %3304 = vmatprep.subr.mxu0 0.0
      %3305 = vmatpush2.msra.mxu0 0.0
      %3306 = vmatprep.subr.mxu0 0.0
      %3307 = vmatpush2.msra.mxu0 0.0
      %3308 = vmatprep.mubr.f32.mxu0 0.0
      %3309 = vmatmul.mubr.f32.gmra.mxu0 %v3242
      %v3310 = vpop.f32.mrf.mxu0
      %v3311 = vadd.f32 0.0, %v3310
      %v3312 = vpop.f32.mrf.mxu0
      %3313 = vdwg.mxu0
      %3314 = vrot.lane.b32.xlu0 %v847, 72
      %v3315 = vpop.permute.xlu0 %3314
      %3316 = vrot.lane.b32.xlu0 %v921, 72
      %v3317 = vpop.permute.xlu0 %3316
      %v3318 = vsel %vm1011, %v3315, 0
      %v3320 = vsel %vm1011, %v3317, 0
      %3322 = vmatprep.subr.mxu0 0.0
      %3323 = vmatpush1.xpose.msra.mxu0 0.0
      %3324 = vmatprep.subr.mxu0 0.0
      %3325 = vmatpush1.xpose.msra.mxu0 0.0
      %3326 = vmatprep.subr.mxu0 0.0
      %3327 = vmatpush1.xpose.msra.mxu0 0.0
      %3328 = vmatprep.subr.mxu0 0.0
      %3329 = vmatpush1.xpose.msra.mxu0 0.0
      %3330 = vmatprep.subr.mxu0 0.0
      %3331 = vmatpush1.xpose.msra.mxu0 0.0
      %3332 = vmatprep.subr.mxu0 0.0
      %3333 = vmatpush1.xpose.msra.mxu0 0.0
      %3334 = vmatprep.subr.mxu0 0.0
      %3335 = vmatpush1.xpose.msra.mxu0 0.0
      %3336 = vmatprep.subr.mxu0 0.0
      %3337 = vmatpush1.xpose.msra.mxu0 0.0
      %3338 = vmatprep.subr.mxu0 0.0
      %3339 = vmatpush1.xpose.msra.mxu0 0.0
      %3340 = vmatprep.subr.mxu0 0.0
      %3341 = vmatpush1.xpose.msra.mxu0 0.0
      %3342 = vmatprep.subr.mxu0 0.0
      %3343 = vmatpush1.xpose.msra.mxu0 0.0
      %3344 = vmatprep.subr.mxu0 0.0
      %3345 = vmatpush1.xpose.msra.mxu0 0.0
      %3346 = vmatprep.subr.mxu0 0.0
      %3347 = vmatpush1.xpose.msra.mxu0 0.0
      %3348 = vmatprep.subr.mxu0 0.0
      %3349 = vmatpush1.xpose.msra.mxu0 0.0
      %3350 = vmatprep.subr.mxu0 0.0
      %3351 = vmatpush1.xpose.msra.mxu0 0.0
      %3352 = vmatprep.subr.mxu0 0.0
      %3353 = vmatpush1.xpose.msra.mxu0 %v3320
      %3354 = vmatprep.subr.mxu0 0.0
      %3355 = vmatpush2.xpose.msra.mxu0 0.0
      %3356 = vmatprep.subr.mxu0 0.0
      %3357 = vmatpush2.xpose.msra.mxu0 0.0
      %3358 = vmatprep.subr.mxu0 0.0
      %3359 = vmatpush2.xpose.msra.mxu0 0.0
      %3360 = vmatprep.subr.mxu0 0.0
      %3361 = vmatpush2.xpose.msra.mxu0 0.0
      %3362 = vmatprep.subr.mxu0 0.0
      %3363 = vmatpush2.xpose.msra.mxu0 0.0
      %3364 = vmatprep.subr.mxu0 0.0
      %3365 = vmatpush2.xpose.msra.mxu0 0.0
      %3366 = vmatprep.subr.mxu0 0.0
      %3367 = vmatpush2.xpose.msra.mxu0 0.0
      %3368 = vmatprep.subr.mxu0 0.0
      %3369 = vmatpush2.xpose.msra.mxu0 0.0
      %3370 = vmatprep.subr.mxu0 0.0
      %3371 = vmatpush2.xpose.msra.mxu0 0.0
      %3372 = vmatprep.subr.mxu0 0.0
      %3373 = vmatpush2.xpose.msra.mxu0 0.0
      %3374 = vmatprep.subr.mxu0 0.0
      %3375 = vmatpush2.xpose.msra.mxu0 0.0
      %3376 = vmatprep.subr.mxu0 0.0
      %3377 = vmatpush2.xpose.msra.mxu0 0.0
      %3378 = vmatprep.subr.mxu0 0.0
      %3379 = vmatpush2.xpose.msra.mxu0 0.0
      %3380 = vmatprep.subr.mxu0 0.0
      %3381 = vmatpush2.xpose.msra.mxu0 0.0
      %3382 = vmatprep.subr.mxu0 0.0
      %3383 = vmatpush2.xpose.msra.mxu0 0.0
      %3384 = vmatprep.subr.mxu0 0.0
      %3385 = vmatpush2.xpose.msra.mxu0 0.0
      %3386 = vmatprep.mubr.f32.mxu0 0.0
      %3387 = vmatmul.mubr.f32.gmra.mxu0 %v3318
      %v3388 = vpop.f32.mrf.mxu0
      %v3389 = vadd.f32 %v1010, %v3388
      %v3390 = vpop.f32.mrf.mxu0
      %3391 = vdwg.mxu0
      %3392 = vrot.lane.b32.xlu0 %v848, 72
      %v3393 = vpop.permute.xlu0 %3392
      %3394 = vrot.lane.b32.xlu0 %v924, 72
      %v3395 = vpop.permute.xlu0 %3394
      %v3396 = vsel %vm1011, %v3393, 0
      %v3398 = vsel %vm1011, %v3395, 0
      %3400 = vmatprep.subr.mxu0 0.0
      %3401 = vmatpush1.xpose.msra.mxu0 0.0
      %3402 = vmatprep.subr.mxu0 0.0
      %3403 = vmatpush1.xpose.msra.mxu0 0.0
      %3404 = vmatprep.subr.mxu0 0.0
      %3405 = vmatpush1.xpose.msra.mxu0 0.0
      %3406 = vmatprep.subr.mxu0 0.0
      %3407 = vmatpush1.xpose.msra.mxu0 0.0
      %3408 = vmatprep.subr.mxu0 0.0
      %3409 = vmatpush1.xpose.msra.mxu0 0.0
      %3410 = vmatprep.subr.mxu0 0.0
      %3411 = vmatpush1.xpose.msra.mxu0 0.0
      %3412 = vmatprep.subr.mxu0 0.0
      %3413 = vmatpush1.xpose.msra.mxu0 0.0
      %3414 = vmatprep.subr.mxu0 0.0
      %3415 = vmatpush1.xpose.msra.mxu0 0.0
      %3416 = vmatprep.subr.mxu0 0.0
      %3417 = vmatpush1.xpose.msra.mxu0 0.0
      %3418 = vmatprep.subr.mxu0 0.0
      %3419 = vmatpush1.xpose.msra.mxu0 0.0
      %3420 = vmatprep.subr.mxu0 0.0
      %3421 = vmatpush1.xpose.msra.mxu0 0.0
      %3422 = vmatprep.subr.mxu0 0.0
      %3423 = vmatpush1.xpose.msra.mxu0 0.0
      %3424 = vmatprep.subr.mxu0 0.0
      %3425 = vmatpush1.xpose.msra.mxu0 0.0
      %3426 = vmatprep.subr.mxu0 0.0
      %3427 = vmatpush1.xpose.msra.mxu0 0.0
      %3428 = vmatprep.subr.mxu0 0.0
      %3429 = vmatpush1.xpose.msra.mxu0 0.0
      %3430 = vmatprep.subr.mxu0 0.0
      %3431 = vmatpush1.xpose.msra.mxu0 %v3398
      %3432 = vmatprep.subr.mxu0 0.0
      %3433 = vmatpush2.xpose.msra.mxu0 0.0
      %3434 = vmatprep.subr.mxu0 0.0
      %3435 = vmatpush2.xpose.msra.mxu0 0.0
      %3436 = vmatprep.subr.mxu0 0.0
      %3437 = vmatpush2.xpose.msra.mxu0 0.0
      %3438 = vmatprep.subr.mxu0 0.0
      %3439 = vmatpush2.xpose.msra.mxu0 0.0
      %3440 = vmatprep.subr.mxu0 0.0
      %3441 = vmatpush2.xpose.msra.mxu0 0.0
      %3442 = vmatprep.subr.mxu0 0.0
      %3443 = vmatpush2.xpose.msra.mxu0 0.0
      %3444 = vmatprep.subr.mxu0 0.0
      %3445 = vmatpush2.xpose.msra.mxu0 0.0
      %3446 = vmatprep.subr.mxu0 0.0
      %3447 = vmatpush2.xpose.msra.mxu0 0.0
      %3448 = vmatprep.subr.mxu0 0.0
      %3449 = vmatpush2.xpose.msra.mxu0 0.0
      %3450 = vmatprep.subr.mxu0 0.0
      %3451 = vmatpush2.xpose.msra.mxu0 0.0
      %3452 = vmatprep.subr.mxu0 0.0
      %3453 = vmatpush2.xpose.msra.mxu0 0.0
      %3454 = vmatprep.subr.mxu0 0.0
      %3455 = vmatpush2.xpose.msra.mxu0 0.0
      %3456 = vmatprep.subr.mxu0 0.0
      %3457 = vmatpush2.xpose.msra.mxu0 0.0
      %3458 = vmatprep.subr.mxu0 0.0
      %3459 = vmatpush2.xpose.msra.mxu0 0.0
      %3460 = vmatprep.subr.mxu0 0.0
      %3461 = vmatpush2.xpose.msra.mxu0 0.0
      %3462 = vmatprep.subr.mxu0 0.0
      %3463 = vmatpush2.xpose.msra.mxu0 0.0
      %3464 = vmatprep.mubr.f32.mxu0 0.0
      %3465 = vmatmul.mubr.f32.gmra.mxu0 %v3396
      %v3466 = vpop.f32.mrf.mxu0
      %v3467 = vadd.f32 %v1010, %v3466
      %v3468 = vpop.f32.mrf.mxu0
      %3469 = vdwg.mxu0
      %v3470 = vsel %vm1011, %v3389, -inf
      %3471 = vmax.xlane.f32.xlu0 %v3470
      %v3472 = vpop.xlane.xlu0 %3471
      %v3473 = vsel %vm1011, %v3467, -inf
      %3474 = vmax.xlane.f32.xlu0 %v3473
      %v3475 = vpop.xlane.xlu0 %3474
      %v3476 = vsub.f32 %v3389, %v3472
      %v3477 = vsub.f32 %v3467, %v3475
      %v3478 = vmul.f32 %v3476, 1.442695
      %v3479 = vpow.pop %v3478
      %v3480 = vmul.f32 %v3477, 1.442695
      %v3481 = vpow.pop %v3480
      %v3482 = vsel %vm1011, %v3479, 0.0
      %3483 = vadd.xlane.f32.xlu0 %v3482
      %v3484 = vpop.xlane.xlu0 %3483
      %v3485 = vsel %vm1011, %v3481, 0.0
      %3486 = vadd.xlane.f32.xlu0 %v3485
      %v3487 = vpop.xlane.xlu0 %3486
      %v3488 = vrcp.pop %v3484
      %v3489 = vmul.f32 %v3479, %v3488
      %v3490 = vrcp.pop %v3487
      %v3491 = vmul.f32 %v3481, %v3490
      %3492 = vrot.lane.b32.xlu0 %v999, 72
      %v3493 = vpop.permute.xlu0 %3492
      %v3496 = vsel %vm1011, %v3489, 0
      %3498 = vmatprep.subr.mxu0 0.0
      %3499 = vmatpush1.msra.mxu0 0.0
      %3500 = vmatprep.subr.mxu0 0.0
      %3501 = vmatpush1.msra.mxu0 0.0
      %3502 = vmatprep.subr.mxu0 0.0
      %3503 = vmatpush1.msra.mxu0 0.0
      %3504 = vmatprep.subr.mxu0 0.0
      %3505 = vmatpush1.msra.mxu0 0.0
      %3506 = vmatprep.subr.mxu0 0.0
      %3507 = vmatpush1.msra.mxu0 0.0
      %3508 = vmatprep.subr.mxu0 0.0
      %3509 = vmatpush1.msra.mxu0 0.0
      %3510 = vmatprep.subr.mxu0 0.0
      %3511 = vmatpush1.msra.mxu0 0.0
      %3512 = vmatprep.subr.mxu0 0.0
      %3513 = vmatpush1.msra.mxu0 0.0
      %3514 = vmatprep.subr.mxu0 0.0
      %3515 = vmatpush1.msra.mxu0 0.0
      %3516 = vmatprep.subr.mxu0 0.0
      %3517 = vmatpush1.msra.mxu0 0.0
      %3518 = vmatprep.subr.mxu0 0.0
      %3519 = vmatpush1.msra.mxu0 0.0
      %3520 = vmatprep.subr.mxu0 0.0
      %3521 = vmatpush1.msra.mxu0 0.0
      %3522 = vmatprep.subr.mxu0 0.0
      %3523 = vmatpush1.msra.mxu0 0.0
      %3524 = vmatprep.subr.mxu0 0.0
      %3525 = vmatpush1.msra.mxu0 0.0
      %3526 = vmatprep.subr.mxu0 0.0
      %3527 = vmatpush1.msra.mxu0 0.0
      %3528 = vmatprep.subr.mxu0 0.0
      %3529 = vmatpush1.msra.mxu0 %v3493
      %3530 = vmatprep.subr.mxu0 0.0
      %3531 = vmatpush2.msra.mxu0 0.0
      %3532 = vmatprep.subr.mxu0 0.0
      %3533 = vmatpush2.msra.mxu0 0.0
      %3534 = vmatprep.subr.mxu0 0.0
      %3535 = vmatpush2.msra.mxu0 0.0
      %3536 = vmatprep.subr.mxu0 0.0
      %3537 = vmatpush2.msra.mxu0 0.0
      %3538 = vmatprep.subr.mxu0 0.0
      %3539 = vmatpush2.msra.mxu0 0.0
      %3540 = vmatprep.subr.mxu0 0.0
      %3541 = vmatpush2.msra.mxu0 0.0
      %3542 = vmatprep.subr.mxu0 0.0
      %3543 = vmatpush2.msra.mxu0 0.0
      %3544 = vmatprep.subr.mxu0 0.0
      %3545 = vmatpush2.msra.mxu0 0.0
      %3546 = vmatprep.subr.mxu0 0.0
      %3547 = vmatpush2.msra.mxu0 0.0
      %3548 = vmatprep.subr.mxu0 0.0
      %3549 = vmatpush2.msra.mxu0 0.0
      %3550 = vmatprep.subr.mxu0 0.0
      %3551 = vmatpush2.msra.mxu0 0.0
      %3552 = vmatprep.subr.mxu0 0.0
      %3553 = vmatpush2.msra.mxu0 0.0
      %3554 = vmatprep.subr.mxu0 0.0
      %3555 = vmatpush2.msra.mxu0 0.0
      %3556 = vmatprep.subr.mxu0 0.0
      %3557 = vmatpush2.msra.mxu0 0.0
      %3558 = vmatprep.subr.mxu0 0.0
      %3559 = vmatpush2.msra.mxu0 0.0
      %3560 = vmatprep.subr.mxu0 0.0
      %3561 = vmatpush2.msra.mxu0 0.0
      %3562 = vmatprep.mubr.f32.mxu0 0.0
      %3563 = vmatmul.mubr.f32.gmra.mxu0 %v3496
      %v3564 = vpop.f32.mrf.mxu0
      %v3565 = vadd.f32 0.0, %v3564
      %v3566 = vpop.f32.mrf.mxu0
      %3567 = vdwg.mxu0
      %3568 = vrot.lane.b32.xlu0 %v1002, 72
      %v3569 = vpop.permute.xlu0 %3568
      %v3572 = vsel %vm1011, %v3491, 0
      %3574 = vmatprep.subr.mxu0 0.0
      %3575 = vmatpush1.msra.mxu0 0.0
      %3576 = vmatprep.subr.mxu0 0.0
      %3577 = vmatpush1.msra.mxu0 0.0
      %3578 = vmatprep.subr.mxu0 0.0
      %3579 = vmatpush1.msra.mxu0 0.0
      %3580 = vmatprep.subr.mxu0 0.0
      %3581 = vmatpush1.msra.mxu0 0.0
      %3582 = vmatprep.subr.mxu0 0.0
      %3583 = vmatpush1.msra.mxu0 0.0
      %3584 = vmatprep.subr.mxu0 0.0
      %3585 = vmatpush1.msra.mxu0 0.0
      %3586 = vmatprep.subr.mxu0 0.0
      %3587 = vmatpush1.msra.mxu0 0.0
      %3588 = vmatprep.subr.mxu0 0.0
      %3589 = vmatpush1.msra.mxu0 0.0
      %3590 = vmatprep.subr.mxu0 0.0
      %3591 = vmatpush1.msra.mxu0 0.0
      %3592 = vmatprep.subr.mxu0 0.0
      %3593 = vmatpush1.msra.mxu0 0.0
      %3594 = vmatprep.subr.mxu0 0.0
      %3595 = vmatpush1.msra.mxu0 0.0
      %3596 = vmatprep.subr.mxu0 0.0
      %3597 = vmatpush1.msra.mxu0 0.0
      %3598 = vmatprep.subr.mxu0 0.0
      %3599 = vmatpush1.msra.mxu0 0.0
      %3600 = vmatprep.subr.mxu0 0.0
      %3601 = vmatpush1.msra.mxu0 0.0
      %3602 = vmatprep.subr.mxu0 0.0
      %3603 = vmatpush1.msra.mxu0 0.0
      %3604 = vmatprep.subr.mxu0 0.0
      %3605 = vmatpush1.msra.mxu0 %v3569
      %3606 = vmatprep.subr.mxu0 0.0
      %3607 = vmatpush2.msra.mxu0 0.0
      %3608 = vmatprep.subr.mxu0 0.0
      %3609 = vmatpush2.msra.mxu0 0.0
      %3610 = vmatprep.subr.mxu0 0.0
      %3611 = vmatpush2.msra.mxu0 0.0
      %3612 = vmatprep.subr.mxu0 0.0
      %3613 = vmatpush2.msra.mxu0 0.0
      %3614 = vmatprep.subr.mxu0 0.0
      %3615 = vmatpush2.msra.mxu0 0.0
      %3616 = vmatprep.subr.mxu0 0.0
      %3617 = vmatpush2.msra.mxu0 0.0
      %3618 = vmatprep.subr.mxu0 0.0
      %3619 = vmatpush2.msra.mxu0 0.0
      %3620 = vmatprep.subr.mxu0 0.0
      %3621 = vmatpush2.msra.mxu0 0.0
      %3622 = vmatprep.subr.mxu0 0.0
      %3623 = vmatpush2.msra.mxu0 0.0
      %3624 = vmatprep.subr.mxu0 0.0
      %3625 = vmatpush2.msra.mxu0 0.0
      %3626 = vmatprep.subr.mxu0 0.0
      %3627 = vmatpush2.msra.mxu0 0.0
      %3628 = vmatprep.subr.mxu0 0.0
      %3629 = vmatpush2.msra.mxu0 0.0
      %3630 = vmatprep.subr.mxu0 0.0
      %3631 = vmatpush2.msra.mxu0 0.0
      %3632 = vmatprep.subr.mxu0 0.0
      %3633 = vmatpush2.msra.mxu0 0.0
      %3634 = vmatprep.subr.mxu0 0.0
      %3635 = vmatpush2.msra.mxu0 0.0
      %3636 = vmatprep.subr.mxu0 0.0
      %3637 = vmatpush2.msra.mxu0 0.0
      %3638 = vmatprep.mubr.f32.mxu0 0.0
      %3639 = vmatmul.mubr.f32.gmra.mxu0 %v3572
      %v3640 = vpop.f32.mrf.mxu0
      %v3641 = vadd.f32 0.0, %v3640
      %v3642 = vpop.f32.mrf.mxu0
      %3643 = vdwg.mxu0
      %3646 = vrot.lane.b32.xlu0 %v1584, 8
      %v3647 = vpop.permute.xlu0 %3646
      %3648 = vrot.lane.b32.xlu0 %v1661, 8
      %v3649 = vpop.permute.xlu0 %3648
      %3654 = vrot.lane.b32.xlu0 %v1915, 16
      %v3655 = vpop.permute.xlu0 %3654
      %3656 = vrot.lane.b32.xlu0 %v1991, 16
      %v3657 = vpop.permute.xlu0 %3656
      %3662 = vrot.lane.b32.xlu0 %v2245, 24
      %v3663 = vpop.permute.xlu0 %3662
      %3664 = vrot.lane.b32.xlu0 %v2321, 24
      %v3665 = vpop.permute.xlu0 %3664
      %3670 = vrot.lane.b32.xlu0 %v2575, 32
      %v3671 = vpop.permute.xlu0 %3670
      %3672 = vrot.lane.b32.xlu0 %v2651, 32
      %v3673 = vpop.permute.xlu0 %3672
      %3678 = vrot.lane.b32.xlu0 %v2905, 40
      %v3679 = vpop.permute.xlu0 %3678
      %3680 = vrot.lane.b32.xlu0 %v2981, 40
      %v3681 = vpop.permute.xlu0 %3680
      %3686 = vrot.lane.b32.xlu0 %v3235, 48
      %v3687 = vpop.permute.xlu0 %3686
      %3688 = vrot.lane.b32.xlu0 %v3311, 48
      %v3689 = vpop.permute.xlu0 %3688
      %3694 = vrot.lane.b32.xlu0 %v3565, 56
      %v3695 = vpop.permute.xlu0 %3694
      %3696 = vrot.lane.b32.xlu0 %v3641, 56
      %v3697 = vpop.permute.xlu0 %3696
      %v3700 = vsel %vm1011, %v1256, %v3647
      %v3701 = vsel %vm1011, %v1329, %v3649
      %vm3702 = vcmask 130048
      %v3703 = vsel %vm3702, %v3700, %v3655
      %v3704 = vsel %vm3702, %v3701, %v3657
      %vm3705 = vcmask 195584
      %v3706 = vsel %vm3705, %v3703, %v3663
      %v3707 = vsel %vm3705, %v3704, %v3665
      %vm3708 = vcmask 261120
      %v3709 = vsel %vm3708, %v3706, %v3671
      %v3710 = vsel %vm3708, %v3707, %v3673
      %vm3711 = vcmask 326656
      %v3712 = vsel %vm3711, %v3709, %v3679
      %v3713 = vsel %vm3711, %v3710, %v3681
      %vm3714 = vcmask 392192
      %v3715 = vsel %vm3714, %v3712, %v3687
      %v3716 = vsel %vm3714, %v3713, %v3689
      %vm3717 = vcmask 457728
      %v3718 = vsel %vm3717, %v3715, %v3695
      %v3719 = vsel %vm3717, %v3716, %v3697
      %v3720 = vld [vmem:[%s702] sm:$0xf]
      %v3721 = vld [vmem:[%s702 + $0x4] sm:$0xf]
      %v3722 = vld [vmem:[%s702 + $0x8] sm:$0xf]
      %v3723 = vld [vmem:[%s702 + $0xc] sm:$0xf]
      %v3724 = vld [vmem:[%s702 + $0x10] sm:$0xf]
      %v3725 = vld [vmem:[%s702 + $0x14] sm:$0xf]
      %v3726 = vld [vmem:[%s702 + $0x18] sm:$0xf]
      %v3727 = vld [vmem:[%s702 + $0x1c] sm:$0xf]
      %v3728 = vpack.c.bf16 %v3719, %v3718
      %v3729 = vld [vmem:[%s705] sm:$0x1]
      %v3731 = vlaneseq
      %v3732 = vshrl.u32 %v3731, 7
      %v3733 = vsub.s32 0, %v3732
      %v3734 = vrot.slane %v3729, %v3733
      %v3744 = vunpack.c.l.b16 %v3720
      %v3745 = vunpack.c.l.b16 %v3721
      %v3746 = vunpack.c.l.b16 %v3722
      %v3747 = vunpack.c.l.b16 %v3723
      %v3748 = vunpack.c.l.b16 %v3724
      %v3749 = vunpack.c.l.b16 %v3725
      %v3750 = vunpack.c.l.b16 %v3726
      %v3751 = vunpack.c.l.b16 %v3727
      %v3752 = vpack.c.b16 %v3745, %v3744
      %v3753 = vpack.c.b16 %v3747, %v3746
      %v3754 = vpack.c.b16 %v3749, %v3748
      %v3755 = vpack.c.b16 %v3751, %v3750
      %v3761 = vsel %vm802, %v3728, 0
      %3763 = vmatprep.subr.bf16.mxu0 0
      %3764 = vmatpush1.bf16.msra.mxu0 0
      %3765 = vmatprep.subr.bf16.mxu0 0
      %3766 = vmatpush1.bf16.msra.mxu0 0
      %3767 = vmatprep.subr.bf16.mxu0 0
      %3768 = vmatpush1.bf16.msra.mxu0 0
      %3769 = vmatprep.subr.bf16.mxu0 0
      %3770 = vmatpush1.bf16.msra.mxu0 0
      %3771 = vmatprep.subr.bf16.mxu0 0
      %3772 = vmatpush1.bf16.msra.mxu0 %v3755
      %3773 = vmatprep.subr.bf16.mxu0 0
      %3774 = vmatpush1.bf16.msra.mxu0 %v3754
      %3775 = vmatprep.subr.bf16.mxu0 0
      %3776 = vmatpush1.bf16.msra.mxu0 %v3753
      %3777 = vmatprep.subr.bf16.mxu0 0
      %3778 = vmatpush1.bf16.msra.mxu0 %v3752
      %3779 = vmatprep.subr.bf16.mxu0 0
      %3780 = vmatpush2.bf16.msra.mxu0 0
      %3781 = vmatprep.subr.bf16.mxu0 0
      %3782 = vmatpush2.bf16.msra.mxu0 0
      %3783 = vmatprep.subr.bf16.mxu0 0
      %3784 = vmatpush2.bf16.msra.mxu0 0
      %3785 = vmatprep.subr.bf16.mxu0 0
      %3786 = vmatpush2.bf16.msra.mxu0 0
      %3787 = vmatprep.subr.bf16.mxu0 0
      %3788 = vmatpush2.bf16.msra.mxu0 0
      %3789 = vmatprep.subr.bf16.mxu0 0
      %3790 = vmatpush2.bf16.msra.mxu0 0
      %3791 = vmatprep.subr.bf16.mxu0 0
      %3792 = vmatpush2.bf16.msra.mxu0 0
      %3793 = vmatprep.subr.bf16.mxu0 0
      %3794 = vmatpush2.bf16.msra.mxu0 0
      %3795 = vmatprep.mubr.bf16.mxu0 0
      %3796 = vmatmul.mubr.bf16.gmra.mxu0 %v3761
      %v3797 = vpop.f32.mrf.mxu0
      %v3798 = vadd.f32 %v3734, %v3797
      %v3799 = vpop.f32.mrf.mxu0
      %v3800 = vpop.f32.mrf.mxu0
      %v3801 = vadd.f32 %v3734, %v3800
      %v3802 = vpop.f32.mrf.mxu0
      %3803 = vdwg.mxu0
      %v3804 = vadd.f32 %v759, %v3798
      %v3805 = vadd.f32 %v760, %v3801
      %v3806 = vsel %vm802, %v3804, 0.0
      %3807 = vadd.xlane.f32.xlu0 %v3806
      %v3808 = vpop.xlane.xlu0 %3807
      %v3809 = vsel %vm802, %v3805, 0.0
      %3810 = vadd.xlane.f32.xlu0 %v3809
      %v3811 = vpop.xlane.xlu0 %3810
      %v3812 = vrcp.pop 64.0
      %v3813 = vmul.f32 %v3808, %v3812
      %v3814 = vmul.f32 %v3811, %v3812
      %v3815 = vsub.f32 %v3804, %v3813
      %v3816 = vsub.f32 %v3805, %v3814
      %v3817 = vmul.f32 %v3815, %v3815
      %v3818 = vmul.f32 %v3816, %v3816
      %v3819 = vsel %vm802, %v3817, 0.0
      %3820 = vadd.xlane.f32.xlu0 %v3819
      %v3821 = vpop.xlane.xlu0 %3820
      %v3822 = vsel %vm802, %v3818, 0.0
      %3823 = vadd.xlane.f32.xlu0 %v3822
      %v3824 = vpop.xlane.xlu0 %3823
      %v3825 = vmul.f32 %v3821, %v3812
      %v3826 = vmul.f32 %v3824, %v3812
      %v3827 = vadd.f32 %v3825, 1e-05
      %v3828 = vadd.f32 %v3826, 1e-05
      %v3829 = vrsqrt.pop %v3827
      %v3830 = vrsqrt.pop %v3828
      %v3831 = vmul.f32 %v3815, %v3829
      %v3832 = vmul.f32 %v3816, %v3830
      %v3833 = vlaneseq
      %v3834 = vshrl.u32 %v3833, 7
      %v3835 = vsub.s32 0, %v3834
      %v3836 = vrot.slane %v763, %v3835
      %v3837 = vmul.f32 %v3831, %v3836
      %v3838 = vmul.f32 %v3832, %v3836
      %v3839 = vlaneseq
      %v3840 = vshrl.u32 %v3839, 7
      %v3841 = vsub.s32 1, %v3840
      %v3842 = vrot.slane %v763, %v3841
      %v3843 = vadd.f32 %v3837, %v3842
      %v3844 = vadd.f32 %v3838, %v3842
      %v3845 = vld [vmem:[%s714] sm:$0x7]
      %v3846 = vld [vmem:[%s710] sm:$0xf]
      %v3847 = vld [vmem:[%s710 + $0x4] sm:$0xf]
      %v3848 = vld [vmem:[%s710 + $0x8] sm:$0xf]
      %v3849 = vld [vmem:[%s710 + $0xc] sm:$0xf]
      %v3850 = vld [vmem:[%s710 + $0x10] sm:$0xf]
      %v3851 = vld [vmem:[%s710 + $0x14] sm:$0xf]
      %v3852 = vld [vmem:[%s710 + $0x18] sm:$0xf]
      %v3853 = vld [vmem:[%s710 + $0x1c] sm:$0xf]
      %v3854 = vpack.c.bf16 %v3844, %v3843
      %v3855 = vlaneseq
      %v3856 = vshrl.u32 %v3855, 7
      %v3857 = vsub.s32 0, %v3856
      %v3858 = vrot.slane %v3845, %v3857
      %v3867 = vunpack.c.l.b16 %v3846
      %v3868 = vunpack.c.l.b16 %v3847
      %v3869 = vunpack.c.l.b16 %v3848
      %v3870 = vunpack.c.l.b16 %v3849
      %v3871 = vunpack.c.l.b16 %v3850
      %v3872 = vunpack.c.l.b16 %v3851
      %v3873 = vunpack.c.l.b16 %v3852
      %v3874 = vunpack.c.l.b16 %v3853
      %v3875 = vpack.c.b16 %v3868, %v3867
      %v3876 = vpack.c.b16 %v3870, %v3869
      %v3877 = vpack.c.b16 %v3872, %v3871
      %v3878 = vpack.c.b16 %v3874, %v3873
      %v3884 = vsel %vm802, %v3854, 0
      %3886 = vmatprep.subr.bf16.mxu0 0
      %3887 = vmatpush1.bf16.msra.mxu0 0
      %3888 = vmatprep.subr.bf16.mxu0 0
      %3889 = vmatpush1.bf16.msra.mxu0 0
      %3890 = vmatprep.subr.bf16.mxu0 0
      %3891 = vmatpush1.bf16.msra.mxu0 0
      %3892 = vmatprep.subr.bf16.mxu0 0
      %3893 = vmatpush1.bf16.msra.mxu0 0
      %3894 = vmatprep.subr.bf16.mxu0 0
      %3895 = vmatpush1.bf16.msra.mxu0 %v3878
      %3896 = vmatprep.subr.bf16.mxu0 0
      %3897 = vmatpush1.bf16.msra.mxu0 %v3877
      %3898 = vmatprep.subr.bf16.mxu0 0
      %3899 = vmatpush1.bf16.msra.mxu0 %v3876
      %3900 = vmatprep.subr.bf16.mxu0 0
      %3901 = vmatpush1.bf16.msra.mxu0 %v3875
      %3902 = vmatprep.subr.bf16.mxu0 0
      %3903 = vmatpush2.bf16.msra.mxu0 0
      %3904 = vmatprep.subr.bf16.mxu0 0
      %3905 = vmatpush2.bf16.msra.mxu0 0
      %3906 = vmatprep.subr.bf16.mxu0 0
      %3907 = vmatpush2.bf16.msra.mxu0 0
      %3908 = vmatprep.subr.bf16.mxu0 0
      %3909 = vmatpush2.bf16.msra.mxu0 0
      %3910 = vmatprep.subr.bf16.mxu0 0
      %3911 = vmatpush2.bf16.msra.mxu0 0
      %3912 = vmatprep.subr.bf16.mxu0 0
      %3913 = vmatpush2.bf16.msra.mxu0 0
      %3914 = vmatprep.subr.bf16.mxu0 0
      %3915 = vmatpush2.bf16.msra.mxu0 0
      %3916 = vmatprep.subr.bf16.mxu0 0
      %3917 = vmatpush2.bf16.msra.mxu0 0
      %3918 = vmatprep.mubr.bf16.mxu0 0
      %3919 = vmatmul.mubr.bf16.gmra.mxu0 %v3884
      %v3920 = vpop.f32.mrf.mxu0
      %v3921 = vadd.f32 %v3858, %v3920
      %v3922 = vpop.f32.mrf.mxu0
      %v3923 = vpop.f32.mrf.mxu0
      %v3924 = vadd.f32 %v3858, %v3923
      %v3925 = vpop.f32.mrf.mxu0
      %3926 = vdwg.mxu0
      %v3927 = vmul.f32 %v3921, 0.35355338
      %v3928 = vmul.f32 %v3924, 0.35355338
      %s3929 = scalar_lea.vmem %s710, 32
      %v3930 = vld [vmem:[%s3929] sm:$0xf]
      %v3931 = vld [vmem:[%s3929 + $0x4] sm:$0xf]
      %v3932 = vld [vmem:[%s3929 + $0x8] sm:$0xf]
      %v3933 = vld [vmem:[%s3929 + $0xc] sm:$0xf]
      %v3934 = vld [vmem:[%s3929 + $0x10] sm:$0xf]
      %v3935 = vld [vmem:[%s3929 + $0x14] sm:$0xf]
      %v3936 = vld [vmem:[%s3929 + $0x18] sm:$0xf]
      %v3937 = vld [vmem:[%s3929 + $0x1c] sm:$0xf]
      %v3938 = vpack.c.bf16 %v762, %v761
      %v3939 = vlaneseq
      %v3940 = vshrl.u32 %v3939, 7
      %v3941 = vsub.s32 1, %v3940
      %v3942 = vrot.slane %v3845, %v3941
      %v3951 = vunpack.c.l.b16 %v3930
      %v3952 = vunpack.c.l.b16 %v3931
      %v3953 = vunpack.c.l.b16 %v3932
      %v3954 = vunpack.c.l.b16 %v3933
      %v3955 = vunpack.c.l.b16 %v3934
      %v3956 = vunpack.c.l.b16 %v3935
      %v3957 = vunpack.c.l.b16 %v3936
      %v3958 = vunpack.c.l.b16 %v3937
      %v3959 = vpack.c.b16 %v3952, %v3951
      %v3960 = vpack.c.b16 %v3954, %v3953
      %v3961 = vpack.c.b16 %v3956, %v3955
      %v3962 = vpack.c.b16 %v3958, %v3957
      %v3968 = vsel %vm802, %v3938, 0
      %3970 = vmatprep.subr.bf16.mxu0 0
      %3971 = vmatpush1.bf16.msra.mxu0 0
      %3972 = vmatprep.subr.bf16.mxu0 0
      %3973 = vmatpush1.bf16.msra.mxu0 0
      %3974 = vmatprep.subr.bf16.mxu0 0
      %3975 = vmatpush1.bf16.msra.mxu0 0
      %3976 = vmatprep.subr.bf16.mxu0 0
      %3977 = vmatpush1.bf16.msra.mxu0 0
      %3978 = vmatprep.subr.bf16.mxu0 0
      %3979 = vmatpush1.bf16.msra.mxu0 %v3962
      %3980 = vmatprep.subr.bf16.mxu0 0
      %3981 = vmatpush1.bf16.msra.mxu0 %v3961
      %3982 = vmatprep.subr.bf16.mxu0 0
      %3983 = vmatpush1.bf16.msra.mxu0 %v3960
      %3984 = vmatprep.subr.bf16.mxu0 0
      %3985 = vmatpush1.bf16.msra.mxu0 %v3959
      %3986 = vmatprep.subr.bf16.mxu0 0
      %3987 = vmatpush2.bf16.msra.mxu0 0
      %3988 = vmatprep.subr.bf16.mxu0 0
      %3989 = vmatpush2.bf16.msra.mxu0 0
      %3990 = vmatprep.subr.bf16.mxu0 0
      %3991 = vmatpush2.bf16.msra.mxu0 0
      %3992 = vmatprep.subr.bf16.mxu0 0
      %3993 = vmatpush2.bf16.msra.mxu0 0
      %3994 = vmatprep.subr.bf16.mxu0 0
      %3995 = vmatpush2.bf16.msra.mxu0 0
      %3996 = vmatprep.subr.bf16.mxu0 0
      %3997 = vmatpush2.bf16.msra.mxu0 0
      %3998 = vmatprep.subr.bf16.mxu0 0
      %3999 = vmatpush2.bf16.msra.mxu0 0
      %4000 = vmatprep.subr.bf16.mxu0 0
      %4001 = vmatpush2.bf16.msra.mxu0 0
      %4002 = vmatprep.mubr.bf16.mxu0 0
      %4003 = vmatmul.mubr.bf16.gmra.mxu0 %v3968
      %v4004 = vpop.f32.mrf.mxu0
      %v4005 = vadd.f32 %v3942, %v4004
      %v4006 = vpop.f32.mrf.mxu0
      %v4007 = vpop.f32.mrf.mxu0
      %v4008 = vadd.f32 %v3942, %v4007
      %v4009 = vpop.f32.mrf.mxu0
      %4010 = vdwg.mxu0
      %s4011 = scalar_lea.vmem %s710, 64
      %v4012 = vld [vmem:[%s4011] sm:$0xf]
      %v4013 = vld [vmem:[%s4011 + $0x4] sm:$0xf]
      %v4014 = vld [vmem:[%s4011 + $0x8] sm:$0xf]
      %v4015 = vld [vmem:[%s4011 + $0xc] sm:$0xf]
      %v4016 = vld [vmem:[%s4011 + $0x10] sm:$0xf]
      %v4017 = vld [vmem:[%s4011 + $0x14] sm:$0xf]
      %v4018 = vld [vmem:[%s4011 + $0x18] sm:$0xf]
      %v4019 = vld [vmem:[%s4011 + $0x1c] sm:$0xf]
      %v4020 = vlaneseq
      %v4021 = vshrl.u32 %v4020, 7
      %v4022 = vsub.s32 2, %v4021
      %v4023 = vrot.slane %v3845, %v4022
      %v4032 = vunpack.c.l.b16 %v4012
      %v4033 = vunpack.c.l.b16 %v4013
      %v4034 = vunpack.c.l.b16 %v4014
      %v4035 = vunpack.c.l.b16 %v4015
      %v4036 = vunpack.c.l.b16 %v4016
      %v4037 = vunpack.c.l.b16 %v4017
      %v4038 = vunpack.c.l.b16 %v4018
      %v4039 = vunpack.c.l.b16 %v4019
      %v4040 = vpack.c.b16 %v4033, %v4032
      %v4041 = vpack.c.b16 %v4035, %v4034
      %v4042 = vpack.c.b16 %v4037, %v4036
      %v4043 = vpack.c.b16 %v4039, %v4038
      %4048 = vmatprep.subr.bf16.mxu0 0
      %4049 = vmatpush1.bf16.msra.mxu0 0
      %4050 = vmatprep.subr.bf16.mxu0 0
      %4051 = vmatpush1.bf16.msra.mxu0 0
      %4052 = vmatprep.subr.bf16.mxu0 0
      %4053 = vmatpush1.bf16.msra.mxu0 0
      %4054 = vmatprep.subr.bf16.mxu0 0
      %4055 = vmatpush1.bf16.msra.mxu0 0
      %4056 = vmatprep.subr.bf16.mxu0 0
      %4057 = vmatpush1.bf16.msra.mxu0 %v4043
      %4058 = vmatprep.subr.bf16.mxu0 0
      %4059 = vmatpush1.bf16.msra.mxu0 %v4042
      %4060 = vmatprep.subr.bf16.mxu0 0
      %4061 = vmatpush1.bf16.msra.mxu0 %v4041
      %4062 = vmatprep.subr.bf16.mxu0 0
      %4063 = vmatpush1.bf16.msra.mxu0 %v4040
      %4064 = vmatprep.subr.bf16.mxu0 0
      %4065 = vmatpush2.bf16.msra.mxu0 0
      %4066 = vmatprep.subr.bf16.mxu0 0
      %4067 = vmatpush2.bf16.msra.mxu0 0
      %4068 = vmatprep.subr.bf16.mxu0 0
      %4069 = vmatpush2.bf16.msra.mxu0 0
      %4070 = vmatprep.subr.bf16.mxu0 0
      %4071 = vmatpush2.bf16.msra.mxu0 0
      %4072 = vmatprep.subr.bf16.mxu0 0
      %4073 = vmatpush2.bf16.msra.mxu0 0
      %4074 = vmatprep.subr.bf16.mxu0 0
      %4075 = vmatpush2.bf16.msra.mxu0 0
      %4076 = vmatprep.subr.bf16.mxu0 0
      %4077 = vmatpush2.bf16.msra.mxu0 0
      %4078 = vmatprep.subr.bf16.mxu0 0
      %4079 = vmatpush2.bf16.msra.mxu0 0
      %4080 = vmatprep.mubr.bf16.mxu0 0
      %4081 = vmatmul.mubr.bf16.gmra.mxu0 %v3968
      %v4082 = vpop.f32.mrf.mxu0
      %v4083 = vadd.f32 %v4023, %v4082
      %v4084 = vpop.f32.mrf.mxu0
      %v4085 = vpop.f32.mrf.mxu0
      %v4086 = vadd.f32 %v4023, %v4085
      %v4087 = vpop.f32.mrf.mxu0
      %4088 = vdwg.mxu0
      %v4090 = vsel %vm1011, %v3927, 0
      %v4093 = vsel %vm1011, %v4005, 0
      %4095 = vmatprep.subr.mxu0 0.0
      %4096 = vmatpush1.xpose.msra.mxu0 0.0
      %4097 = vmatprep.subr.mxu0 0.0
      %4098 = vmatpush1.xpose.msra.mxu0 0.0
      %4099 = vmatprep.subr.mxu0 0.0
      %4100 = vmatpush1.xpose.msra.mxu0 0.0
      %4101 = vmatprep.subr.mxu0 0.0
      %4102 = vmatpush1.xpose.msra.mxu0 0.0
      %4103 = vmatprep.subr.mxu0 0.0
      %4104 = vmatpush1.xpose.msra.mxu0 0.0
      %4105 = vmatprep.subr.mxu0 0.0
      %4106 = vmatpush1.xpose.msra.mxu0 0.0
      %4107 = vmatprep.subr.mxu0 0.0
      %4108 = vmatpush1.xpose.msra.mxu0 0.0
      %4109 = vmatprep.subr.mxu0 0.0
      %4110 = vmatpush1.xpose.msra.mxu0 0.0
      %4111 = vmatprep.subr.mxu0 0.0
      %4112 = vmatpush1.xpose.msra.mxu0 0.0
      %4113 = vmatprep.subr.mxu0 0.0
      %4114 = vmatpush1.xpose.msra.mxu0 0.0
      %4115 = vmatprep.subr.mxu0 0.0
      %4116 = vmatpush1.xpose.msra.mxu0 0.0
      %4117 = vmatprep.subr.mxu0 0.0
      %4118 = vmatpush1.xpose.msra.mxu0 0.0
      %4119 = vmatprep.subr.mxu0 0.0
      %4120 = vmatpush1.xpose.msra.mxu0 0.0
      %4121 = vmatprep.subr.mxu0 0.0
      %4122 = vmatpush1.xpose.msra.mxu0 0.0
      %4123 = vmatprep.subr.mxu0 0.0
      %4124 = vmatpush1.xpose.msra.mxu0 0.0
      %4125 = vmatprep.subr.mxu0 0.0
      %4126 = vmatpush1.xpose.msra.mxu0 %v4093
      %4127 = vmatprep.subr.mxu0 0.0
      %4128 = vmatpush2.xpose.msra.mxu0 0.0
      %4129 = vmatprep.subr.mxu0 0.0
      %4130 = vmatpush2.xpose.msra.mxu0 0.0
      %4131 = vmatprep.subr.mxu0 0.0
      %4132 = vmatpush2.xpose.msra.mxu0 0.0
      %4133 = vmatprep.subr.mxu0 0.0
      %4134 = vmatpush2.xpose.msra.mxu0 0.0
      %4135 = vmatprep.subr.mxu0 0.0
      %4136 = vmatpush2.xpose.msra.mxu0 0.0
      %4137 = vmatprep.subr.mxu0 0.0
      %4138 = vmatpush2.xpose.msra.mxu0 0.0
      %4139 = vmatprep.subr.mxu0 0.0
      %4140 = vmatpush2.xpose.msra.mxu0 0.0
      %4141 = vmatprep.subr.mxu0 0.0
      %4142 = vmatpush2.xpose.msra.mxu0 0.0
      %4143 = vmatprep.subr.mxu0 0.0
      %4144 = vmatpush2.xpose.msra.mxu0 0.0
      %4145 = vmatprep.subr.mxu0 0.0
      %4146 = vmatpush2.xpose.msra.mxu0 0.0
      %4147 = vmatprep.subr.mxu0 0.0
      %4148 = vmatpush2.xpose.msra.mxu0 0.0
      %4149 = vmatprep.subr.mxu0 0.0
      %4150 = vmatpush2.xpose.msra.mxu0 0.0
      %4151 = vmatprep.subr.mxu0 0.0
      %4152 = vmatpush2.xpose.msra.mxu0 0.0
      %4153 = vmatprep.subr.mxu0 0.0
      %4154 = vmatpush2.xpose.msra.mxu0 0.0
      %4155 = vmatprep.subr.mxu0 0.0
      %4156 = vmatpush2.xpose.msra.mxu0 0.0
      %4157 = vmatprep.subr.mxu0 0.0
      %4158 = vmatpush2.xpose.msra.mxu0 0.0
      %4159 = vmatprep.mubr.f32.mxu0 0.0
      %4160 = vmatmul.mubr.f32.gmra.mxu0 %v4090
      %v4161 = vpop.f32.mrf.mxu0
      %v4162 = vadd.f32 0.0, %v4161
      %v4163 = vpop.f32.mrf.mxu0
      %4164 = vdwg.mxu0
      %v4166 = vsel %vm1011, %v3928, 0
      %v4169 = vsel %vm1011, %v4008, 0
      %4171 = vmatprep.subr.mxu0 0.0
      %4172 = vmatpush1.xpose.msra.mxu0 0.0
      %4173 = vmatprep.subr.mxu0 0.0
      %4174 = vmatpush1.xpose.msra.mxu0 0.0
      %4175 = vmatprep.subr.mxu0 0.0
      %4176 = vmatpush1.xpose.msra.mxu0 0.0
      %4177 = vmatprep.subr.mxu0 0.0
      %4178 = vmatpush1.xpose.msra.mxu0 0.0
      %4179 = vmatprep.subr.mxu0 0.0
      %4180 = vmatpush1.xpose.msra.mxu0 0.0
      %4181 = vmatprep.subr.mxu0 0.0
      %4182 = vmatpush1.xpose.msra.mxu0 0.0
      %4183 = vmatprep.subr.mxu0 0.0
      %4184 = vmatpush1.xpose.msra.mxu0 0.0
      %4185 = vmatprep.subr.mxu0 0.0
      %4186 = vmatpush1.xpose.msra.mxu0 0.0
      %4187 = vmatprep.subr.mxu0 0.0
      %4188 = vmatpush1.xpose.msra.mxu0 0.0
      %4189 = vmatprep.subr.mxu0 0.0
      %4190 = vmatpush1.xpose.msra.mxu0 0.0
      %4191 = vmatprep.subr.mxu0 0.0
      %4192 = vmatpush1.xpose.msra.mxu0 0.0
      %4193 = vmatprep.subr.mxu0 0.0
      %4194 = vmatpush1.xpose.msra.mxu0 0.0
      %4195 = vmatprep.subr.mxu0 0.0
      %4196 = vmatpush1.xpose.msra.mxu0 0.0
      %4197 = vmatprep.subr.mxu0 0.0
      %4198 = vmatpush1.xpose.msra.mxu0 0.0
      %4199 = vmatprep.subr.mxu0 0.0
      %4200 = vmatpush1.xpose.msra.mxu0 0.0
      %4201 = vmatprep.subr.mxu0 0.0
      %4202 = vmatpush1.xpose.msra.mxu0 %v4169
      %4203 = vmatprep.subr.mxu0 0.0
      %4204 = vmatpush2.xpose.msra.mxu0 0.0
      %4205 = vmatprep.subr.mxu0 0.0
      %4206 = vmatpush2.xpose.msra.mxu0 0.0
      %4207 = vmatprep.subr.mxu0 0.0
      %4208 = vmatpush2.xpose.msra.mxu0 0.0
      %4209 = vmatprep.subr.mxu0 0.0
      %4210 = vmatpush2.xpose.msra.mxu0 0.0
      %4211 = vmatprep.subr.mxu0 0.0
      %4212 = vmatpush2.xpose.msra.mxu0 0.0
      %4213 = vmatprep.subr.mxu0 0.0
      %4214 = vmatpush2.xpose.msra.mxu0 0.0
      %4215 = vmatprep.subr.mxu0 0.0
      %4216 = vmatpush2.xpose.msra.mxu0 0.0
      %4217 = vmatprep.subr.mxu0 0.0
      %4218 = vmatpush2.xpose.msra.mxu0 0.0
      %4219 = vmatprep.subr.mxu0 0.0
      %4220 = vmatpush2.xpose.msra.mxu0 0.0
      %4221 = vmatprep.subr.mxu0 0.0
      %4222 = vmatpush2.xpose.msra.mxu0 0.0
      %4223 = vmatprep.subr.mxu0 0.0
      %4224 = vmatpush2.xpose.msra.mxu0 0.0
      %4225 = vmatprep.subr.mxu0 0.0
      %4226 = vmatpush2.xpose.msra.mxu0 0.0
      %4227 = vmatprep.subr.mxu0 0.0
      %4228 = vmatpush2.xpose.msra.mxu0 0.0
      %4229 = vmatprep.subr.mxu0 0.0
      %4230 = vmatpush2.xpose.msra.mxu0 0.0
      %4231 = vmatprep.subr.mxu0 0.0
      %4232 = vmatpush2.xpose.msra.mxu0 0.0
      %4233 = vmatprep.subr.mxu0 0.0
      %4234 = vmatpush2.xpose.msra.mxu0 0.0
      %4235 = vmatprep.mubr.f32.mxu0 0.0
      %4236 = vmatmul.mubr.f32.gmra.mxu0 %v4166
      %v4237 = vpop.f32.mrf.mxu0
      %v4238 = vadd.f32 0.0, %v4237
      %v4239 = vpop.f32.mrf.mxu0
      %4240 = vdwg.mxu0
      %v4241 = vsel %vm1011, %v4162, -inf
      %4242 = vmax.xlane.f32.xlu0 %v4241
      %v4243 = vpop.xlane.xlu0 %4242
      %v4244 = vsel %vm1011, %v4238, -inf
      %4245 = vmax.xlane.f32.xlu0 %v4244
      %v4246 = vpop.xlane.xlu0 %4245
      %v4247 = vsub.f32 %v4162, %v4243
      %v4248 = vsub.f32 %v4238, %v4246
      %v4249 = vmul.f32 %v4247, 1.442695
      %v4250 = vpow.pop %v4249
      %v4251 = vmul.f32 %v4248, 1.442695
      %v4252 = vpow.pop %v4251
      %v4253 = vsel %vm1011, %v4250, 0.0
      %4254 = vadd.xlane.f32.xlu0 %v4253
      %v4255 = vpop.xlane.xlu0 %4254
      %v4256 = vsel %vm1011, %v4252, 0.0
      %4257 = vadd.xlane.f32.xlu0 %v4256
      %v4258 = vpop.xlane.xlu0 %4257
      %v4259 = vrcp.pop %v4255
      %v4260 = vmul.f32 %v4250, %v4259
      %v4261 = vrcp.pop %v4258
      %v4262 = vmul.f32 %v4252, %v4261
      %v4264 = vsel %vm1011, %v4260, 0
      %4266 = vmatprep.subr.mxu0 0.0
      %4267 = vmatpush1.msra.mxu0 0.0
      %4268 = vmatprep.subr.mxu0 0.0
      %4269 = vmatpush1.msra.mxu0 0.0
      %4270 = vmatprep.subr.mxu0 0.0
      %4271 = vmatpush1.msra.mxu0 0.0
      %4272 = vmatprep.subr.mxu0 0.0
      %4273 = vmatpush1.msra.mxu0 0.0
      %4274 = vmatprep.subr.mxu0 0.0
      %4275 = vmatpush1.msra.mxu0 0.0
      %4276 = vmatprep.subr.mxu0 0.0
      %4277 = vmatpush1.msra.mxu0 0.0
      %4278 = vmatprep.subr.mxu0 0.0
      %4279 = vmatpush1.msra.mxu0 0.0
      %4280 = vmatprep.subr.mxu0 0.0
      %4281 = vmatpush1.msra.mxu0 0.0
      %4282 = vmatprep.subr.mxu0 0.0
      %4283 = vmatpush1.msra.mxu0 0.0
      %4284 = vmatprep.subr.mxu0 0.0
      %4285 = vmatpush1.msra.mxu0 0.0
      %4286 = vmatprep.subr.mxu0 0.0
      %4287 = vmatpush1.msra.mxu0 0.0
      %4288 = vmatprep.subr.mxu0 0.0
      %4289 = vmatpush1.msra.mxu0 0.0
      %4290 = vmatprep.subr.mxu0 0.0
      %4291 = vmatpush1.msra.mxu0 0.0
      %4292 = vmatprep.subr.mxu0 0.0
      %4293 = vmatpush1.msra.mxu0 0.0
      %4294 = vmatprep.subr.mxu0 0.0
      %4295 = vmatpush1.msra.mxu0 0.0
      %4296 = vmatprep.subr.mxu0 0.0
      %4297 = vmatpush1.msra.mxu0 %v4083
      %4298 = vmatprep.subr.mxu0 0.0
      %4299 = vmatpush2.msra.mxu0 0.0
      %4300 = vmatprep.subr.mxu0 0.0
      %4301 = vmatpush2.msra.mxu0 0.0
      %4302 = vmatprep.subr.mxu0 0.0
      %4303 = vmatpush2.msra.mxu0 0.0
      %4304 = vmatprep.subr.mxu0 0.0
      %4305 = vmatpush2.msra.mxu0 0.0
      %4306 = vmatprep.subr.mxu0 0.0
      %4307 = vmatpush2.msra.mxu0 0.0
      %4308 = vmatprep.subr.mxu0 0.0
      %4309 = vmatpush2.msra.mxu0 0.0
      %4310 = vmatprep.subr.mxu0 0.0
      %4311 = vmatpush2.msra.mxu0 0.0
      %4312 = vmatprep.subr.mxu0 0.0
      %4313 = vmatpush2.msra.mxu0 0.0
      %4314 = vmatprep.subr.mxu0 0.0
      %4315 = vmatpush2.msra.mxu0 0.0
      %4316 = vmatprep.subr.mxu0 0.0
      %4317 = vmatpush2.msra.mxu0 0.0
      %4318 = vmatprep.subr.mxu0 0.0
      %4319 = vmatpush2.msra.mxu0 0.0
      %4320 = vmatprep.subr.mxu0 0.0
      %4321 = vmatpush2.msra.mxu0 0.0
      %4322 = vmatprep.subr.mxu0 0.0
      %4323 = vmatpush2.msra.mxu0 0.0
      %4324 = vmatprep.subr.mxu0 0.0
      %4325 = vmatpush2.msra.mxu0 0.0
      %4326 = vmatprep.subr.mxu0 0.0
      %4327 = vmatpush2.msra.mxu0 0.0
      %4328 = vmatprep.subr.mxu0 0.0
      %4329 = vmatpush2.msra.mxu0 0.0
      %4330 = vmatprep.mubr.f32.mxu0 0.0
      %4331 = vmatmul.mubr.f32.gmra.mxu0 %v4264
      %v4332 = vpop.f32.mrf.mxu0
      %v4333 = vadd.f32 0.0, %v4332
      %v4334 = vpop.f32.mrf.mxu0
      %4335 = vdwg.mxu0
      %v4337 = vsel %vm1011, %v4262, 0
      %4339 = vmatprep.subr.mxu0 0.0
      %4340 = vmatpush1.msra.mxu0 0.0
      %4341 = vmatprep.subr.mxu0 0.0
      %4342 = vmatpush1.msra.mxu0 0.0
      %4343 = vmatprep.subr.mxu0 0.0
      %4344 = vmatpush1.msra.mxu0 0.0
      %4345 = vmatprep.subr.mxu0 0.0
      %4346 = vmatpush1.msra.mxu0 0.0
      %4347 = vmatprep.subr.mxu0 0.0
      %4348 = vmatpush1.msra.mxu0 0.0
      %4349 = vmatprep.subr.mxu0 0.0
      %4350 = vmatpush1.msra.mxu0 0.0
      %4351 = vmatprep.subr.mxu0 0.0
      %4352 = vmatpush1.msra.mxu0 0.0
      %4353 = vmatprep.subr.mxu0 0.0
      %4354 = vmatpush1.msra.mxu0 0.0
      %4355 = vmatprep.subr.mxu0 0.0
      %4356 = vmatpush1.msra.mxu0 0.0
      %4357 = vmatprep.subr.mxu0 0.0
      %4358 = vmatpush1.msra.mxu0 0.0
      %4359 = vmatprep.subr.mxu0 0.0
      %4360 = vmatpush1.msra.mxu0 0.0
      %4361 = vmatprep.subr.mxu0 0.0
      %4362 = vmatpush1.msra.mxu0 0.0
      %4363 = vmatprep.subr.mxu0 0.0
      %4364 = vmatpush1.msra.mxu0 0.0
      %4365 = vmatprep.subr.mxu0 0.0
      %4366 = vmatpush1.msra.mxu0 0.0
      %4367 = vmatprep.subr.mxu0 0.0
      %4368 = vmatpush1.msra.mxu0 0.0
      %4369 = vmatprep.subr.mxu0 0.0
      %4370 = vmatpush1.msra.mxu0 %v4086
      %4371 = vmatprep.subr.mxu0 0.0
      %4372 = vmatpush2.msra.mxu0 0.0
      %4373 = vmatprep.subr.mxu0 0.0
      %4374 = vmatpush2.msra.mxu0 0.0
      %4375 = vmatprep.subr.mxu0 0.0
      %4376 = vmatpush2.msra.mxu0 0.0
      %4377 = vmatprep.subr.mxu0 0.0
      %4378 = vmatpush2.msra.mxu0 0.0
      %4379 = vmatprep.subr.mxu0 0.0
      %4380 = vmatpush2.msra.mxu0 0.0
      %4381 = vmatprep.subr.mxu0 0.0
      %4382 = vmatpush2.msra.mxu0 0.0
      %4383 = vmatprep.subr.mxu0 0.0
      %4384 = vmatpush2.msra.mxu0 0.0
      %4385 = vmatprep.subr.mxu0 0.0
      %4386 = vmatpush2.msra.mxu0 0.0
      %4387 = vmatprep.subr.mxu0 0.0
      %4388 = vmatpush2.msra.mxu0 0.0
      %4389 = vmatprep.subr.mxu0 0.0
      %4390 = vmatpush2.msra.mxu0 0.0
      %4391 = vmatprep.subr.mxu0 0.0
      %4392 = vmatpush2.msra.mxu0 0.0
      %4393 = vmatprep.subr.mxu0 0.0
      %4394 = vmatpush2.msra.mxu0 0.0
      %4395 = vmatprep.subr.mxu0 0.0
      %4396 = vmatpush2.msra.mxu0 0.0
      %4397 = vmatprep.subr.mxu0 0.0
      %4398 = vmatpush2.msra.mxu0 0.0
      %4399 = vmatprep.subr.mxu0 0.0
      %4400 = vmatpush2.msra.mxu0 0.0
      %4401 = vmatprep.subr.mxu0 0.0
      %4402 = vmatpush2.msra.mxu0 0.0
      %4403 = vmatprep.mubr.f32.mxu0 0.0
      %4404 = vmatmul.mubr.f32.gmra.mxu0 %v4337
      %v4405 = vpop.f32.mrf.mxu0
      %v4406 = vadd.f32 0.0, %v4405
      %v4407 = vpop.f32.mrf.mxu0
      %4408 = vdwg.mxu0
      %4409 = vrot.lane.b32.xlu0 %v3927, 120
      %v4410 = vpop.permute.xlu0 %4409
      %4411 = vrot.lane.b32.xlu0 %v4005, 120
      %v4412 = vpop.permute.xlu0 %4411
      %v4413 = vsel %vm1011, %v4410, 0
      %v4415 = vsel %vm1011, %v4412, 0
      %4417 = vmatprep.subr.mxu0 0.0
      %4418 = vmatpush1.xpose.msra.mxu0 0.0
      %4419 = vmatprep.subr.mxu0 0.0
      %4420 = vmatpush1.xpose.msra.mxu0 0.0
      %4421 = vmatprep.subr.mxu0 0.0
      %4422 = vmatpush1.xpose.msra.mxu0 0.0
      %4423 = vmatprep.subr.mxu0 0.0
      %4424 = vmatpush1.xpose.msra.mxu0 0.0
      %4425 = vmatprep.subr.mxu0 0.0
      %4426 = vmatpush1.xpose.msra.mxu0 0.0
      %4427 = vmatprep.subr.mxu0 0.0
      %4428 = vmatpush1.xpose.msra.mxu0 0.0
      %4429 = vmatprep.subr.mxu0 0.0
      %4430 = vmatpush1.xpose.msra.mxu0 0.0
      %4431 = vmatprep.subr.mxu0 0.0
      %4432 = vmatpush1.xpose.msra.mxu0 0.0
      %4433 = vmatprep.subr.mxu0 0.0
      %4434 = vmatpush1.xpose.msra.mxu0 0.0
      %4435 = vmatprep.subr.mxu0 0.0
      %4436 = vmatpush1.xpose.msra.mxu0 0.0
      %4437 = vmatprep.subr.mxu0 0.0
      %4438 = vmatpush1.xpose.msra.mxu0 0.0
      %4439 = vmatprep.subr.mxu0 0.0
      %4440 = vmatpush1.xpose.msra.mxu0 0.0
      %4441 = vmatprep.subr.mxu0 0.0
      %4442 = vmatpush1.xpose.msra.mxu0 0.0
      %4443 = vmatprep.subr.mxu0 0.0
      %4444 = vmatpush1.xpose.msra.mxu0 0.0
      %4445 = vmatprep.subr.mxu0 0.0
      %4446 = vmatpush1.xpose.msra.mxu0 0.0
      %4447 = vmatprep.subr.mxu0 0.0
      %4448 = vmatpush1.xpose.msra.mxu0 %v4415
      %4449 = vmatprep.subr.mxu0 0.0
      %4450 = vmatpush2.xpose.msra.mxu0 0.0
      %4451 = vmatprep.subr.mxu0 0.0
      %4452 = vmatpush2.xpose.msra.mxu0 0.0
      %4453 = vmatprep.subr.mxu0 0.0
      %4454 = vmatpush2.xpose.msra.mxu0 0.0
      %4455 = vmatprep.subr.mxu0 0.0
      %4456 = vmatpush2.xpose.msra.mxu0 0.0
      %4457 = vmatprep.subr.mxu0 0.0
      %4458 = vmatpush2.xpose.msra.mxu0 0.0
      %4459 = vmatprep.subr.mxu0 0.0
      %4460 = vmatpush2.xpose.msra.mxu0 0.0
      %4461 = vmatprep.subr.mxu0 0.0
      %4462 = vmatpush2.xpose.msra.mxu0 0.0
      %4463 = vmatprep.subr.mxu0 0.0
      %4464 = vmatpush2.xpose.msra.mxu0 0.0
      %4465 = vmatprep.subr.mxu0 0.0
      %4466 = vmatpush2.xpose.msra.mxu0 0.0
      %4467 = vmatprep.subr.mxu0 0.0
      %4468 = vmatpush2.xpose.msra.mxu0 0.0
      %4469 = vmatprep.subr.mxu0 0.0
      %4470 = vmatpush2.xpose.msra.mxu0 0.0
      %4471 = vmatprep.subr.mxu0 0.0
      %4472 = vmatpush2.xpose.msra.mxu0 0.0
      %4473 = vmatprep.subr.mxu0 0.0
      %4474 = vmatpush2.xpose.msra.mxu0 0.0
      %4475 = vmatprep.subr.mxu0 0.0
      %4476 = vmatpush2.xpose.msra.mxu0 0.0
      %4477 = vmatprep.subr.mxu0 0.0
      %4478 = vmatpush2.xpose.msra.mxu0 0.0
      %4479 = vmatprep.subr.mxu0 0.0
      %4480 = vmatpush2.xpose.msra.mxu0 0.0
      %4481 = vmatprep.mubr.f32.mxu0 0.0
      %4482 = vmatmul.mubr.f32.gmra.mxu0 %v4413
      %v4483 = vpop.f32.mrf.mxu0
      %v4484 = vadd.f32 0.0, %v4483
      %v4485 = vpop.f32.mrf.mxu0
      %4486 = vdwg.mxu0
      %4487 = vrot.lane.b32.xlu0 %v3928, 120
      %v4488 = vpop.permute.xlu0 %4487
      %4489 = vrot.lane.b32.xlu0 %v4008, 120
      %v4490 = vpop.permute.xlu0 %4489
      %v4491 = vsel %vm1011, %v4488, 0
      %v4493 = vsel %vm1011, %v4490, 0
      %4495 = vmatprep.subr.mxu0 0.0
      %4496 = vmatpush1.xpose.msra.mxu0 0.0
      %4497 = vmatprep.subr.mxu0 0.0
      %4498 = vmatpush1.xpose.msra.mxu0 0.0
      %4499 = vmatprep.subr.mxu0 0.0
      %4500 = vmatpush1.xpose.msra.mxu0 0.0
      %4501 = vmatprep.subr.mxu0 0.0
      %4502 = vmatpush1.xpose.msra.mxu0 0.0
      %4503 = vmatprep.subr.mxu0 0.0
      %4504 = vmatpush1.xpose.msra.mxu0 0.0
      %4505 = vmatprep.subr.mxu0 0.0
      %4506 = vmatpush1.xpose.msra.mxu0 0.0
      %4507 = vmatprep.subr.mxu0 0.0
      %4508 = vmatpush1.xpose.msra.mxu0 0.0
      %4509 = vmatprep.subr.mxu0 0.0
      %4510 = vmatpush1.xpose.msra.mxu0 0.0
      %4511 = vmatprep.subr.mxu0 0.0
      %4512 = vmatpush1.xpose.msra.mxu0 0.0
      %4513 = vmatprep.subr.mxu0 0.0
      %4514 = vmatpush1.xpose.msra.mxu0 0.0
      %4515 = vmatprep.subr.mxu0 0.0
      %4516 = vmatpush1.xpose.msra.mxu0 0.0
      %4517 = vmatprep.subr.mxu0 0.0
      %4518 = vmatpush1.xpose.msra.mxu0 0.0
      %4519 = vmatprep.subr.mxu0 0.0
      %4520 = vmatpush1.xpose.msra.mxu0 0.0
      %4521 = vmatprep.subr.mxu0 0.0
      %4522 = vmatpush1.xpose.msra.mxu0 0.0
      %4523 = vmatprep.subr.mxu0 0.0
      %4524 = vmatpush1.xpose.msra.mxu0 0.0
      %4525 = vmatprep.subr.mxu0 0.0
      %4526 = vmatpush1.xpose.msra.mxu0 %v4493
      %4527 = vmatprep.subr.mxu0 0.0
      %4528 = vmatpush2.xpose.msra.mxu0 0.0
      %4529 = vmatprep.subr.mxu0 0.0
      %4530 = vmatpush2.xpose.msra.mxu0 0.0
      %4531 = vmatprep.subr.mxu0 0.0
      %4532 = vmatpush2.xpose.msra.mxu0 0.0
      %4533 = vmatprep.subr.mxu0 0.0
      %4534 = vmatpush2.xpose.msra.mxu0 0.0
      %4535 = vmatprep.subr.mxu0 0.0
      %4536 = vmatpush2.xpose.msra.mxu0 0.0
      %4537 = vmatprep.subr.mxu0 0.0
      %4538 = vmatpush2.xpose.msra.mxu0 0.0
      %4539 = vmatprep.subr.mxu0 0.0
      %4540 = vmatpush2.xpose.msra.mxu0 0.0
      %4541 = vmatprep.subr.mxu0 0.0
      %4542 = vmatpush2.xpose.msra.mxu0 0.0
      %4543 = vmatprep.subr.mxu0 0.0
      %4544 = vmatpush2.xpose.msra.mxu0 0.0
      %4545 = vmatprep.subr.mxu0 0.0
      %4546 = vmatpush2.xpose.msra.mxu0 0.0
      %4547 = vmatprep.subr.mxu0 0.0
      %4548 = vmatpush2.xpose.msra.mxu0 0.0
      %4549 = vmatprep.subr.mxu0 0.0
      %4550 = vmatpush2.xpose.msra.mxu0 0.0
      %4551 = vmatprep.subr.mxu0 0.0
      %4552 = vmatpush2.xpose.msra.mxu0 0.0
      %4553 = vmatprep.subr.mxu0 0.0
      %4554 = vmatpush2.xpose.msra.mxu0 0.0
      %4555 = vmatprep.subr.mxu0 0.0
      %4556 = vmatpush2.xpose.msra.mxu0 0.0
      %4557 = vmatprep.subr.mxu0 0.0
      %4558 = vmatpush2.xpose.msra.mxu0 0.0
      %4559 = vmatprep.mubr.f32.mxu0 0.0
      %4560 = vmatmul.mubr.f32.gmra.mxu0 %v4491
      %v4561 = vpop.f32.mrf.mxu0
      %v4562 = vadd.f32 0.0, %v4561
      %v4563 = vpop.f32.mrf.mxu0
      %4564 = vdwg.mxu0
      %v4565 = vsel %vm1011, %v4484, -inf
      %4566 = vmax.xlane.f32.xlu0 %v4565
      %v4567 = vpop.xlane.xlu0 %4566
      %v4568 = vsel %vm1011, %v4562, -inf
      %4569 = vmax.xlane.f32.xlu0 %v4568
      %v4570 = vpop.xlane.xlu0 %4569
      %v4571 = vsub.f32 %v4484, %v4567
      %v4572 = vsub.f32 %v4562, %v4570
      %v4573 = vmul.f32 %v4571, 1.442695
      %v4574 = vpow.pop %v4573
      %v4575 = vmul.f32 %v4572, 1.442695
      %v4576 = vpow.pop %v4575
      %v4577 = vsel %vm1011, %v4574, 0.0
      %4578 = vadd.xlane.f32.xlu0 %v4577
      %v4579 = vpop.xlane.xlu0 %4578
      %v4580 = vsel %vm1011, %v4576, 0.0
      %4581 = vadd.xlane.f32.xlu0 %v4580
      %v4582 = vpop.xlane.xlu0 %4581
      %v4583 = vrcp.pop %v4579
      %v4584 = vmul.f32 %v4574, %v4583
      %v4585 = vrcp.pop %v4582
      %v4586 = vmul.f32 %v4576, %v4585
      %4588 = vrot.lane.b32.xlu0 %v4083, 120
      %v4589 = vpop.permute.xlu0 %4588
      %v4592 = vsel %vm1011, %v4584, 0
      %4594 = vmatprep.subr.mxu0 0.0
      %4595 = vmatpush1.msra.mxu0 0.0
      %4596 = vmatprep.subr.mxu0 0.0
      %4597 = vmatpush1.msra.mxu0 0.0
      %4598 = vmatprep.subr.mxu0 0.0
      %4599 = vmatpush1.msra.mxu0 0.0
      %4600 = vmatprep.subr.mxu0 0.0
      %4601 = vmatpush1.msra.mxu0 0.0
      %4602 = vmatprep.subr.mxu0 0.0
      %4603 = vmatpush1.msra.mxu0 0.0
      %4604 = vmatprep.subr.mxu0 0.0
      %4605 = vmatpush1.msra.mxu0 0.0
      %4606 = vmatprep.subr.mxu0 0.0
      %4607 = vmatpush1.msra.mxu0 0.0
      %4608 = vmatprep.subr.mxu0 0.0
      %4609 = vmatpush1.msra.mxu0 0.0
      %4610 = vmatprep.subr.mxu0 0.0
      %4611 = vmatpush1.msra.mxu0 0.0
      %4612 = vmatprep.subr.mxu0 0.0
      %4613 = vmatpush1.msra.mxu0 0.0
      %4614 = vmatprep.subr.mxu0 0.0
      %4615 = vmatpush1.msra.mxu0 0.0
      %4616 = vmatprep.subr.mxu0 0.0
      %4617 = vmatpush1.msra.mxu0 0.0
      %4618 = vmatprep.subr.mxu0 0.0
      %4619 = vmatpush1.msra.mxu0 0.0
      %4620 = vmatprep.subr.mxu0 0.0
      %4621 = vmatpush1.msra.mxu0 0.0
      %4622 = vmatprep.subr.mxu0 0.0
      %4623 = vmatpush1.msra.mxu0 0.0
      %4624 = vmatprep.subr.mxu0 0.0
      %4625 = vmatpush1.msra.mxu0 %v4589
      %4626 = vmatprep.subr.mxu0 0.0
      %4627 = vmatpush2.msra.mxu0 0.0
      %4628 = vmatprep.subr.mxu0 0.0
      %4629 = vmatpush2.msra.mxu0 0.0
      %4630 = vmatprep.subr.mxu0 0.0
      %4631 = vmatpush2.msra.mxu0 0.0
      %4632 = vmatprep.subr.mxu0 0.0
      %4633 = vmatpush2.msra.mxu0 0.0
      %4634 = vmatprep.subr.mxu0 0.0
      %4635 = vmatpush2.msra.mxu0 0.0
      %4636 = vmatprep.subr.mxu0 0.0
      %4637 = vmatpush2.msra.mxu0 0.0
      %4638 = vmatprep.subr.mxu0 0.0
      %4639 = vmatpush2.msra.mxu0 0.0
      %4640 = vmatprep.subr.mxu0 0.0
      %4641 = vmatpush2.msra.mxu0 0.0
      %4642 = vmatprep.subr.mxu0 0.0
      %4643 = vmatpush2.msra.mxu0 0.0
      %4644 = vmatprep.subr.mxu0 0.0
      %4645 = vmatpush2.msra.mxu0 0.0
      %4646 = vmatprep.subr.mxu0 0.0
      %4647 = vmatpush2.msra.mxu0 0.0
      %4648 = vmatprep.subr.mxu0 0.0
      %4649 = vmatpush2.msra.mxu0 0.0
      %4650 = vmatprep.subr.mxu0 0.0
      %4651 = vmatpush2.msra.mxu0 0.0
      %4652 = vmatprep.subr.mxu0 0.0
      %4653 = vmatpush2.msra.mxu0 0.0
      %4654 = vmatprep.subr.mxu0 0.0
      %4655 = vmatpush2.msra.mxu0 0.0
      %4656 = vmatprep.subr.mxu0 0.0
      %4657 = vmatpush2.msra.mxu0 0.0
      %4658 = vmatprep.mubr.f32.mxu0 0.0
      %4659 = vmatmul.mubr.f32.gmra.mxu0 %v4592
      %v4660 = vpop.f32.mrf.mxu0
      %v4661 = vadd.f32 0.0, %v4660
      %v4662 = vpop.f32.mrf.mxu0
      %4663 = vdwg.mxu0
      %4665 = vrot.lane.b32.xlu0 %v4086, 120
      %v4666 = vpop.permute.xlu0 %4665
      %v4669 = vsel %vm1011, %v4586, 0
      %4671 = vmatprep.subr.mxu0 0.0
      %4672 = vmatpush1.msra.mxu0 0.0
      %4673 = vmatprep.subr.mxu0 0.0
      %4674 = vmatpush1.msra.mxu0 0.0
      %4675 = vmatprep.subr.mxu0 0.0
      %4676 = vmatpush1.msra.mxu0 0.0
      %4677 = vmatprep.subr.mxu0 0.0
      %4678 = vmatpush1.msra.mxu0 0.0
      %4679 = vmatprep.subr.mxu0 0.0
      %4680 = vmatpush1.msra.mxu0 0.0
      %4681 = vmatprep.subr.mxu0 0.0
      %4682 = vmatpush1.msra.mxu0 0.0
      %4683 = vmatprep.subr.mxu0 0.0
      %4684 = vmatpush1.msra.mxu0 0.0
      %4685 = vmatprep.subr.mxu0 0.0
      %4686 = vmatpush1.msra.mxu0 0.0
      %4687 = vmatprep.subr.mxu0 0.0
      %4688 = vmatpush1.msra.mxu0 0.0
      %4689 = vmatprep.subr.mxu0 0.0
      %4690 = vmatpush1.msra.mxu0 0.0
      %4691 = vmatprep.subr.mxu0 0.0
      %4692 = vmatpush1.msra.mxu0 0.0
      %4693 = vmatprep.subr.mxu0 0.0
      %4694 = vmatpush1.msra.mxu0 0.0
      %4695 = vmatprep.subr.mxu0 0.0
      %4696 = vmatpush1.msra.mxu0 0.0
      %4697 = vmatprep.subr.mxu0 0.0
      %4698 = vmatpush1.msra.mxu0 0.0
      %4699 = vmatprep.subr.mxu0 0.0
      %4700 = vmatpush1.msra.mxu0 0.0
      %4701 = vmatprep.subr.mxu0 0.0
      %4702 = vmatpush1.msra.mxu0 %v4666
      %4703 = vmatprep.subr.mxu0 0.0
      %4704 = vmatpush2.msra.mxu0 0.0
      %4705 = vmatprep.subr.mxu0 0.0
      %4706 = vmatpush2.msra.mxu0 0.0
      %4707 = vmatprep.subr.mxu0 0.0
      %4708 = vmatpush2.msra.mxu0 0.0
      %4709 = vmatprep.subr.mxu0 0.0
      %4710 = vmatpush2.msra.mxu0 0.0
      %4711 = vmatprep.subr.mxu0 0.0
      %4712 = vmatpush2.msra.mxu0 0.0
      %4713 = vmatprep.subr.mxu0 0.0
      %4714 = vmatpush2.msra.mxu0 0.0
      %4715 = vmatprep.subr.mxu0 0.0
      %4716 = vmatpush2.msra.mxu0 0.0
      %4717 = vmatprep.subr.mxu0 0.0
      %4718 = vmatpush2.msra.mxu0 0.0
      %4719 = vmatprep.subr.mxu0 0.0
      %4720 = vmatpush2.msra.mxu0 0.0
      %4721 = vmatprep.subr.mxu0 0.0
      %4722 = vmatpush2.msra.mxu0 0.0
      %4723 = vmatprep.subr.mxu0 0.0
      %4724 = vmatpush2.msra.mxu0 0.0
      %4725 = vmatprep.subr.mxu0 0.0
      %4726 = vmatpush2.msra.mxu0 0.0
      %4727 = vmatprep.subr.mxu0 0.0
      %4728 = vmatpush2.msra.mxu0 0.0
      %4729 = vmatprep.subr.mxu0 0.0
      %4730 = vmatpush2.msra.mxu0 0.0
      %4731 = vmatprep.subr.mxu0 0.0
      %4732 = vmatpush2.msra.mxu0 0.0
      %4733 = vmatprep.subr.mxu0 0.0
      %4734 = vmatpush2.msra.mxu0 0.0
      %4735 = vmatprep.mubr.f32.mxu0 0.0
      %4736 = vmatmul.mubr.f32.gmra.mxu0 %v4669
      %v4737 = vpop.f32.mrf.mxu0
      %v4738 = vadd.f32 0.0, %v4737
      %v4739 = vpop.f32.mrf.mxu0
      %4740 = vdwg.mxu0
      %4741 = vrot.lane.b32.xlu0 %v3927, 112
      %v4742 = vpop.permute.xlu0 %4741
      %4743 = vrot.lane.b32.xlu0 %v4005, 112
      %v4744 = vpop.permute.xlu0 %4743
      %v4745 = vsel %vm1011, %v4742, 0
      %v4747 = vsel %vm1011, %v4744, 0
      %4749 = vmatprep.subr.mxu0 0.0
      %4750 = vmatpush1.xpose.msra.mxu0 0.0
      %4751 = vmatprep.subr.mxu0 0.0
      %4752 = vmatpush1.xpose.msra.mxu0 0.0
      %4753 = vmatprep.subr.mxu0 0.0
      %4754 = vmatpush1.xpose.msra.mxu0 0.0
      %4755 = vmatprep.subr.mxu0 0.0
      %4756 = vmatpush1.xpose.msra.mxu0 0.0
      %4757 = vmatprep.subr.mxu0 0.0
      %4758 = vmatpush1.xpose.msra.mxu0 0.0
      %4759 = vmatprep.subr.mxu0 0.0
      %4760 = vmatpush1.xpose.msra.mxu0 0.0
      %4761 = vmatprep.subr.mxu0 0.0
      %4762 = vmatpush1.xpose.msra.mxu0 0.0
      %4763 = vmatprep.subr.mxu0 0.0
      %4764 = vmatpush1.xpose.msra.mxu0 0.0
      %4765 = vmatprep.subr.mxu0 0.0
      %4766 = vmatpush1.xpose.msra.mxu0 0.0
      %4767 = vmatprep.subr.mxu0 0.0
      %4768 = vmatpush1.xpose.msra.mxu0 0.0
      %4769 = vmatprep.subr.mxu0 0.0
      %4770 = vmatpush1.xpose.msra.mxu0 0.0
      %4771 = vmatprep.subr.mxu0 0.0
      %4772 = vmatpush1.xpose.msra.mxu0 0.0
      %4773 = vmatprep.subr.mxu0 0.0
      %4774 = vmatpush1.xpose.msra.mxu0 0.0
      %4775 = vmatprep.subr.mxu0 0.0
      %4776 = vmatpush1.xpose.msra.mxu0 0.0
      %4777 = vmatprep.subr.mxu0 0.0
      %4778 = vmatpush1.xpose.msra.mxu0 0.0
      %4779 = vmatprep.subr.mxu0 0.0
      %4780 = vmatpush1.xpose.msra.mxu0 %v4747
      %4781 = vmatprep.subr.mxu0 0.0
      %4782 = vmatpush2.xpose.msra.mxu0 0.0
      %4783 = vmatprep.subr.mxu0 0.0
      %4784 = vmatpush2.xpose.msra.mxu0 0.0
      %4785 = vmatprep.subr.mxu0 0.0
      %4786 = vmatpush2.xpose.msra.mxu0 0.0
      %4787 = vmatprep.subr.mxu0 0.0
      %4788 = vmatpush2.xpose.msra.mxu0 0.0
      %4789 = vmatprep.subr.mxu0 0.0
      %4790 = vmatpush2.xpose.msra.mxu0 0.0
      %4791 = vmatprep.subr.mxu0 0.0
      %4792 = vmatpush2.xpose.msra.mxu0 0.0
      %4793 = vmatprep.subr.mxu0 0.0
      %4794 = vmatpush2.xpose.msra.mxu0 0.0
      %4795 = vmatprep.subr.mxu0 0.0
      %4796 = vmatpush2.xpose.msra.mxu0 0.0
      %4797 = vmatprep.subr.mxu0 0.0
      %4798 = vmatpush2.xpose.msra.mxu0 0.0
      %4799 = vmatprep.subr.mxu0 0.0
      %4800 = vmatpush2.xpose.msra.mxu0 0.0
      %4801 = vmatprep.subr.mxu0 0.0
      %4802 = vmatpush2.xpose.msra.mxu0 0.0
      %4803 = vmatprep.subr.mxu0 0.0
      %4804 = vmatpush2.xpose.msra.mxu0 0.0
      %4805 = vmatprep.subr.mxu0 0.0
      %4806 = vmatpush2.xpose.msra.mxu0 0.0
      %4807 = vmatprep.subr.mxu0 0.0
      %4808 = vmatpush2.xpose.msra.mxu0 0.0
      %4809 = vmatprep.subr.mxu0 0.0
      %4810 = vmatpush2.xpose.msra.mxu0 0.0
      %4811 = vmatprep.subr.mxu0 0.0
      %4812 = vmatpush2.xpose.msra.mxu0 0.0
      %4813 = vmatprep.mubr.f32.mxu0 0.0
      %4814 = vmatmul.mubr.f32.gmra.mxu0 %v4745
      %v4815 = vpop.f32.mrf.mxu0
      %v4816 = vadd.f32 0.0, %v4815
      %v4817 = vpop.f32.mrf.mxu0
      %4818 = vdwg.mxu0
      %4819 = vrot.lane.b32.xlu0 %v3928, 112
      %v4820 = vpop.permute.xlu0 %4819
      %4821 = vrot.lane.b32.xlu0 %v4008, 112
      %v4822 = vpop.permute.xlu0 %4821
      %v4823 = vsel %vm1011, %v4820, 0
      %v4825 = vsel %vm1011, %v4822, 0
      %4827 = vmatprep.subr.mxu0 0.0
      %4828 = vmatpush1.xpose.msra.mxu0 0.0
      %4829 = vmatprep.subr.mxu0 0.0
      %4830 = vmatpush1.xpose.msra.mxu0 0.0
      %4831 = vmatprep.subr.mxu0 0.0
      %4832 = vmatpush1.xpose.msra.mxu0 0.0
      %4833 = vmatprep.subr.mxu0 0.0
      %4834 = vmatpush1.xpose.msra.mxu0 0.0
      %4835 = vmatprep.subr.mxu0 0.0
      %4836 = vmatpush1.xpose.msra.mxu0 0.0
      %4837 = vmatprep.subr.mxu0 0.0
      %4838 = vmatpush1.xpose.msra.mxu0 0.0
      %4839 = vmatprep.subr.mxu0 0.0
      %4840 = vmatpush1.xpose.msra.mxu0 0.0
      %4841 = vmatprep.subr.mxu0 0.0
      %4842 = vmatpush1.xpose.msra.mxu0 0.0
      %4843 = vmatprep.subr.mxu0 0.0
      %4844 = vmatpush1.xpose.msra.mxu0 0.0
      %4845 = vmatprep.subr.mxu0 0.0
      %4846 = vmatpush1.xpose.msra.mxu0 0.0
      %4847 = vmatprep.subr.mxu0 0.0
      %4848 = vmatpush1.xpose.msra.mxu0 0.0
      %4849 = vmatprep.subr.mxu0 0.0
      %4850 = vmatpush1.xpose.msra.mxu0 0.0
      %4851 = vmatprep.subr.mxu0 0.0
      %4852 = vmatpush1.xpose.msra.mxu0 0.0
      %4853 = vmatprep.subr.mxu0 0.0
      %4854 = vmatpush1.xpose.msra.mxu0 0.0
      %4855 = vmatprep.subr.mxu0 0.0
      %4856 = vmatpush1.xpose.msra.mxu0 0.0
      %4857 = vmatprep.subr.mxu0 0.0
      %4858 = vmatpush1.xpose.msra.mxu0 %v4825
      %4859 = vmatprep.subr.mxu0 0.0
      %4860 = vmatpush2.xpose.msra.mxu0 0.0
      %4861 = vmatprep.subr.mxu0 0.0
      %4862 = vmatpush2.xpose.msra.mxu0 0.0
      %4863 = vmatprep.subr.mxu0 0.0
      %4864 = vmatpush2.xpose.msra.mxu0 0.0
      %4865 = vmatprep.subr.mxu0 0.0
      %4866 = vmatpush2.xpose.msra.mxu0 0.0
      %4867 = vmatprep.subr.mxu0 0.0
      %4868 = vmatpush2.xpose.msra.mxu0 0.0
      %4869 = vmatprep.subr.mxu0 0.0
      %4870 = vmatpush2.xpose.msra.mxu0 0.0
      %4871 = vmatprep.subr.mxu0 0.0
      %4872 = vmatpush2.xpose.msra.mxu0 0.0
      %4873 = vmatprep.subr.mxu0 0.0
      %4874 = vmatpush2.xpose.msra.mxu0 0.0
      %4875 = vmatprep.subr.mxu0 0.0
      %4876 = vmatpush2.xpose.msra.mxu0 0.0
      %4877 = vmatprep.subr.mxu0 0.0
      %4878 = vmatpush2.xpose.msra.mxu0 0.0
      %4879 = vmatprep.subr.mxu0 0.0
      %4880 = vmatpush2.xpose.msra.mxu0 0.0
      %4881 = vmatprep.subr.mxu0 0.0
      %4882 = vmatpush2.xpose.msra.mxu0 0.0
      %4883 = vmatprep.subr.mxu0 0.0
      %4884 = vmatpush2.xpose.msra.mxu0 0.0
      %4885 = vmatprep.subr.mxu0 0.0
      %4886 = vmatpush2.xpose.msra.mxu0 0.0
      %4887 = vmatprep.subr.mxu0 0.0
      %4888 = vmatpush2.xpose.msra.mxu0 0.0
      %4889 = vmatprep.subr.mxu0 0.0
      %4890 = vmatpush2.xpose.msra.mxu0 0.0
      %4891 = vmatprep.mubr.f32.mxu0 0.0
      %4892 = vmatmul.mubr.f32.gmra.mxu0 %v4823
      %v4893 = vpop.f32.mrf.mxu0
      %v4894 = vadd.f32 0.0, %v4893
      %v4895 = vpop.f32.mrf.mxu0
      %4896 = vdwg.mxu0
      %v4897 = vsel %vm1011, %v4816, -inf
      %4898 = vmax.xlane.f32.xlu0 %v4897
      %v4899 = vpop.xlane.xlu0 %4898
      %v4900 = vsel %vm1011, %v4894, -inf
      %4901 = vmax.xlane.f32.xlu0 %v4900
      %v4902 = vpop.xlane.xlu0 %4901
      %v4903 = vsub.f32 %v4816, %v4899
      %v4904 = vsub.f32 %v4894, %v4902
      %v4905 = vmul.f32 %v4903, 1.442695
      %v4906 = vpow.pop %v4905
      %v4907 = vmul.f32 %v4904, 1.442695
      %v4908 = vpow.pop %v4907
      %v4909 = vsel %vm1011, %v4906, 0.0
      %4910 = vadd.xlane.f32.xlu0 %v4909
      %v4911 = vpop.xlane.xlu0 %4910
      %v4912 = vsel %vm1011, %v4908, 0.0
      %4913 = vadd.xlane.f32.xlu0 %v4912
      %v4914 = vpop.xlane.xlu0 %4913
      %v4915 = vrcp.pop %v4911
      %v4916 = vmul.f32 %v4906, %v4915
      %v4917 = vrcp.pop %v4914
      %v4918 = vmul.f32 %v4908, %v4917
      %4919 = vrot.lane.b32.xlu0 %v4083, 112
      %v4920 = vpop.permute.xlu0 %4919
      %v4923 = vsel %vm1011, %v4916, 0
      %4925 = vmatprep.subr.mxu0 0.0
      %4926 = vmatpush1.msra.mxu0 0.0
      %4927 = vmatprep.subr.mxu0 0.0
      %4928 = vmatpush1.msra.mxu0 0.0
      %4929 = vmatprep.subr.mxu0 0.0
      %4930 = vmatpush1.msra.mxu0 0.0
      %4931 = vmatprep.subr.mxu0 0.0
      %4932 = vmatpush1.msra.mxu0 0.0
      %4933 = vmatprep.subr.mxu0 0.0
      %4934 = vmatpush1.msra.mxu0 0.0
      %4935 = vmatprep.subr.mxu0 0.0
      %4936 = vmatpush1.msra.mxu0 0.0
      %4937 = vmatprep.subr.mxu0 0.0
      %4938 = vmatpush1.msra.mxu0 0.0
      %4939 = vmatprep.subr.mxu0 0.0
      %4940 = vmatpush1.msra.mxu0 0.0
      %4941 = vmatprep.subr.mxu0 0.0
      %4942 = vmatpush1.msra.mxu0 0.0
      %4943 = vmatprep.subr.mxu0 0.0
      %4944 = vmatpush1.msra.mxu0 0.0
      %4945 = vmatprep.subr.mxu0 0.0
      %4946 = vmatpush1.msra.mxu0 0.0
      %4947 = vmatprep.subr.mxu0 0.0
      %4948 = vmatpush1.msra.mxu0 0.0
      %4949 = vmatprep.subr.mxu0 0.0
      %4950 = vmatpush1.msra.mxu0 0.0
      %4951 = vmatprep.subr.mxu0 0.0
      %4952 = vmatpush1.msra.mxu0 0.0
      %4953 = vmatprep.subr.mxu0 0.0
      %4954 = vmatpush1.msra.mxu0 0.0
      %4955 = vmatprep.subr.mxu0 0.0
      %4956 = vmatpush1.msra.mxu0 %v4920
      %4957 = vmatprep.subr.mxu0 0.0
      %4958 = vmatpush2.msra.mxu0 0.0
      %4959 = vmatprep.subr.mxu0 0.0
      %4960 = vmatpush2.msra.mxu0 0.0
      %4961 = vmatprep.subr.mxu0 0.0
      %4962 = vmatpush2.msra.mxu0 0.0
      %4963 = vmatprep.subr.mxu0 0.0
      %4964 = vmatpush2.msra.mxu0 0.0
      %4965 = vmatprep.subr.mxu0 0.0
      %4966 = vmatpush2.msra.mxu0 0.0
      %4967 = vmatprep.subr.mxu0 0.0
      %4968 = vmatpush2.msra.mxu0 0.0
      %4969 = vmatprep.subr.mxu0 0.0
      %4970 = vmatpush2.msra.mxu0 0.0
      %4971 = vmatprep.subr.mxu0 0.0
      %4972 = vmatpush2.msra.mxu0 0.0
      %4973 = vmatprep.subr.mxu0 0.0
      %4974 = vmatpush2.msra.mxu0 0.0
      %4975 = vmatprep.subr.mxu0 0.0
      %4976 = vmatpush2.msra.mxu0 0.0
      %4977 = vmatprep.subr.mxu0 0.0
      %4978 = vmatpush2.msra.mxu0 0.0
      %4979 = vmatprep.subr.mxu0 0.0
      %4980 = vmatpush2.msra.mxu0 0.0
      %4981 = vmatprep.subr.mxu0 0.0
      %4982 = vmatpush2.msra.mxu0 0.0
      %4983 = vmatprep.subr.mxu0 0.0
      %4984 = vmatpush2.msra.mxu0 0.0
      %4985 = vmatprep.subr.mxu0 0.0
      %4986 = vmatpush2.msra.mxu0 0.0
      %4987 = vmatprep.subr.mxu0 0.0
      %4988 = vmatpush2.msra.mxu0 0.0
      %4989 = vmatprep.mubr.f32.mxu0 0.0
      %4990 = vmatmul.mubr.f32.gmra.mxu0 %v4923
      %v4991 = vpop.f32.mrf.mxu0
      %v4992 = vadd.f32 0.0, %v4991
      %v4993 = vpop.f32.mrf.mxu0
      %4994 = vdwg.mxu0
      %4995 = vrot.lane.b32.xlu0 %v4086, 112
      %v4996 = vpop.permute.xlu0 %4995
      %v4999 = vsel %vm1011, %v4918, 0
      %5001 = vmatprep.subr.mxu0 0.0
      %5002 = vmatpush1.msra.mxu0 0.0
      %5003 = vmatprep.subr.mxu0 0.0
      %5004 = vmatpush1.msra.mxu0 0.0
      %5005 = vmatprep.subr.mxu0 0.0
      %5006 = vmatpush1.msra.mxu0 0.0
      %5007 = vmatprep.subr.mxu0 0.0
      %5008 = vmatpush1.msra.mxu0 0.0
      %5009 = vmatprep.subr.mxu0 0.0
      %5010 = vmatpush1.msra.mxu0 0.0
      %5011 = vmatprep.subr.mxu0 0.0
      %5012 = vmatpush1.msra.mxu0 0.0
      %5013 = vmatprep.subr.mxu0 0.0
      %5014 = vmatpush1.msra.mxu0 0.0
      %5015 = vmatprep.subr.mxu0 0.0
      %5016 = vmatpush1.msra.mxu0 0.0
      %5017 = vmatprep.subr.mxu0 0.0
      %5018 = vmatpush1.msra.mxu0 0.0
      %5019 = vmatprep.subr.mxu0 0.0
      %5020 = vmatpush1.msra.mxu0 0.0
      %5021 = vmatprep.subr.mxu0 0.0
      %5022 = vmatpush1.msra.mxu0 0.0
      %5023 = vmatprep.subr.mxu0 0.0
      %5024 = vmatpush1.msra.mxu0 0.0
      %5025 = vmatprep.subr.mxu0 0.0
      %5026 = vmatpush1.msra.mxu0 0.0
      %5027 = vmatprep.subr.mxu0 0.0
      %5028 = vmatpush1.msra.mxu0 0.0
      %5029 = vmatprep.subr.mxu0 0.0
      %5030 = vmatpush1.msra.mxu0 0.0
      %5031 = vmatprep.subr.mxu0 0.0
      %5032 = vmatpush1.msra.mxu0 %v4996
      %5033 = vmatprep.subr.mxu0 0.0
      %5034 = vmatpush2.msra.mxu0 0.0
      %5035 = vmatprep.subr.mxu0 0.0
      %5036 = vmatpush2.msra.mxu0 0.0
      %5037 = vmatprep.subr.mxu0 0.0
      %5038 = vmatpush2.msra.mxu0 0.0
      %5039 = vmatprep.subr.mxu0 0.0
      %5040 = vmatpush2.msra.mxu0 0.0
      %5041 = vmatprep.subr.mxu0 0.0
      %5042 = vmatpush2.msra.mxu0 0.0
      %5043 = vmatprep.subr.mxu0 0.0
      %5044 = vmatpush2.msra.mxu0 0.0
      %5045 = vmatprep.subr.mxu0 0.0
      %5046 = vmatpush2.msra.mxu0 0.0
      %5047 = vmatprep.subr.mxu0 0.0
      %5048 = vmatpush2.msra.mxu0 0.0
      %5049 = vmatprep.subr.mxu0 0.0
      %5050 = vmatpush2.msra.mxu0 0.0
      %5051 = vmatprep.subr.mxu0 0.0
      %5052 = vmatpush2.msra.mxu0 0.0
      %5053 = vmatprep.subr.mxu0 0.0
      %5054 = vmatpush2.msra.mxu0 0.0
      %5055 = vmatprep.subr.mxu0 0.0
      %5056 = vmatpush2.msra.mxu0 0.0
      %5057 = vmatprep.subr.mxu0 0.0
      %5058 = vmatpush2.msra.mxu0 0.0
      %5059 = vmatprep.subr.mxu0 0.0
      %5060 = vmatpush2.msra.mxu0 0.0
      %5061 = vmatprep.subr.mxu0 0.0
      %5062 = vmatpush2.msra.mxu0 0.0
      %5063 = vmatprep.subr.mxu0 0.0
      %5064 = vmatpush2.msra.mxu0 0.0
      %5065 = vmatprep.mubr.f32.mxu0 0.0
      %5066 = vmatmul.mubr.f32.gmra.mxu0 %v4999
      %v5067 = vpop.f32.mrf.mxu0
      %v5068 = vadd.f32 0.0, %v5067
      %v5069 = vpop.f32.mrf.mxu0
      %5070 = vdwg.mxu0
      %5071 = vrot.lane.b32.xlu0 %v3927, 104
      %v5072 = vpop.permute.xlu0 %5071
      %5073 = vrot.lane.b32.xlu0 %v4005, 104
      %v5074 = vpop.permute.xlu0 %5073
      %v5075 = vsel %vm1011, %v5072, 0
      %v5077 = vsel %vm1011, %v5074, 0
      %5079 = vmatprep.subr.mxu0 0.0
      %5080 = vmatpush1.xpose.msra.mxu0 0.0
      %5081 = vmatprep.subr.mxu0 0.0
      %5082 = vmatpush1.xpose.msra.mxu0 0.0
      %5083 = vmatprep.subr.mxu0 0.0
      %5084 = vmatpush1.xpose.msra.mxu0 0.0
      %5085 = vmatprep.subr.mxu0 0.0
      %5086 = vmatpush1.xpose.msra.mxu0 0.0
      %5087 = vmatprep.subr.mxu0 0.0
      %5088 = vmatpush1.xpose.msra.mxu0 0.0
      %5089 = vmatprep.subr.mxu0 0.0
      %5090 = vmatpush1.xpose.msra.mxu0 0.0
      %5091 = vmatprep.subr.mxu0 0.0
      %5092 = vmatpush1.xpose.msra.mxu0 0.0
      %5093 = vmatprep.subr.mxu0 0.0
      %5094 = vmatpush1.xpose.msra.mxu0 0.0
      %5095 = vmatprep.subr.mxu0 0.0
      %5096 = vmatpush1.xpose.msra.mxu0 0.0
      %5097 = vmatprep.subr.mxu0 0.0
      %5098 = vmatpush1.xpose.msra.mxu0 0.0
      %5099 = vmatprep.subr.mxu0 0.0
      %5100 = vmatpush1.xpose.msra.mxu0 0.0
      %5101 = vmatprep.subr.mxu0 0.0
      %5102 = vmatpush1.xpose.msra.mxu0 0.0
      %5103 = vmatprep.subr.mxu0 0.0
      %5104 = vmatpush1.xpose.msra.mxu0 0.0
      %5105 = vmatprep.subr.mxu0 0.0
      %5106 = vmatpush1.xpose.msra.mxu0 0.0
      %5107 = vmatprep.subr.mxu0 0.0
      %5108 = vmatpush1.xpose.msra.mxu0 0.0
      %5109 = vmatprep.subr.mxu0 0.0
      %5110 = vmatpush1.xpose.msra.mxu0 %v5077
      %5111 = vmatprep.subr.mxu0 0.0
      %5112 = vmatpush2.xpose.msra.mxu0 0.0
      %5113 = vmatprep.subr.mxu0 0.0
      %5114 = vmatpush2.xpose.msra.mxu0 0.0
      %5115 = vmatprep.subr.mxu0 0.0
      %5116 = vmatpush2.xpose.msra.mxu0 0.0
      %5117 = vmatprep.subr.mxu0 0.0
      %5118 = vmatpush2.xpose.msra.mxu0 0.0
      %5119 = vmatprep.subr.mxu0 0.0
      %5120 = vmatpush2.xpose.msra.mxu0 0.0
      %5121 = vmatprep.subr.mxu0 0.0
      %5122 = vmatpush2.xpose.msra.mxu0 0.0
      %5123 = vmatprep.subr.mxu0 0.0
      %5124 = vmatpush2.xpose.msra.mxu0 0.0
      %5125 = vmatprep.subr.mxu0 0.0
      %5126 = vmatpush2.xpose.msra.mxu0 0.0
      %5127 = vmatprep.subr.mxu0 0.0
      %5128 = vmatpush2.xpose.msra.mxu0 0.0
      %5129 = vmatprep.subr.mxu0 0.0
      %5130 = vmatpush2.xpose.msra.mxu0 0.0
      %5131 = vmatprep.subr.mxu0 0.0
      %5132 = vmatpush2.xpose.msra.mxu0 0.0
      %5133 = vmatprep.subr.mxu0 0.0
      %5134 = vmatpush2.xpose.msra.mxu0 0.0
      %5135 = vmatprep.subr.mxu0 0.0
      %5136 = vmatpush2.xpose.msra.mxu0 0.0
      %5137 = vmatprep.subr.mxu0 0.0
      %5138 = vmatpush2.xpose.msra.mxu0 0.0
      %5139 = vmatprep.subr.mxu0 0.0
      %5140 = vmatpush2.xpose.msra.mxu0 0.0
      %5141 = vmatprep.subr.mxu0 0.0
      %5142 = vmatpush2.xpose.msra.mxu0 0.0
      %5143 = vmatprep.mubr.f32.mxu0 0.0
      %5144 = vmatmul.mubr.f32.gmra.mxu0 %v5075
      %v5145 = vpop.f32.mrf.mxu0
      %v5146 = vadd.f32 0.0, %v5145
      %v5147 = vpop.f32.mrf.mxu0
      %5148 = vdwg.mxu0
      %5149 = vrot.lane.b32.xlu0 %v3928, 104
      %v5150 = vpop.permute.xlu0 %5149
      %5151 = vrot.lane.b32.xlu0 %v4008, 104
      %v5152 = vpop.permute.xlu0 %5151
      %v5153 = vsel %vm1011, %v5150, 0
      %v5155 = vsel %vm1011, %v5152, 0
      %5157 = vmatprep.subr.mxu0 0.0
      %5158 = vmatpush1.xpose.msra.mxu0 0.0
      %5159 = vmatprep.subr.mxu0 0.0
      %5160 = vmatpush1.xpose.msra.mxu0 0.0
      %5161 = vmatprep.subr.mxu0 0.0
      %5162 = vmatpush1.xpose.msra.mxu0 0.0
      %5163 = vmatprep.subr.mxu0 0.0
      %5164 = vmatpush1.xpose.msra.mxu0 0.0
      %5165 = vmatprep.subr.mxu0 0.0
      %5166 = vmatpush1.xpose.msra.mxu0 0.0
      %5167 = vmatprep.subr.mxu0 0.0
      %5168 = vmatpush1.xpose.msra.mxu0 0.0
      %5169 = vmatprep.subr.mxu0 0.0
      %5170 = vmatpush1.xpose.msra.mxu0 0.0
      %5171 = vmatprep.subr.mxu0 0.0
      %5172 = vmatpush1.xpose.msra.mxu0 0.0
      %5173 = vmatprep.subr.mxu0 0.0
      %5174 = vmatpush1.xpose.msra.mxu0 0.0
      %5175 = vmatprep.subr.mxu0 0.0
      %5176 = vmatpush1.xpose.msra.mxu0 0.0
      %5177 = vmatprep.subr.mxu0 0.0
      %5178 = vmatpush1.xpose.msra.mxu0 0.0
      %5179 = vmatprep.subr.mxu0 0.0
      %5180 = vmatpush1.xpose.msra.mxu0 0.0
      %5181 = vmatprep.subr.mxu0 0.0
      %5182 = vmatpush1.xpose.msra.mxu0 0.0
      %5183 = vmatprep.subr.mxu0 0.0
      %5184 = vmatpush1.xpose.msra.mxu0 0.0
      %5185 = vmatprep.subr.mxu0 0.0
      %5186 = vmatpush1.xpose.msra.mxu0 0.0
      %5187 = vmatprep.subr.mxu0 0.0
      %5188 = vmatpush1.xpose.msra.mxu0 %v5155
      %5189 = vmatprep.subr.mxu0 0.0
      %5190 = vmatpush2.xpose.msra.mxu0 0.0
      %5191 = vmatprep.subr.mxu0 0.0
      %5192 = vmatpush2.xpose.msra.mxu0 0.0
      %5193 = vmatprep.subr.mxu0 0.0
      %5194 = vmatpush2.xpose.msra.mxu0 0.0
      %5195 = vmatprep.subr.mxu0 0.0
      %5196 = vmatpush2.xpose.msra.mxu0 0.0
      %5197 = vmatprep.subr.mxu0 0.0
      %5198 = vmatpush2.xpose.msra.mxu0 0.0
      %5199 = vmatprep.subr.mxu0 0.0
      %5200 = vmatpush2.xpose.msra.mxu0 0.0
      %5201 = vmatprep.subr.mxu0 0.0
      %5202 = vmatpush2.xpose.msra.mxu0 0.0
      %5203 = vmatprep.subr.mxu0 0.0
      %5204 = vmatpush2.xpose.msra.mxu0 0.0
      %5205 = vmatprep.subr.mxu0 0.0
      %5206 = vmatpush2.xpose.msra.mxu0 0.0
      %5207 = vmatprep.subr.mxu0 0.0
      %5208 = vmatpush2.xpose.msra.mxu0 0.0
      %5209 = vmatprep.subr.mxu0 0.0
      %5210 = vmatpush2.xpose.msra.mxu0 0.0
      %5211 = vmatprep.subr.mxu0 0.0
      %5212 = vmatpush2.xpose.msra.mxu0 0.0
      %5213 = vmatprep.subr.mxu0 0.0
      %5214 = vmatpush2.xpose.msra.mxu0 0.0
      %5215 = vmatprep.subr.mxu0 0.0
      %5216 = vmatpush2.xpose.msra.mxu0 0.0
      %5217 = vmatprep.subr.mxu0 0.0
      %5218 = vmatpush2.xpose.msra.mxu0 0.0
      %5219 = vmatprep.subr.mxu0 0.0
      %5220 = vmatpush2.xpose.msra.mxu0 0.0
      %5221 = vmatprep.mubr.f32.mxu0 0.0
      %5222 = vmatmul.mubr.f32.gmra.mxu0 %v5153
      %v5223 = vpop.f32.mrf.mxu0
      %v5224 = vadd.f32 0.0, %v5223
      %v5225 = vpop.f32.mrf.mxu0
      %5226 = vdwg.mxu0
      %v5227 = vsel %vm1011, %v5146, -inf
      %5228 = vmax.xlane.f32.xlu0 %v5227
      %v5229 = vpop.xlane.xlu0 %5228
      %v5230 = vsel %vm1011, %v5224, -inf
      %5231 = vmax.xlane.f32.xlu0 %v5230
      %v5232 = vpop.xlane.xlu0 %5231
      %v5233 = vsub.f32 %v5146, %v5229
      %v5234 = vsub.f32 %v5224, %v5232
      %v5235 = vmul.f32 %v5233, 1.442695
      %v5236 = vpow.pop %v5235
      %v5237 = vmul.f32 %v5234, 1.442695
      %v5238 = vpow.pop %v5237
      %v5239 = vsel %vm1011, %v5236, 0.0
      %5240 = vadd.xlane.f32.xlu0 %v5239
      %v5241 = vpop.xlane.xlu0 %5240
      %v5242 = vsel %vm1011, %v5238, 0.0
      %5243 = vadd.xlane.f32.xlu0 %v5242
      %v5244 = vpop.xlane.xlu0 %5243
      %v5245 = vrcp.pop %v5241
      %v5246 = vmul.f32 %v5236, %v5245
      %v5247 = vrcp.pop %v5244
      %v5248 = vmul.f32 %v5238, %v5247
      %5249 = vrot.lane.b32.xlu0 %v4083, 104
      %v5250 = vpop.permute.xlu0 %5249
      %v5253 = vsel %vm1011, %v5246, 0
      %5255 = vmatprep.subr.mxu0 0.0
      %5256 = vmatpush1.msra.mxu0 0.0
      %5257 = vmatprep.subr.mxu0 0.0
      %5258 = vmatpush1.msra.mxu0 0.0
      %5259 = vmatprep.subr.mxu0 0.0
      %5260 = vmatpush1.msra.mxu0 0.0
      %5261 = vmatprep.subr.mxu0 0.0
      %5262 = vmatpush1.msra.mxu0 0.0
      %5263 = vmatprep.subr.mxu0 0.0
      %5264 = vmatpush1.msra.mxu0 0.0
      %5265 = vmatprep.subr.mxu0 0.0
      %5266 = vmatpush1.msra.mxu0 0.0
      %5267 = vmatprep.subr.mxu0 0.0
      %5268 = vmatpush1.msra.mxu0 0.0
      %5269 = vmatprep.subr.mxu0 0.0
      %5270 = vmatpush1.msra.mxu0 0.0
      %5271 = vmatprep.subr.mxu0 0.0
      %5272 = vmatpush1.msra.mxu0 0.0
      %5273 = vmatprep.subr.mxu0 0.0
      %5274 = vmatpush1.msra.mxu0 0.0
      %5275 = vmatprep.subr.mxu0 0.0
      %5276 = vmatpush1.msra.mxu0 0.0
      %5277 = vmatprep.subr.mxu0 0.0
      %5278 = vmatpush1.msra.mxu0 0.0
      %5279 = vmatprep.subr.mxu0 0.0
      %5280 = vmatpush1.msra.mxu0 0.0
      %5281 = vmatprep.subr.mxu0 0.0
      %5282 = vmatpush1.msra.mxu0 0.0
      %5283 = vmatprep.subr.mxu0 0.0
      %5284 = vmatpush1.msra.mxu0 0.0
      %5285 = vmatprep.subr.mxu0 0.0
      %5286 = vmatpush1.msra.mxu0 %v5250
      %5287 = vmatprep.subr.mxu0 0.0
      %5288 = vmatpush2.msra.mxu0 0.0
      %5289 = vmatprep.subr.mxu0 0.0
      %5290 = vmatpush2.msra.mxu0 0.0
      %5291 = vmatprep.subr.mxu0 0.0
      %5292 = vmatpush2.msra.mxu0 0.0
      %5293 = vmatprep.subr.mxu0 0.0
      %5294 = vmatpush2.msra.mxu0 0.0
      %5295 = vmatprep.subr.mxu0 0.0
      %5296 = vmatpush2.msra.mxu0 0.0
      %5297 = vmatprep.subr.mxu0 0.0
      %5298 = vmatpush2.msra.mxu0 0.0
      %5299 = vmatprep.subr.mxu0 0.0
      %5300 = vmatpush2.msra.mxu0 0.0
      %5301 = vmatprep.subr.mxu0 0.0
      %5302 = vmatpush2.msra.mxu0 0.0
      %5303 = vmatprep.subr.mxu0 0.0
      %5304 = vmatpush2.msra.mxu0 0.0
      %5305 = vmatprep.subr.mxu0 0.0
      %5306 = vmatpush2.msra.mxu0 0.0
      %5307 = vmatprep.subr.mxu0 0.0
      %5308 = vmatpush2.msra.mxu0 0.0
      %5309 = vmatprep.subr.mxu0 0.0
      %5310 = vmatpush2.msra.mxu0 0.0
      %5311 = vmatprep.subr.mxu0 0.0
      %5312 = vmatpush2.msra.mxu0 0.0
      %5313 = vmatprep.subr.mxu0 0.0
      %5314 = vmatpush2.msra.mxu0 0.0
      %5315 = vmatprep.subr.mxu0 0.0
      %5316 = vmatpush2.msra.mxu0 0.0
      %5317 = vmatprep.subr.mxu0 0.0
      %5318 = vmatpush2.msra.mxu0 0.0
      %5319 = vmatprep.mubr.f32.mxu0 0.0
      %5320 = vmatmul.mubr.f32.gmra.mxu0 %v5253
      %v5321 = vpop.f32.mrf.mxu0
      %v5322 = vadd.f32 0.0, %v5321
      %v5323 = vpop.f32.mrf.mxu0
      %5324 = vdwg.mxu0
      %5325 = vrot.lane.b32.xlu0 %v4086, 104
      %v5326 = vpop.permute.xlu0 %5325
      %v5329 = vsel %vm1011, %v5248, 0
      %5331 = vmatprep.subr.mxu0 0.0
      %5332 = vmatpush1.msra.mxu0 0.0
      %5333 = vmatprep.subr.mxu0 0.0
      %5334 = vmatpush1.msra.mxu0 0.0
      %5335 = vmatprep.subr.mxu0 0.0
      %5336 = vmatpush1.msra.mxu0 0.0
      %5337 = vmatprep.subr.mxu0 0.0
      %5338 = vmatpush1.msra.mxu0 0.0
      %5339 = vmatprep.subr.mxu0 0.0
      %5340 = vmatpush1.msra.mxu0 0.0
      %5341 = vmatprep.subr.mxu0 0.0
      %5342 = vmatpush1.msra.mxu0 0.0
      %5343 = vmatprep.subr.mxu0 0.0
      %5344 = vmatpush1.msra.mxu0 0.0
      %5345 = vmatprep.subr.mxu0 0.0
      %5346 = vmatpush1.msra.mxu0 0.0
      %5347 = vmatprep.subr.mxu0 0.0
      %5348 = vmatpush1.msra.mxu0 0.0
      %5349 = vmatprep.subr.mxu0 0.0
      %5350 = vmatpush1.msra.mxu0 0.0
      %5351 = vmatprep.subr.mxu0 0.0
      %5352 = vmatpush1.msra.mxu0 0.0
      %5353 = vmatprep.subr.mxu0 0.0
      %5354 = vmatpush1.msra.mxu0 0.0
      %5355 = vmatprep.subr.mxu0 0.0
      %5356 = vmatpush1.msra.mxu0 0.0
      %5357 = vmatprep.subr.mxu0 0.0
      %5358 = vmatpush1.msra.mxu0 0.0
      %5359 = vmatprep.subr.mxu0 0.0
      %5360 = vmatpush1.msra.mxu0 0.0
      %5361 = vmatprep.subr.mxu0 0.0
      %5362 = vmatpush1.msra.mxu0 %v5326
      %5363 = vmatprep.subr.mxu0 0.0
      %5364 = vmatpush2.msra.mxu0 0.0
      %5365 = vmatprep.subr.mxu0 0.0
      %5366 = vmatpush2.msra.mxu0 0.0
      %5367 = vmatprep.subr.mxu0 0.0
      %5368 = vmatpush2.msra.mxu0 0.0
      %5369 = vmatprep.subr.mxu0 0.0
      %5370 = vmatpush2.msra.mxu0 0.0
      %5371 = vmatprep.subr.mxu0 0.0
      %5372 = vmatpush2.msra.mxu0 0.0
      %5373 = vmatprep.subr.mxu0 0.0
      %5374 = vmatpush2.msra.mxu0 0.0
      %5375 = vmatprep.subr.mxu0 0.0
      %5376 = vmatpush2.msra.mxu0 0.0
      %5377 = vmatprep.subr.mxu0 0.0
      %5378 = vmatpush2.msra.mxu0 0.0
      %5379 = vmatprep.subr.mxu0 0.0
      %5380 = vmatpush2.msra.mxu0 0.0
      %5381 = vmatprep.subr.mxu0 0.0
      %5382 = vmatpush2.msra.mxu0 0.0
      %5383 = vmatprep.subr.mxu0 0.0
      %5384 = vmatpush2.msra.mxu0 0.0
      %5385 = vmatprep.subr.mxu0 0.0
      %5386 = vmatpush2.msra.mxu0 0.0
      %5387 = vmatprep.subr.mxu0 0.0
      %5388 = vmatpush2.msra.mxu0 0.0
      %5389 = vmatprep.subr.mxu0 0.0
      %5390 = vmatpush2.msra.mxu0 0.0
      %5391 = vmatprep.subr.mxu0 0.0
      %5392 = vmatpush2.msra.mxu0 0.0
      %5393 = vmatprep.subr.mxu0 0.0
      %5394 = vmatpush2.msra.mxu0 0.0
      %5395 = vmatprep.mubr.f32.mxu0 0.0
      %5396 = vmatmul.mubr.f32.gmra.mxu0 %v5329
      %v5397 = vpop.f32.mrf.mxu0
      %v5398 = vadd.f32 0.0, %v5397
      %v5399 = vpop.f32.mrf.mxu0
      %5400 = vdwg.mxu0
      %5401 = vrot.lane.b32.xlu0 %v3927, 96
      %v5402 = vpop.permute.xlu0 %5401
      %5403 = vrot.lane.b32.xlu0 %v4005, 96
      %v5404 = vpop.permute.xlu0 %5403
      %v5405 = vsel %vm1011, %v5402, 0
      %v5407 = vsel %vm1011, %v5404, 0
      %5409 = vmatprep.subr.mxu0 0.0
      %5410 = vmatpush1.xpose.msra.mxu0 0.0
      %5411 = vmatprep.subr.mxu0 0.0
      %5412 = vmatpush1.xpose.msra.mxu0 0.0
      %5413 = vmatprep.subr.mxu0 0.0
      %5414 = vmatpush1.xpose.msra.mxu0 0.0
      %5415 = vmatprep.subr.mxu0 0.0
      %5416 = vmatpush1.xpose.msra.mxu0 0.0
      %5417 = vmatprep.subr.mxu0 0.0
      %5418 = vmatpush1.xpose.msra.mxu0 0.0
      %5419 = vmatprep.subr.mxu0 0.0
      %5420 = vmatpush1.xpose.msra.mxu0 0.0
      %5421 = vmatprep.subr.mxu0 0.0
      %5422 = vmatpush1.xpose.msra.mxu0 0.0
      %5423 = vmatprep.subr.mxu0 0.0
      %5424 = vmatpush1.xpose.msra.mxu0 0.0
      %5425 = vmatprep.subr.mxu0 0.0
      %5426 = vmatpush1.xpose.msra.mxu0 0.0
      %5427 = vmatprep.subr.mxu0 0.0
      %5428 = vmatpush1.xpose.msra.mxu0 0.0
      %5429 = vmatprep.subr.mxu0 0.0
      %5430 = vmatpush1.xpose.msra.mxu0 0.0
      %5431 = vmatprep.subr.mxu0 0.0
      %5432 = vmatpush1.xpose.msra.mxu0 0.0
      %5433 = vmatprep.subr.mxu0 0.0
      %5434 = vmatpush1.xpose.msra.mxu0 0.0
      %5435 = vmatprep.subr.mxu0 0.0
      %5436 = vmatpush1.xpose.msra.mxu0 0.0
      %5437 = vmatprep.subr.mxu0 0.0
      %5438 = vmatpush1.xpose.msra.mxu0 0.0
      %5439 = vmatprep.subr.mxu0 0.0
      %5440 = vmatpush1.xpose.msra.mxu0 %v5407
      %5441 = vmatprep.subr.mxu0 0.0
      %5442 = vmatpush2.xpose.msra.mxu0 0.0
      %5443 = vmatprep.subr.mxu0 0.0
      %5444 = vmatpush2.xpose.msra.mxu0 0.0
      %5445 = vmatprep.subr.mxu0 0.0
      %5446 = vmatpush2.xpose.msra.mxu0 0.0
      %5447 = vmatprep.subr.mxu0 0.0
      %5448 = vmatpush2.xpose.msra.mxu0 0.0
      %5449 = vmatprep.subr.mxu0 0.0
      %5450 = vmatpush2.xpose.msra.mxu0 0.0
      %5451 = vmatprep.subr.mxu0 0.0
      %5452 = vmatpush2.xpose.msra.mxu0 0.0
      %5453 = vmatprep.subr.mxu0 0.0
      %5454 = vmatpush2.xpose.msra.mxu0 0.0
      %5455 = vmatprep.subr.mxu0 0.0
      %5456 = vmatpush2.xpose.msra.mxu0 0.0
      %5457 = vmatprep.subr.mxu0 0.0
      %5458 = vmatpush2.xpose.msra.mxu0 0.0
      %5459 = vmatprep.subr.mxu0 0.0
      %5460 = vmatpush2.xpose.msra.mxu0 0.0
      %5461 = vmatprep.subr.mxu0 0.0
      %5462 = vmatpush2.xpose.msra.mxu0 0.0
      %5463 = vmatprep.subr.mxu0 0.0
      %5464 = vmatpush2.xpose.msra.mxu0 0.0
      %5465 = vmatprep.subr.mxu0 0.0
      %5466 = vmatpush2.xpose.msra.mxu0 0.0
      %5467 = vmatprep.subr.mxu0 0.0
      %5468 = vmatpush2.xpose.msra.mxu0 0.0
      %5469 = vmatprep.subr.mxu0 0.0
      %5470 = vmatpush2.xpose.msra.mxu0 0.0
      %5471 = vmatprep.subr.mxu0 0.0
      %5472 = vmatpush2.xpose.msra.mxu0 0.0
      %5473 = vmatprep.mubr.f32.mxu0 0.0
      %5474 = vmatmul.mubr.f32.gmra.mxu0 %v5405
      %v5475 = vpop.f32.mrf.mxu0
      %v5476 = vadd.f32 0.0, %v5475
      %v5477 = vpop.f32.mrf.mxu0
      %5478 = vdwg.mxu0
      %5479 = vrot.lane.b32.xlu0 %v3928, 96
      %v5480 = vpop.permute.xlu0 %5479
      %5481 = vrot.lane.b32.xlu0 %v4008, 96
      %v5482 = vpop.permute.xlu0 %5481
      %v5483 = vsel %vm1011, %v5480, 0
      %v5485 = vsel %vm1011, %v5482, 0
      %5487 = vmatprep.subr.mxu0 0.0
      %5488 = vmatpush1.xpose.msra.mxu0 0.0
      %5489 = vmatprep.subr.mxu0 0.0
      %5490 = vmatpush1.xpose.msra.mxu0 0.0
      %5491 = vmatprep.subr.mxu0 0.0
      %5492 = vmatpush1.xpose.msra.mxu0 0.0
      %5493 = vmatprep.subr.mxu0 0.0
      %5494 = vmatpush1.xpose.msra.mxu0 0.0
      %5495 = vmatprep.subr.mxu0 0.0
      %5496 = vmatpush1.xpose.msra.mxu0 0.0
      %5497 = vmatprep.subr.mxu0 0.0
      %5498 = vmatpush1.xpose.msra.mxu0 0.0
      %5499 = vmatprep.subr.mxu0 0.0
      %5500 = vmatpush1.xpose.msra.mxu0 0.0
      %5501 = vmatprep.subr.mxu0 0.0
      %5502 = vmatpush1.xpose.msra.mxu0 0.0
      %5503 = vmatprep.subr.mxu0 0.0
      %5504 = vmatpush1.xpose.msra.mxu0 0.0
      %5505 = vmatprep.subr.mxu0 0.0
      %5506 = vmatpush1.xpose.msra.mxu0 0.0
      %5507 = vmatprep.subr.mxu0 0.0
      %5508 = vmatpush1.xpose.msra.mxu0 0.0
      %5509 = vmatprep.subr.mxu0 0.0
      %5510 = vmatpush1.xpose.msra.mxu0 0.0
      %5511 = vmatprep.subr.mxu0 0.0
      %5512 = vmatpush1.xpose.msra.mxu0 0.0
      %5513 = vmatprep.subr.mxu0 0.0
      %5514 = vmatpush1.xpose.msra.mxu0 0.0
      %5515 = vmatprep.subr.mxu0 0.0
      %5516 = vmatpush1.xpose.msra.mxu0 0.0
      %5517 = vmatprep.subr.mxu0 0.0
      %5518 = vmatpush1.xpose.msra.mxu0 %v5485
      %5519 = vmatprep.subr.mxu0 0.0
      %5520 = vmatpush2.xpose.msra.mxu0 0.0
      %5521 = vmatprep.subr.mxu0 0.0
      %5522 = vmatpush2.xpose.msra.mxu0 0.0
      %5523 = vmatprep.subr.mxu0 0.0
      %5524 = vmatpush2.xpose.msra.mxu0 0.0
      %5525 = vmatprep.subr.mxu0 0.0
      %5526 = vmatpush2.xpose.msra.mxu0 0.0
      %5527 = vmatprep.subr.mxu0 0.0
      %5528 = vmatpush2.xpose.msra.mxu0 0.0
      %5529 = vmatprep.subr.mxu0 0.0
      %5530 = vmatpush2.xpose.msra.mxu0 0.0
      %5531 = vmatprep.subr.mxu0 0.0
      %5532 = vmatpush2.xpose.msra.mxu0 0.0
      %5533 = vmatprep.subr.mxu0 0.0
      %5534 = vmatpush2.xpose.msra.mxu0 0.0
      %5535 = vmatprep.subr.mxu0 0.0
      %5536 = vmatpush2.xpose.msra.mxu0 0.0
      %5537 = vmatprep.subr.mxu0 0.0
      %5538 = vmatpush2.xpose.msra.mxu0 0.0
      %5539 = vmatprep.subr.mxu0 0.0
      %5540 = vmatpush2.xpose.msra.mxu0 0.0
      %5541 = vmatprep.subr.mxu0 0.0
      %5542 = vmatpush2.xpose.msra.mxu0 0.0
      %5543 = vmatprep.subr.mxu0 0.0
      %5544 = vmatpush2.xpose.msra.mxu0 0.0
      %5545 = vmatprep.subr.mxu0 0.0
      %5546 = vmatpush2.xpose.msra.mxu0 0.0
      %5547 = vmatprep.subr.mxu0 0.0
      %5548 = vmatpush2.xpose.msra.mxu0 0.0
      %5549 = vmatprep.subr.mxu0 0.0
      %5550 = vmatpush2.xpose.msra.mxu0 0.0
      %5551 = vmatprep.mubr.f32.mxu0 0.0
      %5552 = vmatmul.mubr.f32.gmra.mxu0 %v5483
      %v5553 = vpop.f32.mrf.mxu0
      %v5554 = vadd.f32 0.0, %v5553
      %v5555 = vpop.f32.mrf.mxu0
      %5556 = vdwg.mxu0
      %v5557 = vsel %vm1011, %v5476, -inf
      %5558 = vmax.xlane.f32.xlu0 %v5557
      %v5559 = vpop.xlane.xlu0 %5558
      %v5560 = vsel %vm1011, %v5554, -inf
      %5561 = vmax.xlane.f32.xlu0 %v5560
      %v5562 = vpop.xlane.xlu0 %5561
      %v5563 = vsub.f32 %v5476, %v5559
      %v5564 = vsub.f32 %v5554, %v5562
      %v5565 = vmul.f32 %v5563, 1.442695
      %v5566 = vpow.pop %v5565
      %v5567 = vmul.f32 %v5564, 1.442695
      %v5568 = vpow.pop %v5567
      %v5569 = vsel %vm1011, %v5566, 0.0
      %5570 = vadd.xlane.f32.xlu0 %v5569
      %v5571 = vpop.xlane.xlu0 %5570
      %v5572 = vsel %vm1011, %v5568, 0.0
      %5573 = vadd.xlane.f32.xlu0 %v5572
      %v5574 = vpop.xlane.xlu0 %5573
      %v5575 = vrcp.pop %v5571
      %v5576 = vmul.f32 %v5566, %v5575
      %v5577 = vrcp.pop %v5574
      %v5578 = vmul.f32 %v5568, %v5577
      %5579 = vrot.lane.b32.xlu0 %v4083, 96
      %v5580 = vpop.permute.xlu0 %5579
      %v5583 = vsel %vm1011, %v5576, 0
      %5585 = vmatprep.subr.mxu0 0.0
      %5586 = vmatpush1.msra.mxu0 0.0
      %5587 = vmatprep.subr.mxu0 0.0
      %5588 = vmatpush1.msra.mxu0 0.0
      %5589 = vmatprep.subr.mxu0 0.0
      %5590 = vmatpush1.msra.mxu0 0.0
      %5591 = vmatprep.subr.mxu0 0.0
      %5592 = vmatpush1.msra.mxu0 0.0
      %5593 = vmatprep.subr.mxu0 0.0
      %5594 = vmatpush1.msra.mxu0 0.0
      %5595 = vmatprep.subr.mxu0 0.0
      %5596 = vmatpush1.msra.mxu0 0.0
      %5597 = vmatprep.subr.mxu0 0.0
      %5598 = vmatpush1.msra.mxu0 0.0
      %5599 = vmatprep.subr.mxu0 0.0
      %5600 = vmatpush1.msra.mxu0 0.0
      %5601 = vmatprep.subr.mxu0 0.0
      %5602 = vmatpush1.msra.mxu0 0.0
      %5603 = vmatprep.subr.mxu0 0.0
      %5604 = vmatpush1.msra.mxu0 0.0
      %5605 = vmatprep.subr.mxu0 0.0
      %5606 = vmatpush1.msra.mxu0 0.0
      %5607 = vmatprep.subr.mxu0 0.0
      %5608 = vmatpush1.msra.mxu0 0.0
      %5609 = vmatprep.subr.mxu0 0.0
      %5610 = vmatpush1.msra.mxu0 0.0
      %5611 = vmatprep.subr.mxu0 0.0
      %5612 = vmatpush1.msra.mxu0 0.0
      %5613 = vmatprep.subr.mxu0 0.0
      %5614 = vmatpush1.msra.mxu0 0.0
      %5615 = vmatprep.subr.mxu0 0.0
      %5616 = vmatpush1.msra.mxu0 %v5580
      %5617 = vmatprep.subr.mxu0 0.0
      %5618 = vmatpush2.msra.mxu0 0.0
      %5619 = vmatprep.subr.mxu0 0.0
      %5620 = vmatpush2.msra.mxu0 0.0
      %5621 = vmatprep.subr.mxu0 0.0
      %5622 = vmatpush2.msra.mxu0 0.0
      %5623 = vmatprep.subr.mxu0 0.0
      %5624 = vmatpush2.msra.mxu0 0.0
      %5625 = vmatprep.subr.mxu0 0.0
      %5626 = vmatpush2.msra.mxu0 0.0
      %5627 = vmatprep.subr.mxu0 0.0
      %5628 = vmatpush2.msra.mxu0 0.0
      %5629 = vmatprep.subr.mxu0 0.0
      %5630 = vmatpush2.msra.mxu0 0.0
      %5631 = vmatprep.subr.mxu0 0.0
      %5632 = vmatpush2.msra.mxu0 0.0
      %5633 = vmatprep.subr.mxu0 0.0
      %5634 = vmatpush2.msra.mxu0 0.0
      %5635 = vmatprep.subr.mxu0 0.0
      %5636 = vmatpush2.msra.mxu0 0.0
      %5637 = vmatprep.subr.mxu0 0.0
      %5638 = vmatpush2.msra.mxu0 0.0
      %5639 = vmatprep.subr.mxu0 0.0
      %5640 = vmatpush2.msra.mxu0 0.0
      %5641 = vmatprep.subr.mxu0 0.0
      %5642 = vmatpush2.msra.mxu0 0.0
      %5643 = vmatprep.subr.mxu0 0.0
      %5644 = vmatpush2.msra.mxu0 0.0
      %5645 = vmatprep.subr.mxu0 0.0
      %5646 = vmatpush2.msra.mxu0 0.0
      %5647 = vmatprep.subr.mxu0 0.0
      %5648 = vmatpush2.msra.mxu0 0.0
      %5649 = vmatprep.mubr.f32.mxu0 0.0
      %5650 = vmatmul.mubr.f32.gmra.mxu0 %v5583
      %v5651 = vpop.f32.mrf.mxu0
      %v5652 = vadd.f32 0.0, %v5651
      %v5653 = vpop.f32.mrf.mxu0
      %5654 = vdwg.mxu0
      %5655 = vrot.lane.b32.xlu0 %v4086, 96
      %v5656 = vpop.permute.xlu0 %5655
      %v5659 = vsel %vm1011, %v5578, 0
      %5661 = vmatprep.subr.mxu0 0.0
      %5662 = vmatpush1.msra.mxu0 0.0
      %5663 = vmatprep.subr.mxu0 0.0
      %5664 = vmatpush1.msra.mxu0 0.0
      %5665 = vmatprep.subr.mxu0 0.0
      %5666 = vmatpush1.msra.mxu0 0.0
      %5667 = vmatprep.subr.mxu0 0.0
      %5668 = vmatpush1.msra.mxu0 0.0
      %5669 = vmatprep.subr.mxu0 0.0
      %5670 = vmatpush1.msra.mxu0 0.0
      %5671 = vmatprep.subr.mxu0 0.0
      %5672 = vmatpush1.msra.mxu0 0.0
      %5673 = vmatprep.subr.mxu0 0.0
      %5674 = vmatpush1.msra.mxu0 0.0
      %5675 = vmatprep.subr.mxu0 0.0
      %5676 = vmatpush1.msra.mxu0 0.0
      %5677 = vmatprep.subr.mxu0 0.0
      %5678 = vmatpush1.msra.mxu0 0.0
      %5679 = vmatprep.subr.mxu0 0.0
      %5680 = vmatpush1.msra.mxu0 0.0
      %5681 = vmatprep.subr.mxu0 0.0
      %5682 = vmatpush1.msra.mxu0 0.0
      %5683 = vmatprep.subr.mxu0 0.0
      %5684 = vmatpush1.msra.mxu0 0.0
      %5685 = vmatprep.subr.mxu0 0.0
      %5686 = vmatpush1.msra.mxu0 0.0
      %5687 = vmatprep.subr.mxu0 0.0
      %5688 = vmatpush1.msra.mxu0 0.0
      %5689 = vmatprep.subr.mxu0 0.0
      %5690 = vmatpush1.msra.mxu0 0.0
      %5691 = vmatprep.subr.mxu0 0.0
      %5692 = vmatpush1.msra.mxu0 %v5656
      %5693 = vmatprep.subr.mxu0 0.0
      %5694 = vmatpush2.msra.mxu0 0.0
      %5695 = vmatprep.subr.mxu0 0.0
      %5696 = vmatpush2.msra.mxu0 0.0
      %5697 = vmatprep.subr.mxu0 0.0
      %5698 = vmatpush2.msra.mxu0 0.0
      %5699 = vmatprep.subr.mxu0 0.0
      %5700 = vmatpush2.msra.mxu0 0.0
      %5701 = vmatprep.subr.mxu0 0.0
      %5702 = vmatpush2.msra.mxu0 0.0
      %5703 = vmatprep.subr.mxu0 0.0
      %5704 = vmatpush2.msra.mxu0 0.0
      %5705 = vmatprep.subr.mxu0 0.0
      %5706 = vmatpush2.msra.mxu0 0.0
      %5707 = vmatprep.subr.mxu0 0.0
      %5708 = vmatpush2.msra.mxu0 0.0
      %5709 = vmatprep.subr.mxu0 0.0
      %5710 = vmatpush2.msra.mxu0 0.0
      %5711 = vmatprep.subr.mxu0 0.0
      %5712 = vmatpush2.msra.mxu0 0.0
      %5713 = vmatprep.subr.mxu0 0.0
      %5714 = vmatpush2.msra.mxu0 0.0
      %5715 = vmatprep.subr.mxu0 0.0
      %5716 = vmatpush2.msra.mxu0 0.0
      %5717 = vmatprep.subr.mxu0 0.0
      %5718 = vmatpush2.msra.mxu0 0.0
      %5719 = vmatprep.subr.mxu0 0.0
      %5720 = vmatpush2.msra.mxu0 0.0
      %5721 = vmatprep.subr.mxu0 0.0
      %5722 = vmatpush2.msra.mxu0 0.0
      %5723 = vmatprep.subr.mxu0 0.0
      %5724 = vmatpush2.msra.mxu0 0.0
      %5725 = vmatprep.mubr.f32.mxu0 0.0
      %5726 = vmatmul.mubr.f32.gmra.mxu0 %v5659
      %v5727 = vpop.f32.mrf.mxu0
      %v5728 = vadd.f32 0.0, %v5727
      %v5729 = vpop.f32.mrf.mxu0
      %5730 = vdwg.mxu0
      %5731 = vrot.lane.b32.xlu0 %v3927, 88
      %v5732 = vpop.permute.xlu0 %5731
      %5733 = vrot.lane.b32.xlu0 %v4005, 88
      %v5734 = vpop.permute.xlu0 %5733
      %v5735 = vsel %vm1011, %v5732, 0
      %v5737 = vsel %vm1011, %v5734, 0
      %5739 = vmatprep.subr.mxu0 0.0
      %5740 = vmatpush1.xpose.msra.mxu0 0.0
      %5741 = vmatprep.subr.mxu0 0.0
      %5742 = vmatpush1.xpose.msra.mxu0 0.0
      %5743 = vmatprep.subr.mxu0 0.0
      %5744 = vmatpush1.xpose.msra.mxu0 0.0
      %5745 = vmatprep.subr.mxu0 0.0
      %5746 = vmatpush1.xpose.msra.mxu0 0.0
      %5747 = vmatprep.subr.mxu0 0.0
      %5748 = vmatpush1.xpose.msra.mxu0 0.0
      %5749 = vmatprep.subr.mxu0 0.0
      %5750 = vmatpush1.xpose.msra.mxu0 0.0
      %5751 = vmatprep.subr.mxu0 0.0
      %5752 = vmatpush1.xpose.msra.mxu0 0.0
      %5753 = vmatprep.subr.mxu0 0.0
      %5754 = vmatpush1.xpose.msra.mxu0 0.0
      %5755 = vmatprep.subr.mxu0 0.0
      %5756 = vmatpush1.xpose.msra.mxu0 0.0
      %5757 = vmatprep.subr.mxu0 0.0
      %5758 = vmatpush1.xpose.msra.mxu0 0.0
      %5759 = vmatprep.subr.mxu0 0.0
      %5760 = vmatpush1.xpose.msra.mxu0 0.0
      %5761 = vmatprep.subr.mxu0 0.0
      %5762 = vmatpush1.xpose.msra.mxu0 0.0
      %5763 = vmatprep.subr.mxu0 0.0
      %5764 = vmatpush1.xpose.msra.mxu0 0.0
      %5765 = vmatprep.subr.mxu0 0.0
      %5766 = vmatpush1.xpose.msra.mxu0 0.0
      %5767 = vmatprep.subr.mxu0 0.0
      %5768 = vmatpush1.xpose.msra.mxu0 0.0
      %5769 = vmatprep.subr.mxu0 0.0
      %5770 = vmatpush1.xpose.msra.mxu0 %v5737
      %5771 = vmatprep.subr.mxu0 0.0
      %5772 = vmatpush2.xpose.msra.mxu0 0.0
      %5773 = vmatprep.subr.mxu0 0.0
      %5774 = vmatpush2.xpose.msra.mxu0 0.0
      %5775 = vmatprep.subr.mxu0 0.0
      %5776 = vmatpush2.xpose.msra.mxu0 0.0
      %5777 = vmatprep.subr.mxu0 0.0
      %5778 = vmatpush2.xpose.msra.mxu0 0.0
      %5779 = vmatprep.subr.mxu0 0.0
      %5780 = vmatpush2.xpose.msra.mxu0 0.0
      %5781 = vmatprep.subr.mxu0 0.0
      %5782 = vmatpush2.xpose.msra.mxu0 0.0
      %5783 = vmatprep.subr.mxu0 0.0
      %5784 = vmatpush2.xpose.msra.mxu0 0.0
      %5785 = vmatprep.subr.mxu0 0.0
      %5786 = vmatpush2.xpose.msra.mxu0 0.0
      %5787 = vmatprep.subr.mxu0 0.0
      %5788 = vmatpush2.xpose.msra.mxu0 0.0
      %5789 = vmatprep.subr.mxu0 0.0
      %5790 = vmatpush2.xpose.msra.mxu0 0.0
      %5791 = vmatprep.subr.mxu0 0.0
      %5792 = vmatpush2.xpose.msra.mxu0 0.0
      %5793 = vmatprep.subr.mxu0 0.0
      %5794 = vmatpush2.xpose.msra.mxu0 0.0
      %5795 = vmatprep.subr.mxu0 0.0
      %5796 = vmatpush2.xpose.msra.mxu0 0.0
      %5797 = vmatprep.subr.mxu0 0.0
      %5798 = vmatpush2.xpose.msra.mxu0 0.0
      %5799 = vmatprep.subr.mxu0 0.0
      %5800 = vmatpush2.xpose.msra.mxu0 0.0
      %5801 = vmatprep.subr.mxu0 0.0
      %5802 = vmatpush2.xpose.msra.mxu0 0.0
      %5803 = vmatprep.mubr.f32.mxu0 0.0
      %5804 = vmatmul.mubr.f32.gmra.mxu0 %v5735
      %v5805 = vpop.f32.mrf.mxu0
      %v5806 = vadd.f32 0.0, %v5805
      %v5807 = vpop.f32.mrf.mxu0
      %5808 = vdwg.mxu0
      %5809 = vrot.lane.b32.xlu0 %v3928, 88
      %v5810 = vpop.permute.xlu0 %5809
      %5811 = vrot.lane.b32.xlu0 %v4008, 88
      %v5812 = vpop.permute.xlu0 %5811
      %v5813 = vsel %vm1011, %v5810, 0
      %v5815 = vsel %vm1011, %v5812, 0
      %5817 = vmatprep.subr.mxu0 0.0
      %5818 = vmatpush1.xpose.msra.mxu0 0.0
      %5819 = vmatprep.subr.mxu0 0.0
      %5820 = vmatpush1.xpose.msra.mxu0 0.0
      %5821 = vmatprep.subr.mxu0 0.0
      %5822 = vmatpush1.xpose.msra.mxu0 0.0
      %5823 = vmatprep.subr.mxu0 0.0
      %5824 = vmatpush1.xpose.msra.mxu0 0.0
      %5825 = vmatprep.subr.mxu0 0.0
      %5826 = vmatpush1.xpose.msra.mxu0 0.0
      %5827 = vmatprep.subr.mxu0 0.0
      %5828 = vmatpush1.xpose.msra.mxu0 0.0
      %5829 = vmatprep.subr.mxu0 0.0
      %5830 = vmatpush1.xpose.msra.mxu0 0.0
      %5831 = vmatprep.subr.mxu0 0.0
      %5832 = vmatpush1.xpose.msra.mxu0 0.0
      %5833 = vmatprep.subr.mxu0 0.0
      %5834 = vmatpush1.xpose.msra.mxu0 0.0
      %5835 = vmatprep.subr.mxu0 0.0
      %5836 = vmatpush1.xpose.msra.mxu0 0.0
      %5837 = vmatprep.subr.mxu0 0.0
      %5838 = vmatpush1.xpose.msra.mxu0 0.0
      %5839 = vmatprep.subr.mxu0 0.0
      %5840 = vmatpush1.xpose.msra.mxu0 0.0
      %5841 = vmatprep.subr.mxu0 0.0
      %5842 = vmatpush1.xpose.msra.mxu0 0.0
      %5843 = vmatprep.subr.mxu0 0.0
      %5844 = vmatpush1.xpose.msra.mxu0 0.0
      %5845 = vmatprep.subr.mxu0 0.0
      %5846 = vmatpush1.xpose.msra.mxu0 0.0
      %5847 = vmatprep.subr.mxu0 0.0
      %5848 = vmatpush1.xpose.msra.mxu0 %v5815
      %5849 = vmatprep.subr.mxu0 0.0
      %5850 = vmatpush2.xpose.msra.mxu0 0.0
      %5851 = vmatprep.subr.mxu0 0.0
      %5852 = vmatpush2.xpose.msra.mxu0 0.0
      %5853 = vmatprep.subr.mxu0 0.0
      %5854 = vmatpush2.xpose.msra.mxu0 0.0
      %5855 = vmatprep.subr.mxu0 0.0
      %5856 = vmatpush2.xpose.msra.mxu0 0.0
      %5857 = vmatprep.subr.mxu0 0.0
      %5858 = vmatpush2.xpose.msra.mxu0 0.0
      %5859 = vmatprep.subr.mxu0 0.0
      %5860 = vmatpush2.xpose.msra.mxu0 0.0
      %5861 = vmatprep.subr.mxu0 0.0
      %5862 = vmatpush2.xpose.msra.mxu0 0.0
      %5863 = vmatprep.subr.mxu0 0.0
      %5864 = vmatpush2.xpose.msra.mxu0 0.0
      %5865 = vmatprep.subr.mxu0 0.0
      %5866 = vmatpush2.xpose.msra.mxu0 0.0
      %5867 = vmatprep.subr.mxu0 0.0
      %5868 = vmatpush2.xpose.msra.mxu0 0.0
      %5869 = vmatprep.subr.mxu0 0.0
      %5870 = vmatpush2.xpose.msra.mxu0 0.0
      %5871 = vmatprep.subr.mxu0 0.0
      %5872 = vmatpush2.xpose.msra.mxu0 0.0
      %5873 = vmatprep.subr.mxu0 0.0
      %5874 = vmatpush2.xpose.msra.mxu0 0.0
      %5875 = vmatprep.subr.mxu0 0.0
      %5876 = vmatpush2.xpose.msra.mxu0 0.0
      %5877 = vmatprep.subr.mxu0 0.0
      %5878 = vmatpush2.xpose.msra.mxu0 0.0
      %5879 = vmatprep.subr.mxu0 0.0
      %5880 = vmatpush2.xpose.msra.mxu0 0.0
      %5881 = vmatprep.mubr.f32.mxu0 0.0
      %5882 = vmatmul.mubr.f32.gmra.mxu0 %v5813
      %v5883 = vpop.f32.mrf.mxu0
      %v5884 = vadd.f32 0.0, %v5883
      %v5885 = vpop.f32.mrf.mxu0
      %5886 = vdwg.mxu0
      %v5887 = vsel %vm1011, %v5806, -inf
      %5888 = vmax.xlane.f32.xlu0 %v5887
      %v5889 = vpop.xlane.xlu0 %5888
      %v5890 = vsel %vm1011, %v5884, -inf
      %5891 = vmax.xlane.f32.xlu0 %v5890
      %v5892 = vpop.xlane.xlu0 %5891
      %v5893 = vsub.f32 %v5806, %v5889
      %v5894 = vsub.f32 %v5884, %v5892
      %v5895 = vmul.f32 %v5893, 1.442695
      %v5896 = vpow.pop %v5895
      %v5897 = vmul.f32 %v5894, 1.442695
      %v5898 = vpow.pop %v5897
      %v5899 = vsel %vm1011, %v5896, 0.0
      %5900 = vadd.xlane.f32.xlu0 %v5899
      %v5901 = vpop.xlane.xlu0 %5900
      %v5902 = vsel %vm1011, %v5898, 0.0
      %5903 = vadd.xlane.f32.xlu0 %v5902
      %v5904 = vpop.xlane.xlu0 %5903
      %v5905 = vrcp.pop %v5901
      %v5906 = vmul.f32 %v5896, %v5905
      %v5907 = vrcp.pop %v5904
      %v5908 = vmul.f32 %v5898, %v5907
      %5909 = vrot.lane.b32.xlu0 %v4083, 88
      %v5910 = vpop.permute.xlu0 %5909
      %v5913 = vsel %vm1011, %v5906, 0
      %5915 = vmatprep.subr.mxu0 0.0
      %5916 = vmatpush1.msra.mxu0 0.0
      %5917 = vmatprep.subr.mxu0 0.0
      %5918 = vmatpush1.msra.mxu0 0.0
      %5919 = vmatprep.subr.mxu0 0.0
      %5920 = vmatpush1.msra.mxu0 0.0
      %5921 = vmatprep.subr.mxu0 0.0
      %5922 = vmatpush1.msra.mxu0 0.0
      %5923 = vmatprep.subr.mxu0 0.0
      %5924 = vmatpush1.msra.mxu0 0.0
      %5925 = vmatprep.subr.mxu0 0.0
      %5926 = vmatpush1.msra.mxu0 0.0
      %5927 = vmatprep.subr.mxu0 0.0
      %5928 = vmatpush1.msra.mxu0 0.0
      %5929 = vmatprep.subr.mxu0 0.0
      %5930 = vmatpush1.msra.mxu0 0.0
      %5931 = vmatprep.subr.mxu0 0.0
      %5932 = vmatpush1.msra.mxu0 0.0
      %5933 = vmatprep.subr.mxu0 0.0
      %5934 = vmatpush1.msra.mxu0 0.0
      %5935 = vmatprep.subr.mxu0 0.0
      %5936 = vmatpush1.msra.mxu0 0.0
      %5937 = vmatprep.subr.mxu0 0.0
      %5938 = vmatpush1.msra.mxu0 0.0
      %5939 = vmatprep.subr.mxu0 0.0
      %5940 = vmatpush1.msra.mxu0 0.0
      %5941 = vmatprep.subr.mxu0 0.0
      %5942 = vmatpush1.msra.mxu0 0.0
      %5943 = vmatprep.subr.mxu0 0.0
      %5944 = vmatpush1.msra.mxu0 0.0
      %5945 = vmatprep.subr.mxu0 0.0
      %5946 = vmatpush1.msra.mxu0 %v5910
      %5947 = vmatprep.subr.mxu0 0.0
      %5948 = vmatpush2.msra.mxu0 0.0
      %5949 = vmatprep.subr.mxu0 0.0
      %5950 = vmatpush2.msra.mxu0 0.0
      %5951 = vmatprep.subr.mxu0 0.0
      %5952 = vmatpush2.msra.mxu0 0.0
      %5953 = vmatprep.subr.mxu0 0.0
      %5954 = vmatpush2.msra.mxu0 0.0
      %5955 = vmatprep.subr.mxu0 0.0
      %5956 = vmatpush2.msra.mxu0 0.0
      %5957 = vmatprep.subr.mxu0 0.0
      %5958 = vmatpush2.msra.mxu0 0.0
      %5959 = vmatprep.subr.mxu0 0.0
      %5960 = vmatpush2.msra.mxu0 0.0
      %5961 = vmatprep.subr.mxu0 0.0
      %5962 = vmatpush2.msra.mxu0 0.0
      %5963 = vmatprep.subr.mxu0 0.0
      %5964 = vmatpush2.msra.mxu0 0.0
      %5965 = vmatprep.subr.mxu0 0.0
      %5966 = vmatpush2.msra.mxu0 0.0
      %5967 = vmatprep.subr.mxu0 0.0
      %5968 = vmatpush2.msra.mxu0 0.0
      %5969 = vmatprep.subr.mxu0 0.0
      %5970 = vmatpush2.msra.mxu0 0.0
      %5971 = vmatprep.subr.mxu0 0.0
      %5972 = vmatpush2.msra.mxu0 0.0
      %5973 = vmatprep.subr.mxu0 0.0
      %5974 = vmatpush2.msra.mxu0 0.0
      %5975 = vmatprep.subr.mxu0 0.0
      %5976 = vmatpush2.msra.mxu0 0.0
      %5977 = vmatprep.subr.mxu0 0.0
      %5978 = vmatpush2.msra.mxu0 0.0
      %5979 = vmatprep.mubr.f32.mxu0 0.0
      %5980 = vmatmul.mubr.f32.gmra.mxu0 %v5913
      %v5981 = vpop.f32.mrf.mxu0
      %v5982 = vadd.f32 0.0, %v5981
      %v5983 = vpop.f32.mrf.mxu0
      %5984 = vdwg.mxu0
      %5985 = vrot.lane.b32.xlu0 %v4086, 88
      %v5986 = vpop.permute.xlu0 %5985
      %v5989 = vsel %vm1011, %v5908, 0
      %5991 = vmatprep.subr.mxu0 0.0
      %5992 = vmatpush1.msra.mxu0 0.0
      %5993 = vmatprep.subr.mxu0 0.0
      %5994 = vmatpush1.msra.mxu0 0.0
      %5995 = vmatprep.subr.mxu0 0.0
      %5996 = vmatpush1.msra.mxu0 0.0
      %5997 = vmatprep.subr.mxu0 0.0
      %5998 = vmatpush1.msra.mxu0 0.0
      %5999 = vmatprep.subr.mxu0 0.0
      %6000 = vmatpush1.msra.mxu0 0.0
      %6001 = vmatprep.subr.mxu0 0.0
      %6002 = vmatpush1.msra.mxu0 0.0
      %6003 = vmatprep.subr.mxu0 0.0
      %6004 = vmatpush1.msra.mxu0 0.0
      %6005 = vmatprep.subr.mxu0 0.0
      %6006 = vmatpush1.msra.mxu0 0.0
      %6007 = vmatprep.subr.mxu0 0.0
      %6008 = vmatpush1.msra.mxu0 0.0
      %6009 = vmatprep.subr.mxu0 0.0
      %6010 = vmatpush1.msra.mxu0 0.0
      %6011 = vmatprep.subr.mxu0 0.0
      %6012 = vmatpush1.msra.mxu0 0.0
      %6013 = vmatprep.subr.mxu0 0.0
      %6014 = vmatpush1.msra.mxu0 0.0
      %6015 = vmatprep.subr.mxu0 0.0
      %6016 = vmatpush1.msra.mxu0 0.0
      %6017 = vmatprep.subr.mxu0 0.0
      %6018 = vmatpush1.msra.mxu0 0.0
      %6019 = vmatprep.subr.mxu0 0.0
      %6020 = vmatpush1.msra.mxu0 0.0
      %6021 = vmatprep.subr.mxu0 0.0
      %6022 = vmatpush1.msra.mxu0 %v5986
      %6023 = vmatprep.subr.mxu0 0.0
      %6024 = vmatpush2.msra.mxu0 0.0
      %6025 = vmatprep.subr.mxu0 0.0
      %6026 = vmatpush2.msra.mxu0 0.0
      %6027 = vmatprep.subr.mxu0 0.0
      %6028 = vmatpush2.msra.mxu0 0.0
      %6029 = vmatprep.subr.mxu0 0.0
      %6030 = vmatpush2.msra.mxu0 0.0
      %6031 = vmatprep.subr.mxu0 0.0
      %6032 = vmatpush2.msra.mxu0 0.0
      %6033 = vmatprep.subr.mxu0 0.0
      %6034 = vmatpush2.msra.mxu0 0.0
      %6035 = vmatprep.subr.mxu0 0.0
      %6036 = vmatpush2.msra.mxu0 0.0
      %6037 = vmatprep.subr.mxu0 0.0
      %6038 = vmatpush2.msra.mxu0 0.0
      %6039 = vmatprep.subr.mxu0 0.0
      %6040 = vmatpush2.msra.mxu0 0.0
      %6041 = vmatprep.subr.mxu0 0.0
      %6042 = vmatpush2.msra.mxu0 0.0
      %6043 = vmatprep.subr.mxu0 0.0
      %6044 = vmatpush2.msra.mxu0 0.0
      %6045 = vmatprep.subr.mxu0 0.0
      %6046 = vmatpush2.msra.mxu0 0.0
      %6047 = vmatprep.subr.mxu0 0.0
      %6048 = vmatpush2.msra.mxu0 0.0
      %6049 = vmatprep.subr.mxu0 0.0
      %6050 = vmatpush2.msra.mxu0 0.0
      %6051 = vmatprep.subr.mxu0 0.0
      %6052 = vmatpush2.msra.mxu0 0.0
      %6053 = vmatprep.subr.mxu0 0.0
      %6054 = vmatpush2.msra.mxu0 0.0
      %6055 = vmatprep.mubr.f32.mxu0 0.0
      %6056 = vmatmul.mubr.f32.gmra.mxu0 %v5989
      %v6057 = vpop.f32.mrf.mxu0
      %v6058 = vadd.f32 0.0, %v6057
      %v6059 = vpop.f32.mrf.mxu0
      %6060 = vdwg.mxu0
      %6061 = vrot.lane.b32.xlu0 %v3927, 80
      %v6062 = vpop.permute.xlu0 %6061
      %6063 = vrot.lane.b32.xlu0 %v4005, 80
      %v6064 = vpop.permute.xlu0 %6063
      %v6065 = vsel %vm1011, %v6062, 0
      %v6067 = vsel %vm1011, %v6064, 0
      %6069 = vmatprep.subr.mxu0 0.0
      %6070 = vmatpush1.xpose.msra.mxu0 0.0
      %6071 = vmatprep.subr.mxu0 0.0
      %6072 = vmatpush1.xpose.msra.mxu0 0.0
      %6073 = vmatprep.subr.mxu0 0.0
      %6074 = vmatpush1.xpose.msra.mxu0 0.0
      %6075 = vmatprep.subr.mxu0 0.0
      %6076 = vmatpush1.xpose.msra.mxu0 0.0
      %6077 = vmatprep.subr.mxu0 0.0
      %6078 = vmatpush1.xpose.msra.mxu0 0.0
      %6079 = vmatprep.subr.mxu0 0.0
      %6080 = vmatpush1.xpose.msra.mxu0 0.0
      %6081 = vmatprep.subr.mxu0 0.0
      %6082 = vmatpush1.xpose.msra.mxu0 0.0
      %6083 = vmatprep.subr.mxu0 0.0
      %6084 = vmatpush1.xpose.msra.mxu0 0.0
      %6085 = vmatprep.subr.mxu0 0.0
      %6086 = vmatpush1.xpose.msra.mxu0 0.0
      %6087 = vmatprep.subr.mxu0 0.0
      %6088 = vmatpush1.xpose.msra.mxu0 0.0
      %6089 = vmatprep.subr.mxu0 0.0
      %6090 = vmatpush1.xpose.msra.mxu0 0.0
      %6091 = vmatprep.subr.mxu0 0.0
      %6092 = vmatpush1.xpose.msra.mxu0 0.0
      %6093 = vmatprep.subr.mxu0 0.0
      %6094 = vmatpush1.xpose.msra.mxu0 0.0
      %6095 = vmatprep.subr.mxu0 0.0
      %6096 = vmatpush1.xpose.msra.mxu0 0.0
      %6097 = vmatprep.subr.mxu0 0.0
      %6098 = vmatpush1.xpose.msra.mxu0 0.0
      %6099 = vmatprep.subr.mxu0 0.0
      %6100 = vmatpush1.xpose.msra.mxu0 %v6067
      %6101 = vmatprep.subr.mxu0 0.0
      %6102 = vmatpush2.xpose.msra.mxu0 0.0
      %6103 = vmatprep.subr.mxu0 0.0
      %6104 = vmatpush2.xpose.msra.mxu0 0.0
      %6105 = vmatprep.subr.mxu0 0.0
      %6106 = vmatpush2.xpose.msra.mxu0 0.0
      %6107 = vmatprep.subr.mxu0 0.0
      %6108 = vmatpush2.xpose.msra.mxu0 0.0
      %6109 = vmatprep.subr.mxu0 0.0
      %6110 = vmatpush2.xpose.msra.mxu0 0.0
      %6111 = vmatprep.subr.mxu0 0.0
      %6112 = vmatpush2.xpose.msra.mxu0 0.0
      %6113 = vmatprep.subr.mxu0 0.0
      %6114 = vmatpush2.xpose.msra.mxu0 0.0
      %6115 = vmatprep.subr.mxu0 0.0
      %6116 = vmatpush2.xpose.msra.mxu0 0.0
      %6117 = vmatprep.subr.mxu0 0.0
      %6118 = vmatpush2.xpose.msra.mxu0 0.0
      %6119 = vmatprep.subr.mxu0 0.0
      %6120 = vmatpush2.xpose.msra.mxu0 0.0
      %6121 = vmatprep.subr.mxu0 0.0
      %6122 = vmatpush2.xpose.msra.mxu0 0.0
      %6123 = vmatprep.subr.mxu0 0.0
      %6124 = vmatpush2.xpose.msra.mxu0 0.0
      %6125 = vmatprep.subr.mxu0 0.0
      %6126 = vmatpush2.xpose.msra.mxu0 0.0
      %6127 = vmatprep.subr.mxu0 0.0
      %6128 = vmatpush2.xpose.msra.mxu0 0.0
      %6129 = vmatprep.subr.mxu0 0.0
      %6130 = vmatpush2.xpose.msra.mxu0 0.0
      %6131 = vmatprep.subr.mxu0 0.0
      %6132 = vmatpush2.xpose.msra.mxu0 0.0
      %6133 = vmatprep.mubr.f32.mxu0 0.0
      %6134 = vmatmul.mubr.f32.gmra.mxu0 %v6065
      %v6135 = vpop.f32.mrf.mxu0
      %v6136 = vadd.f32 0.0, %v6135
      %v6137 = vpop.f32.mrf.mxu0
      %6138 = vdwg.mxu0
      %6139 = vrot.lane.b32.xlu0 %v3928, 80
      %v6140 = vpop.permute.xlu0 %6139
      %6141 = vrot.lane.b32.xlu0 %v4008, 80
      %v6142 = vpop.permute.xlu0 %6141
      %v6143 = vsel %vm1011, %v6140, 0
      %v6145 = vsel %vm1011, %v6142, 0
      %6147 = vmatprep.subr.mxu0 0.0
      %6148 = vmatpush1.xpose.msra.mxu0 0.0
      %6149 = vmatprep.subr.mxu0 0.0
      %6150 = vmatpush1.xpose.msra.mxu0 0.0
      %6151 = vmatprep.subr.mxu0 0.0
      %6152 = vmatpush1.xpose.msra.mxu0 0.0
      %6153 = vmatprep.subr.mxu0 0.0
      %6154 = vmatpush1.xpose.msra.mxu0 0.0
      %6155 = vmatprep.subr.mxu0 0.0
      %6156 = vmatpush1.xpose.msra.mxu0 0.0
      %6157 = vmatprep.subr.mxu0 0.0
      %6158 = vmatpush1.xpose.msra.mxu0 0.0
      %6159 = vmatprep.subr.mxu0 0.0
      %6160 = vmatpush1.xpose.msra.mxu0 0.0
      %6161 = vmatprep.subr.mxu0 0.0
      %6162 = vmatpush1.xpose.msra.mxu0 0.0
      %6163 = vmatprep.subr.mxu0 0.0
      %6164 = vmatpush1.xpose.msra.mxu0 0.0
      %6165 = vmatprep.subr.mxu0 0.0
      %6166 = vmatpush1.xpose.msra.mxu0 0.0
      %6167 = vmatprep.subr.mxu0 0.0
      %6168 = vmatpush1.xpose.msra.mxu0 0.0
      %6169 = vmatprep.subr.mxu0 0.0
      %6170 = vmatpush1.xpose.msra.mxu0 0.0
      %6171 = vmatprep.subr.mxu0 0.0
      %6172 = vmatpush1.xpose.msra.mxu0 0.0
      %6173 = vmatprep.subr.mxu0 0.0
      %6174 = vmatpush1.xpose.msra.mxu0 0.0
      %6175 = vmatprep.subr.mxu0 0.0
      %6176 = vmatpush1.xpose.msra.mxu0 0.0
      %6177 = vmatprep.subr.mxu0 0.0
      %6178 = vmatpush1.xpose.msra.mxu0 %v6145
      %6179 = vmatprep.subr.mxu0 0.0
      %6180 = vmatpush2.xpose.msra.mxu0 0.0
      %6181 = vmatprep.subr.mxu0 0.0
      %6182 = vmatpush2.xpose.msra.mxu0 0.0
      %6183 = vmatprep.subr.mxu0 0.0
      %6184 = vmatpush2.xpose.msra.mxu0 0.0
      %6185 = vmatprep.subr.mxu0 0.0
      %6186 = vmatpush2.xpose.msra.mxu0 0.0
      %6187 = vmatprep.subr.mxu0 0.0
      %6188 = vmatpush2.xpose.msra.mxu0 0.0
      %6189 = vmatprep.subr.mxu0 0.0
      %6190 = vmatpush2.xpose.msra.mxu0 0.0
      %6191 = vmatprep.subr.mxu0 0.0
      %6192 = vmatpush2.xpose.msra.mxu0 0.0
      %6193 = vmatprep.subr.mxu0 0.0
      %6194 = vmatpush2.xpose.msra.mxu0 0.0
      %6195 = vmatprep.subr.mxu0 0.0
      %6196 = vmatpush2.xpose.msra.mxu0 0.0
      %6197 = vmatprep.subr.mxu0 0.0
      %6198 = vmatpush2.xpose.msra.mxu0 0.0
      %6199 = vmatprep.subr.mxu0 0.0
      %6200 = vmatpush2.xpose.msra.mxu0 0.0
      %6201 = vmatprep.subr.mxu0 0.0
      %6202 = vmatpush2.xpose.msra.mxu0 0.0
      %6203 = vmatprep.subr.mxu0 0.0
      %6204 = vmatpush2.xpose.msra.mxu0 0.0
      %6205 = vmatprep.subr.mxu0 0.0
      %6206 = vmatpush2.xpose.msra.mxu0 0.0
      %6207 = vmatprep.subr.mxu0 0.0
      %6208 = vmatpush2.xpose.msra.mxu0 0.0
      %6209 = vmatprep.subr.mxu0 0.0
      %6210 = vmatpush2.xpose.msra.mxu0 0.0
      %6211 = vmatprep.mubr.f32.mxu0 0.0
      %6212 = vmatmul.mubr.f32.gmra.mxu0 %v6143
      %v6213 = vpop.f32.mrf.mxu0
      %v6214 = vadd.f32 0.0, %v6213
      %v6215 = vpop.f32.mrf.mxu0
      %6216 = vdwg.mxu0
      %v6217 = vsel %vm1011, %v6136, -inf
      %6218 = vmax.xlane.f32.xlu0 %v6217
      %v6219 = vpop.xlane.xlu0 %6218
      %v6220 = vsel %vm1011, %v6214, -inf
      %6221 = vmax.xlane.f32.xlu0 %v6220
      %v6222 = vpop.xlane.xlu0 %6221
      %v6223 = vsub.f32 %v6136, %v6219
      %v6224 = vsub.f32 %v6214, %v6222
      %v6225 = vmul.f32 %v6223, 1.442695
      %v6226 = vpow.pop %v6225
      %v6227 = vmul.f32 %v6224, 1.442695
      %v6228 = vpow.pop %v6227
      %v6229 = vsel %vm1011, %v6226, 0.0
      %6230 = vadd.xlane.f32.xlu0 %v6229
      %v6231 = vpop.xlane.xlu0 %6230
      %v6232 = vsel %vm1011, %v6228, 0.0
      %6233 = vadd.xlane.f32.xlu0 %v6232
      %v6234 = vpop.xlane.xlu0 %6233
      %v6235 = vrcp.pop %v6231
      %v6236 = vmul.f32 %v6226, %v6235
      %v6237 = vrcp.pop %v6234
      %v6238 = vmul.f32 %v6228, %v6237
      %6239 = vrot.lane.b32.xlu0 %v4083, 80
      %v6240 = vpop.permute.xlu0 %6239
      %v6243 = vsel %vm1011, %v6236, 0
      %6245 = vmatprep.subr.mxu0 0.0
      %6246 = vmatpush1.msra.mxu0 0.0
      %6247 = vmatprep.subr.mxu0 0.0
      %6248 = vmatpush1.msra.mxu0 0.0
      %6249 = vmatprep.subr.mxu0 0.0
      %6250 = vmatpush1.msra.mxu0 0.0
      %6251 = vmatprep.subr.mxu0 0.0
      %6252 = vmatpush1.msra.mxu0 0.0
      %6253 = vmatprep.subr.mxu0 0.0
      %6254 = vmatpush1.msra.mxu0 0.0
      %6255 = vmatprep.subr.mxu0 0.0
      %6256 = vmatpush1.msra.mxu0 0.0
      %6257 = vmatprep.subr.mxu0 0.0
      %6258 = vmatpush1.msra.mxu0 0.0
      %6259 = vmatprep.subr.mxu0 0.0
      %6260 = vmatpush1.msra.mxu0 0.0
      %6261 = vmatprep.subr.mxu0 0.0
      %6262 = vmatpush1.msra.mxu0 0.0
      %6263 = vmatprep.subr.mxu0 0.0
      %6264 = vmatpush1.msra.mxu0 0.0
      %6265 = vmatprep.subr.mxu0 0.0
      %6266 = vmatpush1.msra.mxu0 0.0
      %6267 = vmatprep.subr.mxu0 0.0
      %6268 = vmatpush1.msra.mxu0 0.0
      %6269 = vmatprep.subr.mxu0 0.0
      %6270 = vmatpush1.msra.mxu0 0.0
      %6271 = vmatprep.subr.mxu0 0.0
      %6272 = vmatpush1.msra.mxu0 0.0
      %6273 = vmatprep.subr.mxu0 0.0
      %6274 = vmatpush1.msra.mxu0 0.0
      %6275 = vmatprep.subr.mxu0 0.0
      %6276 = vmatpush1.msra.mxu0 %v6240
      %6277 = vmatprep.subr.mxu0 0.0
      %6278 = vmatpush2.msra.mxu0 0.0
      %6279 = vmatprep.subr.mxu0 0.0
      %6280 = vmatpush2.msra.mxu0 0.0
      %6281 = vmatprep.subr.mxu0 0.0
      %6282 = vmatpush2.msra.mxu0 0.0
      %6283 = vmatprep.subr.mxu0 0.0
      %6284 = vmatpush2.msra.mxu0 0.0
      %6285 = vmatprep.subr.mxu0 0.0
      %6286 = vmatpush2.msra.mxu0 0.0
      %6287 = vmatprep.subr.mxu0 0.0
      %6288 = vmatpush2.msra.mxu0 0.0
      %6289 = vmatprep.subr.mxu0 0.0
      %6290 = vmatpush2.msra.mxu0 0.0
      %6291 = vmatprep.subr.mxu0 0.0
      %6292 = vmatpush2.msra.mxu0 0.0
      %6293 = vmatprep.subr.mxu0 0.0
      %6294 = vmatpush2.msra.mxu0 0.0
      %6295 = vmatprep.subr.mxu0 0.0
      %6296 = vmatpush2.msra.mxu0 0.0
      %6297 = vmatprep.subr.mxu0 0.0
      %6298 = vmatpush2.msra.mxu0 0.0
      %6299 = vmatprep.subr.mxu0 0.0
      %6300 = vmatpush2.msra.mxu0 0.0
      %6301 = vmatprep.subr.mxu0 0.0
      %6302 = vmatpush2.msra.mxu0 0.0
      %6303 = vmatprep.subr.mxu0 0.0
      %6304 = vmatpush2.msra.mxu0 0.0
      %6305 = vmatprep.subr.mxu0 0.0
      %6306 = vmatpush2.msra.mxu0 0.0
      %6307 = vmatprep.subr.mxu0 0.0
      %6308 = vmatpush2.msra.mxu0 0.0
      %6309 = vmatprep.mubr.f32.mxu0 0.0
      %6310 = vmatmul.mubr.f32.gmra.mxu0 %v6243
      %v6311 = vpop.f32.mrf.mxu0
      %v6312 = vadd.f32 0.0, %v6311
      %v6313 = vpop.f32.mrf.mxu0
      %6314 = vdwg.mxu0
      %6315 = vrot.lane.b32.xlu0 %v4086, 80
      %v6316 = vpop.permute.xlu0 %6315
      %v6319 = vsel %vm1011, %v6238, 0
      %6321 = vmatprep.subr.mxu0 0.0
      %6322 = vmatpush1.msra.mxu0 0.0
      %6323 = vmatprep.subr.mxu0 0.0
      %6324 = vmatpush1.msra.mxu0 0.0
      %6325 = vmatprep.subr.mxu0 0.0
      %6326 = vmatpush1.msra.mxu0 0.0
      %6327 = vmatprep.subr.mxu0 0.0
      %6328 = vmatpush1.msra.mxu0 0.0
      %6329 = vmatprep.subr.mxu0 0.0
      %6330 = vmatpush1.msra.mxu0 0.0
      %6331 = vmatprep.subr.mxu0 0.0
      %6332 = vmatpush1.msra.mxu0 0.0
      %6333 = vmatprep.subr.mxu0 0.0
      %6334 = vmatpush1.msra.mxu0 0.0
      %6335 = vmatprep.subr.mxu0 0.0
      %6336 = vmatpush1.msra.mxu0 0.0
      %6337 = vmatprep.subr.mxu0 0.0
      %6338 = vmatpush1.msra.mxu0 0.0
      %6339 = vmatprep.subr.mxu0 0.0
      %6340 = vmatpush1.msra.mxu0 0.0
      %6341 = vmatprep.subr.mxu0 0.0
      %6342 = vmatpush1.msra.mxu0 0.0
      %6343 = vmatprep.subr.mxu0 0.0
      %6344 = vmatpush1.msra.mxu0 0.0
      %6345 = vmatprep.subr.mxu0 0.0
      %6346 = vmatpush1.msra.mxu0 0.0
      %6347 = vmatprep.subr.mxu0 0.0
      %6348 = vmatpush1.msra.mxu0 0.0
      %6349 = vmatprep.subr.mxu0 0.0
      %6350 = vmatpush1.msra.mxu0 0.0
      %6351 = vmatprep.subr.mxu0 0.0
      %6352 = vmatpush1.msra.mxu0 %v6316
      %6353 = vmatprep.subr.mxu0 0.0
      %6354 = vmatpush2.msra.mxu0 0.0
      %6355 = vmatprep.subr.mxu0 0.0
      %6356 = vmatpush2.msra.mxu0 0.0
      %6357 = vmatprep.subr.mxu0 0.0
      %6358 = vmatpush2.msra.mxu0 0.0
      %6359 = vmatprep.subr.mxu0 0.0
      %6360 = vmatpush2.msra.mxu0 0.0
      %6361 = vmatprep.subr.mxu0 0.0
      %6362 = vmatpush2.msra.mxu0 0.0
      %6363 = vmatprep.subr.mxu0 0.0
      %6364 = vmatpush2.msra.mxu0 0.0
      %6365 = vmatprep.subr.mxu0 0.0
      %6366 = vmatpush2.msra.mxu0 0.0
      %6367 = vmatprep.subr.mxu0 0.0
      %6368 = vmatpush2.msra.mxu0 0.0
      %6369 = vmatprep.subr.mxu0 0.0
      %6370 = vmatpush2.msra.mxu0 0.0
      %6371 = vmatprep.subr.mxu0 0.0
      %6372 = vmatpush2.msra.mxu0 0.0
      %6373 = vmatprep.subr.mxu0 0.0
      %6374 = vmatpush2.msra.mxu0 0.0
      %6375 = vmatprep.subr.mxu0 0.0
      %6376 = vmatpush2.msra.mxu0 0.0
      %6377 = vmatprep.subr.mxu0 0.0
      %6378 = vmatpush2.msra.mxu0 0.0
      %6379 = vmatprep.subr.mxu0 0.0
      %6380 = vmatpush2.msra.mxu0 0.0
      %6381 = vmatprep.subr.mxu0 0.0
      %6382 = vmatpush2.msra.mxu0 0.0
      %6383 = vmatprep.subr.mxu0 0.0
      %6384 = vmatpush2.msra.mxu0 0.0
      %6385 = vmatprep.mubr.f32.mxu0 0.0
      %6386 = vmatmul.mubr.f32.gmra.mxu0 %v6319
      %v6387 = vpop.f32.mrf.mxu0
      %v6388 = vadd.f32 0.0, %v6387
      %v6389 = vpop.f32.mrf.mxu0
      %6390 = vdwg.mxu0
      %6391 = vrot.lane.b32.xlu0 %v3927, 72
      %v6392 = vpop.permute.xlu0 %6391
      %6393 = vrot.lane.b32.xlu0 %v4005, 72
      %v6394 = vpop.permute.xlu0 %6393
      %v6395 = vsel %vm1011, %v6392, 0
      %v6397 = vsel %vm1011, %v6394, 0
      %6399 = vmatprep.subr.mxu0 0.0
      %6400 = vmatpush1.xpose.msra.mxu0 0.0
      %6401 = vmatprep.subr.mxu0 0.0
      %6402 = vmatpush1.xpose.msra.mxu0 0.0
      %6403 = vmatprep.subr.mxu0 0.0
      %6404 = vmatpush1.xpose.msra.mxu0 0.0
      %6405 = vmatprep.subr.mxu0 0.0
      %6406 = vmatpush1.xpose.msra.mxu0 0.0
      %6407 = vmatprep.subr.mxu0 0.0
      %6408 = vmatpush1.xpose.msra.mxu0 0.0
      %6409 = vmatprep.subr.mxu0 0.0
      %6410 = vmatpush1.xpose.msra.mxu0 0.0
      %6411 = vmatprep.subr.mxu0 0.0
      %6412 = vmatpush1.xpose.msra.mxu0 0.0
      %6413 = vmatprep.subr.mxu0 0.0
      %6414 = vmatpush1.xpose.msra.mxu0 0.0
      %6415 = vmatprep.subr.mxu0 0.0
      %6416 = vmatpush1.xpose.msra.mxu0 0.0
      %6417 = vmatprep.subr.mxu0 0.0
      %6418 = vmatpush1.xpose.msra.mxu0 0.0
      %6419 = vmatprep.subr.mxu0 0.0
      %6420 = vmatpush1.xpose.msra.mxu0 0.0
      %6421 = vmatprep.subr.mxu0 0.0
      %6422 = vmatpush1.xpose.msra.mxu0 0.0
      %6423 = vmatprep.subr.mxu0 0.0
      %6424 = vmatpush1.xpose.msra.mxu0 0.0
      %6425 = vmatprep.subr.mxu0 0.0
      %6426 = vmatpush1.xpose.msra.mxu0 0.0
      %6427 = vmatprep.subr.mxu0 0.0
      %6428 = vmatpush1.xpose.msra.mxu0 0.0
      %6429 = vmatprep.subr.mxu0 0.0
      %6430 = vmatpush1.xpose.msra.mxu0 %v6397
      %6431 = vmatprep.subr.mxu0 0.0
      %6432 = vmatpush2.xpose.msra.mxu0 0.0
      %6433 = vmatprep.subr.mxu0 0.0
      %6434 = vmatpush2.xpose.msra.mxu0 0.0
      %6435 = vmatprep.subr.mxu0 0.0
      %6436 = vmatpush2.xpose.msra.mxu0 0.0
      %6437 = vmatprep.subr.mxu0 0.0
      %6438 = vmatpush2.xpose.msra.mxu0 0.0
      %6439 = vmatprep.subr.mxu0 0.0
      %6440 = vmatpush2.xpose.msra.mxu0 0.0
      %6441 = vmatprep.subr.mxu0 0.0
      %6442 = vmatpush2.xpose.msra.mxu0 0.0
      %6443 = vmatprep.subr.mxu0 0.0
      %6444 = vmatpush2.xpose.msra.mxu0 0.0
      %6445 = vmatprep.subr.mxu0 0.0
      %6446 = vmatpush2.xpose.msra.mxu0 0.0
      %6447 = vmatprep.subr.mxu0 0.0
      %6448 = vmatpush2.xpose.msra.mxu0 0.0
      %6449 = vmatprep.subr.mxu0 0.0
      %6450 = vmatpush2.xpose.msra.mxu0 0.0
      %6451 = vmatprep.subr.mxu0 0.0
      %6452 = vmatpush2.xpose.msra.mxu0 0.0
      %6453 = vmatprep.subr.mxu0 0.0
      %6454 = vmatpush2.xpose.msra.mxu0 0.0
      %6455 = vmatprep.subr.mxu0 0.0
      %6456 = vmatpush2.xpose.msra.mxu0 0.0
      %6457 = vmatprep.subr.mxu0 0.0
      %6458 = vmatpush2.xpose.msra.mxu0 0.0
      %6459 = vmatprep.subr.mxu0 0.0
      %6460 = vmatpush2.xpose.msra.mxu0 0.0
      %6461 = vmatprep.subr.mxu0 0.0
      %6462 = vmatpush2.xpose.msra.mxu0 0.0
      %6463 = vmatprep.mubr.f32.mxu0 0.0
      %6464 = vmatmul.mubr.f32.gmra.mxu0 %v6395
      %v6465 = vpop.f32.mrf.mxu0
      %v6466 = vadd.f32 0.0, %v6465
      %v6467 = vpop.f32.mrf.mxu0
      %6468 = vdwg.mxu0
      %6469 = vrot.lane.b32.xlu0 %v3928, 72
      %v6470 = vpop.permute.xlu0 %6469
      %6471 = vrot.lane.b32.xlu0 %v4008, 72
      %v6472 = vpop.permute.xlu0 %6471
      %v6473 = vsel %vm1011, %v6470, 0
      %v6475 = vsel %vm1011, %v6472, 0
      %6477 = vmatprep.subr.mxu0 0.0
      %6478 = vmatpush1.xpose.msra.mxu0 0.0
      %6479 = vmatprep.subr.mxu0 0.0
      %6480 = vmatpush1.xpose.msra.mxu0 0.0
      %6481 = vmatprep.subr.mxu0 0.0
      %6482 = vmatpush1.xpose.msra.mxu0 0.0
      %6483 = vmatprep.subr.mxu0 0.0
      %6484 = vmatpush1.xpose.msra.mxu0 0.0
      %6485 = vmatprep.subr.mxu0 0.0
      %6486 = vmatpush1.xpose.msra.mxu0 0.0
      %6487 = vmatprep.subr.mxu0 0.0
      %6488 = vmatpush1.xpose.msra.mxu0 0.0
      %6489 = vmatprep.subr.mxu0 0.0
      %6490 = vmatpush1.xpose.msra.mxu0 0.0
      %6491 = vmatprep.subr.mxu0 0.0
      %6492 = vmatpush1.xpose.msra.mxu0 0.0
      %6493 = vmatprep.subr.mxu0 0.0
      %6494 = vmatpush1.xpose.msra.mxu0 0.0
      %6495 = vmatprep.subr.mxu0 0.0
      %6496 = vmatpush1.xpose.msra.mxu0 0.0
      %6497 = vmatprep.subr.mxu0 0.0
      %6498 = vmatpush1.xpose.msra.mxu0 0.0
      %6499 = vmatprep.subr.mxu0 0.0
      %6500 = vmatpush1.xpose.msra.mxu0 0.0
      %6501 = vmatprep.subr.mxu0 0.0
      %6502 = vmatpush1.xpose.msra.mxu0 0.0
      %6503 = vmatprep.subr.mxu0 0.0
      %6504 = vmatpush1.xpose.msra.mxu0 0.0
      %6505 = vmatprep.subr.mxu0 0.0
      %6506 = vmatpush1.xpose.msra.mxu0 0.0
      %6507 = vmatprep.subr.mxu0 0.0
      %6508 = vmatpush1.xpose.msra.mxu0 %v6475
      %6509 = vmatprep.subr.mxu0 0.0
      %6510 = vmatpush2.xpose.msra.mxu0 0.0
      %6511 = vmatprep.subr.mxu0 0.0
      %6512 = vmatpush2.xpose.msra.mxu0 0.0
      %6513 = vmatprep.subr.mxu0 0.0
      %6514 = vmatpush2.xpose.msra.mxu0 0.0
      %6515 = vmatprep.subr.mxu0 0.0
      %6516 = vmatpush2.xpose.msra.mxu0 0.0
      %6517 = vmatprep.subr.mxu0 0.0
      %6518 = vmatpush2.xpose.msra.mxu0 0.0
      %6519 = vmatprep.subr.mxu0 0.0
      %6520 = vmatpush2.xpose.msra.mxu0 0.0
      %6521 = vmatprep.subr.mxu0 0.0
      %6522 = vmatpush2.xpose.msra.mxu0 0.0
      %6523 = vmatprep.subr.mxu0 0.0
      %6524 = vmatpush2.xpose.msra.mxu0 0.0
      %6525 = vmatprep.subr.mxu0 0.0
      %6526 = vmatpush2.xpose.msra.mxu0 0.0
      %6527 = vmatprep.subr.mxu0 0.0
      %6528 = vmatpush2.xpose.msra.mxu0 0.0
      %6529 = vmatprep.subr.mxu0 0.0
      %6530 = vmatpush2.xpose.msra.mxu0 0.0
      %6531 = vmatprep.subr.mxu0 0.0
      %6532 = vmatpush2.xpose.msra.mxu0 0.0
      %6533 = vmatprep.subr.mxu0 0.0
      %6534 = vmatpush2.xpose.msra.mxu0 0.0
      %6535 = vmatprep.subr.mxu0 0.0
      %6536 = vmatpush2.xpose.msra.mxu0 0.0
      %6537 = vmatprep.subr.mxu0 0.0
      %6538 = vmatpush2.xpose.msra.mxu0 0.0
      %6539 = vmatprep.subr.mxu0 0.0
      %6540 = vmatpush2.xpose.msra.mxu0 0.0
      %6541 = vmatprep.mubr.f32.mxu0 0.0
      %6542 = vmatmul.mubr.f32.gmra.mxu0 %v6473
      %v6543 = vpop.f32.mrf.mxu0
      %v6544 = vadd.f32 0.0, %v6543
      %v6545 = vpop.f32.mrf.mxu0
      %6546 = vdwg.mxu0
      %v6547 = vsel %vm1011, %v6466, -inf
      %6548 = vmax.xlane.f32.xlu0 %v6547
      %v6549 = vpop.xlane.xlu0 %6548
      %v6550 = vsel %vm1011, %v6544, -inf
      %6551 = vmax.xlane.f32.xlu0 %v6550
      %v6552 = vpop.xlane.xlu0 %6551
      %v6553 = vsub.f32 %v6466, %v6549
      %v6554 = vsub.f32 %v6544, %v6552
      %v6555 = vmul.f32 %v6553, 1.442695
      %v6556 = vpow.pop %v6555
      %v6557 = vmul.f32 %v6554, 1.442695
      %v6558 = vpow.pop %v6557
      %v6559 = vsel %vm1011, %v6556, 0.0
      %6560 = vadd.xlane.f32.xlu0 %v6559
      %v6561 = vpop.xlane.xlu0 %6560
      %v6562 = vsel %vm1011, %v6558, 0.0
      %6563 = vadd.xlane.f32.xlu0 %v6562
      %v6564 = vpop.xlane.xlu0 %6563
      %v6565 = vrcp.pop %v6561
      %v6566 = vmul.f32 %v6556, %v6565
      %v6567 = vrcp.pop %v6564
      %v6568 = vmul.f32 %v6558, %v6567
      %6569 = vrot.lane.b32.xlu0 %v4083, 72
      %v6570 = vpop.permute.xlu0 %6569
      %v6573 = vsel %vm1011, %v6566, 0
      %6575 = vmatprep.subr.mxu0 0.0
      %6576 = vmatpush1.msra.mxu0 0.0
      %6577 = vmatprep.subr.mxu0 0.0
      %6578 = vmatpush1.msra.mxu0 0.0
      %6579 = vmatprep.subr.mxu0 0.0
      %6580 = vmatpush1.msra.mxu0 0.0
      %6581 = vmatprep.subr.mxu0 0.0
      %6582 = vmatpush1.msra.mxu0 0.0
      %6583 = vmatprep.subr.mxu0 0.0
      %6584 = vmatpush1.msra.mxu0 0.0
      %6585 = vmatprep.subr.mxu0 0.0
      %6586 = vmatpush1.msra.mxu0 0.0
      %6587 = vmatprep.subr.mxu0 0.0
      %6588 = vmatpush1.msra.mxu0 0.0
      %6589 = vmatprep.subr.mxu0 0.0
      %6590 = vmatpush1.msra.mxu0 0.0
      %6591 = vmatprep.subr.mxu0 0.0
      %6592 = vmatpush1.msra.mxu0 0.0
      %6593 = vmatprep.subr.mxu0 0.0
      %6594 = vmatpush1.msra.mxu0 0.0
      %6595 = vmatprep.subr.mxu0 0.0
      %6596 = vmatpush1.msra.mxu0 0.0
      %6597 = vmatprep.subr.mxu0 0.0
      %6598 = vmatpush1.msra.mxu0 0.0
      %6599 = vmatprep.subr.mxu0 0.0
      %6600 = vmatpush1.msra.mxu0 0.0
      %6601 = vmatprep.subr.mxu0 0.0
      %6602 = vmatpush1.msra.mxu0 0.0
      %6603 = vmatprep.subr.mxu0 0.0
      %6604 = vmatpush1.msra.mxu0 0.0
      %6605 = vmatprep.subr.mxu0 0.0
      %6606 = vmatpush1.msra.mxu0 %v6570
      %6607 = vmatprep.subr.mxu0 0.0
      %6608 = vmatpush2.msra.mxu0 0.0
      %6609 = vmatprep.subr.mxu0 0.0
      %6610 = vmatpush2.msra.mxu0 0.0
      %6611 = vmatprep.subr.mxu0 0.0
      %6612 = vmatpush2.msra.mxu0 0.0
      %6613 = vmatprep.subr.mxu0 0.0
      %6614 = vmatpush2.msra.mxu0 0.0
      %6615 = vmatprep.subr.mxu0 0.0
      %6616 = vmatpush2.msra.mxu0 0.0
      %6617 = vmatprep.subr.mxu0 0.0
      %6618 = vmatpush2.msra.mxu0 0.0
      %6619 = vmatprep.subr.mxu0 0.0
      %6620 = vmatpush2.msra.mxu0 0.0
      %6621 = vmatprep.subr.mxu0 0.0
      %6622 = vmatpush2.msra.mxu0 0.0
      %6623 = vmatprep.subr.mxu0 0.0
      %6624 = vmatpush2.msra.mxu0 0.0
      %6625 = vmatprep.subr.mxu0 0.0
      %6626 = vmatpush2.msra.mxu0 0.0
      %6627 = vmatprep.subr.mxu0 0.0
      %6628 = vmatpush2.msra.mxu0 0.0
      %6629 = vmatprep.subr.mxu0 0.0
      %6630 = vmatpush2.msra.mxu0 0.0
      %6631 = vmatprep.subr.mxu0 0.0
      %6632 = vmatpush2.msra.mxu0 0.0
      %6633 = vmatprep.subr.mxu0 0.0
      %6634 = vmatpush2.msra.mxu0 0.0
      %6635 = vmatprep.subr.mxu0 0.0
      %6636 = vmatpush2.msra.mxu0 0.0
      %6637 = vmatprep.subr.mxu0 0.0
      %6638 = vmatpush2.msra.mxu0 0.0
      %6639 = vmatprep.mubr.f32.mxu0 0.0
      %6640 = vmatmul.mubr.f32.gmra.mxu0 %v6573
      %v6641 = vpop.f32.mrf.mxu0
      %v6642 = vadd.f32 0.0, %v6641
      %v6643 = vpop.f32.mrf.mxu0
      %6644 = vdwg.mxu0
      %6645 = vrot.lane.b32.xlu0 %v4086, 72
      %v6646 = vpop.permute.xlu0 %6645
      %v6649 = vsel %vm1011, %v6568, 0
      %6651 = vmatprep.subr.mxu0 0.0
      %6652 = vmatpush1.msra.mxu0 0.0
      %6653 = vmatprep.subr.mxu0 0.0
      %6654 = vmatpush1.msra.mxu0 0.0
      %6655 = vmatprep.subr.mxu0 0.0
      %6656 = vmatpush1.msra.mxu0 0.0
      %6657 = vmatprep.subr.mxu0 0.0
      %6658 = vmatpush1.msra.mxu0 0.0
      %6659 = vmatprep.subr.mxu0 0.0
      %6660 = vmatpush1.msra.mxu0 0.0
      %6661 = vmatprep.subr.mxu0 0.0
      %6662 = vmatpush1.msra.mxu0 0.0
      %6663 = vmatprep.subr.mxu0 0.0
      %6664 = vmatpush1.msra.mxu0 0.0
      %6665 = vmatprep.subr.mxu0 0.0
      %6666 = vmatpush1.msra.mxu0 0.0
      %6667 = vmatprep.subr.mxu0 0.0
      %6668 = vmatpush1.msra.mxu0 0.0
      %6669 = vmatprep.subr.mxu0 0.0
      %6670 = vmatpush1.msra.mxu0 0.0
      %6671 = vmatprep.subr.mxu0 0.0
      %6672 = vmatpush1.msra.mxu0 0.0
      %6673 = vmatprep.subr.mxu0 0.0
      %6674 = vmatpush1.msra.mxu0 0.0
      %6675 = vmatprep.subr.mxu0 0.0
      %6676 = vmatpush1.msra.mxu0 0.0
      %6677 = vmatprep.subr.mxu0 0.0
      %6678 = vmatpush1.msra.mxu0 0.0
      %6679 = vmatprep.subr.mxu0 0.0
      %6680 = vmatpush1.msra.mxu0 0.0
      %6681 = vmatprep.subr.mxu0 0.0
      %6682 = vmatpush1.msra.mxu0 %v6646
      %6683 = vmatprep.subr.mxu0 0.0
      %6684 = vmatpush2.msra.mxu0 0.0
      %6685 = vmatprep.subr.mxu0 0.0
      %6686 = vmatpush2.msra.mxu0 0.0
      %6687 = vmatprep.subr.mxu0 0.0
      %6688 = vmatpush2.msra.mxu0 0.0
      %6689 = vmatprep.subr.mxu0 0.0
      %6690 = vmatpush2.msra.mxu0 0.0
      %6691 = vmatprep.subr.mxu0 0.0
      %6692 = vmatpush2.msra.mxu0 0.0
      %6693 = vmatprep.subr.mxu0 0.0
      %6694 = vmatpush2.msra.mxu0 0.0
      %6695 = vmatprep.subr.mxu0 0.0
      %6696 = vmatpush2.msra.mxu0 0.0
      %6697 = vmatprep.subr.mxu0 0.0
      %6698 = vmatpush2.msra.mxu0 0.0
      %6699 = vmatprep.subr.mxu0 0.0
      %6700 = vmatpush2.msra.mxu0 0.0
      %6701 = vmatprep.subr.mxu0 0.0
      %6702 = vmatpush2.msra.mxu0 0.0
      %6703 = vmatprep.subr.mxu0 0.0
      %6704 = vmatpush2.msra.mxu0 0.0
      %6705 = vmatprep.subr.mxu0 0.0
      %6706 = vmatpush2.msra.mxu0 0.0
      %6707 = vmatprep.subr.mxu0 0.0
      %6708 = vmatpush2.msra.mxu0 0.0
      %6709 = vmatprep.subr.mxu0 0.0
      %6710 = vmatpush2.msra.mxu0 0.0
      %6711 = vmatprep.subr.mxu0 0.0
      %6712 = vmatpush2.msra.mxu0 0.0
      %6713 = vmatprep.subr.mxu0 0.0
      %6714 = vmatpush2.msra.mxu0 0.0
      %6715 = vmatprep.mubr.f32.mxu0 0.0
      %6716 = vmatmul.mubr.f32.gmra.mxu0 %v6649
      %v6717 = vpop.f32.mrf.mxu0
      %v6718 = vadd.f32 0.0, %v6717
      %v6719 = vpop.f32.mrf.mxu0
      %6720 = vdwg.mxu0
      %6723 = vrot.lane.b32.xlu0 %v4661, 8
      %v6724 = vpop.permute.xlu0 %6723
      %6725 = vrot.lane.b32.xlu0 %v4738, 8
      %v6726 = vpop.permute.xlu0 %6725
      %6731 = vrot.lane.b32.xlu0 %v4992, 16
      %v6732 = vpop.permute.xlu0 %6731
      %6733 = vrot.lane.b32.xlu0 %v5068, 16
      %v6734 = vpop.permute.xlu0 %6733
      %6739 = vrot.lane.b32.xlu0 %v5322, 24
      %v6740 = vpop.permute.xlu0 %6739
      %6741 = vrot.lane.b32.xlu0 %v5398, 24
      %v6742 = vpop.permute.xlu0 %6741
      %6747 = vrot.lane.b32.xlu0 %v5652, 32
      %v6748 = vpop.permute.xlu0 %6747
      %6749 = vrot.lane.b32.xlu0 %v5728, 32
      %v6750 = vpop.permute.xlu0 %6749
      %6755 = vrot.lane.b32.xlu0 %v5982, 40
      %v6756 = vpop.permute.xlu0 %6755
      %6757 = vrot.lane.b32.xlu0 %v6058, 40
      %v6758 = vpop.permute.xlu0 %6757
      %6763 = vrot.lane.b32.xlu0 %v6312, 48
      %v6764 = vpop.permute.xlu0 %6763
      %6765 = vrot.lane.b32.xlu0 %v6388, 48
      %v6766 = vpop.permute.xlu0 %6765
      %6771 = vrot.lane.b32.xlu0 %v6642, 56
      %v6772 = vpop.permute.xlu0 %6771
      %6773 = vrot.lane.b32.xlu0 %v6718, 56
      %v6774 = vpop.permute.xlu0 %6773
      %v6777 = vsel %vm1011, %v4333, %v6724
      %v6778 = vsel %vm1011, %v4406, %v6726
      %v6779 = vsel %vm3702, %v6777, %v6732
      %v6780 = vsel %vm3702, %v6778, %v6734
      %v6781 = vsel %vm3705, %v6779, %v6740
      %v6782 = vsel %vm3705, %v6780, %v6742
      %v6783 = vsel %vm3708, %v6781, %v6748
      %v6784 = vsel %vm3708, %v6782, %v6750
      %v6785 = vsel %vm3711, %v6783, %v6756
      %v6786 = vsel %vm3711, %v6784, %v6758
      %v6787 = vsel %vm3714, %v6785, %v6764
      %v6788 = vsel %vm3714, %v6786, %v6766
      %v6789 = vsel %vm3717, %v6787, %v6772
      %v6790 = vsel %vm3717, %v6788, %v6774
      %v6791 = vld [vmem:[%s719] sm:$0xf]
      %v6792 = vld [vmem:[%s719 + $0x4] sm:$0xf]
      %v6793 = vld [vmem:[%s719 + $0x8] sm:$0xf]
      %v6794 = vld [vmem:[%s719 + $0xc] sm:$0xf]
      %v6795 = vld [vmem:[%s719 + $0x10] sm:$0xf]
      %v6796 = vld [vmem:[%s719 + $0x14] sm:$0xf]
      %v6797 = vld [vmem:[%s719 + $0x18] sm:$0xf]
      %v6798 = vld [vmem:[%s719 + $0x1c] sm:$0xf]
      %v6799 = vpack.c.bf16 %v6790, %v6789
      %v6800 = vld [vmem:[%s722] sm:$0x1]
      %v6802 = vlaneseq
      %v6803 = vshrl.u32 %v6802, 7
      %v6804 = vsub.s32 0, %v6803
      %v6805 = vrot.slane %v6800, %v6804
      %v6815 = vunpack.c.l.b16 %v6791
      %v6816 = vunpack.c.l.b16 %v6792
      %v6817 = vunpack.c.l.b16 %v6793
      %v6818 = vunpack.c.l.b16 %v6794
      %v6819 = vunpack.c.l.b16 %v6795
      %v6820 = vunpack.c.l.b16 %v6796
      %v6821 = vunpack.c.l.b16 %v6797
      %v6822 = vunpack.c.l.b16 %v6798
      %v6823 = vpack.c.b16 %v6816, %v6815
      %v6824 = vpack.c.b16 %v6818, %v6817
      %v6825 = vpack.c.b16 %v6820, %v6819
      %v6826 = vpack.c.b16 %v6822, %v6821
      %v6832 = vsel %vm802, %v6799, 0
      %6834 = vmatprep.subr.bf16.mxu0 0
      %6835 = vmatpush1.bf16.msra.mxu0 0
      %6836 = vmatprep.subr.bf16.mxu0 0
      %6837 = vmatpush1.bf16.msra.mxu0 0
      %6838 = vmatprep.subr.bf16.mxu0 0
      %6839 = vmatpush1.bf16.msra.mxu0 0
      %6840 = vmatprep.subr.bf16.mxu0 0
      %6841 = vmatpush1.bf16.msra.mxu0 0
      %6842 = vmatprep.subr.bf16.mxu0 0
      %6843 = vmatpush1.bf16.msra.mxu0 %v6826
      %6844 = vmatprep.subr.bf16.mxu0 0
      %6845 = vmatpush1.bf16.msra.mxu0 %v6825
      %6846 = vmatprep.subr.bf16.mxu0 0
      %6847 = vmatpush1.bf16.msra.mxu0 %v6824
      %6848 = vmatprep.subr.bf16.mxu0 0
      %6849 = vmatpush1.bf16.msra.mxu0 %v6823
      %6850 = vmatprep.subr.bf16.mxu0 0
      %6851 = vmatpush2.bf16.msra.mxu0 0
      %6852 = vmatprep.subr.bf16.mxu0 0
      %6853 = vmatpush2.bf16.msra.mxu0 0
      %6854 = vmatprep.subr.bf16.mxu0 0
      %6855 = vmatpush2.bf16.msra.mxu0 0
      %6856 = vmatprep.subr.bf16.mxu0 0
      %6857 = vmatpush2.bf16.msra.mxu0 0
      %6858 = vmatprep.subr.bf16.mxu0 0
      %6859 = vmatpush2.bf16.msra.mxu0 0
      %6860 = vmatprep.subr.bf16.mxu0 0
      %6861 = vmatpush2.bf16.msra.mxu0 0
      %6862 = vmatprep.subr.bf16.mxu0 0
      %6863 = vmatpush2.bf16.msra.mxu0 0
      %6864 = vmatprep.subr.bf16.mxu0 0
      %6865 = vmatpush2.bf16.msra.mxu0 0
      %6866 = vmatprep.mubr.bf16.mxu0 0
      %6867 = vmatmul.mubr.bf16.gmra.mxu0 %v6832
      %v6868 = vpop.f32.mrf.mxu0
      %v6869 = vadd.f32 %v6805, %v6868
      %v6870 = vpop.f32.mrf.mxu0
      %v6871 = vpop.f32.mrf.mxu0
      %v6872 = vadd.f32 %v6805, %v6871
      %v6873 = vpop.f32.mrf.mxu0
      %6874 = vdwg.mxu0
      %v6875 = vadd.f32 %v3843, %v6869
      %v6876 = vadd.f32 %v3844, %v6872
      %v6877 = vsel %vm802, %v6875, 0.0
      %6878 = vadd.xlane.f32.xlu0 %v6877
      %v6879 = vpop.xlane.xlu0 %6878
      %v6880 = vsel %vm802, %v6876, 0.0
      %6881 = vadd.xlane.f32.xlu0 %v6880
      %v6882 = vpop.xlane.xlu0 %6881
      %v6883 = vmul.f32 %v6879, %v3812
      %v6884 = vmul.f32 %v6882, %v3812
      %v6885 = vsub.f32 %v6875, %v6883
      %v6886 = vsub.f32 %v6876, %v6884
      %v6887 = vmul.f32 %v6885, %v6885
      %v6888 = vmul.f32 %v6886, %v6886
      %v6889 = vsel %vm802, %v6887, 0.0
      %6890 = vadd.xlane.f32.xlu0 %v6889
      %v6891 = vpop.xlane.xlu0 %6890
      %v6892 = vsel %vm802, %v6888, 0.0
      %6893 = vadd.xlane.f32.xlu0 %v6892
      %v6894 = vpop.xlane.xlu0 %6893
      %v6895 = vmul.f32 %v6891, %v3812
      %v6896 = vmul.f32 %v6894, %v3812
      %v6897 = vadd.f32 %v6895, 1e-05
      %v6898 = vadd.f32 %v6896, 1e-05
      %v6899 = vrsqrt.pop %v6897
      %v6900 = vrsqrt.pop %v6898
      %v6901 = vmul.f32 %v6885, %v6899
      %v6902 = vmul.f32 %v6886, %v6900
      %v6903 = vlaneseq
      %v6904 = vshrl.u32 %v6903, 7
      %v6905 = vsub.s32 2, %v6904
      %v6906 = vrot.slane %v763, %v6905
      %v6907 = vmul.f32 %v6901, %v6906
      %v6908 = vmul.f32 %v6902, %v6906
      %v6909 = vlaneseq
      %v6910 = vshrl.u32 %v6909, 7
      %v6911 = vsub.s32 3, %v6910
      %v6912 = vrot.slane %v763, %v6911
      %v6913 = vadd.f32 %v6907, %v6912
      %v6914 = vadd.f32 %v6908, %v6912
      %v6915 = vld [vmem:[%s727] sm:$0xff]
      %v6916 = vld [vmem:[%s727 + $0x8] sm:$0xff]
      %v6917 = vld [vmem:[%s727 + $0x10] sm:$0xff]
      %v6918 = vld [vmem:[%s727 + $0x18] sm:$0xff]
      %v6919 = vld [vmem:[%s727 + $0x40] sm:$0xff]
      %v6920 = vld [vmem:[%s727 + $0x48] sm:$0xff]
      %v6921 = vld [vmem:[%s727 + $0x50] sm:$0xff]
      %v6922 = vld [vmem:[%s727 + $0x58] sm:$0xff]
      %v6923 = vld [vmem:[%s727 + $0x80] sm:$0xff]
      %v6924 = vld [vmem:[%s727 + $0x88] sm:$0xff]
      %v6925 = vld [vmem:[%s727 + $0x90] sm:$0xff]
      %v6926 = vld [vmem:[%s727 + $0x98] sm:$0xff]
      %v6927 = vld [vmem:[%s727 + $0xc0] sm:$0xff]
      %v6928 = vld [vmem:[%s727 + $0xc8] sm:$0xff]
      %v6929 = vld [vmem:[%s727 + $0xd0] sm:$0xff]
      %v6930 = vld [vmem:[%s727 + $0xd8] sm:$0xff]
      %v6931 = vld [vmem:[%s727 + $0x100] sm:$0xff]
      %v6932 = vld [vmem:[%s727 + $0x108] sm:$0xff]
      %v6933 = vld [vmem:[%s727 + $0x110] sm:$0xff]
      %v6934 = vld [vmem:[%s727 + $0x118] sm:$0xff]
      %v6935 = vld [vmem:[%s727 + $0x140] sm:$0xff]
      %v6936 = vld [vmem:[%s727 + $0x148] sm:$0xff]
      %v6937 = vld [vmem:[%s727 + $0x150] sm:$0xff]
      %v6938 = vld [vmem:[%s727 + $0x158] sm:$0xff]
      %v6939 = vld [vmem:[%s727 + $0x180] sm:$0xff]
      %v6940 = vld [vmem:[%s727 + $0x188] sm:$0xff]
      %v6941 = vld [vmem:[%s727 + $0x190] sm:$0xff]
      %v6942 = vld [vmem:[%s727 + $0x198] sm:$0xff]
      %v6943 = vld [vmem:[%s727 + $0x1c0] sm:$0xff]
      %v6944 = vld [vmem:[%s727 + $0x1c8] sm:$0xff]
      %v6945 = vld [vmem:[%s727 + $0x1d0] sm:$0xff]
      %v6946 = vld [vmem:[%s727 + $0x1d8] sm:$0xff]
      %v6947 = vpack.c.bf16 %v6914, %v6913
      %v6948 = vld [vmem:[%s731] sm:$0xff]
      %v6950 = vlaneseq
      %v6951 = vshrl.u32 %v6950, 7
      %v6952 = vsub.s32 0, %v6951
      %v6953 = vrot.slane %v6948, %v6952
      %v6954 = vlaneseq
      %v6955 = vshrl.u32 %v6954, 7
      %v6956 = vsub.s32 1, %v6955
      %v6957 = vrot.slane %v6948, %v6956
      %v6958 = vlaneseq
      %v6959 = vshrl.u32 %v6958, 7
      %v6960 = vsub.s32 2, %v6959
      %v6961 = vrot.slane %v6948, %v6960
      %v6962 = vlaneseq
      %v6963 = vshrl.u32 %v6962, 7
      %v6964 = vsub.s32 3, %v6963
      %v6965 = vrot.slane %v6948, %v6964
      %v6966 = vlaneseq
      %v6967 = vshrl.u32 %v6966, 7
      %v6968 = vsub.s32 4, %v6967
      %v6969 = vrot.slane %v6948, %v6968
      %v6970 = vlaneseq
      %v6971 = vshrl.u32 %v6970, 7
      %v6972 = vsub.s32 5, %v6971
      %v6973 = vrot.slane %v6948, %v6972
      %v6974 = vlaneseq
      %v6975 = vshrl.u32 %v6974, 7
      %v6976 = vsub.s32 6, %v6975
      %v6977 = vrot.slane %v6948, %v6976
      %v6978 = vlaneseq
      %v6979 = vshrl.u32 %v6978, 7
      %v6980 = vsub.s32 7, %v6979
      %v6981 = vrot.slane %v6948, %v6980
      %v7022 = vunpack.c.l.b16 %v6915
      %v7023 = vunpack.c.h.b16 %v6915
      %v7024 = vunpack.c.l.b16 %v6916
      %v7025 = vunpack.c.h.b16 %v6916
      %v7026 = vunpack.c.l.b16 %v6917
      %v7027 = vunpack.c.h.b16 %v6917
      %v7028 = vunpack.c.l.b16 %v6918
      %v7029 = vunpack.c.h.b16 %v6918
      %v7030 = vunpack.c.l.b16 %v6919
      %v7031 = vunpack.c.h.b16 %v6919
      %v7032 = vunpack.c.l.b16 %v6920
      %v7033 = vunpack.c.h.b16 %v6920
      %v7034 = vunpack.c.l.b16 %v6921
      %v7035 = vunpack.c.h.b16 %v6921
      %v7036 = vunpack.c.l.b16 %v6922
      %v7037 = vunpack.c.h.b16 %v6922
      %v7038 = vunpack.c.l.b16 %v6923
      %v7039 = vunpack.c.h.b16 %v6923
      %v7040 = vunpack.c.l.b16 %v6924
      %v7041 = vunpack.c.h.b16 %v6924
      %v7042 = vunpack.c.l.b16 %v6925
      %v7043 = vunpack.c.h.b16 %v6925
      %v7044 = vunpack.c.l.b16 %v6926
      %v7045 = vunpack.c.h.b16 %v6926
      %v7046 = vunpack.c.l.b16 %v6927
      %v7047 = vunpack.c.h.b16 %v6927
      %v7048 = vunpack.c.l.b16 %v6928
      %v7049 = vunpack.c.h.b16 %v6928
      %v7050 = vunpack.c.l.b16 %v6929
      %v7051 = vunpack.c.h.b16 %v6929
      %v7052 = vunpack.c.l.b16 %v6930
      %v7053 = vunpack.c.h.b16 %v6930
      %v7054 = vunpack.c.l.b16 %v6931
      %v7055 = vunpack.c.h.b16 %v6931
      %v7056 = vunpack.c.l.b16 %v6932
      %v7057 = vunpack.c.h.b16 %v6932
      %v7058 = vunpack.c.l.b16 %v6933
      %v7059 = vunpack.c.h.b16 %v6933
      %v7060 = vunpack.c.l.b16 %v6934
      %v7061 = vunpack.c.h.b16 %v6934
      %v7062 = vunpack.c.l.b16 %v6935
      %v7063 = vunpack.c.h.b16 %v6935
      %v7064 = vunpack.c.l.b16 %v6936
      %v7065 = vunpack.c.h.b16 %v6936
      %v7066 = vunpack.c.l.b16 %v6937
      %v7067 = vunpack.c.h.b16 %v6937
      %v7068 = vunpack.c.l.b16 %v6938
      %v7069 = vunpack.c.h.b16 %v6938
      %v7070 = vunpack.c.l.b16 %v6939
      %v7071 = vunpack.c.h.b16 %v6939
      %v7072 = vunpack.c.l.b16 %v6940
      %v7073 = vunpack.c.h.b16 %v6940
      %v7074 = vunpack.c.l.b16 %v6941
      %v7075 = vunpack.c.h.b16 %v6941
      %v7076 = vunpack.c.l.b16 %v6942
      %v7077 = vunpack.c.h.b16 %v6942
      %v7078 = vunpack.c.l.b16 %v6943
      %v7079 = vunpack.c.h.b16 %v6943
      %v7080 = vunpack.c.l.b16 %v6944
      %v7081 = vunpack.c.h.b16 %v6944
      %v7082 = vunpack.c.l.b16 %v6945
      %v7083 = vunpack.c.h.b16 %v6945
      %v7084 = vunpack.c.l.b16 %v6946
      %v7085 = vunpack.c.h.b16 %v6946
      %v7086 = vpack.c.b16 %v7030, %v7022
      %v7087 = vpack.c.b16 %v7031, %v7023
      %v7088 = vpack.c.b16 %v7032, %v7024
      %v7089 = vpack.c.b16 %v7033, %v7025
      %v7090 = vpack.c.b16 %v7034, %v7026
      %v7091 = vpack.c.b16 %v7035, %v7027
      %v7092 = vpack.c.b16 %v7036, %v7028
      %v7093 = vpack.c.b16 %v7037, %v7029
      %v7094 = vpack.c.b16 %v7046, %v7038
      %v7095 = vpack.c.b16 %v7047, %v7039
      %v7096 = vpack.c.b16 %v7048, %v7040
      %v7097 = vpack.c.b16 %v7049, %v7041
      %v7098 = vpack.c.b16 %v7050, %v7042
      %v7099 = vpack.c.b16 %v7051, %v7043
      %v7100 = vpack.c.b16 %v7052, %v7044
      %v7101 = vpack.c.b16 %v7053, %v7045
      %v7102 = vpack.c.b16 %v7062, %v7054
      %v7103 = vpack.c.b16 %v7063, %v7055
      %v7104 = vpack.c.b16 %v7064, %v7056
      %v7105 = vpack.c.b16 %v7065, %v7057
      %v7106 = vpack.c.b16 %v7066, %v7058
      %v7107 = vpack.c.b16 %v7067, %v7059
      %v7108 = vpack.c.b16 %v7068, %v7060
      %v7109 = vpack.c.b16 %v7069, %v7061
      %v7110 = vpack.c.b16 %v7078, %v7070
      %v7111 = vpack.c.b16 %v7079, %v7071
      %v7112 = vpack.c.b16 %v7080, %v7072
      %v7113 = vpack.c.b16 %v7081, %v7073
      %v7114 = vpack.c.b16 %v7082, %v7074
      %v7115 = vpack.c.b16 %v7083, %v7075
      %v7116 = vpack.c.b16 %v7084, %v7076
      %v7117 = vpack.c.b16 %v7085, %v7077
      %v7151 = vsel %vm802, %v6947, 0
      %7153 = vmatprep.subr.bf16.mxu0 0
      %7154 = vmatpush1.bf16.msra.mxu0 0
      %7155 = vmatprep.subr.bf16.mxu0 0
      %7156 = vmatpush1.bf16.msra.mxu0 0
      %7157 = vmatprep.subr.bf16.mxu0 0
      %7158 = vmatpush1.bf16.msra.mxu0 0
      %7159 = vmatprep.subr.bf16.mxu0 0
      %7160 = vmatpush1.bf16.msra.mxu0 0
      %7161 = vmatprep.subr.bf16.mxu0 %v7111
      %7162 = vmatpush1.bf16.msra.mxu0 %v7110
      %7163 = vmatprep.subr.bf16.mxu0 %v7103
      %7164 = vmatpush1.bf16.msra.mxu0 %v7102
      %7165 = vmatprep.subr.bf16.mxu0 %v7095
      %7166 = vmatpush1.bf16.msra.mxu0 %v7094
      %7167 = vmatprep.subr.bf16.mxu0 %v7087
      %7168 = vmatpush1.bf16.msra.mxu0 %v7086
      %7169 = vmatprep.subr.bf16.mxu0 0
      %7170 = vmatpush2.bf16.msra.mxu0 0
      %7171 = vmatprep.subr.bf16.mxu0 0
      %7172 = vmatpush2.bf16.msra.mxu0 0
      %7173 = vmatprep.subr.bf16.mxu0 0
      %7174 = vmatpush2.bf16.msra.mxu0 0
      %7175 = vmatprep.subr.bf16.mxu0 0
      %7176 = vmatpush2.bf16.msra.mxu0 0
      %7177 = vmatprep.subr.bf16.mxu0 0
      %7178 = vmatpush2.bf16.msra.mxu0 0
      %7179 = vmatprep.subr.bf16.mxu0 0
      %7180 = vmatpush2.bf16.msra.mxu0 0
      %7181 = vmatprep.subr.bf16.mxu0 0
      %7182 = vmatpush2.bf16.msra.mxu0 0
      %7183 = vmatprep.subr.bf16.mxu0 0
      %7184 = vmatpush2.bf16.msra.mxu0 0
      %7185 = vmatprep.mubr.bf16.mxu0 0
      %7186 = vmatmul.mubr.bf16.gmra.mxu0 %v7151
      %v7187 = vpop.f32.mrf.mxu0
      %v7188 = vadd.f32 %v6953, %v7187
      %v7189 = vpop.f32.mrf.mxu0
      %v7190 = vadd.f32 %v6957, %v7189
      %v7191 = vpop.f32.mrf.mxu0
      %v7192 = vadd.f32 %v6953, %v7191
      %v7193 = vpop.f32.mrf.mxu0
      %v7194 = vadd.f32 %v6957, %v7193
      %7195 = vdwg.mxu0
      %7196 = vmatprep.subr.bf16.mxu0 0
      %7197 = vmatpush1.bf16.msra.mxu0 0
      %7198 = vmatprep.subr.bf16.mxu0 0
      %7199 = vmatpush1.bf16.msra.mxu0 0
      %7200 = vmatprep.subr.bf16.mxu0 0
      %7201 = vmatpush1.bf16.msra.mxu0 0
      %7202 = vmatprep.subr.bf16.mxu0 0
      %7203 = vmatpush1.bf16.msra.mxu0 0
      %7204 = vmatprep.subr.bf16.mxu0 %v7113
      %7205 = vmatpush1.bf16.msra.mxu0 %v7112
      %7206 = vmatprep.subr.bf16.mxu0 %v7105
      %7207 = vmatpush1.bf16.msra.mxu0 %v7104
      %7208 = vmatprep.subr.bf16.mxu0 %v7097
      %7209 = vmatpush1.bf16.msra.mxu0 %v7096
      %7210 = vmatprep.subr.bf16.mxu0 %v7089
      %7211 = vmatpush1.bf16.msra.mxu0 %v7088
      %7212 = vmatprep.subr.bf16.mxu0 0
      %7213 = vmatpush2.bf16.msra.mxu0 0
      %7214 = vmatprep.subr.bf16.mxu0 0
      %7215 = vmatpush2.bf16.msra.mxu0 0
      %7216 = vmatprep.subr.bf16.mxu0 0
      %7217 = vmatpush2.bf16.msra.mxu0 0
      %7218 = vmatprep.subr.bf16.mxu0 0
      %7219 = vmatpush2.bf16.msra.mxu0 0
      %7220 = vmatprep.subr.bf16.mxu0 0
      %7221 = vmatpush2.bf16.msra.mxu0 0
      %7222 = vmatprep.subr.bf16.mxu0 0
      %7223 = vmatpush2.bf16.msra.mxu0 0
      %7224 = vmatprep.subr.bf16.mxu0 0
      %7225 = vmatpush2.bf16.msra.mxu0 0
      %7226 = vmatprep.subr.bf16.mxu0 0
      %7227 = vmatpush2.bf16.msra.mxu0 0
      %7228 = vmatprep.mubr.bf16.mxu0 0
      %7229 = vmatmul.mubr.bf16.gmra.mxu0 %v7151
      %v7230 = vpop.f32.mrf.mxu0
      %v7231 = vadd.f32 %v6961, %v7230
      %v7232 = vpop.f32.mrf.mxu0
      %v7233 = vadd.f32 %v6965, %v7232
      %v7234 = vpop.f32.mrf.mxu0
      %v7235 = vadd.f32 %v6961, %v7234
      %v7236 = vpop.f32.mrf.mxu0
      %v7237 = vadd.f32 %v6965, %v7236
      %7238 = vdwg.mxu0
      %7239 = vmatprep.subr.bf16.mxu0 0
      %7240 = vmatpush1.bf16.msra.mxu0 0
      %7241 = vmatprep.subr.bf16.mxu0 0
      %7242 = vmatpush1.bf16.msra.mxu0 0
      %7243 = vmatprep.subr.bf16.mxu0 0
      %7244 = vmatpush1.bf16.msra.mxu0 0
      %7245 = vmatprep.subr.bf16.mxu0 0
      %7246 = vmatpush1.bf16.msra.mxu0 0
      %7247 = vmatprep.subr.bf16.mxu0 %v7115
      %7248 = vmatpush1.bf16.msra.mxu0 %v7114
      %7249 = vmatprep.subr.bf16.mxu0 %v7107
      %7250 = vmatpush1.bf16.msra.mxu0 %v7106
      %7251 = vmatprep.subr.bf16.mxu0 %v7099
      %7252 = vmatpush1.bf16.msra.mxu0 %v7098
      %7253 = vmatprep.subr.bf16.mxu0 %v7091
      %7254 = vmatpush1.bf16.msra.mxu0 %v7090
      %7255 = vmatprep.subr.bf16.mxu0 0
      %7256 = vmatpush2.bf16.msra.mxu0 0
      %7257 = vmatprep.subr.bf16.mxu0 0
      %7258 = vmatpush2.bf16.msra.mxu0 0
      %7259 = vmatprep.subr.bf16.mxu0 0
      %7260 = vmatpush2.bf16.msra.mxu0 0
      %7261 = vmatprep.subr.bf16.mxu0 0
      %7262 = vmatpush2.bf16.msra.mxu0 0
      %7263 = vmatprep.subr.bf16.mxu0 0
      %7264 = vmatpush2.bf16.msra.mxu0 0
      %7265 = vmatprep.subr.bf16.mxu0 0
      %7266 = vmatpush2.bf16.msra.mxu0 0
      %7267 = vmatprep.subr.bf16.mxu0 0
      %7268 = vmatpush2.bf16.msra.mxu0 0
      %7269 = vmatprep.subr.bf16.mxu0 0
      %7270 = vmatpush2.bf16.msra.mxu0 0
      %7271 = vmatprep.mubr.bf16.mxu0 0
      %7272 = vmatmul.mubr.bf16.gmra.mxu0 %v7151
      %v7273 = vpop.f32.mrf.mxu0
      %v7274 = vadd.f32 %v6969, %v7273
      %v7275 = vpop.f32.mrf.mxu0
      %v7276 = vadd.f32 %v6973, %v7275
      %v7277 = vpop.f32.mrf.mxu0
      %v7278 = vadd.f32 %v6969, %v7277
      %v7279 = vpop.f32.mrf.mxu0
      %v7280 = vadd.f32 %v6973, %v7279
      %7281 = vdwg.mxu0
      %7282 = vmatprep.subr.bf16.mxu0 0
      %7283 = vmatpush1.bf16.msra.mxu0 0
      %7284 = vmatprep.subr.bf16.mxu0 0
      %7285 = vmatpush1.bf16.msra.mxu0 0
      %7286 = vmatprep.subr.bf16.mxu0 0
      %7287 = vmatpush1.bf16.msra.mxu0 0
      %7288 = vmatprep.subr.bf16.mxu0 0
      %7289 = vmatpush1.bf16.msra.mxu0 0
      %7290 = vmatprep.subr.bf16.mxu0 %v7117
      %7291 = vmatpush1.bf16.msra.mxu0 %v7116
      %7292 = vmatprep.subr.bf16.mxu0 %v7109
      %7293 = vmatpush1.bf16.msra.mxu0 %v7108
      %7294 = vmatprep.subr.bf16.mxu0 %v7101
      %7295 = vmatpush1.bf16.msra.mxu0 %v7100
      %7296 = vmatprep.subr.bf16.mxu0 %v7093
      %7297 = vmatpush1.bf16.msra.mxu0 %v7092
      %7298 = vmatprep.subr.bf16.mxu0 0
      %7299 = vmatpush2.bf16.msra.mxu0 0
      %7300 = vmatprep.subr.bf16.mxu0 0
      %7301 = vmatpush2.bf16.msra.mxu0 0
      %7302 = vmatprep.subr.bf16.mxu0 0
      %7303 = vmatpush2.bf16.msra.mxu0 0
      %7304 = vmatprep.subr.bf16.mxu0 0
      %7305 = vmatpush2.bf16.msra.mxu0 0
      %7306 = vmatprep.subr.bf16.mxu0 0
      %7307 = vmatpush2.bf16.msra.mxu0 0
      %7308 = vmatprep.subr.bf16.mxu0 0
      %7309 = vmatpush2.bf16.msra.mxu0 0
      %7310 = vmatprep.subr.bf16.mxu0 0
      %7311 = vmatpush2.bf16.msra.mxu0 0
      %7312 = vmatprep.subr.bf16.mxu0 0
      %7313 = vmatpush2.bf16.msra.mxu0 0
      %7314 = vmatprep.mubr.bf16.mxu0 0
      %7315 = vmatmul.mubr.bf16.gmra.mxu0 %v7151
      %v7316 = vpop.f32.mrf.mxu0
      %v7317 = vadd.f32 %v6977, %v7316
      %v7318 = vpop.f32.mrf.mxu0
      %v7319 = vadd.f32 %v6981, %v7318
      %v7320 = vpop.f32.mrf.mxu0
      %v7321 = vadd.f32 %v6977, %v7320
      %v7322 = vpop.f32.mrf.mxu0
      %v7323 = vadd.f32 %v6981, %v7322
      %7324 = vdwg.mxu0
      %v7325 = vmax.f32 %v7188, 0.0
      %v7326 = vmax.f32 %v7190, 0.0
      %v7327 = vmax.f32 %v7231, 0.0
      %v7328 = vmax.f32 %v7233, 0.0
      %v7329 = vmax.f32 %v7274, 0.0
      %v7330 = vmax.f32 %v7276, 0.0
      %v7331 = vmax.f32 %v7317, 0.0
      %v7332 = vmax.f32 %v7319, 0.0
      %v7333 = vmax.f32 %v7192, 0.0
      %v7334 = vmax.f32 %v7194, 0.0
      %v7335 = vmax.f32 %v7235, 0.0
      %v7336 = vmax.f32 %v7237, 0.0
      %v7337 = vmax.f32 %v7278, 0.0
      %v7338 = vmax.f32 %v7280, 0.0
      %v7339 = vmax.f32 %v7321, 0.0
      %v7340 = vmax.f32 %v7323, 0.0
      %v7341 = vld [vmem:[%s736] sm:$0xf]
      %v7342 = vld [vmem:[%s736 + $0x4] sm:$0xf]
      %v7343 = vld [vmem:[%s736 + $0x8] sm:$0xf]
      %v7344 = vld [vmem:[%s736 + $0xc] sm:$0xf]
      %v7345 = vld [vmem:[%s736 + $0x10] sm:$0xf]
      %v7346 = vld [vmem:[%s736 + $0x14] sm:$0xf]
      %v7347 = vld [vmem:[%s736 + $0x18] sm:$0xf]
      %v7348 = vld [vmem:[%s736 + $0x1c] sm:$0xf]
      %v7349 = vld [vmem:[%s736 + $0x20] sm:$0xf]
      %v7350 = vld [vmem:[%s736 + $0x24] sm:$0xf]
      %v7351 = vld [vmem:[%s736 + $0x28] sm:$0xf]
      %v7352 = vld [vmem:[%s736 + $0x2c] sm:$0xf]
      %v7353 = vld [vmem:[%s736 + $0x30] sm:$0xf]
      %v7354 = vld [vmem:[%s736 + $0x34] sm:$0xf]
      %v7355 = vld [vmem:[%s736 + $0x38] sm:$0xf]
      %v7356 = vld [vmem:[%s736 + $0x3c] sm:$0xf]
      %v7357 = vld [vmem:[%s736 + $0x40] sm:$0xf]
      %v7358 = vld [vmem:[%s736 + $0x44] sm:$0xf]
      %v7359 = vld [vmem:[%s736 + $0x48] sm:$0xf]
      %v7360 = vld [vmem:[%s736 + $0x4c] sm:$0xf]
      %v7361 = vld [vmem:[%s736 + $0x50] sm:$0xf]
      %v7362 = vld [vmem:[%s736 + $0x54] sm:$0xf]
      %v7363 = vld [vmem:[%s736 + $0x58] sm:$0xf]
      %v7364 = vld [vmem:[%s736 + $0x5c] sm:$0xf]
      %v7365 = vld [vmem:[%s736 + $0x60] sm:$0xf]
      %v7366 = vld [vmem:[%s736 + $0x64] sm:$0xf]
      %v7367 = vld [vmem:[%s736 + $0x68] sm:$0xf]
      %v7368 = vld [vmem:[%s736 + $0x6c] sm:$0xf]
      %v7369 = vld [vmem:[%s736 + $0x70] sm:$0xf]
      %v7370 = vld [vmem:[%s736 + $0x74] sm:$0xf]
      %v7371 = vld [vmem:[%s736 + $0x78] sm:$0xf]
      %v7372 = vld [vmem:[%s736 + $0x7c] sm:$0xf]
      %v7373 = vld [vmem:[%s736 + $0x80] sm:$0xf]
      %v7374 = vld [vmem:[%s736 + $0x84] sm:$0xf]
      %v7375 = vld [vmem:[%s736 + $0x88] sm:$0xf]
      %v7376 = vld [vmem:[%s736 + $0x8c] sm:$0xf]
      %v7377 = vld [vmem:[%s736 + $0x90] sm:$0xf]
      %v7378 = vld [vmem:[%s736 + $0x94] sm:$0xf]
      %v7379 = vld [vmem:[%s736 + $0x98] sm:$0xf]
      %v7380 = vld [vmem:[%s736 + $0x9c] sm:$0xf]
      %v7381 = vld [vmem:[%s736 + $0xa0] sm:$0xf]
      %v7382 = vld [vmem:[%s736 + $0xa4] sm:$0xf]
      %v7383 = vld [vmem:[%s736 + $0xa8] sm:$0xf]
      %v7384 = vld [vmem:[%s736 + $0xac] sm:$0xf]
      %v7385 = vld [vmem:[%s736 + $0xb0] sm:$0xf]
      %v7386 = vld [vmem:[%s736 + $0xb4] sm:$0xf]
      %v7387 = vld [vmem:[%s736 + $0xb8] sm:$0xf]
      %v7388 = vld [vmem:[%s736 + $0xbc] sm:$0xf]
      %v7389 = vld [vmem:[%s736 + $0xc0] sm:$0xf]
      %v7390 = vld [vmem:[%s736 + $0xc4] sm:$0xf]
      %v7391 = vld [vmem:[%s736 + $0xc8] sm:$0xf]
      %v7392 = vld [vmem:[%s736 + $0xcc] sm:$0xf]
      %v7393 = vld [vmem:[%s736 + $0xd0] sm:$0xf]
      %v7394 = vld [vmem:[%s736 + $0xd4] sm:$0xf]
      %v7395 = vld [vmem:[%s736 + $0xd8] sm:$0xf]
      %v7396 = vld [vmem:[%s736 + $0xdc] sm:$0xf]
      %v7397 = vld [vmem:[%s736 + $0xe0] sm:$0xf]
      %v7398 = vld [vmem:[%s736 + $0xe4] sm:$0xf]
      %v7399 = vld [vmem:[%s736 + $0xe8] sm:$0xf]
      %v7400 = vld [vmem:[%s736 + $0xec] sm:$0xf]
      %v7401 = vld [vmem:[%s736 + $0xf0] sm:$0xf]
      %v7402 = vld [vmem:[%s736 + $0xf4] sm:$0xf]
      %v7403 = vld [vmem:[%s736 + $0xf8] sm:$0xf]
      %v7404 = vld [vmem:[%s736 + $0xfc] sm:$0xf]
      %v7405 = vld [vmem:[%s736 + $0x100] sm:$0xf]
      %v7406 = vld [vmem:[%s736 + $0x104] sm:$0xf]
      %v7407 = vld [vmem:[%s736 + $0x108] sm:$0xf]
      %v7408 = vld [vmem:[%s736 + $0x10c] sm:$0xf]
      %v7409 = vld [vmem:[%s736 + $0x110] sm:$0xf]
      %v7410 = vld [vmem:[%s736 + $0x114] sm:$0xf]
      %v7411 = vld [vmem:[%s736 + $0x118] sm:$0xf]
      %v7412 = vld [vmem:[%s736 + $0x11c] sm:$0xf]
      %v7413 = vld [vmem:[%s736 + $0x120] sm:$0xf]
      %v7414 = vld [vmem:[%s736 + $0x124] sm:$0xf]
      %v7415 = vld [vmem:[%s736 + $0x128] sm:$0xf]
      %v7416 = vld [vmem:[%s736 + $0x12c] sm:$0xf]
      %v7417 = vld [vmem:[%s736 + $0x130] sm:$0xf]
      %v7418 = vld [vmem:[%s736 + $0x134] sm:$0xf]
      %v7419 = vld [vmem:[%s736 + $0x138] sm:$0xf]
      %v7420 = vld [vmem:[%s736 + $0x13c] sm:$0xf]
      %v7421 = vld [vmem:[%s736 + $0x140] sm:$0xf]
      %v7422 = vld [vmem:[%s736 + $0x144] sm:$0xf]
      %v7423 = vld [vmem:[%s736 + $0x148] sm:$0xf]
      %v7424 = vld [vmem:[%s736 + $0x14c] sm:$0xf]
      %v7425 = vld [vmem:[%s736 + $0x150] sm:$0xf]
      %v7426 = vld [vmem:[%s736 + $0x154] sm:$0xf]
      %v7427 = vld [vmem:[%s736 + $0x158] sm:$0xf]
      %v7428 = vld [vmem:[%s736 + $0x15c] sm:$0xf]
      %v7429 = vld [vmem:[%s736 + $0x160] sm:$0xf]
      %v7430 = vld [vmem:[%s736 + $0x164] sm:$0xf]
      %v7431 = vld [vmem:[%s736 + $0x168] sm:$0xf]
      %v7432 = vld [vmem:[%s736 + $0x16c] sm:$0xf]
      %v7433 = vld [vmem:[%s736 + $0x170] sm:$0xf]
      %v7434 = vld [vmem:[%s736 + $0x174] sm:$0xf]
      %v7435 = vld [vmem:[%s736 + $0x178] sm:$0xf]
      %v7436 = vld [vmem:[%s736 + $0x17c] sm:$0xf]
      %v7437 = vld [vmem:[%s736 + $0x180] sm:$0xf]
      %v7438 = vld [vmem:[%s736 + $0x184] sm:$0xf]
      %v7439 = vld [vmem:[%s736 + $0x188] sm:$0xf]
      %v7440 = vld [vmem:[%s736 + $0x18c] sm:$0xf]
      %v7441 = vld [vmem:[%s736 + $0x190] sm:$0xf]
      %v7442 = vld [vmem:[%s736 + $0x194] sm:$0xf]
      %v7443 = vld [vmem:[%s736 + $0x198] sm:$0xf]
      %v7444 = vld [vmem:[%s736 + $0x19c] sm:$0xf]
      %v7445 = vld [vmem:[%s736 + $0x1a0] sm:$0xf]
      %v7446 = vld [vmem:[%s736 + $0x1a4] sm:$0xf]
      %v7447 = vld [vmem:[%s736 + $0x1a8] sm:$0xf]
      %v7448 = vld [vmem:[%s736 + $0x1ac] sm:$0xf]
      %v7449 = vld [vmem:[%s736 + $0x1b0] sm:$0xf]
      %v7450 = vld [vmem:[%s736 + $0x1b4] sm:$0xf]
      %v7451 = vld [vmem:[%s736 + $0x1b8] sm:$0xf]
      %v7452 = vld [vmem:[%s736 + $0x1bc] sm:$0xf]
      %v7453 = vld [vmem:[%s736 + $0x1c0] sm:$0xf]
      %v7454 = vld [vmem:[%s736 + $0x1c4] sm:$0xf]
      %v7455 = vld [vmem:[%s736 + $0x1c8] sm:$0xf]
      %v7456 = vld [vmem:[%s736 + $0x1cc] sm:$0xf]
      %v7457 = vld [vmem:[%s736 + $0x1d0] sm:$0xf]
      %v7458 = vld [vmem:[%s736 + $0x1d4] sm:$0xf]
      %v7459 = vld [vmem:[%s736 + $0x1d8] sm:$0xf]
      %v7460 = vld [vmem:[%s736 + $0x1dc] sm:$0xf]
      %v7461 = vld [vmem:[%s736 + $0x1e0] sm:$0xf]
      %v7462 = vld [vmem:[%s736 + $0x1e4] sm:$0xf]
      %v7463 = vld [vmem:[%s736 + $0x1e8] sm:$0xf]
      %v7464 = vld [vmem:[%s736 + $0x1ec] sm:$0xf]
      %v7465 = vld [vmem:[%s736 + $0x1f0] sm:$0xf]
      %v7466 = vld [vmem:[%s736 + $0x1f4] sm:$0xf]
      %v7467 = vld [vmem:[%s736 + $0x1f8] sm:$0xf]
      %v7468 = vld [vmem:[%s736 + $0x1fc] sm:$0xf]
      %v7469 = vpack.c.bf16 %v7333, %v7325
      %v7470 = vpack.c.bf16 %v7334, %v7326
      %v7471 = vpack.c.bf16 %v7335, %v7327
      %v7472 = vpack.c.bf16 %v7336, %v7328
      %v7473 = vpack.c.bf16 %v7337, %v7329
      %v7474 = vpack.c.bf16 %v7338, %v7330
      %v7475 = vpack.c.bf16 %v7339, %v7331
      %v7476 = vpack.c.bf16 %v7340, %v7332
      %v7477 = vld [vmem:[%s727 + $0x20] sm:$0xff]
      %v7478 = vld [vmem:[%s727 + $0x28] sm:$0xff]
      %v7479 = vld [vmem:[%s727 + $0x30] sm:$0xff]
      %v7480 = vld [vmem:[%s727 + $0x38] sm:$0xff]
      %v7481 = vld [vmem:[%s727 + $0x60] sm:$0xff]
      %v7482 = vld [vmem:[%s727 + $0x68] sm:$0xff]
      %v7483 = vld [vmem:[%s727 + $0x70] sm:$0xff]
      %v7484 = vld [vmem:[%s727 + $0x78] sm:$0xff]
      %v7485 = vld [vmem:[%s727 + $0xa0] sm:$0xff]
      %v7486 = vld [vmem:[%s727 + $0xa8] sm:$0xff]
      %v7487 = vld [vmem:[%s727 + $0xb0] sm:$0xff]
      %v7488 = vld [vmem:[%s727 + $0xb8] sm:$0xff]
      %v7489 = vld [vmem:[%s727 + $0xe0] sm:$0xff]
      %v7490 = vld [vmem:[%s727 + $0xe8] sm:$0xff]
      %v7491 = vld [vmem:[%s727 + $0xf0] sm:$0xff]
      %v7492 = vld [vmem:[%s727 + $0xf8] sm:$0xff]
      %v7493 = vld [vmem:[%s727 + $0x120] sm:$0xff]
      %v7494 = vld [vmem:[%s727 + $0x128] sm:$0xff]
      %v7495 = vld [vmem:[%s727 + $0x130] sm:$0xff]
      %v7496 = vld [vmem:[%s727 + $0x138] sm:$0xff]
      %v7497 = vld [vmem:[%s727 + $0x160] sm:$0xff]
      %v7498 = vld [vmem:[%s727 + $0x168] sm:$0xff]
      %v7499 = vld [vmem:[%s727 + $0x170] sm:$0xff]
      %v7500 = vld [vmem:[%s727 + $0x178] sm:$0xff]
      %v7501 = vld [vmem:[%s727 + $0x1a0] sm:$0xff]
      %v7502 = vld [vmem:[%s727 + $0x1a8] sm:$0xff]
      %v7503 = vld [vmem:[%s727 + $0x1b0] sm:$0xff]
      %v7504 = vld [vmem:[%s727 + $0x1b8] sm:$0xff]
      %v7505 = vld [vmem:[%s727 + $0x1e0] sm:$0xff]
      %v7506 = vld [vmem:[%s727 + $0x1e8] sm:$0xff]
      %v7507 = vld [vmem:[%s727 + $0x1f0] sm:$0xff]
      %v7508 = vld [vmem:[%s727 + $0x1f8] sm:$0xff]
      %v7509 = vld [vmem:[%s731 + $0x8] sm:$0xff]
      %v7511 = vlaneseq
      %v7512 = vshrl.u32 %v7511, 7
      %v7513 = vsub.s32 0, %v7512
      %v7514 = vrot.slane %v7509, %v7513
      %v7515 = vlaneseq
      %v7516 = vshrl.u32 %v7515, 7
      %v7517 = vsub.s32 1, %v7516
      %v7518 = vrot.slane %v7509, %v7517
      %v7519 = vlaneseq
      %v7520 = vshrl.u32 %v7519, 7
      %v7521 = vsub.s32 2, %v7520
      %v7522 = vrot.slane %v7509, %v7521
      %v7523 = vlaneseq
      %v7524 = vshrl.u32 %v7523, 7
      %v7525 = vsub.s32 3, %v7524
      %v7526 = vrot.slane %v7509, %v7525
      %v7527 = vlaneseq
      %v7528 = vshrl.u32 %v7527, 7
      %v7529 = vsub.s32 4, %v7528
      %v7530 = vrot.slane %v7509, %v7529
      %v7531 = vlaneseq
      %v7532 = vshrl.u32 %v7531, 7
      %v7533 = vsub.s32 5, %v7532
      %v7534 = vrot.slane %v7509, %v7533
      %v7535 = vlaneseq
      %v7536 = vshrl.u32 %v7535, 7
      %v7537 = vsub.s32 6, %v7536
      %v7538 = vrot.slane %v7509, %v7537
      %v7539 = vlaneseq
      %v7540 = vshrl.u32 %v7539, 7
      %v7541 = vsub.s32 7, %v7540
      %v7542 = vrot.slane %v7509, %v7541
      %v7583 = vunpack.c.l.b16 %v7477
      %v7584 = vunpack.c.h.b16 %v7477
      %v7585 = vunpack.c.l.b16 %v7478
      %v7586 = vunpack.c.h.b16 %v7478
      %v7587 = vunpack.c.l.b16 %v7479
      %v7588 = vunpack.c.h.b16 %v7479
      %v7589 = vunpack.c.l.b16 %v7480
      %v7590 = vunpack.c.h.b16 %v7480
      %v7591 = vunpack.c.l.b16 %v7481
      %v7592 = vunpack.c.h.b16 %v7481
      %v7593 = vunpack.c.l.b16 %v7482
      %v7594 = vunpack.c.h.b16 %v7482
      %v7595 = vunpack.c.l.b16 %v7483
      %v7596 = vunpack.c.h.b16 %v7483
      %v7597 = vunpack.c.l.b16 %v7484
      %v7598 = vunpack.c.h.b16 %v7484
      %v7599 = vunpack.c.l.b16 %v7485
      %v7600 = vunpack.c.h.b16 %v7485
      %v7601 = vunpack.c.l.b16 %v7486
      %v7602 = vunpack.c.h.b16 %v7486
      %v7603 = vunpack.c.l.b16 %v7487
      %v7604 = vunpack.c.h.b16 %v7487
      %v7605 = vunpack.c.l.b16 %v7488
      %v7606 = vunpack.c.h.b16 %v7488
      %v7607 = vunpack.c.l.b16 %v7489
      %v7608 = vunpack.c.h.b16 %v7489
      %v7609 = vunpack.c.l.b16 %v7490
      %v7610 = vunpack.c.h.b16 %v7490
      %v7611 = vunpack.c.l.b16 %v7491
      %v7612 = vunpack.c.h.b16 %v7491
      %v7613 = vunpack.c.l.b16 %v7492
      %v7614 = vunpack.c.h.b16 %v7492
      %v7615 = vunpack.c.l.b16 %v7493
      %v7616 = vunpack.c.h.b16 %v7493
      %v7617 = vunpack.c.l.b16 %v7494
      %v7618 = vunpack.c.h.b16 %v7494
      %v7619 = vunpack.c.l.b16 %v7495
      %v7620 = vunpack.c.h.b16 %v7495
      %v7621 = vunpack.c.l.b16 %v7496
      %v7622 = vunpack.c.h.b16 %v7496
      %v7623 = vunpack.c.l.b16 %v7497
      %v7624 = vunpack.c.h.b16 %v7497
      %v7625 = vunpack.c.l.b16 %v7498
      %v7626 = vunpack.c.h.b16 %v7498
      %v7627 = vunpack.c.l.b16 %v7499
      %v7628 = vunpack.c.h.b16 %v7499
      %v7629 = vunpack.c.l.b16 %v7500
      %v7630 = vunpack.c.h.b16 %v7500
      %v7631 = vunpack.c.l.b16 %v7501
      %v7632 = vunpack.c.h.b16 %v7501
      %v7633 = vunpack.c.l.b16 %v7502
      %v7634 = vunpack.c.h.b16 %v7502
      %v7635 = vunpack.c.l.b16 %v7503
      %v7636 = vunpack.c.h.b16 %v7503
      %v7637 = vunpack.c.l.b16 %v7504
      %v7638 = vunpack.c.h.b16 %v7504
      %v7639 = vunpack.c.l.b16 %v7505
      %v7640 = vunpack.c.h.b16 %v7505
      %v7641 = vunpack.c.l.b16 %v7506
      %v7642 = vunpack.c.h.b16 %v7506
      %v7643 = vunpack.c.l.b16 %v7507
      %v7644 = vunpack.c.h.b16 %v7507
      %v7645 = vunpack.c.l.b16 %v7508
      %v7646 = vunpack.c.h.b16 %v7508
      %v7647 = vpack.c.b16 %v7591, %v7583
      %v7648 = vpack.c.b16 %v7592, %v7584
      %v7649 = vpack.c.b16 %v7593, %v7585
      %v7650 = vpack.c.b16 %v7594, %v7586
      %v7651 = vpack.c.b16 %v7595, %v7587
      %v7652 = vpack.c.b16 %v7596, %v7588
      %v7653 = vpack.c.b16 %v7597, %v7589
      %v7654 = vpack.c.b16 %v7598, %v7590
      %v7655 = vpack.c.b16 %v7607, %v7599
      %v7656 = vpack.c.b16 %v7608, %v7600
      %v7657 = vpack.c.b16 %v7609, %v7601
      %v7658 = vpack.c.b16 %v7610, %v7602
      %v7659 = vpack.c.b16 %v7611, %v7603
      %v7660 = vpack.c.b16 %v7612, %v7604
      %v7661 = vpack.c.b16 %v7613, %v7605
      %v7662 = vpack.c.b16 %v7614, %v7606
      %v7663 = vpack.c.b16 %v7623, %v7615
      %v7664 = vpack.c.b16 %v7624, %v7616
      %v7665 = vpack.c.b16 %v7625, %v7617
      %v7666 = vpack.c.b16 %v7626, %v7618
      %v7667 = vpack.c.b16 %v7627, %v7619
      %v7668 = vpack.c.b16 %v7628, %v7620
      %v7669 = vpack.c.b16 %v7629, %v7621
      %v7670 = vpack.c.b16 %v7630, %v7622
      %v7671 = vpack.c.b16 %v7639, %v7631
      %v7672 = vpack.c.b16 %v7640, %v7632
      %v7673 = vpack.c.b16 %v7641, %v7633
      %v7674 = vpack.c.b16 %v7642, %v7634
      %v7675 = vpack.c.b16 %v7643, %v7635
      %v7676 = vpack.c.b16 %v7644, %v7636
      %v7677 = vpack.c.b16 %v7645, %v7637
      %v7678 = vpack.c.b16 %v7646, %v7638
      %7711 = vmatprep.subr.bf16.mxu0 0
      %7712 = vmatpush1.bf16.msra.mxu0 0
      %7713 = vmatprep.subr.bf16.mxu0 0
      %7714 = vmatpush1.bf16.msra.mxu0 0
      %7715 = vmatprep.subr.bf16.mxu0 0
      %7716 = vmatpush1.bf16.msra.mxu0 0
      %7717 = vmatprep.subr.bf16.mxu0 0
      %7718 = vmatpush1.bf16.msra.mxu0 0
      %7719 = vmatprep.subr.bf16.mxu0 %v7672
      %7720 = vmatpush1.bf16.msra.mxu0 %v7671
      %7721 = vmatprep.subr.bf16.mxu0 %v7664
      %7722 = vmatpush1.bf16.msra.mxu0 %v7663
      %7723 = vmatprep.subr.bf16.mxu0 %v7656
      %7724 = vmatpush1.bf16.msra.mxu0 %v7655
      %7725 = vmatprep.subr.bf16.mxu0 %v7648
      %7726 = vmatpush1.bf16.msra.mxu0 %v7647
      %7727 = vmatprep.subr.bf16.mxu0 0
      %7728 = vmatpush2.bf16.msra.mxu0 0
      %7729 = vmatprep.subr.bf16.mxu0 0
      %7730 = vmatpush2.bf16.msra.mxu0 0
      %7731 = vmatprep.subr.bf16.mxu0 0
      %7732 = vmatpush2.bf16.msra.mxu0 0
      %7733 = vmatprep.subr.bf16.mxu0 0
      %7734 = vmatpush2.bf16.msra.mxu0 0
      %7735 = vmatprep.subr.bf16.mxu0 0
      %7736 = vmatpush2.bf16.msra.mxu0 0
      %7737 = vmatprep.subr.bf16.mxu0 0
      %7738 = vmatpush2.bf16.msra.mxu0 0
      %7739 = vmatprep.subr.bf16.mxu0 0
      %7740 = vmatpush2.bf16.msra.mxu0 0
      %7741 = vmatprep.subr.bf16.mxu0 0
      %7742 = vmatpush2.bf16.msra.mxu0 0
      %7743 = vmatprep.mubr.bf16.mxu0 0
      %7744 = vmatmul.mubr.bf16.gmra.mxu0 %v7151
      %v7745 = vpop.f32.mrf.mxu0
      %v7746 = vadd.f32 %v7514, %v7745
      %v7747 = vpop.f32.mrf.mxu0
      %v7748 = vadd.f32 %v7518, %v7747
      %v7749 = vpop.f32.mrf.mxu0
      %v7750 = vadd.f32 %v7514, %v7749
      %v7751 = vpop.f32.mrf.mxu0
      %v7752 = vadd.f32 %v7518, %v7751
      %7753 = vdwg.mxu0
      %7754 = vmatprep.subr.bf16.mxu0 0
      %7755 = vmatpush1.bf16.msra.mxu0 0
      %7756 = vmatprep.subr.bf16.mxu0 0
      %7757 = vmatpush1.bf16.msra.mxu0 0
      %7758 = vmatprep.subr.bf16.mxu0 0
      %7759 = vmatpush1.bf16.msra.mxu0 0
      %7760 = vmatprep.subr.bf16.mxu0 0
      %7761 = vmatpush1.bf16.msra.mxu0 0
      %7762 = vmatprep.subr.bf16.mxu0 %v7674
      %7763 = vmatpush1.bf16.msra.mxu0 %v7673
      %7764 = vmatprep.subr.bf16.mxu0 %v7666
      %7765 = vmatpush1.bf16.msra.mxu0 %v7665
      %7766 = vmatprep.subr.bf16.mxu0 %v7658
      %7767 = vmatpush1.bf16.msra.mxu0 %v7657
      %7768 = vmatprep.subr.bf16.mxu0 %v7650
      %7769 = vmatpush1.bf16.msra.mxu0 %v7649
      %7770 = vmatprep.subr.bf16.mxu0 0
      %7771 = vmatpush2.bf16.msra.mxu0 0
      %7772 = vmatprep.subr.bf16.mxu0 0
      %7773 = vmatpush2.bf16.msra.mxu0 0
      %7774 = vmatprep.subr.bf16.mxu0 0
      %7775 = vmatpush2.bf16.msra.mxu0 0
      %7776 = vmatprep.subr.bf16.mxu0 0
      %7777 = vmatpush2.bf16.msra.mxu0 0
      %7778 = vmatprep.subr.bf16.mxu0 0
      %7779 = vmatpush2.bf16.msra.mxu0 0
      %7780 = vmatprep.subr.bf16.mxu0 0
      %7781 = vmatpush2.bf16.msra.mxu0 0
      %7782 = vmatprep.subr.bf16.mxu0 0
      %7783 = vmatpush2.bf16.msra.mxu0 0
      %7784 = vmatprep.subr.bf16.mxu0 0
      %7785 = vmatpush2.bf16.msra.mxu0 0
      %7786 = vmatprep.mubr.bf16.mxu0 0
      %7787 = vmatmul.mubr.bf16.gmra.mxu0 %v7151
      %v7788 = vpop.f32.mrf.mxu0
      %v7789 = vadd.f32 %v7522, %v7788
      %v7790 = vpop.f32.mrf.mxu0
      %v7791 = vadd.f32 %v7526, %v7790
      %v7792 = vpop.f32.mrf.mxu0
      %v7793 = vadd.f32 %v7522, %v7792
      %v7794 = vpop.f32.mrf.mxu0
      %v7795 = vadd.f32 %v7526, %v7794
      %7796 = vdwg.mxu0
      %7797 = vmatprep.subr.bf16.mxu0 0
      %7798 = vmatpush1.bf16.msra.mxu0 0
      %7799 = vmatprep.subr.bf16.mxu0 0
      %7800 = vmatpush1.bf16.msra.mxu0 0
      %7801 = vmatprep.subr.bf16.mxu0 0
      %7802 = vmatpush1.bf16.msra.mxu0 0
      %7803 = vmatprep.subr.bf16.mxu0 0
      %7804 = vmatpush1.bf16.msra.mxu0 0
      %7805 = vmatprep.subr.bf16.mxu0 %v7676
      %7806 = vmatpush1.bf16.msra.mxu0 %v7675
      %7807 = vmatprep.subr.bf16.mxu0 %v7668
      %7808 = vmatpush1.bf16.msra.mxu0 %v7667
      %7809 = vmatprep.subr.bf16.mxu0 %v7660
      %7810 = vmatpush1.bf16.msra.mxu0 %v7659
      %7811 = vmatprep.subr.bf16.mxu0 %v7652
      %7812 = vmatpush1.bf16.msra.mxu0 %v7651
      %7813 = vmatprep.subr.bf16.mxu0 0
      %7814 = vmatpush2.bf16.msra.mxu0 0
      %7815 = vmatprep.subr.bf16.mxu0 0
      %7816 = vmatpush2.bf16.msra.mxu0 0
      %7817 = vmatprep.subr.bf16.mxu0 0
      %7818 = vmatpush2.bf16.msra.mxu0 0
      %7819 = vmatprep.subr.bf16.mxu0 0
      %7820 = vmatpush2.bf16.msra.mxu0 0
      %7821 = vmatprep.subr.bf16.mxu0 0
      %7822 = vmatpush2.bf16.msra.mxu0 0
      %7823 = vmatprep.subr.bf16.mxu0 0
      %7824 = vmatpush2.bf16.msra.mxu0 0
      %7825 = vmatprep.subr.bf16.mxu0 0
      %7826 = vmatpush2.bf16.msra.mxu0 0
      %7827 = vmatprep.subr.bf16.mxu0 0
      %7828 = vmatpush2.bf16.msra.mxu0 0
      %7829 = vmatprep.mubr.bf16.mxu0 0
      %7830 = vmatmul.mubr.bf16.gmra.mxu0 %v7151
      %v7831 = vpop.f32.mrf.mxu0
      %v7832 = vadd.f32 %v7530, %v7831
      %v7833 = vpop.f32.mrf.mxu0
      %v7834 = vadd.f32 %v7534, %v7833
      %v7835 = vpop.f32.mrf.mxu0
      %v7836 = vadd.f32 %v7530, %v7835
      %v7837 = vpop.f32.mrf.mxu0
      %v7838 = vadd.f32 %v7534, %v7837
      %7839 = vdwg.mxu0
      %7840 = vmatprep.subr.bf16.mxu0 0
      %7841 = vmatpush1.bf16.msra.mxu0 0
      %7842 = vmatprep.subr.bf16.mxu0 0
      %7843 = vmatpush1.bf16.msra.mxu0 0
      %7844 = vmatprep.subr.bf16.mxu0 0
      %7845 = vmatpush1.bf16.msra.mxu0 0
      %7846 = vmatprep.subr.bf16.mxu0 0
      %7847 = vmatpush1.bf16.msra.mxu0 0
      %7848 = vmatprep.subr.bf16.mxu0 %v7678
      %7849 = vmatpush1.bf16.msra.mxu0 %v7677
      %7850 = vmatprep.subr.bf16.mxu0 %v7670
      %7851 = vmatpush1.bf16.msra.mxu0 %v7669
      %7852 = vmatprep.subr.bf16.mxu0 %v7662
      %7853 = vmatpush1.bf16.msra.mxu0 %v7661
      %7854 = vmatprep.subr.bf16.mxu0 %v7654
      %7855 = vmatpush1.bf16.msra.mxu0 %v7653
      %7856 = vmatprep.subr.bf16.mxu0 0
      %7857 = vmatpush2.bf16.msra.mxu0 0
      %7858 = vmatprep.subr.bf16.mxu0 0
      %7859 = vmatpush2.bf16.msra.mxu0 0
      %7860 = vmatprep.subr.bf16.mxu0 0
      %7861 = vmatpush2.bf16.msra.mxu0 0
      %7862 = vmatprep.subr.bf16.mxu0 0
      %7863 = vmatpush2.bf16.msra.mxu0 0
      %7864 = vmatprep.subr.bf16.mxu0 0
      %7865 = vmatpush2.bf16.msra.mxu0 0
      %7866 = vmatprep.subr.bf16.mxu0 0
      %7867 = vmatpush2.bf16.msra.mxu0 0
      %7868 = vmatprep.subr.bf16.mxu0 0
      %7869 = vmatpush2.bf16.msra.mxu0 0
      %7870 = vmatprep.subr.bf16.mxu0 0
      %7871 = vmatpush2.bf16.msra.mxu0 0
      %7872 = vmatprep.mubr.bf16.mxu0 0
      %7873 = vmatmul.mubr.bf16.gmra.mxu0 %v7151
      %v7874 = vpop.f32.mrf.mxu0
      %v7875 = vadd.f32 %v7538, %v7874
      %v7876 = vpop.f32.mrf.mxu0
      %v7877 = vadd.f32 %v7542, %v7876
      %v7878 = vpop.f32.mrf.mxu0
      %v7879 = vadd.f32 %v7538, %v7878
      %v7880 = vpop.f32.mrf.mxu0
      %v7881 = vadd.f32 %v7542, %v7880
      %7882 = vdwg.mxu0
      %v7883 = vmax.f32 %v7746, 0.0
      %v7884 = vmax.f32 %v7748, 0.0
      %v7885 = vmax.f32 %v7789, 0.0
      %v7886 = vmax.f32 %v7791, 0.0
      %v7887 = vmax.f32 %v7832, 0.0
      %v7888 = vmax.f32 %v7834, 0.0
      %v7889 = vmax.f32 %v7875, 0.0
      %v7890 = vmax.f32 %v7877, 0.0
      %v7891 = vmax.f32 %v7750, 0.0
      %v7892 = vmax.f32 %v7752, 0.0
      %v7893 = vmax.f32 %v7793, 0.0
      %v7894 = vmax.f32 %v7795, 0.0
      %v7895 = vmax.f32 %v7836, 0.0
      %v7896 = vmax.f32 %v7838, 0.0
      %v7897 = vmax.f32 %v7879, 0.0
      %v7898 = vmax.f32 %v7881, 0.0
      %v7899 = vld [vmem:[%s736 + $0x200] sm:$0xf]
      %v7900 = vld [vmem:[%s736 + $0x204] sm:$0xf]
      %v7901 = vld [vmem:[%s736 + $0x208] sm:$0xf]
      %v7902 = vld [vmem:[%s736 + $0x20c] sm:$0xf]
      %v7903 = vld [vmem:[%s736 + $0x210] sm:$0xf]
      %v7904 = vld [vmem:[%s736 + $0x214] sm:$0xf]
      %v7905 = vld [vmem:[%s736 + $0x218] sm:$0xf]
      %v7906 = vld [vmem:[%s736 + $0x21c] sm:$0xf]
      %v7907 = vld [vmem:[%s736 + $0x220] sm:$0xf]
      %v7908 = vld [vmem:[%s736 + $0x224] sm:$0xf]
      %v7909 = vld [vmem:[%s736 + $0x228] sm:$0xf]
      %v7910 = vld [vmem:[%s736 + $0x22c] sm:$0xf]
      %v7911 = vld [vmem:[%s736 + $0x230] sm:$0xf]
      %v7912 = vld [vmem:[%s736 + $0x234] sm:$0xf]
      %v7913 = vld [vmem:[%s736 + $0x238] sm:$0xf]
      %v7914 = vld [vmem:[%s736 + $0x23c] sm:$0xf]
      %v7915 = vld [vmem:[%s736 + $0x240] sm:$0xf]
      %v7916 = vld [vmem:[%s736 + $0x244] sm:$0xf]
      %v7917 = vld [vmem:[%s736 + $0x248] sm:$0xf]
      %v7918 = vld [vmem:[%s736 + $0x24c] sm:$0xf]
      %v7919 = vld [vmem:[%s736 + $0x250] sm:$0xf]
      %v7920 = vld [vmem:[%s736 + $0x254] sm:$0xf]
      %v7921 = vld [vmem:[%s736 + $0x258] sm:$0xf]
      %v7922 = vld [vmem:[%s736 + $0x25c] sm:$0xf]
      %v7923 = vld [vmem:[%s736 + $0x260] sm:$0xf]
      %v7924 = vld [vmem:[%s736 + $0x264] sm:$0xf]
      %v7925 = vld [vmem:[%s736 + $0x268] sm:$0xf]
      %v7926 = vld [vmem:[%s736 + $0x26c] sm:$0xf]
      %v7927 = vld [vmem:[%s736 + $0x270] sm:$0xf]
      %v7928 = vld [vmem:[%s736 + $0x274] sm:$0xf]
      %v7929 = vld [vmem:[%s736 + $0x278] sm:$0xf]
      %v7930 = vld [vmem:[%s736 + $0x27c] sm:$0xf]
      %v7931 = vld [vmem:[%s736 + $0x280] sm:$0xf]
      %v7932 = vld [vmem:[%s736 + $0x284] sm:$0xf]
      %v7933 = vld [vmem:[%s736 + $0x288] sm:$0xf]
      %v7934 = vld [vmem:[%s736 + $0x28c] sm:$0xf]
      %v7935 = vld [vmem:[%s736 + $0x290] sm:$0xf]
      %v7936 = vld [vmem:[%s736 + $0x294] sm:$0xf]
      %v7937 = vld [vmem:[%s736 + $0x298] sm:$0xf]
      %v7938 = vld [vmem:[%s736 + $0x29c] sm:$0xf]
      %v7939 = vld [vmem:[%s736 + $0x2a0] sm:$0xf]
      %v7940 = vld [vmem:[%s736 + $0x2a4] sm:$0xf]
      %v7941 = vld [vmem:[%s736 + $0x2a8] sm:$0xf]
      %v7942 = vld [vmem:[%s736 + $0x2ac] sm:$0xf]
      %v7943 = vld [vmem:[%s736 + $0x2b0] sm:$0xf]
      %v7944 = vld [vmem:[%s736 + $0x2b4] sm:$0xf]
      %v7945 = vld [vmem:[%s736 + $0x2b8] sm:$0xf]
      %v7946 = vld [vmem:[%s736 + $0x2bc] sm:$0xf]
      %v7947 = vld [vmem:[%s736 + $0x2c0] sm:$0xf]
      %v7948 = vld [vmem:[%s736 + $0x2c4] sm:$0xf]
      %v7949 = vld [vmem:[%s736 + $0x2c8] sm:$0xf]
      %v7950 = vld [vmem:[%s736 + $0x2cc] sm:$0xf]
      %v7951 = vld [vmem:[%s736 + $0x2d0] sm:$0xf]
      %v7952 = vld [vmem:[%s736 + $0x2d4] sm:$0xf]
      %v7953 = vld [vmem:[%s736 + $0x2d8] sm:$0xf]
      %v7954 = vld [vmem:[%s736 + $0x2dc] sm:$0xf]
      %v7955 = vld [vmem:[%s736 + $0x2e0] sm:$0xf]
      %v7956 = vld [vmem:[%s736 + $0x2e4] sm:$0xf]
      %v7957 = vld [vmem:[%s736 + $0x2e8] sm:$0xf]
      %v7958 = vld [vmem:[%s736 + $0x2ec] sm:$0xf]
      %v7959 = vld [vmem:[%s736 + $0x2f0] sm:$0xf]
      %v7960 = vld [vmem:[%s736 + $0x2f4] sm:$0xf]
      %v7961 = vld [vmem:[%s736 + $0x2f8] sm:$0xf]
      %v7962 = vld [vmem:[%s736 + $0x2fc] sm:$0xf]
      %v7963 = vld [vmem:[%s736 + $0x300] sm:$0xf]
      %v7964 = vld [vmem:[%s736 + $0x304] sm:$0xf]
      %v7965 = vld [vmem:[%s736 + $0x308] sm:$0xf]
      %v7966 = vld [vmem:[%s736 + $0x30c] sm:$0xf]
      %v7967 = vld [vmem:[%s736 + $0x310] sm:$0xf]
      %v7968 = vld [vmem:[%s736 + $0x314] sm:$0xf]
      %v7969 = vld [vmem:[%s736 + $0x318] sm:$0xf]
      %v7970 = vld [vmem:[%s736 + $0x31c] sm:$0xf]
      %v7971 = vld [vmem:[%s736 + $0x320] sm:$0xf]
      %v7972 = vld [vmem:[%s736 + $0x324] sm:$0xf]
      %v7973 = vld [vmem:[%s736 + $0x328] sm:$0xf]
      %v7974 = vld [vmem:[%s736 + $0x32c] sm:$0xf]
      %v7975 = vld [vmem:[%s736 + $0x330] sm:$0xf]
      %v7976 = vld [vmem:[%s736 + $0x334] sm:$0xf]
      %v7977 = vld [vmem:[%s736 + $0x338] sm:$0xf]
      %v7978 = vld [vmem:[%s736 + $0x33c] sm:$0xf]
      %v7979 = vld [vmem:[%s736 + $0x340] sm:$0xf]
      %v7980 = vld [vmem:[%s736 + $0x344] sm:$0xf]
      %v7981 = vld [vmem:[%s736 + $0x348] sm:$0xf]
      %v7982 = vld [vmem:[%s736 + $0x34c] sm:$0xf]
      %v7983 = vld [vmem:[%s736 + $0x350] sm:$0xf]
      %v7984 = vld [vmem:[%s736 + $0x354] sm:$0xf]
      %v7985 = vld [vmem:[%s736 + $0x358] sm:$0xf]
      %v7986 = vld [vmem:[%s736 + $0x35c] sm:$0xf]
      %v7987 = vld [vmem:[%s736 + $0x360] sm:$0xf]
      %v7988 = vld [vmem:[%s736 + $0x364] sm:$0xf]
      %v7989 = vld [vmem:[%s736 + $0x368] sm:$0xf]
      %v7990 = vld [vmem:[%s736 + $0x36c] sm:$0xf]
      %v7991 = vld [vmem:[%s736 + $0x370] sm:$0xf]
      %v7992 = vld [vmem:[%s736 + $0x374] sm:$0xf]
      %v7993 = vld [vmem:[%s736 + $0x378] sm:$0xf]
      %v7994 = vld [vmem:[%s736 + $0x37c] sm:$0xf]
      %v7995 = vld [vmem:[%s736 + $0x380] sm:$0xf]
      %v7996 = vld [vmem:[%s736 + $0x384] sm:$0xf]
      %v7997 = vld [vmem:[%s736 + $0x388] sm:$0xf]
      %v7998 = vld [vmem:[%s736 + $0x38c] sm:$0xf]
      %v7999 = vld [vmem:[%s736 + $0x390] sm:$0xf]
      %v8000 = vld [vmem:[%s736 + $0x394] sm:$0xf]
      %v8001 = vld [vmem:[%s736 + $0x398] sm:$0xf]
      %v8002 = vld [vmem:[%s736 + $0x39c] sm:$0xf]
      %v8003 = vld [vmem:[%s736 + $0x3a0] sm:$0xf]
      %v8004 = vld [vmem:[%s736 + $0x3a4] sm:$0xf]
      %v8005 = vld [vmem:[%s736 + $0x3a8] sm:$0xf]
      %v8006 = vld [vmem:[%s736 + $0x3ac] sm:$0xf]
      %v8007 = vld [vmem:[%s736 + $0x3b0] sm:$0xf]
      %v8008 = vld [vmem:[%s736 + $0x3b4] sm:$0xf]
      %v8009 = vld [vmem:[%s736 + $0x3b8] sm:$0xf]
      %v8010 = vld [vmem:[%s736 + $0x3bc] sm:$0xf]
      %v8011 = vld [vmem:[%s736 + $0x3c0] sm:$0xf]
      %v8012 = vld [vmem:[%s736 + $0x3c4] sm:$0xf]
      %v8013 = vld [vmem:[%s736 + $0x3c8] sm:$0xf]
      %v8014 = vld [vmem:[%s736 + $0x3cc] sm:$0xf]
      %v8015 = vld [vmem:[%s736 + $0x3d0] sm:$0xf]
      %v8016 = vld [vmem:[%s736 + $0x3d4] sm:$0xf]
      %v8017 = vld [vmem:[%s736 + $0x3d8] sm:$0xf]
      %v8018 = vld [vmem:[%s736 + $0x3dc] sm:$0xf]
      %v8019 = vld [vmem:[%s736 + $0x3e0] sm:$0xf]
      %v8020 = vld [vmem:[%s736 + $0x3e4] sm:$0xf]
      %v8021 = vld [vmem:[%s736 + $0x3e8] sm:$0xf]
      %v8022 = vld [vmem:[%s736 + $0x3ec] sm:$0xf]
      %v8023 = vld [vmem:[%s736 + $0x3f0] sm:$0xf]
      %v8024 = vld [vmem:[%s736 + $0x3f4] sm:$0xf]
      %v8025 = vld [vmem:[%s736 + $0x3f8] sm:$0xf]
      %v8026 = vld [vmem:[%s736 + $0x3fc] sm:$0xf]
      %v8027 = vpack.c.bf16 %v7891, %v7883
      %v8028 = vpack.c.bf16 %v7892, %v7884
      %v8029 = vpack.c.bf16 %v7893, %v7885
      %v8030 = vpack.c.bf16 %v7894, %v7886
      %v8031 = vpack.c.bf16 %v7895, %v7887
      %v8032 = vpack.c.bf16 %v7896, %v7888
      %v8033 = vpack.c.bf16 %v7897, %v7889
      %v8034 = vpack.c.bf16 %v7898, %v7890
      %v8163 = vunpack.c.l.b16 %v7899
      %v8164 = vunpack.c.l.b16 %v7900
      %v8165 = vunpack.c.l.b16 %v7901
      %v8166 = vunpack.c.l.b16 %v7902
      %v8167 = vunpack.c.l.b16 %v7903
      %v8168 = vunpack.c.l.b16 %v7904
      %v8169 = vunpack.c.l.b16 %v7905
      %v8170 = vunpack.c.l.b16 %v7906
      %v8171 = vunpack.c.l.b16 %v7907
      %v8172 = vunpack.c.l.b16 %v7908
      %v8173 = vunpack.c.l.b16 %v7909
      %v8174 = vunpack.c.l.b16 %v7910
      %v8175 = vunpack.c.l.b16 %v7911
      %v8176 = vunpack.c.l.b16 %v7912
      %v8177 = vunpack.c.l.b16 %v7913
      %v8178 = vunpack.c.l.b16 %v7914
      %v8179 = vunpack.c.l.b16 %v7915
      %v8180 = vunpack.c.l.b16 %v7916
      %v8181 = vunpack.c.l.b16 %v7917
      %v8182 = vunpack.c.l.b16 %v7918
      %v8183 = vunpack.c.l.b16 %v7919
      %v8184 = vunpack.c.l.b16 %v7920
      %v8185 = vunpack.c.l.b16 %v7921
      %v8186 = vunpack.c.l.b16 %v7922
      %v8187 = vunpack.c.l.b16 %v7923
      %v8188 = vunpack.c.l.b16 %v7924
      %v8189 = vunpack.c.l.b16 %v7925
      %v8190 = vunpack.c.l.b16 %v7926
      %v8191 = vunpack.c.l.b16 %v7927
      %v8192 = vunpack.c.l.b16 %v7928
      %v8193 = vunpack.c.l.b16 %v7929
      %v8194 = vunpack.c.l.b16 %v7930
      %v8195 = vunpack.c.l.b16 %v7931
      %v8196 = vunpack.c.l.b16 %v7932
      %v8197 = vunpack.c.l.b16 %v7933
      %v8198 = vunpack.c.l.b16 %v7934
      %v8199 = vunpack.c.l.b16 %v7935
      %v8200 = vunpack.c.l.b16 %v7936
      %v8201 = vunpack.c.l.b16 %v7937
      %v8202 = vunpack.c.l.b16 %v7938
      %v8203 = vunpack.c.l.b16 %v7939
      %v8204 = vunpack.c.l.b16 %v7940
      %v8205 = vunpack.c.l.b16 %v7941
      %v8206 = vunpack.c.l.b16 %v7942
      %v8207 = vunpack.c.l.b16 %v7943
      %v8208 = vunpack.c.l.b16 %v7944
      %v8209 = vunpack.c.l.b16 %v7945
      %v8210 = vunpack.c.l.b16 %v7946
      %v8211 = vunpack.c.l.b16 %v7947
      %v8212 = vunpack.c.l.b16 %v7948
      %v8213 = vunpack.c.l.b16 %v7949
      %v8214 = vunpack.c.l.b16 %v7950
      %v8215 = vunpack.c.l.b16 %v7951
      %v8216 = vunpack.c.l.b16 %v7952
      %v8217 = vunpack.c.l.b16 %v7953
      %v8218 = vunpack.c.l.b16 %v7954
      %v8219 = vunpack.c.l.b16 %v7955
      %v8220 = vunpack.c.l.b16 %v7956
      %v8221 = vunpack.c.l.b16 %v7957
      %v8222 = vunpack.c.l.b16 %v7958
      %v8223 = vunpack.c.l.b16 %v7959
      %v8224 = vunpack.c.l.b16 %v7960
      %v8225 = vunpack.c.l.b16 %v7961
      %v8226 = vunpack.c.l.b16 %v7962
      %v8227 = vunpack.c.l.b16 %v7963
      %v8228 = vunpack.c.l.b16 %v7964
      %v8229 = vunpack.c.l.b16 %v7965
      %v8230 = vunpack.c.l.b16 %v7966
      %v8231 = vunpack.c.l.b16 %v7967
      %v8232 = vunpack.c.l.b16 %v7968
      %v8233 = vunpack.c.l.b16 %v7969
      %v8234 = vunpack.c.l.b16 %v7970
      %v8235 = vunpack.c.l.b16 %v7971
      %v8236 = vunpack.c.l.b16 %v7972
      %v8237 = vunpack.c.l.b16 %v7973
      %v8238 = vunpack.c.l.b16 %v7974
      %v8239 = vunpack.c.l.b16 %v7975
      %v8240 = vunpack.c.l.b16 %v7976
      %v8241 = vunpack.c.l.b16 %v7977
      %v8242 = vunpack.c.l.b16 %v7978
      %v8243 = vunpack.c.l.b16 %v7979
      %v8244 = vunpack.c.l.b16 %v7980
      %v8245 = vunpack.c.l.b16 %v7981
      %v8246 = vunpack.c.l.b16 %v7982
      %v8247 = vunpack.c.l.b16 %v7983
      %v8248 = vunpack.c.l.b16 %v7984
      %v8249 = vunpack.c.l.b16 %v7985
      %v8250 = vunpack.c.l.b16 %v7986
      %v8251 = vunpack.c.l.b16 %v7987
      %v8252 = vunpack.c.l.b16 %v7988
      %v8253 = vunpack.c.l.b16 %v7989
      %v8254 = vunpack.c.l.b16 %v7990
      %v8255 = vunpack.c.l.b16 %v7991
      %v8256 = vunpack.c.l.b16 %v7992
      %v8257 = vunpack.c.l.b16 %v7993
      %v8258 = vunpack.c.l.b16 %v7994
      %v8259 = vunpack.c.l.b16 %v7995
      %v8260 = vunpack.c.l.b16 %v7996
      %v8261 = vunpack.c.l.b16 %v7997
      %v8262 = vunpack.c.l.b16 %v7998
      %v8263 = vunpack.c.l.b16 %v7999
      %v8264 = vunpack.c.l.b16 %v8000
      %v8265 = vunpack.c.l.b16 %v8001
      %v8266 = vunpack.c.l.b16 %v8002
      %v8267 = vunpack.c.l.b16 %v8003
      %v8268 = vunpack.c.l.b16 %v8004
      %v8269 = vunpack.c.l.b16 %v8005
      %v8270 = vunpack.c.l.b16 %v8006
      %v8271 = vunpack.c.l.b16 %v8007
      %v8272 = vunpack.c.l.b16 %v8008
      %v8273 = vunpack.c.l.b16 %v8009
      %v8274 = vunpack.c.l.b16 %v8010
      %v8275 = vunpack.c.l.b16 %v8011
      %v8276 = vunpack.c.l.b16 %v8012
      %v8277 = vunpack.c.l.b16 %v8013
      %v8278 = vunpack.c.l.b16 %v8014
      %v8279 = vunpack.c.l.b16 %v8015
      %v8280 = vunpack.c.l.b16 %v8016
      %v8281 = vunpack.c.l.b16 %v8017
      %v8282 = vunpack.c.l.b16 %v8018
      %v8283 = vunpack.c.l.b16 %v8019
      %v8284 = vunpack.c.l.b16 %v8020
      %v8285 = vunpack.c.l.b16 %v8021
      %v8286 = vunpack.c.l.b16 %v8022
      %v8287 = vunpack.c.l.b16 %v8023
      %v8288 = vunpack.c.l.b16 %v8024
      %v8289 = vunpack.c.l.b16 %v8025
      %v8290 = vunpack.c.l.b16 %v8026
      %v8291 = vpack.c.b16 %v8164, %v8163
      %v8292 = vpack.c.b16 %v8166, %v8165
      %v8293 = vpack.c.b16 %v8168, %v8167
      %v8294 = vpack.c.b16 %v8170, %v8169
      %v8295 = vpack.c.b16 %v8172, %v8171
      %v8296 = vpack.c.b16 %v8174, %v8173
      %v8297 = vpack.c.b16 %v8176, %v8175
      %v8298 = vpack.c.b16 %v8178, %v8177
      %v8299 = vpack.c.b16 %v8180, %v8179
      %v8300 = vpack.c.b16 %v8182, %v8181
      %v8301 = vpack.c.b16 %v8184, %v8183
      %v8302 = vpack.c.b16 %v8186, %v8185
      %v8303 = vpack.c.b16 %v8188, %v8187
      %v8304 = vpack.c.b16 %v8190, %v8189
      %v8305 = vpack.c.b16 %v8192, %v8191
      %v8306 = vpack.c.b16 %v8194, %v8193
      %v8307 = vpack.c.b16 %v8196, %v8195
      %v8308 = vpack.c.b16 %v8198, %v8197
      %v8309 = vpack.c.b16 %v8200, %v8199
      %v8310 = vpack.c.b16 %v8202, %v8201
      %v8311 = vpack.c.b16 %v8204, %v8203
      %v8312 = vpack.c.b16 %v8206, %v8205
      %v8313 = vpack.c.b16 %v8208, %v8207
      %v8314 = vpack.c.b16 %v8210, %v8209
      %v8315 = vpack.c.b16 %v8212, %v8211
      %v8316 = vpack.c.b16 %v8214, %v8213
      %v8317 = vpack.c.b16 %v8216, %v8215
      %v8318 = vpack.c.b16 %v8218, %v8217
      %v8319 = vpack.c.b16 %v8220, %v8219
      %v8320 = vpack.c.b16 %v8222, %v8221
      %v8321 = vpack.c.b16 %v8224, %v8223
      %v8322 = vpack.c.b16 %v8226, %v8225
      %v8323 = vpack.c.b16 %v8228, %v8227
      %v8324 = vpack.c.b16 %v8230, %v8229
      %v8325 = vpack.c.b16 %v8232, %v8231
      %v8326 = vpack.c.b16 %v8234, %v8233
      %v8327 = vpack.c.b16 %v8236, %v8235
      %v8328 = vpack.c.b16 %v8238, %v8237
      %v8329 = vpack.c.b16 %v8240, %v8239
      %v8330 = vpack.c.b16 %v8242, %v8241
      %v8331 = vpack.c.b16 %v8244, %v8243
      %v8332 = vpack.c.b16 %v8246, %v8245
      %v8333 = vpack.c.b16 %v8248, %v8247
      %v8334 = vpack.c.b16 %v8250, %v8249
      %v8335 = vpack.c.b16 %v8252, %v8251
      %v8336 = vpack.c.b16 %v8254, %v8253
      %v8337 = vpack.c.b16 %v8256, %v8255
      %v8338 = vpack.c.b16 %v8258, %v8257
      %v8339 = vpack.c.b16 %v8260, %v8259
      %v8340 = vpack.c.b16 %v8262, %v8261
      %v8341 = vpack.c.b16 %v8264, %v8263
      %v8342 = vpack.c.b16 %v8266, %v8265
      %v8343 = vpack.c.b16 %v8268, %v8267
      %v8344 = vpack.c.b16 %v8270, %v8269
      %v8345 = vpack.c.b16 %v8272, %v8271
      %v8346 = vpack.c.b16 %v8274, %v8273
      %v8347 = vpack.c.b16 %v8276, %v8275
      %v8348 = vpack.c.b16 %v8278, %v8277
      %v8349 = vpack.c.b16 %v8280, %v8279
      %v8350 = vpack.c.b16 %v8282, %v8281
      %v8351 = vpack.c.b16 %v8284, %v8283
      %v8352 = vpack.c.b16 %v8286, %v8285
      %v8353 = vpack.c.b16 %v8288, %v8287
      %v8354 = vpack.c.b16 %v8290, %v8289
      %8419 = vmatprep.subr.bf16.mxu0 0
      %8420 = vmatpush1.bf16.msra.mxu0 %v8298
      %8421 = vmatprep.subr.bf16.mxu0 0
      %8422 = vmatpush1.bf16.msra.mxu0 %v8297
      %8423 = vmatprep.subr.bf16.mxu0 0
      %8424 = vmatpush1.bf16.msra.mxu0 %v8296
      %8425 = vmatprep.subr.bf16.mxu0 0
      %8426 = vmatpush1.bf16.msra.mxu0 %v8295
      %8427 = vmatprep.subr.bf16.mxu0 0
      %8428 = vmatpush1.bf16.msra.mxu0 %v8294
      %8429 = vmatprep.subr.bf16.mxu0 0
      %8430 = vmatpush1.bf16.msra.mxu0 %v8293
      %8431 = vmatprep.subr.bf16.mxu0 0
      %8432 = vmatpush1.bf16.msra.mxu0 %v8292
      %8433 = vmatprep.subr.bf16.mxu0 0
      %8434 = vmatpush1.bf16.msra.mxu0 %v8291
      %8435 = vmatprep.subr.bf16.mxu0 0
      %8436 = vmatpush2.bf16.msra.mxu0 %v8306
      %8437 = vmatprep.subr.bf16.mxu0 0
      %8438 = vmatpush2.bf16.msra.mxu0 %v8305
      %8439 = vmatprep.subr.bf16.mxu0 0
      %8440 = vmatpush2.bf16.msra.mxu0 %v8304
      %8441 = vmatprep.subr.bf16.mxu0 0
      %8442 = vmatpush2.bf16.msra.mxu0 %v8303
      %8443 = vmatprep.subr.bf16.mxu0 0
      %8444 = vmatpush2.bf16.msra.mxu0 %v8302
      %8445 = vmatprep.subr.bf16.mxu0 0
      %8446 = vmatpush2.bf16.msra.mxu0 %v8301
      %8447 = vmatprep.subr.bf16.mxu0 0
      %8448 = vmatpush2.bf16.msra.mxu0 %v8300
      %8449 = vmatprep.subr.bf16.mxu0 0
      %8450 = vmatpush2.bf16.msra.mxu0 %v8299
      %8451 = vmatprep.mubr.bf16.mxu0 %v8028
      %8452 = vmatmul.mubr.bf16.gmra.mxu0 %v8027
      %v8453 = vpop.f32.mrf.mxu0
      %v8454 = vadd.f32 0.0, %v8453
      %v8455 = vpop.f32.mrf.mxu0
      %v8456 = vpop.f32.mrf.mxu0
      %v8457 = vadd.f32 0.0, %v8456
      %v8458 = vpop.f32.mrf.mxu0
      %8459 = vdwg.mxu0
      %8460 = vmatprep.subr.bf16.mxu0 0
      %8461 = vmatpush1.bf16.msra.mxu0 %v8314
      %8462 = vmatprep.subr.bf16.mxu0 0
      %8463 = vmatpush1.bf16.msra.mxu0 %v8313
      %8464 = vmatprep.subr.bf16.mxu0 0
      %8465 = vmatpush1.bf16.msra.mxu0 %v8312
      %8466 = vmatprep.subr.bf16.mxu0 0
      %8467 = vmatpush1.bf16.msra.mxu0 %v8311
      %8468 = vmatprep.subr.bf16.mxu0 0
      %8469 = vmatpush1.bf16.msra.mxu0 %v8310
      %8470 = vmatprep.subr.bf16.mxu0 0
      %8471 = vmatpush1.bf16.msra.mxu0 %v8309
      %8472 = vmatprep.subr.bf16.mxu0 0
      %8473 = vmatpush1.bf16.msra.mxu0 %v8308
      %8474 = vmatprep.subr.bf16.mxu0 0
      %8475 = vmatpush1.bf16.msra.mxu0 %v8307
      %8476 = vmatprep.subr.bf16.mxu0 0
      %8477 = vmatpush2.bf16.msra.mxu0 %v8322
      %8478 = vmatprep.subr.bf16.mxu0 0
      %8479 = vmatpush2.bf16.msra.mxu0 %v8321
      %8480 = vmatprep.subr.bf16.mxu0 0
      %8481 = vmatpush2.bf16.msra.mxu0 %v8320
      %8482 = vmatprep.subr.bf16.mxu0 0
      %8483 = vmatpush2.bf16.msra.mxu0 %v8319
      %8484 = vmatprep.subr.bf16.mxu0 0
      %8485 = vmatpush2.bf16.msra.mxu0 %v8318
      %8486 = vmatprep.subr.bf16.mxu0 0
      %8487 = vmatpush2.bf16.msra.mxu0 %v8317
      %8488 = vmatprep.subr.bf16.mxu0 0
      %8489 = vmatpush2.bf16.msra.mxu0 %v8316
      %8490 = vmatprep.subr.bf16.mxu0 0
      %8491 = vmatpush2.bf16.msra.mxu0 %v8315
      %8492 = vmatprep.mubr.bf16.mxu0 %v8030
      %8493 = vmatmul.mubr.bf16.gmra.mxu0 %v8029
      %v8494 = vpop.f32.mrf.mxu0
      %v8495 = vadd.f32 %v8454, %v8494
      %v8496 = vpop.f32.mrf.mxu0
      %v8497 = vpop.f32.mrf.mxu0
      %v8498 = vadd.f32 %v8457, %v8497
      %v8499 = vpop.f32.mrf.mxu0
      %8500 = vdwg.mxu0
      %8501 = vmatprep.subr.bf16.mxu0 0
      %8502 = vmatpush1.bf16.msra.mxu0 %v8330
      %8503 = vmatprep.subr.bf16.mxu0 0
      %8504 = vmatpush1.bf16.msra.mxu0 %v8329
      %8505 = vmatprep.subr.bf16.mxu0 0
      %8506 = vmatpush1.bf16.msra.mxu0 %v8328
      %8507 = vmatprep.subr.bf16.mxu0 0
      %8508 = vmatpush1.bf16.msra.mxu0 %v8327
      %8509 = vmatprep.subr.bf16.mxu0 0
      %8510 = vmatpush1.bf16.msra.mxu0 %v8326
      %8511 = vmatprep.subr.bf16.mxu0 0
      %8512 = vmatpush1.bf16.msra.mxu0 %v8325
      %8513 = vmatprep.subr.bf16.mxu0 0
      %8514 = vmatpush1.bf16.msra.mxu0 %v8324
      %8515 = vmatprep.subr.bf16.mxu0 0
      %8516 = vmatpush1.bf16.msra.mxu0 %v8323
      %8517 = vmatprep.subr.bf16.mxu0 0
      %8518 = vmatpush2.bf16.msra.mxu0 %v8338
      %8519 = vmatprep.subr.bf16.mxu0 0
      %8520 = vmatpush2.bf16.msra.mxu0 %v8337
      %8521 = vmatprep.subr.bf16.mxu0 0
      %8522 = vmatpush2.bf16.msra.mxu0 %v8336
      %8523 = vmatprep.subr.bf16.mxu0 0
      %8524 = vmatpush2.bf16.msra.mxu0 %v8335
      %8525 = vmatprep.subr.bf16.mxu0 0
      %8526 = vmatpush2.bf16.msra.mxu0 %v8334
      %8527 = vmatprep.subr.bf16.mxu0 0
      %8528 = vmatpush2.bf16.msra.mxu0 %v8333
      %8529 = vmatprep.subr.bf16.mxu0 0
      %8530 = vmatpush2.bf16.msra.mxu0 %v8332
      %8531 = vmatprep.subr.bf16.mxu0 0
      %8532 = vmatpush2.bf16.msra.mxu0 %v8331
      %8533 = vmatprep.mubr.bf16.mxu0 %v8032
      %8534 = vmatmul.mubr.bf16.gmra.mxu0 %v8031
      %v8535 = vpop.f32.mrf.mxu0
      %v8536 = vadd.f32 %v8495, %v8535
      %v8537 = vpop.f32.mrf.mxu0
      %v8538 = vpop.f32.mrf.mxu0
      %v8539 = vadd.f32 %v8498, %v8538
      %v8540 = vpop.f32.mrf.mxu0
      %8541 = vdwg.mxu0
      %8542 = vmatprep.subr.bf16.mxu0 0
      %8543 = vmatpush1.bf16.msra.mxu0 %v8346
      %8544 = vmatprep.subr.bf16.mxu0 0
      %8545 = vmatpush1.bf16.msra.mxu0 %v8345
      %8546 = vmatprep.subr.bf16.mxu0 0
      %8547 = vmatpush1.bf16.msra.mxu0 %v8344
      %8548 = vmatprep.subr.bf16.mxu0 0
      %8549 = vmatpush1.bf16.msra.mxu0 %v8343
      %8550 = vmatprep.subr.bf16.mxu0 0
      %8551 = vmatpush1.bf16.msra.mxu0 %v8342
      %8552 = vmatprep.subr.bf16.mxu0 0
      %8553 = vmatpush1.bf16.msra.mxu0 %v8341
      %8554 = vmatprep.subr.bf16.mxu0 0
      %8555 = vmatpush1.bf16.msra.mxu0 %v8340
      %8556 = vmatprep.subr.bf16.mxu0 0
      %8557 = vmatpush1.bf16.msra.mxu0 %v8339
      %8558 = vmatprep.subr.bf16.mxu0 0
      %8559 = vmatpush2.bf16.msra.mxu0 %v8354
      %8560 = vmatprep.subr.bf16.mxu0 0
      %8561 = vmatpush2.bf16.msra.mxu0 %v8353
      %8562 = vmatprep.subr.bf16.mxu0 0
      %8563 = vmatpush2.bf16.msra.mxu0 %v8352
      %8564 = vmatprep.subr.bf16.mxu0 0
      %8565 = vmatpush2.bf16.msra.mxu0 %v8351
      %8566 = vmatprep.subr.bf16.mxu0 0
      %8567 = vmatpush2.bf16.msra.mxu0 %v8350
      %8568 = vmatprep.subr.bf16.mxu0 0
      %8569 = vmatpush2.bf16.msra.mxu0 %v8349
      %8570 = vmatprep.subr.bf16.mxu0 0
      %8571 = vmatpush2.bf16.msra.mxu0 %v8348
      %8572 = vmatprep.subr.bf16.mxu0 0
      %8573 = vmatpush2.bf16.msra.mxu0 %v8347
      %8574 = vmatprep.mubr.bf16.mxu0 %v8034
      %8575 = vmatmul.mubr.bf16.gmra.mxu0 %v8033
      %v8576 = vpop.f32.mrf.mxu0
      %v8577 = vadd.f32 %v8536, %v8576
      %v8578 = vpop.f32.mrf.mxu0
      %v8579 = vpop.f32.mrf.mxu0
      %v8580 = vadd.f32 %v8539, %v8579
      %v8581 = vpop.f32.mrf.mxu0
      %8582 = vdwg.mxu0
      %v8711 = vunpack.c.l.b16 %v7341
      %v8712 = vunpack.c.l.b16 %v7342
      %v8713 = vunpack.c.l.b16 %v7343
      %v8714 = vunpack.c.l.b16 %v7344
      %v8715 = vunpack.c.l.b16 %v7345
      %v8716 = vunpack.c.l.b16 %v7346
      %v8717 = vunpack.c.l.b16 %v7347
      %v8718 = vunpack.c.l.b16 %v7348
      %v8719 = vunpack.c.l.b16 %v7349
      %v8720 = vunpack.c.l.b16 %v7350
      %v8721 = vunpack.c.l.b16 %v7351
      %v8722 = vunpack.c.l.b16 %v7352
      %v8723 = vunpack.c.l.b16 %v7353
      %v8724 = vunpack.c.l.b16 %v7354
      %v8725 = vunpack.c.l.b16 %v7355
      %v8726 = vunpack.c.l.b16 %v7356
      %v8727 = vunpack.c.l.b16 %v7357
      %v8728 = vunpack.c.l.b16 %v7358
      %v8729 = vunpack.c.l.b16 %v7359
      %v8730 = vunpack.c.l.b16 %v7360
      %v8731 = vunpack.c.l.b16 %v7361
      %v8732 = vunpack.c.l.b16 %v7362
      %v8733 = vunpack.c.l.b16 %v7363
      %v8734 = vunpack.c.l.b16 %v7364
      %v8735 = vunpack.c.l.b16 %v7365
      %v8736 = vunpack.c.l.b16 %v7366
      %v8737 = vunpack.c.l.b16 %v7367
      %v8738 = vunpack.c.l.b16 %v7368
      %v8739 = vunpack.c.l.b16 %v7369
      %v8740 = vunpack.c.l.b16 %v7370
      %v8741 = vunpack.c.l.b16 %v7371
      %v8742 = vunpack.c.l.b16 %v7372
      %v8743 = vunpack.c.l.b16 %v7373
      %v8744 = vunpack.c.l.b16 %v7374
      %v8745 = vunpack.c.l.b16 %v7375
      %v8746 = vunpack.c.l.b16 %v7376
      %v8747 = vunpack.c.l.b16 %v7377
      %v8748 = vunpack.c.l.b16 %v7378
      %v8749 = vunpack.c.l.b16 %v7379
      %v8750 = vunpack.c.l.b16 %v7380
      %v8751 = vunpack.c.l.b16 %v7381
      %v8752 = vunpack.c.l.b16 %v7382
      %v8753 = vunpack.c.l.b16 %v7383
      %v8754 = vunpack.c.l.b16 %v7384
      %v8755 = vunpack.c.l.b16 %v7385
      %v8756 = vunpack.c.l.b16 %v7386
      %v8757 = vunpack.c.l.b16 %v7387
      %v8758 = vunpack.c.l.b16 %v7388
      %v8759 = vunpack.c.l.b16 %v7389
      %v8760 = vunpack.c.l.b16 %v7390
      %v8761 = vunpack.c.l.b16 %v7391
      %v8762 = vunpack.c.l.b16 %v7392
      %v8763 = vunpack.c.l.b16 %v7393
      %v8764 = vunpack.c.l.b16 %v7394
      %v8765 = vunpack.c.l.b16 %v7395
      %v8766 = vunpack.c.l.b16 %v7396
      %v8767 = vunpack.c.l.b16 %v7397
      %v8768 = vunpack.c.l.b16 %v7398
      %v8769 = vunpack.c.l.b16 %v7399
      %v8770 = vunpack.c.l.b16 %v7400
      %v8771 = vunpack.c.l.b16 %v7401
      %v8772 = vunpack.c.l.b16 %v7402
      %v8773 = vunpack.c.l.b16 %v7403
      %v8774 = vunpack.c.l.b16 %v7404
      %v8775 = vunpack.c.l.b16 %v7405
      %v8776 = vunpack.c.l.b16 %v7406
      %v8777 = vunpack.c.l.b16 %v7407
      %v8778 = vunpack.c.l.b16 %v7408
      %v8779 = vunpack.c.l.b16 %v7409
      %v8780 = vunpack.c.l.b16 %v7410
      %v8781 = vunpack.c.l.b16 %v7411
      %v8782 = vunpack.c.l.b16 %v7412
      %v8783 = vunpack.c.l.b16 %v7413
      %v8784 = vunpack.c.l.b16 %v7414
      %v8785 = vunpack.c.l.b16 %v7415
      %v8786 = vunpack.c.l.b16 %v7416
      %v8787 = vunpack.c.l.b16 %v7417
      %v8788 = vunpack.c.l.b16 %v7418
      %v8789 = vunpack.c.l.b16 %v7419
      %v8790 = vunpack.c.l.b16 %v7420
      %v8791 = vunpack.c.l.b16 %v7421
      %v8792 = vunpack.c.l.b16 %v7422
      %v8793 = vunpack.c.l.b16 %v7423
      %v8794 = vunpack.c.l.b16 %v7424
      %v8795 = vunpack.c.l.b16 %v7425
      %v8796 = vunpack.c.l.b16 %v7426
      %v8797 = vunpack.c.l.b16 %v7427
      %v8798 = vunpack.c.l.b16 %v7428
      %v8799 = vunpack.c.l.b16 %v7429
      %v8800 = vunpack.c.l.b16 %v7430
      %v8801 = vunpack.c.l.b16 %v7431
      %v8802 = vunpack.c.l.b16 %v7432
      %v8803 = vunpack.c.l.b16 %v7433
      %v8804 = vunpack.c.l.b16 %v7434
      %v8805 = vunpack.c.l.b16 %v7435
      %v8806 = vunpack.c.l.b16 %v7436
      %v8807 = vunpack.c.l.b16 %v7437
      %v8808 = vunpack.c.l.b16 %v7438
      %v8809 = vunpack.c.l.b16 %v7439
      %v8810 = vunpack.c.l.b16 %v7440
      %v8811 = vunpack.c.l.b16 %v7441
      %v8812 = vunpack.c.l.b16 %v7442
      %v8813 = vunpack.c.l.b16 %v7443
      %v8814 = vunpack.c.l.b16 %v7444
      %v8815 = vunpack.c.l.b16 %v7445
      %v8816 = vunpack.c.l.b16 %v7446
      %v8817 = vunpack.c.l.b16 %v7447
      %v8818 = vunpack.c.l.b16 %v7448
      %v8819 = vunpack.c.l.b16 %v7449
      %v8820 = vunpack.c.l.b16 %v7450
      %v8821 = vunpack.c.l.b16 %v7451
      %v8822 = vunpack.c.l.b16 %v7452
      %v8823 = vunpack.c.l.b16 %v7453
      %v8824 = vunpack.c.l.b16 %v7454
      %v8825 = vunpack.c.l.b16 %v7455
      %v8826 = vunpack.c.l.b16 %v7456
      %v8827 = vunpack.c.l.b16 %v7457
      %v8828 = vunpack.c.l.b16 %v7458
      %v8829 = vunpack.c.l.b16 %v7459
      %v8830 = vunpack.c.l.b16 %v7460
      %v8831 = vunpack.c.l.b16 %v7461
      %v8832 = vunpack.c.l.b16 %v7462
      %v8833 = vunpack.c.l.b16 %v7463
      %v8834 = vunpack.c.l.b16 %v7464
      %v8835 = vunpack.c.l.b16 %v7465
      %v8836 = vunpack.c.l.b16 %v7466
      %v8837 = vunpack.c.l.b16 %v7467
      %v8838 = vunpack.c.l.b16 %v7468
      %v8839 = vpack.c.b16 %v8712, %v8711
      %v8840 = vpack.c.b16 %v8714, %v8713
      %v8841 = vpack.c.b16 %v8716, %v8715
      %v8842 = vpack.c.b16 %v8718, %v8717
      %v8843 = vpack.c.b16 %v8720, %v8719
      %v8844 = vpack.c.b16 %v8722, %v8721
      %v8845 = vpack.c.b16 %v8724, %v8723
      %v8846 = vpack.c.b16 %v8726, %v8725
      %v8847 = vpack.c.b16 %v8728, %v8727
      %v8848 = vpack.c.b16 %v8730, %v8729
      %v8849 = vpack.c.b16 %v8732, %v8731
      %v8850 = vpack.c.b16 %v8734, %v8733
      %v8851 = vpack.c.b16 %v8736, %v8735
      %v8852 = vpack.c.b16 %v8738, %v8737
      %v8853 = vpack.c.b16 %v8740, %v8739
      %v8854 = vpack.c.b16 %v8742, %v8741
      %v8855 = vpack.c.b16 %v8744, %v8743
      %v8856 = vpack.c.b16 %v8746, %v8745
      %v8857 = vpack.c.b16 %v8748, %v8747
      %v8858 = vpack.c.b16 %v8750, %v8749
      %v8859 = vpack.c.b16 %v8752, %v8751
      %v8860 = vpack.c.b16 %v8754, %v8753
      %v8861 = vpack.c.b16 %v8756, %v8755
      %v8862 = vpack.c.b16 %v8758, %v8757
      %v8863 = vpack.c.b16 %v8760, %v8759
      %v8864 = vpack.c.b16 %v8762, %v8761
      %v8865 = vpack.c.b16 %v8764, %v8763
      %v8866 = vpack.c.b16 %v8766, %v8765
      %v8867 = vpack.c.b16 %v8768, %v8767
      %v8868 = vpack.c.b16 %v8770, %v8769
      %v8869 = vpack.c.b16 %v8772, %v8771
      %v8870 = vpack.c.b16 %v8774, %v8773
      %v8871 = vpack.c.b16 %v8776, %v8775
      %v8872 = vpack.c.b16 %v8778, %v8777
      %v8873 = vpack.c.b16 %v8780, %v8779
      %v8874 = vpack.c.b16 %v8782, %v8781
      %v8875 = vpack.c.b16 %v8784, %v8783
      %v8876 = vpack.c.b16 %v8786, %v8785
      %v8877 = vpack.c.b16 %v8788, %v8787
      %v8878 = vpack.c.b16 %v8790, %v8789
      %v8879 = vpack.c.b16 %v8792, %v8791
      %v8880 = vpack.c.b16 %v8794, %v8793
      %v8881 = vpack.c.b16 %v8796, %v8795
      %v8882 = vpack.c.b16 %v8798, %v8797
      %v8883 = vpack.c.b16 %v8800, %v8799
      %v8884 = vpack.c.b16 %v8802, %v8801
      %v8885 = vpack.c.b16 %v8804, %v8803
      %v8886 = vpack.c.b16 %v8806, %v8805
      %v8887 = vpack.c.b16 %v8808, %v8807
      %v8888 = vpack.c.b16 %v8810, %v8809
      %v8889 = vpack.c.b16 %v8812, %v8811
      %v8890 = vpack.c.b16 %v8814, %v8813
      %v8891 = vpack.c.b16 %v8816, %v8815
      %v8892 = vpack.c.b16 %v8818, %v8817
      %v8893 = vpack.c.b16 %v8820, %v8819
      %v8894 = vpack.c.b16 %v8822, %v8821
      %v8895 = vpack.c.b16 %v8824, %v8823
      %v8896 = vpack.c.b16 %v8826, %v8825
      %v8897 = vpack.c.b16 %v8828, %v8827
      %v8898 = vpack.c.b16 %v8830, %v8829
      %v8899 = vpack.c.b16 %v8832, %v8831
      %v8900 = vpack.c.b16 %v8834, %v8833
      %v8901 = vpack.c.b16 %v8836, %v8835
      %v8902 = vpack.c.b16 %v8838, %v8837
      %8967 = vmatprep.subr.bf16.mxu0 0
      %8968 = vmatpush1.bf16.msra.mxu0 %v8846
      %8969 = vmatprep.subr.bf16.mxu0 0
      %8970 = vmatpush1.bf16.msra.mxu0 %v8845
      %8971 = vmatprep.subr.bf16.mxu0 0
      %8972 = vmatpush1.bf16.msra.mxu0 %v8844
      %8973 = vmatprep.subr.bf16.mxu0 0
      %8974 = vmatpush1.bf16.msra.mxu0 %v8843
      %8975 = vmatprep.subr.bf16.mxu0 0
      %8976 = vmatpush1.bf16.msra.mxu0 %v8842
      %8977 = vmatprep.subr.bf16.mxu0 0
      %8978 = vmatpush1.bf16.msra.mxu0 %v8841
      %8979 = vmatprep.subr.bf16.mxu0 0
      %8980 = vmatpush1.bf16.msra.mxu0 %v8840
      %8981 = vmatprep.subr.bf16.mxu0 0
      %8982 = vmatpush1.bf16.msra.mxu0 %v8839
      %8983 = vmatprep.subr.bf16.mxu0 0
      %8984 = vmatpush2.bf16.msra.mxu0 %v8854
      %8985 = vmatprep.subr.bf16.mxu0 0
      %8986 = vmatpush2.bf16.msra.mxu0 %v8853
      %8987 = vmatprep.subr.bf16.mxu0 0
      %8988 = vmatpush2.bf16.msra.mxu0 %v8852
      %8989 = vmatprep.subr.bf16.mxu0 0
      %8990 = vmatpush2.bf16.msra.mxu0 %v8851
      %8991 = vmatprep.subr.bf16.mxu0 0
      %8992 = vmatpush2.bf16.msra.mxu0 %v8850
      %8993 = vmatprep.subr.bf16.mxu0 0
      %8994 = vmatpush2.bf16.msra.mxu0 %v8849
      %8995 = vmatprep.subr.bf16.mxu0 0
      %8996 = vmatpush2.bf16.msra.mxu0 %v8848
      %8997 = vmatprep.subr.bf16.mxu0 0
      %8998 = vmatpush2.bf16.msra.mxu0 %v8847
      %8999 = vmatprep.mubr.bf16.mxu0 %v7470
      %9000 = vmatmul.mubr.bf16.gmra.mxu0 %v7469
      %v9001 = vpop.f32.mrf.mxu0
      %v9002 = vadd.f32 %v8577, %v9001
      %v9003 = vpop.f32.mrf.mxu0
      %v9004 = vpop.f32.mrf.mxu0
      %v9005 = vadd.f32 %v8580, %v9004
      %v9006 = vpop.f32.mrf.mxu0
      %9007 = vdwg.mxu0
      %9008 = vmatprep.subr.bf16.mxu0 0
      %9009 = vmatpush1.bf16.msra.mxu0 %v8862
      %9010 = vmatprep.subr.bf16.mxu0 0
      %9011 = vmatpush1.bf16.msra.mxu0 %v8861
      %9012 = vmatprep.subr.bf16.mxu0 0
      %9013 = vmatpush1.bf16.msra.mxu0 %v8860
      %9014 = vmatprep.subr.bf16.mxu0 0
      %9015 = vmatpush1.bf16.msra.mxu0 %v8859
      %9016 = vmatprep.subr.bf16.mxu0 0
      %9017 = vmatpush1.bf16.msra.mxu0 %v8858
      %9018 = vmatprep.subr.bf16.mxu0 0
      %9019 = vmatpush1.bf16.msra.mxu0 %v8857
      %9020 = vmatprep.subr.bf16.mxu0 0
      %9021 = vmatpush1.bf16.msra.mxu0 %v8856
      %9022 = vmatprep.subr.bf16.mxu0 0
      %9023 = vmatpush1.bf16.msra.mxu0 %v8855
      %9024 = vmatprep.subr.bf16.mxu0 0
      %9025 = vmatpush2.bf16.msra.mxu0 %v8870
      %9026 = vmatprep.subr.bf16.mxu0 0
      %9027 = vmatpush2.bf16.msra.mxu0 %v8869
      %9028 = vmatprep.subr.bf16.mxu0 0
      %9029 = vmatpush2.bf16.msra.mxu0 %v8868
      %9030 = vmatprep.subr.bf16.mxu0 0
      %9031 = vmatpush2.bf16.msra.mxu0 %v8867
      %9032 = vmatprep.subr.bf16.mxu0 0
      %9033 = vmatpush2.bf16.msra.mxu0 %v8866
      %9034 = vmatprep.subr.bf16.mxu0 0
      %9035 = vmatpush2.bf16.msra.mxu0 %v8865
      %9036 = vmatprep.subr.bf16.mxu0 0
      %9037 = vmatpush2.bf16.msra.mxu0 %v8864
      %9038 = vmatprep.subr.bf16.mxu0 0
      %9039 = vmatpush2.bf16.msra.mxu0 %v8863
      %9040 = vmatprep.mubr.bf16.mxu0 %v7472
      %9041 = vmatmul.mubr.bf16.gmra.mxu0 %v7471
      %v9042 = vpop.f32.mrf.mxu0
      %v9043 = vadd.f32 %v9002, %v9042
      %v9044 = vpop.f32.mrf.mxu0
      %v9045 = vpop.f32.mrf.mxu0
      %v9046 = vadd.f32 %v9005, %v9045
      %v9047 = vpop.f32.mrf.mxu0
      %9048 = vdwg.mxu0
      %9049 = vmatprep.subr.bf16.mxu0 0
      %9050 = vmatpush1.bf16.msra.mxu0 %v8878
      %9051 = vmatprep.subr.bf16.mxu0 0
      %9052 = vmatpush1.bf16.msra.mxu0 %v8877
      %9053 = vmatprep.subr.bf16.mxu0 0
      %9054 = vmatpush1.bf16.msra.mxu0 %v8876
      %9055 = vmatprep.subr.bf16.mxu0 0
      %9056 = vmatpush1.bf16.msra.mxu0 %v8875
      %9057 = vmatprep.subr.bf16.mxu0 0
      %9058 = vmatpush1.bf16.msra.mxu0 %v8874
      %9059 = vmatprep.subr.bf16.mxu0 0
      %9060 = vmatpush1.bf16.msra.mxu0 %v8873
      %9061 = vmatprep.subr.bf16.mxu0 0
      %9062 = vmatpush1.bf16.msra.mxu0 %v8872
      %9063 = vmatprep.subr.bf16.mxu0 0
      %9064 = vmatpush1.bf16.msra.mxu0 %v8871
      %9065 = vmatprep.subr.bf16.mxu0 0
      %9066 = vmatpush2.bf16.msra.mxu0 %v8886
      %9067 = vmatprep.subr.bf16.mxu0 0
      %9068 = vmatpush2.bf16.msra.mxu0 %v8885
      %9069 = vmatprep.subr.bf16.mxu0 0
      %9070 = vmatpush2.bf16.msra.mxu0 %v8884
      %9071 = vmatprep.subr.bf16.mxu0 0
      %9072 = vmatpush2.bf16.msra.mxu0 %v8883
      %9073 = vmatprep.subr.bf16.mxu0 0
      %9074 = vmatpush2.bf16.msra.mxu0 %v8882
      %9075 = vmatprep.subr.bf16.mxu0 0
      %9076 = vmatpush2.bf16.msra.mxu0 %v8881
      %9077 = vmatprep.subr.bf16.mxu0 0
      %9078 = vmatpush2.bf16.msra.mxu0 %v8880
      %9079 = vmatprep.subr.bf16.mxu0 0
      %9080 = vmatpush2.bf16.msra.mxu0 %v8879
      %9081 = vmatprep.mubr.bf16.mxu0 %v7474
      %9082 = vmatmul.mubr.bf16.gmra.mxu0 %v7473
      %v9083 = vpop.f32.mrf.mxu0
      %v9084 = vadd.f32 %v9043, %v9083
      %v9085 = vpop.f32.mrf.mxu0
      %v9086 = vpop.f32.mrf.mxu0
      %v9087 = vadd.f32 %v9046, %v9086
      %v9088 = vpop.f32.mrf.mxu0
      %9089 = vdwg.mxu0
      %9090 = vmatprep.subr.bf16.mxu0 0
      %9091 = vmatpush1.bf16.msra.mxu0 %v8894
      %9092 = vmatprep.subr.bf16.mxu0 0
      %9093 = vmatpush1.bf16.msra.mxu0 %v8893
      %9094 = vmatprep.subr.bf16.mxu0 0
      %9095 = vmatpush1.bf16.msra.mxu0 %v8892
      %9096 = vmatprep.subr.bf16.mxu0 0
      %9097 = vmatpush1.bf16.msra.mxu0 %v8891
      %9098 = vmatprep.subr.bf16.mxu0 0
      %9099 = vmatpush1.bf16.msra.mxu0 %v8890
      %9100 = vmatprep.subr.bf16.mxu0 0
      %9101 = vmatpush1.bf16.msra.mxu0 %v8889
      %9102 = vmatprep.subr.bf16.mxu0 0
      %9103 = vmatpush1.bf16.msra.mxu0 %v8888
      %9104 = vmatprep.subr.bf16.mxu0 0
      %9105 = vmatpush1.bf16.msra.mxu0 %v8887
      %9106 = vmatprep.subr.bf16.mxu0 0
      %9107 = vmatpush2.bf16.msra.mxu0 %v8902
      %9108 = vmatprep.subr.bf16.mxu0 0
      %9109 = vmatpush2.bf16.msra.mxu0 %v8901
      %9110 = vmatprep.subr.bf16.mxu0 0
      %9111 = vmatpush2.bf16.msra.mxu0 %v8900
      %9112 = vmatprep.subr.bf16.mxu0 0
      %9113 = vmatpush2.bf16.msra.mxu0 %v8899
      %9114 = vmatprep.subr.bf16.mxu0 0
      %9115 = vmatpush2.bf16.msra.mxu0 %v8898
      %9116 = vmatprep.subr.bf16.mxu0 0
      %9117 = vmatpush2.bf16.msra.mxu0 %v8897
      %9118 = vmatprep.subr.bf16.mxu0 0
      %9119 = vmatpush2.bf16.msra.mxu0 %v8896
      %9120 = vmatprep.subr.bf16.mxu0 0
      %9121 = vmatpush2.bf16.msra.mxu0 %v8895
      %9122 = vmatprep.mubr.bf16.mxu0 %v7476
      %9123 = vmatmul.mubr.bf16.gmra.mxu0 %v7475
      %v9124 = vpop.f32.mrf.mxu0
      %v9125 = vadd.f32 %v9084, %v9124
      %v9126 = vpop.f32.mrf.mxu0
      %v9127 = vpop.f32.mrf.mxu0
      %v9128 = vadd.f32 %v9087, %v9127
      %v9129 = vpop.f32.mrf.mxu0
      %9130 = vdwg.mxu0
      %v9131 = vadd.f32 %v6913, %v9125
      %v9132 = vadd.f32 %v6914, %v9128
      %v9133 = vld [vmem:[%s739] sm:$0x1]
      %v9135 = vlaneseq
      %v9136 = vshrl.u32 %v9135, 7
      %v9137 = vsub.s32 0, %v9136
      %v9138 = vrot.slane %v9133, %v9137
      %v9140 = vadd.f32 %v9131, %v9138
      %v9141 = vadd.f32 %v9132, %v9138
      %v9142 = vsel %vm802, %v9140, 0.0
      %9143 = vadd.xlane.f32.xlu0 %v9142
      %v9144 = vpop.xlane.xlu0 %9143
      %v9145 = vsel %vm802, %v9141, 0.0
      %9146 = vadd.xlane.f32.xlu0 %v9145
      %v9147 = vpop.xlane.xlu0 %9146
      %v9148 = vmul.f32 %v9144, %v3812
      %v9149 = vmul.f32 %v9147, %v3812
      %v9150 = vsub.f32 %v9140, %v9148
      %v9151 = vsub.f32 %v9141, %v9149
      %v9152 = vmul.f32 %v9150, %v9150
      %v9153 = vmul.f32 %v9151, %v9151
      %v9154 = vsel %vm802, %v9152, 0.0
      %9155 = vadd.xlane.f32.xlu0 %v9154
      %v9156 = vpop.xlane.xlu0 %9155
      %v9157 = vsel %vm802, %v9153, 0.0
      %9158 = vadd.xlane.f32.xlu0 %v9157
      %v9159 = vpop.xlane.xlu0 %9158
      %v9160 = vmul.f32 %v9156, %v3812
      %v9161 = vmul.f32 %v9159, %v3812
      %v9162 = vadd.f32 %v9160, 1e-05
      %v9163 = vadd.f32 %v9161, 1e-05
      %v9164 = vrsqrt.pop %v9162
      %v9165 = vrsqrt.pop %v9163
      %v9166 = vmul.f32 %v9150, %v9164
      %v9167 = vmul.f32 %v9151, %v9165
      %v9168 = vlaneseq
      %v9169 = vshrl.u32 %v9168, 7
      %v9170 = vsub.s32 4, %v9169
      %v9171 = vrot.slane %v763, %v9170
      %v9172 = vmul.f32 %v9166, %v9171
      %v9173 = vmul.f32 %v9167, %v9171
      %v9174 = vlaneseq
      %v9175 = vshrl.u32 %v9174, 7
      %v9176 = vsub.s32 5, %v9175
      %v9177 = vrot.slane %v763, %v9176
      %v9178 = vadd.f32 %v9172, %v9177
      %v9179 = vadd.f32 %v9173, %v9177
      %9180 = vst.msk [vmem:[#allocation2] sm:$0xff] %vm802, %v9178
      %9181 = vst.msk [vmem:[#allocation2 + $0x8] sm:$0xff] %vm802, %v9179
      %p9182 = scmp.eq.s32.totalorder %s28, 5
      // Predicated region
      $region93: #{protein_function_predictor.1} parent=87 // pred_check
        %p9183 = pneg %p9182
      $region94: #{protein_function_predictor.1} parent=87 // pred_check_branch
        %9185 = sbr.rel (%p9183) target = $region96
      $region95: #{protein_function_predictor.1} parent=87 // pred_region
        %v9186 = vld [vmem:[%s15] sm:$0xff]
        %v9187 = vld [vmem:[%s15 + $0x8] sm:$0xff]
        %v9188 = vld [vmem:[%s15 + $0x10] sm:$0xff]
        %v9189 = vld [vmem:[%s15 + $0x18] sm:$0xff]
        %v9190 = vld [vmem:[%s15 + $0x20] sm:$0xff]
        %v9191 = vld [vmem:[%s15 + $0x28] sm:$0xff]
        %v9192 = vld [vmem:[%s15 + $0x30] sm:$0xff]
        %v9193 = vld [vmem:[%s15 + $0x38] sm:$0xff]
        %v9194 = vld [vmem:[%s16] sm:$0x1]
        %v9196 = vlaneseq
        %v9197 = vshrl.u32 %v9196, 7
        %v9198 = vsub.s32 0, %v9197
        %v9199 = vrot.slane %v9194, %v9198
        %v9202 = vsel %vm802, %v9179, 0
        %9204 = vmatprep.subr.mxu0 0.0
        %9205 = vmatpush1.msra.mxu0 0.0
        %9206 = vmatprep.subr.mxu0 0.0
        %9207 = vmatpush1.msra.mxu0 0.0
        %9208 = vmatprep.subr.mxu0 0.0
        %9209 = vmatpush1.msra.mxu0 0.0
        %9210 = vmatprep.subr.mxu0 0.0
        %9211 = vmatpush1.msra.mxu0 0.0
        %9212 = vmatprep.subr.mxu0 0.0
        %9213 = vmatpush1.msra.mxu0 0.0
        %9214 = vmatprep.subr.mxu0 0.0
        %9215 = vmatpush1.msra.mxu0 0.0
        %9216 = vmatprep.subr.mxu0 0.0
        %9217 = vmatpush1.msra.mxu0 0.0
        %9218 = vmatprep.subr.mxu0 0.0
        %9219 = vmatpush1.msra.mxu0 0.0
        %9220 = vmatprep.subr.mxu0 0.0
        %9221 = vmatpush1.msra.mxu0 %v9193
        %9222 = vmatprep.subr.mxu0 0.0
        %9223 = vmatpush1.msra.mxu0 %v9192
        %9224 = vmatprep.subr.mxu0 0.0
        %9225 = vmatpush1.msra.mxu0 %v9191
        %9226 = vmatprep.subr.mxu0 0.0
        %9227 = vmatpush1.msra.mxu0 %v9190
        %9228 = vmatprep.subr.mxu0 0.0
        %9229 = vmatpush1.msra.mxu0 %v9189
        %9230 = vmatprep.subr.mxu0 0.0
        %9231 = vmatpush1.msra.mxu0 %v9188
        %9232 = vmatprep.subr.mxu0 0.0
        %9233 = vmatpush1.msra.mxu0 %v9187
        %9234 = vmatprep.subr.mxu0 0.0
        %9235 = vmatpush1.msra.mxu0 %v9186
        %9236 = vmatprep.subr.mxu0 0.0
        %9237 = vmatpush2.msra.mxu0 0.0
        %9238 = vmatprep.subr.mxu0 0.0
        %9239 = vmatpush2.msra.mxu0 0.0
        %9240 = vmatprep.subr.mxu0 0.0
        %9241 = vmatpush2.msra.mxu0 0.0
        %9242 = vmatprep.subr.mxu0 0.0
        %9243 = vmatpush2.msra.mxu0 0.0
        %9244 = vmatprep.subr.mxu0 0.0
        %9245 = vmatpush2.msra.mxu0 0.0
        %9246 = vmatprep.subr.mxu0 0.0
        %9247 = vmatpush2.msra.mxu0 0.0
        %9248 = vmatprep.subr.mxu0 0.0
        %9249 = vmatpush2.msra.mxu0 0.0
        %9250 = vmatprep.subr.mxu0 0.0
        %9251 = vmatpush2.msra.mxu0 0.0
        %9252 = vmatprep.subr.mxu0 0.0
        %9253 = vmatpush2.msra.mxu0 0.0
        %9254 = vmatprep.subr.mxu0 0.0
        %9255 = vmatpush2.msra.mxu0 0.0
        %9256 = vmatprep.subr.mxu0 0.0
        %9257 = vmatpush2.msra.mxu0 0.0
        %9258 = vmatprep.subr.mxu0 0.0
        %9259 = vmatpush2.msra.mxu0 0.0
        %9260 = vmatprep.subr.mxu0 0.0
        %9261 = vmatpush2.msra.mxu0 0.0
        %9262 = vmatprep.subr.mxu0 0.0
        %9263 = vmatpush2.msra.mxu0 0.0
        %9264 = vmatprep.subr.mxu0 0.0
        %9265 = vmatpush2.msra.mxu0 0.0
        %9266 = vmatprep.subr.mxu0 0.0
        %9267 = vmatpush2.msra.mxu0 0.0
        %9268 = vmatprep.mubr.f32.mxu0 0.0
        %9269 = vmatmul.mubr.f32.gmra.mxu0 %v9202
        %v9270 = vpop.f32.mrf.mxu0
        %v9271 = vadd.f32 %v9199, %v9270
        %v9272 = vpop.f32.mrf.mxu0
        %9273 = vdwg.mxu0
        %9274 = vst [vmem:[%s17] sm:$0xff] %v9271
      $region96: #{protein_function_predictor.1} parent=87 // pred_fallthru
        _
      // Predicated region
      $region97: #{protein_function_predictor.1} parent=87 // pred_check
        %p9275 = pneg %p463
      $region98: #{protein_function_predictor.1} parent=87 // pred_check_branch
        %9277 = sbr.rel (%p9275) target = $region100
      $region99: #{protein_function_predictor.1} parent=87 // pred_region
        _
      $region100: #{protein_function_predictor.1} parent=87 // pred_fallthru
        _
      // Predicated region
      $region101: #{protein_function_predictor.1} parent=87 // pred_check
        %p9278 = pneg %p463
      $region102: #{protein_function_predictor.1} parent=87 // pred_check_branch
        %9280 = sbr.rel (%p9278) target = $region104
      $region103: #{protein_function_predictor.1} parent=87 // pred_region
        _
      $region104: #{protein_function_predictor.1} parent=87 // pred_fallthru
        _
    $region88: #{protein_function_predictor.1} parent=5 // pred_fallthru
      _
    %p9281 = scmp.le.s32.totalorder 2, %s23
    // Predicated region
    $region105: #{protein_function_predictor.1} parent=5 // pred_check
      %p9282 = pneg %p9281
    $region106: #{protein_function_predictor.1} parent=5 // pred_check_branch
      %9284 = sbr.rel (%p9282) target = $region108
    $region107: #{protein_function_predictor.1} parent=5 // pred_region
      %s9285 = ssub.s32 %s23, 2
    $region108: #{protein_function_predictor.1} parent=5 // pred_fallthru
      _
  $region6: #{protein_function_predictor.1} parent=0 // loop_footer
    %s27 = sadd.s32 1, %s23
  $region7: #{protein_function_predictor.1} parent=0 // loop_footer_branch
    %22 = sbr.rel target = $region3
  $region8: #{protein_function_predictor.1} parent=0 // loop_exit
    _

</llo_original>
